<compile_context>
chip_gen: v7x
topology: tpu7x:2x2x1
jax: 0.10.0
libtpu: 0.0.40
codegen_flags: <defaults>
</compile_context>

<pallas_src>
import jax
import jax.numpy as jnp
from jax.experimental import pallas as pl
from jax.experimental.pallas import tpu as pltpu

_LANE = 128


def _round_up(x, m):
    return (x + m - 1) // m * m


def _make_fused_kernel(NB, H, W, Cin_p, Cmid_p, Cout_p):
    M = NB * H * W

    def kernel(x_ref, w1_ref, b1_ref, w2_ref, b2_ref, o_ref,
               xp_ref, mp_ref, acc1_ref, acc2_ref):
        # x_ref  : (NB, H*W, Cin_p)           lane-dense input block
        # w*_ref : (9, C_in_p, C_out_p)       per-tap weights, tap = kh*3+kw
        # b*_ref : (1, C_out_p)               f32 bias (zero in padded lanes)
        # o_ref  : (NB, H*W, Cout_p)          lane-dense output block
        # xp_ref : VMEM (NB, H+2, W+2, Cin_p)  zero-halo padded input
        # mp_ref : VMEM (NB, H+2, W+2, Cmid_p) zero-halo padded middle act (HBM-free)
        # acc*_ref: VMEM (M, C*_p) f32 accumulators

        # ---- zero only the 1-pixel halo strips.  The interior is fully
        #      rewritten below every step; done every step (not program_id==0)
        #      so it is safe under megacore sharding of the parallel axis. ----
        def zero_halo(ref, Cp):
            ref[:, 0:1, :, :] = jnp.zeros((NB, 1, W + 2, Cp), ref.dtype)
            ref[:, H + 1:H + 2, :, :] = jnp.zeros((NB, 1, W + 2, Cp), ref.dtype)
            ref[:, :, 0:1, :] = jnp.zeros((NB, H + 2, 1, Cp), ref.dtype)
            ref[:, :, W + 1:W + 2, :] = jnp.zeros((NB, H + 2, 1, Cp), ref.dtype)

        zero_halo(xp_ref, Cin_p)
        zero_halo(mp_ref, Cmid_p)

        def conv3x3_bias_relu(src_ref, Cs_in, w_ref, b_ref, acc_ref, Cs_out):
            # 3x3 "same" conv as nine accumulating K=Cs_in matmuls; each tap is
            # streamed straight from a ref-slice of the padded scratch, so no
            # concat / cross-tile reshape relayouts and flat vreg pressure.
            acc_ref[...] = jnp.broadcast_to(b_ref[...], (M, Cs_out))
            for t in range(9):
                kh, kw = divmod(t, 3)
                tap = src_ref[:, kh:kh + H, kw:kw + W, :].reshape(M, Cs_in)
                acc_ref[...] += jnp.dot(tap, w_ref[t],
                                        preferred_element_type=jnp.float32)
            return jnp.maximum(acc_ref[...], 0.0)          # fused bias + ReLU

        # ---- stage 1: pad -> conv1 -> ReLU (middle act never touches HBM) --
        xp_ref[:, 1:H + 1, 1:W + 1, :] = (
            x_ref[...].reshape(NB, H, W, Cin_p).astype(xp_ref.dtype))
        mid = conv3x3_bias_relu(xp_ref, Cin_p, w1_ref, b1_ref, acc1_ref, Cmid_p)
        mp_ref[:, 1:H + 1, 1:W + 1, :] = (
            mid.reshape(NB, H, W, Cmid_p).astype(mp_ref.dtype))

        # ---- stage 2: pad -> conv2 -> ReLU -> lane-dense store -------------
        out = conv3x3_bias_relu(mp_ref, Cmid_p, w2_ref, b2_ref, acc2_ref, Cout_p)
        o_ref[...] = out.reshape(NB, H * W, Cout_p).astype(o_ref.dtype)

    return kernel


def conv_activ_forward_nhwc(x_nhwc, params, *, batch_block=1,
                            compute_dtype=jnp.float32):
    """Fused conv3x3+ReLU -> conv3x3+ReLU. x_nhwc: (N, H, W, Cin). NHWC pipeline."""
    w1, b1, w2, b2 = params                      # w1, w2 stored as HWIO (3,3,Ci,Co)
    N, H, W, Cin = x_nhwc.shape
    Cmid, Cout = w1.shape[-1], w2.shape[-1]
    NB = batch_block
    assert N % NB == 0, "batch must be divisible by batch_block"
    assert W % 8 == 0 and H % 8 == 0, "H, W multiples of 8 (layout-free reshapes)"

    Cin_p = _round_up(Cin, _LANE)
    Cmid_p = _round_up(Cmid, _LANE)
    Cout_p = _round_up(Cout, _LANE)
    M = NB * H * W

    # Lane-dense input: zero-pad channels to a multiple of 128 and flatten the
    # spatial dims (free reshape) so HBM<->VMEM rows are fully 128-lane dense.
    x_pad = jnp.pad(x_nhwc, ((0, 0), (0, 0), (0, 0), (0, Cin_p - Cin)))
    x_flat = x_pad.reshape(N, H * W, Cin_p)

    def prep_w(w, Ci, Co, Ci_p, Co_p):
        # HWIO (3,3,Ci,Co) -> (9,Ci,Co); tap index = kh*3+kw matches the kernel.
        wt = w.reshape(9, Ci, Co)
        wt = jnp.pad(wt, ((0, 0), (0, Ci_p - Ci), (0, Co_p - Co)))
        return wt.astype(compute_dtype)

    w1_t = prep_w(w1, Cin, Cmid, Cin_p, Cmid_p)
    w2_t = prep_w(w2, Cmid, Cout, Cmid_p, Cout_p)
    b1_p = jnp.pad(b1, (0, Cmid_p - Cmid)).reshape(1, Cmid_p).astype(jnp.float32)
    b2_p = jnp.pad(b2, (0, Cout_p - Cout)).reshape(1, Cout_p).astype(jnp.float32)

    kernel = _make_fused_kernel(NB, H, W, Cin_p, Cmid_p, Cout_p)

    # Explicit VMEM budget: scratch + double-buffered in/out blocks + weights.
    cbytes = jnp.dtype(compute_dtype).itemsize
    xbytes = jnp.dtype(x_nhwc.dtype).itemsize
    scratch_bytes = (NB * (H + 2) * (W + 2) * (Cin_p + Cmid_p) * cbytes
                     + M * (Cmid_p + Cout_p) * 4)
    io_bytes = 2 * M * (Cin_p + Cout_p) * xbytes
    w_bytes = 2 * 9 * (Cin_p * Cmid_p + Cmid_p * Cout_p) * cbytes \
        + 2 * (Cmid_p + Cout_p) * 4
    vmem_limit = int(1.25 * (scratch_bytes + io_bytes + w_bytes)) + (2 << 20)
    vmem_limit = min(max(vmem_limit, 16 * 2 ** 20), 64 * 2 ** 20)

    out_flat = pl.pallas_call(
        kernel,
        out_shape=jax.ShapeDtypeStruct((N, H * W, Cout_p), x_nhwc.dtype),
        grid=(N // NB,),
        in_specs=[
            pl.BlockSpec((NB, H * W, Cin_p), lambda n: (n, 0, 0)),
            pl.BlockSpec((9, Cin_p, Cmid_p), lambda n: (0, 0, 0)),
            pl.BlockSpec((1, Cmid_p), lambda n: (0, 0)),
            pl.BlockSpec((9, Cmid_p, Cout_p), lambda n: (0, 0, 0)),
            pl.BlockSpec((1, Cout_p), lambda n: (0, 0)),
        ],
        out_specs=pl.BlockSpec((NB, H * W, Cout_p), lambda n: (n, 0, 0)),
        scratch_shapes=[
            pltpu.VMEM((NB, H + 2, W + 2, Cin_p), compute_dtype),   # padded input
            pltpu.VMEM((NB, H + 2, W + 2, Cmid_p), compute_dtype),  # padded mid act
            pltpu.VMEM((M, Cmid_p), jnp.float32),                   # stage-1 acc
            pltpu.VMEM((M, Cout_p), jnp.float32),                   # stage-2 acc
        ],
        compiler_params=pltpu.CompilerParams(
            dimension_semantics=("parallel",),
            vmem_limit_bytes=vmem_limit),
    )(x_flat, w1_t, b1_p, w2_t, b2_p)

    # Drop the padded output channels (free reshape + cheap slice).
    return out_flat.reshape(N, H, W, Cout_p)[..., :Cout]


def conv_activ_forward(x_nchw, params, **kwargs):
    """PyTorch-parity adapter (NCHW in / NCHW out).

    The Pallas pipeline itself is NHWC end-to-end; only this adapter pays the
    two layout transposes. Prefer conv_activ_forward_nhwc in an NHWC model.
    """
    x = jnp.transpose(x_nchw, (0, 2, 3, 1))      # NCHW -> NHWC
    y = conv_activ_forward_nhwc(x, params, **kwargs)
    return jnp.transpose(y, (0, 3, 1, 2))        # NHWC -> NCHW


def init_params(key, in_channels, middle_channels, out_channels, dtype=jnp.float32):
    k1, k2, k3, k4 = jax.random.split(key, 4)
    # PyTorch conv weights are OIHW; store as HWIO for the NHWC kernel.
    w1_oihw = jax.random.normal(k1, (middle_channels, in_channels, 3, 3), dtype) * 0.1
    b1 = jax.random.normal(k2, (middle_channels,), dtype) * 0.1
    w2_oihw = jax.random.normal(k3, (out_channels, middle_channels, 3, 3), dtype) * 0.1
    b2 = jax.random.normal(k4, (out_channels,), dtype) * 0.1
    w1 = jnp.transpose(w1_oihw, (2, 3, 1, 0))    # OIHW -> HWIO
    w2 = jnp.transpose(w2_oihw, (2, 3, 1, 0))
    return (w1, b1, w2, b2)


def _reference(x_nchw, params):
    """Pure-JAX reference (lax conv) for validation."""
    w1, b1, w2, b2 = params

    def conv(x, w, b):
        y = jax.lax.conv_general_dilated(
            x, w, window_strides=(1, 1), padding=((1, 1), (1, 1)),
            dimension_numbers=("NHWC", "HWIO", "NHWC"))
        return jnp.maximum(y + b[None, None, None, :], 0.0)

    x = jnp.transpose(x_nchw, (0, 2, 3, 1))
    x = conv(x, w1, b1)
    x = conv(x, w2, b2)
    return jnp.transpose(x, (0, 3, 1, 2))


if __name__ == "__main__":
    key = jax.random.PRNGKey(0)
    kx, kp = jax.random.split(key)

    in_channels, middle_channels, out_channels = 4, 8, 4
    N, H, W = 2, 16, 16

    x = jax.random.normal(kx, (N, in_channels, H, W), jnp.float32)
    params = init_params(kp, in_channels, middle_channels, out_channels)

    # batch_block=1 -> grid=(2,), keeps both v7x TensorCores busy.
    out = conv_activ_forward(x, params, batch_block=1, compute_dtype=jnp.float32)
    out = jax.block_until_ready(out)

    ref = _reference(x, params)
    assert out.shape == (N, out_channels, H, W), out.shape
    assert jnp.allclose(out, ref, atol=1e-4, rtol=1e-4), "mismatch vs reference"

    print("KERNEL_OK")
</pallas_src>

<mosaic_0001>
module attributes {stable_mosaic.version = 11 : i64} {
  func.func @kernel(%arg0: i32, %arg1: memref<1x256x128xf32, #tpu.memory_space<vmem>>, %arg2: memref<9x128x128xf32, #tpu.memory_space<vmem>>, %arg3: memref<1x128xf32, #tpu.memory_space<vmem>>, %arg4: memref<9x128x128xf32, #tpu.memory_space<vmem>>, %arg5: memref<1x128xf32, #tpu.memory_space<vmem>>, %arg6: memref<1x256x128xf32, #tpu.memory_space<vmem>>, %arg7: memref<1x18x18x128xf32, #tpu.memory_space<vmem>>, %arg8: memref<1x18x18x128xf32, #tpu.memory_space<vmem>>, %arg9: memref<256x128xf32, #tpu.memory_space<vmem>>, %arg10: memref<256x128xf32, #tpu.memory_space<vmem>>) attributes {dimension_semantics = [#tpu.dimension_semantics<parallel>], iteration_bounds = array<i64: 2>, scalar_prefetch = 0 : i64, scratch_operands = 4 : i64, tpu.core_type = #tpu.core_type<tc>, window_params = [{transform_indices = @transform_0, window_bounds = array<i64: 1, 256, 128>}, {pipeline_mode = #tpu.pipeline_mode<synchronous>, transform_indices = @transform_1, window_bounds = array<i64: 9, 128, 128>}, {pipeline_mode = #tpu.pipeline_mode<synchronous>, transform_indices = @transform_2, window_bounds = array<i64: 1, 128>}, {pipeline_mode = #tpu.pipeline_mode<synchronous>, transform_indices = @transform_3, window_bounds = array<i64: 9, 128, 128>}, {pipeline_mode = #tpu.pipeline_mode<synchronous>, transform_indices = @transform_4, window_bounds = array<i64: 1, 128>}, {transform_indices = @transform_5, window_bounds = array<i64: 1, 256, 128>}]} {
    %cst = arith.constant 0.000000e+00 : f32
    %0 = vector.broadcast %cst : f32 to vector<1x1x18x128xf32>
    %c0 = arith.constant 0 : index
    %c0_0 = arith.constant 0 : index
    %c0_1 = arith.constant 0 : index
    %c0_2 = arith.constant 0 : index
    %1 = vector.load %arg7[%c0, %c0_0, %c0_1, %c0_2] : memref<1x18x18x128xf32, #tpu.memory_space<vmem>>, vector<1x1x18x128xf32>
    tpu.vector_store %arg7[%c0, %c0_0, %c0_1, %c0_2], %0 {strides = array<i32>} : memref<1x18x18x128xf32, #tpu.memory_space<vmem>>, vector<1x1x18x128xf32>,
    %cst_3 = arith.constant 0.000000e+00 : f32
    %2 = vector.broadcast %cst_3 : f32 to vector<1x1x18x128xf32>
    %c0_4 = arith.constant 0 : index
    %c17 = arith.constant 17 : index
    %c0_5 = arith.constant 0 : index
    %c0_6 = arith.constant 0 : index
    %3 = vector.load %arg7[%c0_4, %c17, %c0_5, %c0_6] : memref<1x18x18x128xf32, #tpu.memory_space<vmem>>, vector<1x1x18x128xf32>
    tpu.vector_store %arg7[%c0_4, %c17, %c0_5, %c0_6], %2 {strides = array<i32>} : memref<1x18x18x128xf32, #tpu.memory_space<vmem>>, vector<1x1x18x128xf32>,
    %cst_7 = arith.constant 0.000000e+00 : f32
    %4 = vector.broadcast %cst_7 : f32 to vector<1x18x1x128xf32>
    %c0_8 = arith.constant 0 : index
    %c0_9 = arith.constant 0 : index
    %c0_10 = arith.constant 0 : index
    %c0_11 = arith.constant 0 : index
    %5 = vector.load %arg7[%c0_8, %c0_9, %c0_10, %c0_11] : memref<1x18x18x128xf32, #tpu.memory_space<vmem>>, vector<1x18x1x128xf32>
    tpu.vector_store %arg7[%c0_8, %c0_9, %c0_10, %c0_11], %4 {strides = array<i32>} : memref<1x18x18x128xf32, #tpu.memory_space<vmem>>, vector<1x18x1x128xf32>,
    %cst_12 = arith.constant 0.000000e+00 : f32
    %6 = vector.broadcast %cst_12 : f32 to vector<1x18x1x128xf32>
    %c0_13 = arith.constant 0 : index
    %c0_14 = arith.constant 0 : index
    %c17_15 = arith.constant 17 : index
    %c0_16 = arith.constant 0 : index
    %7 = vector.load %arg7[%c0_13, %c0_14, %c17_15, %c0_16] : memref<1x18x18x128xf32, #tpu.memory_space<vmem>>, vector<1x18x1x128xf32>
    tpu.vector_store %arg7[%c0_13, %c0_14, %c17_15, %c0_16], %6 {strides = array<i32>} : memref<1x18x18x128xf32, #tpu.memory_space<vmem>>, vector<1x18x1x128xf32>,
    %cst_17 = arith.constant 0.000000e+00 : f32
    %8 = vector.broadcast %cst_17 : f32 to vector<1x1x18x128xf32>
    %c0_18 = arith.constant 0 : index
    %c0_19 = arith.constant 0 : index
    %c0_20 = arith.constant 0 : index
    %c0_21 = arith.constant 0 : index
    %9 = vector.load %arg8[%c0_18, %c0_19, %c0_20, %c0_21] : memref<1x18x18x128xf32, #tpu.memory_space<vmem>>, vector<1x1x18x128xf32>
    tpu.vector_store %arg8[%c0_18, %c0_19, %c0_20, %c0_21], %8 {strides = array<i32>} : memref<1x18x18x128xf32, #tpu.memory_space<vmem>>, vector<1x1x18x128xf32>,
    %cst_22 = arith.constant 0.000000e+00 : f32
    %10 = vector.broadcast %cst_22 : f32 to vector<1x1x18x128xf32>
    %c0_23 = arith.constant 0 : index
    %c17_24 = arith.constant 17 : index
    %c0_25 = arith.constant 0 : index
    %c0_26 = arith.constant 0 : index
    %11 = vector.load %arg8[%c0_23, %c17_24, %c0_25, %c0_26] : memref<1x18x18x128xf32, #tpu.memory_space<vmem>>, vector<1x1x18x128xf32>
    tpu.vector_store %arg8[%c0_23, %c17_24, %c0_25, %c0_26], %10 {strides = array<i32>} : memref<1x18x18x128xf32, #tpu.memory_space<vmem>>, vector<1x1x18x128xf32>,
    %cst_27 = arith.constant 0.000000e+00 : f32
    %12 = vector.broadcast %cst_27 : f32 to vector<1x18x1x128xf32>
    %c0_28 = arith.constant 0 : index
    %c0_29 = arith.constant 0 : index
    %c0_30 = arith.constant 0 : index
    %c0_31 = arith.constant 0 : index
    %13 = vector.load %arg8[%c0_28, %c0_29, %c0_30, %c0_31] : memref<1x18x18x128xf32, #tpu.memory_space<vmem>>, vector<1x18x1x128xf32>
    tpu.vector_store %arg8[%c0_28, %c0_29, %c0_30, %c0_31], %12 {strides = array<i32>} : memref<1x18x18x128xf32, #tpu.memory_space<vmem>>, vector<1x18x1x128xf32>,
    %cst_32 = arith.constant 0.000000e+00 : f32
    %14 = vector.broadcast %cst_32 : f32 to vector<1x18x1x128xf32>
    %c0_33 = arith.constant 0 : index
    %c0_34 = arith.constant 0 : index
    %c17_35 = arith.constant 17 : index
    %c0_36 = arith.constant 0 : index
    %15 = vector.load %arg8[%c0_33, %c0_34, %c17_35, %c0_36] : memref<1x18x18x128xf32, #tpu.memory_space<vmem>>, vector<1x18x1x128xf32>
    tpu.vector_store %arg8[%c0_33, %c0_34, %c17_35, %c0_36], %14 {strides = array<i32>} : memref<1x18x18x128xf32, #tpu.memory_space<vmem>>, vector<1x18x1x128xf32>,
    %c0_37 = arith.constant 0 : index
    %c0_38 = arith.constant 0 : index
    %c0_39 = arith.constant 0 : index
    %16 = vector.load %arg1[%c0_37, %c0_38, %c0_39] : memref<1x256x128xf32, #tpu.memory_space<vmem>>, vector<1x256x128xf32>
    %17 = vector.shape_cast %16 : vector<1x256x128xf32> to vector<1x16x16x128xf32>
    %c0_40 = arith.constant 0 : index
    %c1 = arith.constant 1 : index
    %c1_41 = arith.constant 1 : index
    %c0_42 = arith.constant 0 : index
    %18 = vector.load %arg7[%c0_40, %c1, %c1_41, %c0_42] : memref<1x18x18x128xf32, #tpu.memory_space<vmem>>, vector<1x16x16x128xf32>
    tpu.vector_store %arg7[%c0_40, %c1, %c1_41, %c0_42], %17 {strides = array<i32>} : memref<1x18x18x128xf32, #tpu.memory_space<vmem>>, vector<1x16x16x128xf32>,
    %c0_43 = arith.constant 0 : index
    %c0_44 = arith.constant 0 : index
    %19 = vector.load %arg3[%c0_43, %c0_44] : memref<1x128xf32, #tpu.memory_space<vmem>>, vector<1x128xf32>
    %20 = vector.shape_cast %19 : vector<1x128xf32> to vector<1x128xf32>
    %21 = vector.broadcast %20 : vector<1x128xf32> to vector<256x128xf32>
    %c0_45 = arith.constant 0 : index
    %c0_46 = arith.constant 0 : index
    %22 = vector.load %arg9[%c0_45, %c0_46] : memref<256x128xf32, #tpu.memory_space<vmem>>, vector<256x128xf32>
    tpu.vector_store %arg9[%c0_45, %c0_46], %21 {strides = array<i32>} : memref<256x128xf32, #tpu.memory_space<vmem>>, vector<256x128xf32>,
    %c0_47 = arith.constant 0 : index
    %c0_48 = arith.constant 0 : index
    %c0_49 = arith.constant 0 : index
    %c0_50 = arith.constant 0 : index
    %23 = vector.load %arg7[%c0_47, %c0_48, %c0_49, %c0_50] : memref<1x18x18x128xf32, #tpu.memory_space<vmem>>, vector<1x16x16x128xf32>
    %24 = vector.shape_cast %23 : vector<1x16x16x128xf32> to vector<256x128xf32>
    %c0_51 = arith.constant 0 : index
    %c0_52 = arith.constant 0 : index
    %25 = vector.load %arg9[%c0_51, %c0_52] : memref<256x128xf32, #tpu.memory_space<vmem>>, vector<256x128xf32>
    %c0_53 = arith.constant 0 : index
    %c0_54 = arith.constant 0 : index
    %c0_55 = arith.constant 0 : index
    %26 = vector.load %arg2[%c0_53, %c0_54, %c0_55] : memref<9x128x128xf32, #tpu.memory_space<vmem>>, vector<1x128x128xf32>
    %27 = vector.shape_cast %26 : vector<1x128x128xf32> to vector<128x128xf32>
    %cst_56 = arith.constant dense<0.000000e+00> : vector<256x128xf32>
    %28 = tpu.matmul %24, %27, %cst_56 {dimension_numbers = #tpu.dot_dimension_numbers<[1], [0], [0], [1], [0, 0, 1, 1], [], []>} : vector<256x128xf32>, vector<128x128xf32>, vector<256x128xf32> -> vector<256x128xf32>
    %29 = arith.addf %25, %28 : vector<256x128xf32>
    %c0_57 = arith.constant 0 : index
    %c0_58 = arith.constant 0 : index
    %30 = vector.load %arg9[%c0_57, %c0_58] : memref<256x128xf32, #tpu.memory_space<vmem>>, vector<256x128xf32>
    tpu.vector_store %arg9[%c0_57, %c0_58], %29 {strides = array<i32>} : memref<256x128xf32, #tpu.memory_space<vmem>>, vector<256x128xf32>,
    %c0_59 = arith.constant 0 : index
    %c0_60 = arith.constant 0 : index
    %c1_61 = arith.constant 1 : index
    %c0_62 = arith.constant 0 : index
    %31 = vector.load %arg7[%c0_59, %c0_60, %c1_61, %c0_62] : memref<1x18x18x128xf32, #tpu.memory_space<vmem>>, vector<1x16x16x128xf32>
    %32 = vector.shape_cast %31 : vector<1x16x16x128xf32> to vector<256x128xf32>
    %c0_63 = arith.constant 0 : index
    %c0_64 = arith.constant 0 : index
    %33 = vector.load %arg9[%c0_63, %c0_64] : memref<256x128xf32, #tpu.memory_space<vmem>>, vector<256x128xf32>
    %c1_65 = arith.constant 1 : index
    %c0_66 = arith.constant 0 : index
    %c0_67 = arith.constant 0 : index
    %34 = vector.load %arg2[%c1_65, %c0_66, %c0_67] : memref<9x128x128xf32, #tpu.memory_space<vmem>>, vector<1x128x128xf32>
    %35 = vector.shape_cast %34 : vector<1x128x128xf32> to vector<128x128xf32>
    %cst_68 = arith.constant dense<0.000000e+00> : vector<256x128xf32>
    %36 = tpu.matmul %32, %35, %cst_68 {dimension_numbers = #tpu.dot_dimension_numbers<[1], [0], [0], [1], [0, 0, 1, 1], [], []>} : vector<256x128xf32>, vector<128x128xf32>, vector<256x128xf32> -> vector<256x128xf32>
    %37 = arith.addf %33, %36 : vector<256x128xf32>
    %c0_69 = arith.constant 0 : index
    %c0_70 = arith.constant 0 : index
    %38 = vector.load %arg9[%c0_69, %c0_70] : memref<256x128xf32, #tpu.memory_space<vmem>>, vector<256x128xf32>
    tpu.vector_store %arg9[%c0_69, %c0_70], %37 {strides = array<i32>} : memref<256x128xf32, #tpu.memory_space<vmem>>, vector<256x128xf32>,
    %c0_71 = arith.constant 0 : index
    %c0_72 = arith.constant 0 : index
    %c2 = arith.constant 2 : index
    %c0_73 = arith.constant 0 : index
    %39 = vector.load %arg7[%c0_71, %c0_72, %c2, %c0_73] : memref<1x18x18x128xf32, #tpu.memory_space<vmem>>, vector<1x16x16x128xf32>
    %40 = vector.shape_cast %39 : vector<1x16x16x128xf32> to vector<256x128xf32>
    %c0_74 = arith.constant 0 : index
    %c0_75 = arith.constant 0 : index
    %41 = vector.load %arg9[%c0_74, %c0_75] : memref<256x128xf32, #tpu.memory_space<vmem>>, vector<256x128xf32>
    %c2_76 = arith.constant 2 : index
    %c0_77 = arith.constant 0 : index
    %c0_78 = arith.constant 0 : index
    %42 = vector.load %arg2[%c2_76, %c0_77, %c0_78] : memref<9x128x128xf32, #tpu.memory_space<vmem>>, vector<1x128x128xf32>
    %43 = vector.shape_cast %42 : vector<1x128x128xf32> to vector<128x128xf32>
    %cst_79 = arith.constant dense<0.000000e+00> : vector<256x128xf32>
    %44 = tpu.matmul %40, %43, %cst_79 {dimension_numbers = #tpu.dot_dimension_numbers<[1], [0], [0], [1], [0, 0, 1, 1], [], []>} : vector<256x128xf32>, vector<128x128xf32>, vector<256x128xf32> -> vector<256x128xf32>
    %45 = arith.addf %41, %44 : vector<256x128xf32>
    %c0_80 = arith.constant 0 : index
    %c0_81 = arith.constant 0 : index
    %46 = vector.load %arg9[%c0_80, %c0_81] : memref<256x128xf32, #tpu.memory_space<vmem>>, vector<256x128xf32>
    tpu.vector_store %arg9[%c0_80, %c0_81], %45 {strides = array<i32>} : memref<256x128xf32, #tpu.memory_space<vmem>>, vector<256x128xf32>,
    %c0_82 = arith.constant 0 : index
    %c1_83 = arith.constant 1 : index
    %c0_84 = arith.constant 0 : index
    %c0_85 = arith.constant 0 : index
    %47 = vector.load %arg7[%c0_82, %c1_83, %c0_84, %c0_85] : memref<1x18x18x128xf32, #tpu.memory_space<vmem>>, vector<1x16x16x128xf32>
    %48 = vector.shape_cast %47 : vector<1x16x16x128xf32> to vector<256x128xf32>
    %c0_86 = arith.constant 0 : index
    %c0_87 = arith.constant 0 : index
    %49 = vector.load %arg9[%c0_86, %c0_87] : memref<256x128xf32, #tpu.memory_space<vmem>>, vector<256x128xf32>
    %c3 = arith.constant 3 : index
    %c0_88 = arith.constant 0 : index
    %c0_89 = arith.constant 0 : index
    %50 = vector.load %arg2[%c3, %c0_88, %c0_89] : memref<9x128x128xf32, #tpu.memory_space<vmem>>, vector<1x128x128xf32>
    %51 = vector.shape_cast %50 : vector<1x128x128xf32> to vector<128x128xf32>
    %cst_90 = arith.constant dense<0.000000e+00> : vector<256x128xf32>
    %52 = tpu.matmul %48, %51, %cst_90 {dimension_numbers = #tpu.dot_dimension_numbers<[1], [0], [0], [1], [0, 0, 1, 1], [], []>} : vector<256x128xf32>, vector<128x128xf32>, vector<256x128xf32> -> vector<256x128xf32>
    %53 = arith.addf %49, %52 : vector<256x128xf32>
    %c0_91 = arith.constant 0 : index
    %c0_92 = arith.constant 0 : index
    %54 = vector.load %arg9[%c0_91, %c0_92] : memref<256x128xf32, #tpu.memory_space<vmem>>, vector<256x128xf32>
    tpu.vector_store %arg9[%c0_91, %c0_92], %53 {strides = array<i32>} : memref<256x128xf32, #tpu.memory_space<vmem>>, vector<256x128xf32>,
    %c0_93 = arith.constant 0 : index
    %c1_94 = arith.constant 1 : index
    %c1_95 = arith.constant 1 : index
    %c0_96 = arith.constant 0 : index
    %55 = vector.load %arg7[%c0_93, %c1_94, %c1_95, %c0_96] : memref<1x18x18x128xf32, #tpu.memory_space<vmem>>, vector<1x16x16x128xf32>
    %56 = vector.shape_cast %55 : vector<1x16x16x128xf32> to vector<256x128xf32>
    %c0_97 = arith.constant 0 : index
    %c0_98 = arith.constant 0 : index
    %57 = vector.load %arg9[%c0_97, %c0_98] : memref<256x128xf32, #tpu.memory_space<vmem>>, vector<256x128xf32>
    %c4 = arith.constant 4 : index
    %c0_99 = arith.constant 0 : index
    %c0_100 = arith.constant 0 : index
    %58 = vector.load %arg2[%c4, %c0_99, %c0_100] : memref<9x128x128xf32, #tpu.memory_space<vmem>>, vector<1x128x128xf32>
    %59 = vector.shape_cast %58 : vector<1x128x128xf32> to vector<128x128xf32>
    %cst_101 = arith.constant dense<0.000000e+00> : vector<256x128xf32>
    %60 = tpu.matmul %56, %59, %cst_101 {dimension_numbers = #tpu.dot_dimension_numbers<[1], [0], [0], [1], [0, 0, 1, 1], [], []>} : vector<256x128xf32>, vector<128x128xf32>, vector<256x128xf32> -> vector<256x128xf32>
    %61 = arith.addf %57, %60 : vector<256x128xf32>
    %c0_102 = arith.constant 0 : index
    %c0_103 = arith.constant 0 : index
    %62 = vector.load %arg9[%c0_102, %c0_103] : memref<256x128xf32, #tpu.memory_space<vmem>>, vector<256x128xf32>
    tpu.vector_store %arg9[%c0_102, %c0_103], %61 {strides = array<i32>} : memref<256x128xf32, #tpu.memory_space<vmem>>, vector<256x128xf32>,
    %c0_104 = arith.constant 0 : index
    %c1_105 = arith.constant 1 : index
    %c2_106 = arith.constant 2 : index
    %c0_107 = arith.constant 0 : index
    %63 = vector.load %arg7[%c0_104, %c1_105, %c2_106, %c0_107] : memref<1x18x18x128xf32, #tpu.memory_space<vmem>>, vector<1x16x16x128xf32>
    %64 = vector.shape_cast %63 : vector<1x16x16x128xf32> to vector<256x128xf32>
    %c0_108 = arith.constant 0 : index
    %c0_109 = arith.constant 0 : index
    %65 = vector.load %arg9[%c0_108, %c0_109] : memref<256x128xf32, #tpu.memory_space<vmem>>, vector<256x128xf32>
    %c5 = arith.constant 5 : index
    %c0_110 = arith.constant 0 : index
    %c0_111 = arith.constant 0 : index
    %66 = vector.load %arg2[%c5, %c0_110, %c0_111] : memref<9x128x128xf32, #tpu.memory_space<vmem>>, vector<1x128x128xf32>
    %67 = vector.shape_cast %66 : vector<1x128x128xf32> to vector<128x128xf32>
    %cst_112 = arith.constant dense<0.000000e+00> : vector<256x128xf32>
    %68 = tpu.matmul %64, %67, %cst_112 {dimension_numbers = #tpu.dot_dimension_numbers<[1], [0], [0], [1], [0, 0, 1, 1], [], []>} : vector<256x128xf32>, vector<128x128xf32>, vector<256x128xf32> -> vector<256x128xf32>
    %69 = arith.addf %65, %68 : vector<256x128xf32>
    %c0_113 = arith.constant 0 : index
    %c0_114 = arith.constant 0 : index
    %70 = vector.load %arg9[%c0_113, %c0_114] : memref<256x128xf32, #tpu.memory_space<vmem>>, vector<256x128xf32>
    tpu.vector_store %arg9[%c0_113, %c0_114], %69 {strides = array<i32>} : memref<256x128xf32, #tpu.memory_space<vmem>>, vector<256x128xf32>,
    %c0_115 = arith.constant 0 : index
    %c2_116 = arith.constant 2 : index
    %c0_117 = arith.constant 0 : index
    %c0_118 = arith.constant 0 : index
    %71 = vector.load %arg7[%c0_115, %c2_116, %c0_117, %c0_118] : memref<1x18x18x128xf32, #tpu.memory_space<vmem>>, vector<1x16x16x128xf32>
    %72 = vector.shape_cast %71 : vector<1x16x16x128xf32> to vector<256x128xf32>
    %c0_119 = arith.constant 0 : index
    %c0_120 = arith.constant 0 : index
    %73 = vector.load %arg9[%c0_119, %c0_120] : memref<256x128xf32, #tpu.memory_space<vmem>>, vector<256x128xf32>
    %c6 = arith.constant 6 : index
    %c0_121 = arith.constant 0 : index
    %c0_122 = arith.constant 0 : index
    %74 = vector.load %arg2[%c6, %c0_121, %c0_122] : memref<9x128x128xf32, #tpu.memory_space<vmem>>, vector<1x128x128xf32>
    %75 = vector.shape_cast %74 : vector<1x128x128xf32> to vector<128x128xf32>
    %cst_123 = arith.constant dense<0.000000e+00> : vector<256x128xf32>
    %76 = tpu.matmul %72, %75, %cst_123 {dimension_numbers = #tpu.dot_dimension_numbers<[1], [0], [0], [1], [0, 0, 1, 1], [], []>} : vector<256x128xf32>, vector<128x128xf32>, vector<256x128xf32> -> vector<256x128xf32>
    %77 = arith.addf %73, %76 : vector<256x128xf32>
    %c0_124 = arith.constant 0 : index
    %c0_125 = arith.constant 0 : index
    %78 = vector.load %arg9[%c0_124, %c0_125] : memref<256x128xf32, #tpu.memory_space<vmem>>, vector<256x128xf32>
    tpu.vector_store %arg9[%c0_124, %c0_125], %77 {strides = array<i32>} : memref<256x128xf32, #tpu.memory_space<vmem>>, vector<256x128xf32>,
    %c0_126 = arith.constant 0 : index
    %c2_127 = arith.constant 2 : index
    %c1_128 = arith.constant 1 : index
    %c0_129 = arith.constant 0 : index
    %79 = vector.load %arg7[%c0_126, %c2_127, %c1_128, %c0_129] : memref<1x18x18x128xf32, #tpu.memory_space<vmem>>, vector<1x16x16x128xf32>
    %80 = vector.shape_cast %79 : vector<1x16x16x128xf32> to vector<256x128xf32>
    %c0_130 = arith.constant 0 : index
    %c0_131 = arith.constant 0 : index
    %81 = vector.load %arg9[%c0_130, %c0_131] : memref<256x128xf32, #tpu.memory_space<vmem>>, vector<256x128xf32>
    %c7 = arith.constant 7 : index
    %c0_132 = arith.constant 0 : index
    %c0_133 = arith.constant 0 : index
    %82 = vector.load %arg2[%c7, %c0_132, %c0_133] : memref<9x128x128xf32, #tpu.memory_space<vmem>>, vector<1x128x128xf32>
    %83 = vector.shape_cast %82 : vector<1x128x128xf32> to vector<128x128xf32>
    %cst_134 = arith.constant dense<0.000000e+00> : vector<256x128xf32>
    %84 = tpu.matmul %80, %83, %cst_134 {dimension_numbers = #tpu.dot_dimension_numbers<[1], [0], [0], [1], [0, 0, 1, 1], [], []>} : vector<256x128xf32>, vector<128x128xf32>, vector<256x128xf32> -> vector<256x128xf32>
    %85 = arith.addf %81, %84 : vector<256x128xf32>
    %c0_135 = arith.constant 0 : index
    %c0_136 = arith.constant 0 : index
    %86 = vector.load %arg9[%c0_135, %c0_136] : memref<256x128xf32, #tpu.memory_space<vmem>>, vector<256x128xf32>
    tpu.vector_store %arg9[%c0_135, %c0_136], %85 {strides = array<i32>} : memref<256x128xf32, #tpu.memory_space<vmem>>, vector<256x128xf32>,
    %c0_137 = arith.constant 0 : index
    %c2_138 = arith.constant 2 : index
    %c2_139 = arith.constant 2 : index
    %c0_140 = arith.constant 0 : index
    %87 = vector.load %arg7[%c0_137, %c2_138, %c2_139, %c0_140] : memref<1x18x18x128xf32, #tpu.memory_space<vmem>>, vector<1x16x16x128xf32>
    %88 = vector.shape_cast %87 : vector<1x16x16x128xf32> to vector<256x128xf32>
    %c0_141 = arith.constant 0 : index
    %c0_142 = arith.constant 0 : index
    %89 = vector.load %arg9[%c0_141, %c0_142] : memref<256x128xf32, #tpu.memory_space<vmem>>, vector<256x128xf32>
    %c8 = arith.constant 8 : index
    %c0_143 = arith.constant 0 : index
    %c0_144 = arith.constant 0 : index
    %90 = vector.load %arg2[%c8, %c0_143, %c0_144] : memref<9x128x128xf32, #tpu.memory_space<vmem>>, vector<1x128x128xf32>
    %91 = vector.shape_cast %90 : vector<1x128x128xf32> to vector<128x128xf32>
    %cst_145 = arith.constant dense<0.000000e+00> : vector<256x128xf32>
    %92 = tpu.matmul %88, %91, %cst_145 {dimension_numbers = #tpu.dot_dimension_numbers<[1], [0], [0], [1], [0, 0, 1, 1], [], []>} : vector<256x128xf32>, vector<128x128xf32>, vector<256x128xf32> -> vector<256x128xf32>
    %93 = arith.addf %89, %92 : vector<256x128xf32>
    %c0_146 = arith.constant 0 : index
    %c0_147 = arith.constant 0 : index
    %94 = vector.load %arg9[%c0_146, %c0_147] : memref<256x128xf32, #tpu.memory_space<vmem>>, vector<256x128xf32>
    tpu.vector_store %arg9[%c0_146, %c0_147], %93 {strides = array<i32>} : memref<256x128xf32, #tpu.memory_space<vmem>>, vector<256x128xf32>,
    %c0_148 = arith.constant 0 : index
    %c0_149 = arith.constant 0 : index
    %95 = vector.load %arg9[%c0_148, %c0_149] : memref<256x128xf32, #tpu.memory_space<vmem>>, vector<256x128xf32>
    %cst_150 = arith.constant 0.000000e+00 : f32
    %96 = vector.broadcast %cst_150 : f32 to vector<256x128xf32>
    %97 = arith.maximumf %95, %96 : vector<256x128xf32>
    %98 = vector.shape_cast %97 : vector<256x128xf32> to vector<1x16x16x128xf32>
    %c0_151 = arith.constant 0 : index
    %c1_152 = arith.constant 1 : index
    %c1_153 = arith.constant 1 : index
    %c0_154 = arith.constant 0 : index
    %99 = vector.load %arg8[%c0_151, %c1_152, %c1_153, %c0_154] : memref<1x18x18x128xf32, #tpu.memory_space<vmem>>, vector<1x16x16x128xf32>
    tpu.vector_store %arg8[%c0_151, %c1_152, %c1_153, %c0_154], %98 {strides = array<i32>} : memref<1x18x18x128xf32, #tpu.memory_space<vmem>>, vector<1x16x16x128xf32>,
    %c0_155 = arith.constant 0 : index
    %c0_156 = arith.constant 0 : index
    %100 = vector.load %arg5[%c0_155, %c0_156] : memref<1x128xf32, #tpu.memory_space<vmem>>, vector<1x128xf32>
    %101 = vector.shape_cast %100 : vector<1x128xf32> to vector<1x128xf32>
    %102 = vector.broadcast %101 : vector<1x128xf32> to vector<256x128xf32>
    %c0_157 = arith.constant 0 : index
    %c0_158 = arith.constant 0 : index
    %103 = vector.load %arg10[%c0_157, %c0_158] : memref<256x128xf32, #tpu.memory_space<vmem>>, vector<256x128xf32>
    tpu.vector_store %arg10[%c0_157, %c0_158], %102 {strides = array<i32>} : memref<256x128xf32, #tpu.memory_space<vmem>>, vector<256x128xf32>,
    %c0_159 = arith.constant 0 : index
    %c0_160 = arith.constant 0 : index
    %c0_161 = arith.constant 0 : index
    %c0_162 = arith.constant 0 : index
    %104 = vector.load %arg8[%c0_159, %c0_160, %c0_161, %c0_162] : memref<1x18x18x128xf32, #tpu.memory_space<vmem>>, vector<1x16x16x128xf32>
    %105 = vector.shape_cast %104 : vector<1x16x16x128xf32> to vector<256x128xf32>
    %c0_163 = arith.constant 0 : index
    %c0_164 = arith.constant 0 : index
    %106 = vector.load %arg10[%c0_163, %c0_164] : memref<256x128xf32, #tpu.memory_space<vmem>>, vector<256x128xf32>
    %c0_165 = arith.constant 0 : index
    %c0_166 = arith.constant 0 : index
    %c0_167 = arith.constant 0 : index
    %107 = vector.load %arg4[%c0_165, %c0_166, %c0_167] : memref<9x128x128xf32, #tpu.memory_space<vmem>>, vector<1x128x128xf32>
    %108 = vector.shape_cast %107 : vector<1x128x128xf32> to vector<128x128xf32>
    %cst_168 = arith.constant dense<0.000000e+00> : vector<256x128xf32>
    %109 = tpu.matmul %105, %108, %cst_168 {dimension_numbers = #tpu.dot_dimension_numbers<[1], [0], [0], [1], [0, 0, 1, 1], [], []>} : vector<256x128xf32>, vector<128x128xf32>, vector<256x128xf32> -> vector<256x128xf32>
    %110 = arith.addf %106, %109 : vector<256x128xf32>
    %c0_169 = arith.constant 0 : index
    %c0_170 = arith.constant 0 : index
    %111 = vector.load %arg10[%c0_169, %c0_170] : memref<256x128xf32, #tpu.memory_space<vmem>>, vector<256x128xf32>
    tpu.vector_store %arg10[%c0_169, %c0_170], %110 {strides = array<i32>} : memref<256x128xf32, #tpu.memory_space<vmem>>, vector<256x128xf32>,
    %c0_171 = arith.constant 0 : index
    %c0_172 = arith.constant 0 : index
    %c1_173 = arith.constant 1 : index
    %c0_174 = arith.constant 0 : index
    %112 = vector.load %arg8[%c0_171, %c0_172, %c1_173, %c0_174] : memref<1x18x18x128xf32, #tpu.memory_space<vmem>>, vector<1x16x16x128xf32>
    %113 = vector.shape_cast %112 : vector<1x16x16x128xf32> to vector<256x128xf32>
    %c0_175 = arith.constant 0 : index
    %c0_176 = arith.constant 0 : index
    %114 = vector.load %arg10[%c0_175, %c0_176] : memref<256x128xf32, #tpu.memory_space<vmem>>, vector<256x128xf32>
    %c1_177 = arith.constant 1 : index
    %c0_178 = arith.constant 0 : index
    %c0_179 = arith.constant 0 : index
    %115 = vector.load %arg4[%c1_177, %c0_178, %c0_179] : memref<9x128x128xf32, #tpu.memory_space<vmem>>, vector<1x128x128xf32>
    %116 = vector.shape_cast %115 : vector<1x128x128xf32> to vector<128x128xf32>
    %cst_180 = arith.constant dense<0.000000e+00> : vector<256x128xf32>
    %117 = tpu.matmul %113, %116, %cst_180 {dimension_numbers = #tpu.dot_dimension_numbers<[1], [0], [0], [1], [0, 0, 1, 1], [], []>} : vector<256x128xf32>, vector<128x128xf32>, vector<256x128xf32> -> vector<256x128xf32>
    %118 = arith.addf %114, %117 : vector<256x128xf32>
    %c0_181 = arith.constant 0 : index
    %c0_182 = arith.constant 0 : index
    %119 = vector.load %arg10[%c0_181, %c0_182] : memref<256x128xf32, #tpu.memory_space<vmem>>, vector<256x128xf32>
    tpu.vector_store %arg10[%c0_181, %c0_182], %118 {strides = array<i32>} : memref<256x128xf32, #tpu.memory_space<vmem>>, vector<256x128xf32>,
    %c0_183 = arith.constant 0 : index
    %c0_184 = arith.constant 0 : index
    %c2_185 = arith.constant 2 : index
    %c0_186 = arith.constant 0 : index
    %120 = vector.load %arg8[%c0_183, %c0_184, %c2_185, %c0_186] : memref<1x18x18x128xf32, #tpu.memory_space<vmem>>, vector<1x16x16x128xf32>
    %121 = vector.shape_cast %120 : vector<1x16x16x128xf32> to vector<256x128xf32>
    %c0_187 = arith.constant 0 : index
    %c0_188 = arith.constant 0 : index
    %122 = vector.load %arg10[%c0_187, %c0_188] : memref<256x128xf32, #tpu.memory_space<vmem>>, vector<256x128xf32>
    %c2_189 = arith.constant 2 : index
    %c0_190 = arith.constant 0 : index
    %c0_191 = arith.constant 0 : index
    %123 = vector.load %arg4[%c2_189, %c0_190, %c0_191] : memref<9x128x128xf32, #tpu.memory_space<vmem>>, vector<1x128x128xf32>
    %124 = vector.shape_cast %123 : vector<1x128x128xf32> to vector<128x128xf32>
    %cst_192 = arith.constant dense<0.000000e+00> : vector<256x128xf32>
    %125 = tpu.matmul %121, %124, %cst_192 {dimension_numbers = #tpu.dot_dimension_numbers<[1], [0], [0], [1], [0, 0, 1, 1], [], []>} : vector<256x128xf32>, vector<128x128xf32>, vector<256x128xf32> -> vector<256x128xf32>
    %126 = arith.addf %122, %125 : vector<256x128xf32>
    %c0_193 = arith.constant 0 : index
    %c0_194 = arith.constant 0 : index
    %127 = vector.load %arg10[%c0_193, %c0_194] : memref<256x128xf32, #tpu.memory_space<vmem>>, vector<256x128xf32>
    tpu.vector_store %arg10[%c0_193, %c0_194], %126 {strides = array<i32>} : memref<256x128xf32, #tpu.memory_space<vmem>>, vector<256x128xf32>,
    %c0_195 = arith.constant 0 : index
    %c1_196 = arith.constant 1 : index
    %c0_197 = arith.constant 0 : index
    %c0_198 = arith.constant 0 : index
    %128 = vector.load %arg8[%c0_195, %c1_196, %c0_197, %c0_198] : memref<1x18x18x128xf32, #tpu.memory_space<vmem>>, vector<1x16x16x128xf32>
    %129 = vector.shape_cast %128 : vector<1x16x16x128xf32> to vector<256x128xf32>
    %c0_199 = arith.constant 0 : index
    %c0_200 = arith.constant 0 : index
    %130 = vector.load %arg10[%c0_199, %c0_200] : memref<256x128xf32, #tpu.memory_space<vmem>>, vector<256x128xf32>
    %c3_201 = arith.constant 3 : index
    %c0_202 = arith.constant 0 : index
    %c0_203 = arith.constant 0 : index
    %131 = vector.load %arg4[%c3_201, %c0_202, %c0_203] : memref<9x128x128xf32, #tpu.memory_space<vmem>>, vector<1x128x128xf32>
    %132 = vector.shape_cast %131 : vector<1x128x128xf32> to vector<128x128xf32>
    %cst_204 = arith.constant dense<0.000000e+00> : vector<256x128xf32>
    %133 = tpu.matmul %129, %132, %cst_204 {dimension_numbers = #tpu.dot_dimension_numbers<[1], [0], [0], [1], [0, 0, 1, 1], [], []>} : vector<256x128xf32>, vector<128x128xf32>, vector<256x128xf32> -> vector<256x128xf32>
    %134 = arith.addf %130, %133 : vector<256x128xf32>
    %c0_205 = arith.constant 0 : index
    %c0_206 = arith.constant 0 : index
    %135 = vector.load %arg10[%c0_205, %c0_206] : memref<256x128xf32, #tpu.memory_space<vmem>>, vector<256x128xf32>
    tpu.vector_store %arg10[%c0_205, %c0_206], %134 {strides = array<i32>} : memref<256x128xf32, #tpu.memory_space<vmem>>, vector<256x128xf32>,
    %c0_207 = arith.constant 0 : index
    %c1_208 = arith.constant 1 : index
    %c1_209 = arith.constant 1 : index
    %c0_210 = arith.constant 0 : index
    %136 = vector.load %arg8[%c0_207, %c1_208, %c1_209, %c0_210] : memref<1x18x18x128xf32, #tpu.memory_space<vmem>>, vector<1x16x16x128xf32>
    %137 = vector.shape_cast %136 : vector<1x16x16x128xf32> to vector<256x128xf32>
    %c0_211 = arith.constant 0 : index
    %c0_212 = arith.constant 0 : index
    %138 = vector.load %arg10[%c0_211, %c0_212] : memref<256x128xf32, #tpu.memory_space<vmem>>, vector<256x128xf32>
    %c4_213 = arith.constant 4 : index
    %c0_214 = arith.constant 0 : index
    %c0_215 = arith.constant 0 : index
    %139 = vector.load %arg4[%c4_213, %c0_214, %c0_215] : memref<9x128x128xf32, #tpu.memory_space<vmem>>, vector<1x128x128xf32>
    %140 = vector.shape_cast %139 : vector<1x128x128xf32> to vector<128x128xf32>
    %cst_216 = arith.constant dense<0.000000e+00> : vector<256x128xf32>
    %141 = tpu.matmul %137, %140, %cst_216 {dimension_numbers = #tpu.dot_dimension_numbers<[1], [0], [0], [1], [0, 0, 1, 1], [], []>} : vector<256x128xf32>, vector<128x128xf32>, vector<256x128xf32> -> vector<256x128xf32>
    %142 = arith.addf %138, %141 : vector<256x128xf32>
    %c0_217 = arith.constant 0 : index
    %c0_218 = arith.constant 0 : index
    %143 = vector.load %arg10[%c0_217, %c0_218] : memref<256x128xf32, #tpu.memory_space<vmem>>, vector<256x128xf32>
    tpu.vector_store %arg10[%c0_217, %c0_218], %142 {strides = array<i32>} : memref<256x128xf32, #tpu.memory_space<vmem>>, vector<256x128xf32>,
    %c0_219 = arith.constant 0 : index
    %c1_220 = arith.constant 1 : index
    %c2_221 = arith.constant 2 : index
    %c0_222 = arith.constant 0 : index
    %144 = vector.load %arg8[%c0_219, %c1_220, %c2_221, %c0_222] : memref<1x18x18x128xf32, #tpu.memory_space<vmem>>, vector<1x16x16x128xf32>
    %145 = vector.shape_cast %144 : vector<1x16x16x128xf32> to vector<256x128xf32>
    %c0_223 = arith.constant 0 : index
    %c0_224 = arith.constant 0 : index
    %146 = vector.load %arg10[%c0_223, %c0_224] : memref<256x128xf32, #tpu.memory_space<vmem>>, vector<256x128xf32>
    %c5_225 = arith.constant 5 : index
    %c0_226 = arith.constant 0 : index
    %c0_227 = arith.constant 0 : index
    %147 = vector.load %arg4[%c5_225, %c0_226, %c0_227] : memref<9x128x128xf32, #tpu.memory_space<vmem>>, vector<1x128x128xf32>
    %148 = vector.shape_cast %147 : vector<1x128x128xf32> to vector<128x128xf32>
    %cst_228 = arith.constant dense<0.000000e+00> : vector<256x128xf32>
    %149 = tpu.matmul %145, %148, %cst_228 {dimension_numbers = #tpu.dot_dimension_numbers<[1], [0], [0], [1], [0, 0, 1, 1], [], []>} : vector<256x128xf32>, vector<128x128xf32>, vector<256x128xf32> -> vector<256x128xf32>
    %150 = arith.addf %146, %149 : vector<256x128xf32>
    %c0_229 = arith.constant 0 : index
    %c0_230 = arith.constant 0 : index
    %151 = vector.load %arg10[%c0_229, %c0_230] : memref<256x128xf32, #tpu.memory_space<vmem>>, vector<256x128xf32>
    tpu.vector_store %arg10[%c0_229, %c0_230], %150 {strides = array<i32>} : memref<256x128xf32, #tpu.memory_space<vmem>>, vector<256x128xf32>,
    %c0_231 = arith.constant 0 : index
    %c2_232 = arith.constant 2 : index
    %c0_233 = arith.constant 0 : index
    %c0_234 = arith.constant 0 : index
    %152 = vector.load %arg8[%c0_231, %c2_232, %c0_233, %c0_234] : memref<1x18x18x128xf32, #tpu.memory_space<vmem>>, vector<1x16x16x128xf32>
    %153 = vector.shape_cast %152 : vector<1x16x16x128xf32> to vector<256x128xf32>
    %c0_235 = arith.constant 0 : index
    %c0_236 = arith.constant 0 : index
    %154 = vector.load %arg10[%c0_235, %c0_236] : memref<256x128xf32, #tpu.memory_space<vmem>>, vector<256x128xf32>
    %c6_237 = arith.constant 6 : index
    %c0_238 = arith.constant 0 : index
    %c0_239 = arith.constant 0 : index
    %155 = vector.load %arg4[%c6_237, %c0_238, %c0_239] : memref<9x128x128xf32, #tpu.memory_space<vmem>>, vector<1x128x128xf32>
    %156 = vector.shape_cast %155 : vector<1x128x128xf32> to vector<128x128xf32>
    %cst_240 = arith.constant dense<0.000000e+00> : vector<256x128xf32>
    %157 = tpu.matmul %153, %156, %cst_240 {dimension_numbers = #tpu.dot_dimension_numbers<[1], [0], [0], [1], [0, 0, 1, 1], [], []>} : vector<256x128xf32>, vector<128x128xf32>, vector<256x128xf32> -> vector<256x128xf32>
    %158 = arith.addf %154, %157 : vector<256x128xf32>
    %c0_241 = arith.constant 0 : index
    %c0_242 = arith.constant 0 : index
    %159 = vector.load %arg10[%c0_241, %c0_242] : memref<256x128xf32, #tpu.memory_space<vmem>>, vector<256x128xf32>
    tpu.vector_store %arg10[%c0_241, %c0_242], %158 {strides = array<i32>} : memref<256x128xf32, #tpu.memory_space<vmem>>, vector<256x128xf32>,
    %c0_243 = arith.constant 0 : index
    %c2_244 = arith.constant 2 : index
    %c1_245 = arith.constant 1 : index
    %c0_246 = arith.constant 0 : index
    %160 = vector.load %arg8[%c0_243, %c2_244, %c1_245, %c0_246] : memref<1x18x18x128xf32, #tpu.memory_space<vmem>>, vector<1x16x16x128xf32>
    %161 = vector.shape_cast %160 : vector<1x16x16x128xf32> to vector<256x128xf32>
    %c0_247 = arith.constant 0 : index
    %c0_248 = arith.constant 0 : index
    %162 = vector.load %arg10[%c0_247, %c0_248] : memref<256x128xf32, #tpu.memory_space<vmem>>, vector<256x128xf32>
    %c7_249 = arith.constant 7 : index
    %c0_250 = arith.constant 0 : index
    %c0_251 = arith.constant 0 : index
    %163 = vector.load %arg4[%c7_249, %c0_250, %c0_251] : memref<9x128x128xf32, #tpu.memory_space<vmem>>, vector<1x128x128xf32>
    %164 = vector.shape_cast %163 : vector<1x128x128xf32> to vector<128x128xf32>
    %cst_252 = arith.constant dense<0.000000e+00> : vector<256x128xf32>
    %165 = tpu.matmul %161, %164, %cst_252 {dimension_numbers = #tpu.dot_dimension_numbers<[1], [0], [0], [1], [0, 0, 1, 1], [], []>} : vector<256x128xf32>, vector<128x128xf32>, vector<256x128xf32> -> vector<256x128xf32>
    %166 = arith.addf %162, %165 : vector<256x128xf32>
    %c0_253 = arith.constant 0 : index
    %c0_254 = arith.constant 0 : index
    %167 = vector.load %arg10[%c0_253, %c0_254] : memref<256x128xf32, #tpu.memory_space<vmem>>, vector<256x128xf32>
    tpu.vector_store %arg10[%c0_253, %c0_254], %166 {strides = array<i32>} : memref<256x128xf32, #tpu.memory_space<vmem>>, vector<256x128xf32>,
    %c0_255 = arith.constant 0 : index
    %c2_256 = arith.constant 2 : index
    %c2_257 = arith.constant 2 : index
    %c0_258 = arith.constant 0 : index
    %168 = vector.load %arg8[%c0_255, %c2_256, %c2_257, %c0_258] : memref<1x18x18x128xf32, #tpu.memory_space<vmem>>, vector<1x16x16x128xf32>
    %169 = vector.shape_cast %168 : vector<1x16x16x128xf32> to vector<256x128xf32>
    %c0_259 = arith.constant 0 : index
    %c0_260 = arith.constant 0 : index
    %170 = vector.load %arg10[%c0_259, %c0_260] : memref<256x128xf32, #tpu.memory_space<vmem>>, vector<256x128xf32>
    %c8_261 = arith.constant 8 : index
    %c0_262 = arith.constant 0 : index
    %c0_263 = arith.constant 0 : index
    %171 = vector.load %arg4[%c8_261, %c0_262, %c0_263] : memref<9x128x128xf32, #tpu.memory_space<vmem>>, vector<1x128x128xf32>
    %172 = vector.shape_cast %171 : vector<1x128x128xf32> to vector<128x128xf32>
    %cst_264 = arith.constant dense<0.000000e+00> : vector<256x128xf32>
    %173 = tpu.matmul %169, %172, %cst_264 {dimension_numbers = #tpu.dot_dimension_numbers<[1], [0], [0], [1], [0, 0, 1, 1], [], []>} : vector<256x128xf32>, vector<128x128xf32>, vector<256x128xf32> -> vector<256x128xf32>
    %174 = arith.addf %170, %173 : vector<256x128xf32>
    %c0_265 = arith.constant 0 : index
    %c0_266 = arith.constant 0 : index
    %175 = vector.load %arg10[%c0_265, %c0_266] : memref<256x128xf32, #tpu.memory_space<vmem>>, vector<256x128xf32>
    tpu.vector_store %arg10[%c0_265, %c0_266], %174 {strides = array<i32>} : memref<256x128xf32, #tpu.memory_space<vmem>>, vector<256x128xf32>,
    %c0_267 = arith.constant 0 : index
    %c0_268 = arith.constant 0 : index
    %176 = vector.load %arg10[%c0_267, %c0_268] : memref<256x128xf32, #tpu.memory_space<vmem>>, vector<256x128xf32>
    %cst_269 = arith.constant 0.000000e+00 : f32
    %177 = vector.broadcast %cst_269 : f32 to vector<256x128xf32>
    %178 = arith.maximumf %176, %177 : vector<256x128xf32>
    %179 = vector.shape_cast %178 : vector<256x128xf32> to vector<1x256x128xf32>
    %c0_270 = arith.constant 0 : index
    %c0_271 = arith.constant 0 : index
    %c0_272 = arith.constant 0 : index
    %180 = vector.load %arg6[%c0_270, %c0_271, %c0_272] : memref<1x256x128xf32, #tpu.memory_space<vmem>>, vector<1x256x128xf32>
    tpu.vector_store %arg6[%c0_270, %c0_271, %c0_272], %179 {strides = array<i32>} : memref<1x256x128xf32, #tpu.memory_space<vmem>>, vector<1x256x128xf32>,
    return
  }
  func.func @transform_0(%arg0: i32) -> (i32, i32, i32) {
    %c0_i32 = arith.constant 0 : i32
    %c0_i32_0 = arith.constant 0 : i32
    %c0_i32_1 = arith.constant 0 : i32
    return %arg0, %c0_i32, %c0_i32_0 : i32, i32, i32
  }
  func.func @transform_1(%arg0: i32) -> (i32, i32, i32) {
    %c0_i32 = arith.constant 0 : i32
    %c0_i32_0 = arith.constant 0 : i32
    %c0_i32_1 = arith.constant 0 : i32
    %c0_i32_2 = arith.constant 0 : i32
    return %c0_i32, %c0_i32_0, %c0_i32_1 : i32, i32, i32
  }
  func.func @transform_2(%arg0: i32) -> (i32, i32) {
    %c0_i32 = arith.constant 0 : i32
    %c0_i32_0 = arith.constant 0 : i32
    %c0_i32_1 = arith.constant 0 : i32
    return %c0_i32, %c0_i32_0 : i32, i32
  }
  func.func @transform_3(%arg0: i32) -> (i32, i32, i32) {
    %c0_i32 = arith.constant 0 : i32
    %c0_i32_0 = arith.constant 0 : i32
    %c0_i32_1 = arith.constant 0 : i32
    %c0_i32_2 = arith.constant 0 : i32
    return %c0_i32, %c0_i32_0, %c0_i32_1 : i32, i32, i32
  }
  func.func @transform_4(%arg0: i32) -> (i32, i32) {
    %c0_i32 = arith.constant 0 : i32
    %c0_i32_0 = arith.constant 0 : i32
    %c0_i32_1 = arith.constant 0 : i32
    return %c0_i32, %c0_i32_0 : i32, i32
  }
  func.func @transform_5(%arg0: i32) -> (i32, i32, i32) {
    %c0_i32 = arith.constant 0 : i32
    %c0_i32_0 = arith.constant 0 : i32
    %c0_i32_1 = arith.constant 0 : i32
    return %arg0, %c0_i32, %c0_i32_0 : i32, i32, i32
  }
}

</mosaic_0001>

<llo_original>
// kernel: tpu_custom_call.1
$region0: #{tpu_custom_call.1}
  #allocation0 [shape = 'u32[]', space=smem, size = 0x4, offset = 0x4, fixed_abs, tag = 'smem constant byte address 0x4 - core index']
  #allocation1 [shape = 'u32[144,128]{1,0:T(1,128)}', space=vmem, size = 0x12000, scoped, tag = 'internal scratch']
  #allocation2 [shape = 'f32[1,18,18,128]{3,2,1,0:T(8,128)}', space=vmem, size = 0x36000, scoped, tag = 'scratch operand']
  #allocation3 [shape = 'f32[1,18,18,128]{3,2,1,0:T(8,128)}', space=vmem, size = 0x36000, scoped, tag = 'scratch operand']
  #allocation4 [shape = 'f32[256,128]{1,0:T(8,128)}', space=vmem, size = 0x20000, scoped, tag = 'scratch operand']
  #allocation5 [shape = 'f32[256,128]{1,0:T(8,128)}', space=vmem, size = 0x20000, scoped, tag = 'scratch operand']
  %s0 = inlined_call_operand.hbm [shape: f32[2,256,128], index: 0, kind: input, shape index: {}]
  %s1 = inlined_call_operand.hbm [shape: f32[9,128,128], index: 1, kind: input, shape index: {}]
  %s2 = inlined_call_operand.vmem [shape: f32[1,128], index: 2, kind: input, shape index: {}]
  %s3 = inlined_call_operand.hbm [shape: f32[9,128,128], index: 3, kind: input, shape index: {}]
  %s4 = inlined_call_operand.vmem [shape: f32[1,128], index: 4, kind: input, shape index: {}]
  %s5 = inlined_call_operand.hbm [shape: f32[2,256,128], index: 5, kind: output, shape index: {}]
  %s6 = sld [smem:[#allocation0]]
  $region65: #{tpu_custom_call.1} parent=0
    _
  %s8 = ssub.s32 1, %s6
  %s9 = scalar_select 0, %s8, %s6
  $region1: #{tpu_custom_call.1} parent=0
    #allocation6 [shape = 'u8[262144]{0}', space=vmem, size = 0x40000, scoped, tag = 'input window, operand 0']
    #allocation7 [shape = 's32[2]{0}', space=sflag, size = 0x8, scoped, tag = 'scoped memory for tpu_custom_call.1']
    #allocation8 [shape = 's32[2]{0}', space=sflag, size = 0x8, scoped, tag = 'scoped memory for tpu_custom_call.1']
    #allocation9 [shape = 'u8[589824]{0}', space=vmem, size = 0x90000, scoped, tag = 'input window, operand 1, single buffered']
    #allocation10 [shape = 's32[1]{0}', space=sflag, size = 0x4, scoped, tag = 'scoped memory for tpu_custom_call.1']
    #allocation11 [shape = 'u8[589824]{0}', space=vmem, size = 0x90000, scoped, tag = 'input window, operand 3, single buffered']
    #allocation12 [shape = 'u8[262144]{0}', space=vmem, size = 0x40000, scoped, tag = 'output window, operand 0']
    %10 = vsyncpa [#allocation7], 0
    %s11 = scalar_lea.sflag [#allocation7], 1
    %12 = vsyncpa %s11, 0
    %13 = vsyncpa [#allocation10], 0
    %14 = vsyncpa [#allocation8], 0
    %s15 = scalar_lea.sflag [#allocation8], 1
    %16 = vsyncpa %s15, 0
    loop: start=0, step=1, limit=4
    $region2: #{tpu_custom_call.1} parent=1 // loop_pre_header
      _
    $region3: #{tpu_custom_call.1} parent=1 // loop_header
      %s18 = sphi 0, %s22
      %p19 = scmp.ge.s32.totalorder %s18, 4
      %s28 = sphi 0, %s30
      %s31 = sphi 0, %s28
      %s32 = sphi 0, %s31
      %s48 = sphi 0, %s32
      %s52 = sphi 0, %s52
      %s54 = sphi 0, %s52
      %s55 = sphi 0, %s54
      %s69 = sphi 0, %s55
      %s73 = sphi 0, %s73
      %s75 = sphi 0, %s73
      %s76 = sphi 0, %s75
      %s90 = sphi 0, %s76
      %s94 = sphi 0, %s94
      %s96 = sphi 0, %s94
      %s97 = sphi 0, %s96
      %s111 = sphi 0, %s97
      %s115 = sphi 0, %s115
      %s117 = sphi 0, %s115
      %s118 = sphi 0, %s117
      %s132 = sphi 0, %s118
      %s138 = sphi 0, %s140
      %s141 = sphi 0, %s138
      %s142 = sphi 0, %s141
      %s158 = sphi 0, %s142
    $region4: #{tpu_custom_call.1} parent=1 // loop_header_branch
      %21 = sbr.rel (%p19) target = $region8
    $region5: #{tpu_custom_call.1} parent=1 // loop_body
      %s23 = ssub.s32 %s18, 1
      %s24 = ssub.s32 %s18, 2
      %s25 = sadd.s32 %s18, 1
      %s26 = ssub.s32 %s18, %s25
      %p27 = scmp.eq.s32.totalorder %s26, 0
      %s29 = sadd.s32 %s28, 1
      %s30 = scalar_select %p27, %s28, %s29
      %p33 = pneg %p27
      %p34 = scmp.eq.s32.totalorder %s18, 1
      %p35 = por %p33, %p34
      %p36 = scmp.ne.s32.totalorder %s28, %s31
      %p37 = scmp.eq.s32.totalorder %s18, 0
      %p38 = por %p36, %p37
      %p39 = scmp.ne.s32.totalorder %s28, %s31
      %p40 = scmp.eq.s32.totalorder %s23, 1
      %p41 = por %p39, %p40
      %p42 = scmp.ne.s32.totalorder %s31, %s32
      %p43 = scmp.eq.s32.totalorder %s23, 0
      %p44 = por %p42, %p43
      %p45 = scmp.ne.s32.totalorder %s31, %s32
      %p46 = scmp.eq.s32.totalorder %s24, 1
      %p47 = por %p45, %p46
      %p49 = scmp.ne.s32.totalorder %s32, %s48
      %p50 = scmp.eq.s32.totalorder %s24, 0
      %p51 = por %p49, %p50
      %s53 = sadd.s32 %s52, 1
      %p56 = scmp.eq.s32.totalorder %s18, 1
      %p57 = scmp.ne.s32.totalorder %s52, %s54
      %p58 = scmp.eq.s32.totalorder %s18, 0
      %p59 = por %p57, %p58
      %p60 = scmp.ne.s32.totalorder %s52, %s54
      %p61 = scmp.eq.s32.totalorder %s23, 1
      %p62 = por %p60, %p61
      %p63 = scmp.ne.s32.totalorder %s54, %s55
      %p64 = scmp.eq.s32.totalorder %s23, 0
      %p65 = por %p63, %p64
      %p66 = scmp.ne.s32.totalorder %s54, %s55
      %p67 = scmp.eq.s32.totalorder %s24, 1
      %p68 = por %p66, %p67
      %p70 = scmp.ne.s32.totalorder %s55, %s69
      %p71 = scmp.eq.s32.totalorder %s24, 0
      %p72 = por %p70, %p71
      %s74 = sadd.s32 %s73, 1
      %p77 = scmp.eq.s32.totalorder %s18, 1
      %p78 = scmp.ne.s32.totalorder %s73, %s75
      %p79 = scmp.eq.s32.totalorder %s18, 0
      %p80 = por %p78, %p79
      %p81 = scmp.ne.s32.totalorder %s73, %s75
      %p82 = scmp.eq.s32.totalorder %s23, 1
      %p83 = por %p81, %p82
      %p84 = scmp.ne.s32.totalorder %s75, %s76
      %p85 = scmp.eq.s32.totalorder %s23, 0
      %p86 = por %p84, %p85
      %p87 = scmp.ne.s32.totalorder %s75, %s76
      %p88 = scmp.eq.s32.totalorder %s24, 1
      %p89 = por %p87, %p88
      %p91 = scmp.ne.s32.totalorder %s76, %s90
      %p92 = scmp.eq.s32.totalorder %s24, 0
      %p93 = por %p91, %p92
      %s95 = sadd.s32 %s94, 1
      %p98 = scmp.eq.s32.totalorder %s18, 1
      %p99 = scmp.ne.s32.totalorder %s94, %s96
      %p100 = scmp.eq.s32.totalorder %s18, 0
      %p101 = por %p99, %p100
      %p102 = scmp.ne.s32.totalorder %s94, %s96
      %p103 = scmp.eq.s32.totalorder %s23, 1
      %p104 = por %p102, %p103
      %p105 = scmp.ne.s32.totalorder %s96, %s97
      %p106 = scmp.eq.s32.totalorder %s23, 0
      %p107 = por %p105, %p106
      %p108 = scmp.ne.s32.totalorder %s96, %s97
      %p109 = scmp.eq.s32.totalorder %s24, 1
      %p110 = por %p108, %p109
      %p112 = scmp.ne.s32.totalorder %s97, %s111
      %p113 = scmp.eq.s32.totalorder %s24, 0
      %p114 = por %p112, %p113
      %s116 = sadd.s32 %s115, 1
      %p119 = scmp.eq.s32.totalorder %s18, 1
      %p120 = scmp.ne.s32.totalorder %s115, %s117
      %p121 = scmp.eq.s32.totalorder %s18, 0
      %p122 = por %p120, %p121
      %p123 = scmp.ne.s32.totalorder %s115, %s117
      %p124 = scmp.eq.s32.totalorder %s23, 1
      %p125 = por %p123, %p124
      %p126 = scmp.ne.s32.totalorder %s117, %s118
      %p127 = scmp.eq.s32.totalorder %s23, 0
      %p128 = por %p126, %p127
      %p129 = scmp.ne.s32.totalorder %s117, %s118
      %p130 = scmp.eq.s32.totalorder %s24, 1
      %p131 = por %p129, %p130
      %p133 = scmp.ne.s32.totalorder %s118, %s132
      %p134 = scmp.eq.s32.totalorder %s24, 0
      %p135 = por %p133, %p134
      %s136 = ssub.s32 %s18, %s25
      %p137 = scmp.eq.s32.totalorder %s136, 0
      %s139 = sadd.s32 %s138, 1
      %s140 = scalar_select %p137, %s138, %s139
      %p143 = pneg %p137
      %p144 = scmp.eq.s32.totalorder %s18, 1
      %p145 = por %p143, %p144
      %p146 = scmp.ne.s32.totalorder %s138, %s141
      %p147 = scmp.eq.s32.totalorder %s18, 0
      %p148 = por %p146, %p147
      %p149 = scmp.ne.s32.totalorder %s138, %s141
      %p150 = scmp.eq.s32.totalorder %s23, 1
      %p151 = por %p149, %p150
      %p152 = scmp.ne.s32.totalorder %s141, %s142
      %p153 = scmp.eq.s32.totalorder %s23, 0
      %p154 = por %p152, %p153
      %p155 = scmp.ne.s32.totalorder %s141, %s142
      %p156 = scmp.eq.s32.totalorder %s24, 1
      %p157 = por %p155, %p156
      %p159 = scmp.ne.s32.totalorder %s142, %s158
      %p160 = scmp.eq.s32.totalorder %s24, 0
      %p161 = por %p159, %p160
      %p162 = scmp.le.s32.totalorder 1, %s18
      %p163 = scmp.lt.s32.totalorder %s18, 3
      %p164 = pnand %p162, %p163
      %p165 = pneg %p164
      // Predicated region
      $region9: #{tpu_custom_call.1} parent=5 // pred_check
        _
      $region10: #{tpu_custom_call.1} parent=5 // pred_check_branch
        %167 = sbr.rel (%p164) target = $region12
      $region11: #{tpu_custom_call.1} parent=5 // pred_region
        %s168 = ssub.s32 %s18, 1
        // Predicated region
        $region13: #{tpu_custom_call.1} parent=11 // pred_check
          %p169 = pneg %p65
        $region14: #{tpu_custom_call.1} parent=11 // pred_check_branch
          %171 = sbr.rel (%p169) target = $region16
        $region15: #{tpu_custom_call.1} parent=11 // pred_region
          %s173 = ssub.s32 18432, 18432
          %174 = vsyncadd [#allocation10], %s173
          %s175 = sshll.u32 [#allocation9], 4
          %s176 = int_to_ptr.vmem [resolvable:$true] %s175
          %181 = dma.hbm_to_vmem [thread:$0]  %s1, 18432, %s176, [#allocation10], 128, 128, 8
        $region16: #{tpu_custom_call.1} parent=11 // pred_fallthru
          _
        // Predicated region
        $region17: #{tpu_custom_call.1} parent=11 // pred_check
          %p182 = pneg %p86
        $region18: #{tpu_custom_call.1} parent=11 // pred_check_branch
          %184 = sbr.rel (%p182) target = $region20
        $region19: #{tpu_custom_call.1} parent=11 // pred_region
          _
        $region20: #{tpu_custom_call.1} parent=11 // pred_fallthru
          _
        // Predicated region
        $region21: #{tpu_custom_call.1} parent=11 // pred_check
          %p185 = pneg %p107
        $region22: #{tpu_custom_call.1} parent=11 // pred_check_branch
          %187 = sbr.rel (%p185) target = $region24
        $region23: #{tpu_custom_call.1} parent=11 // pred_region
          %s189 = ssub.s32 18432, 18432
          %190 = vsyncadd [#allocation10], %s189
          %s191 = sshll.u32 [#allocation11], 4
          %s192 = int_to_ptr.vmem [resolvable:$true] %s191
          %197 = dma.hbm_to_vmem [thread:$0]  %s3, 18432, %s192, [#allocation10], 128, 128, 8
        $region24: #{tpu_custom_call.1} parent=11 // pred_fallthru
          _
        // Predicated region
        $region25: #{tpu_custom_call.1} parent=11 // pred_check
          %p198 = pneg %p128
        $region26: #{tpu_custom_call.1} parent=11 // pred_check_branch
          %200 = sbr.rel (%p198) target = $region28
        $region27: #{tpu_custom_call.1} parent=11 // pred_region
          _
        $region28: #{tpu_custom_call.1} parent=11 // pred_fallthru
          _
      $region12: #{tpu_custom_call.1} parent=5 // pred_fallthru
        _
      %p201 = scmp.lt.s32.totalorder %s18, 2
      // Predicated region
      $region29: #{tpu_custom_call.1} parent=5 // pred_check
        %p202 = pneg %p201
      $region30: #{tpu_custom_call.1} parent=5 // pred_check_branch
        %204 = sbr.rel (%p202) target = $region32
      $region31: #{tpu_custom_call.1} parent=5 // pred_region
        // Predicated region
        $region33: #{tpu_custom_call.1} parent=31 // pred_check
          %p205 = pneg %p38
        $region34: #{tpu_custom_call.1} parent=31 // pred_check_branch
          %207 = sbr.rel (%p205) target = $region36
        $region35: #{tpu_custom_call.1} parent=31 // pred_region
          %s208 = sand.u32 %s28, 1
          %s209 = scalar_lea.sflag [#allocation7], %s208
          %s210 = sand.u32 %s28, 1
          %s211 = smul.addr %s210, 256
          %s212 = scalar_lea.vmem [#allocation6], %s211
          %s214 = ssub.s32 4096, 4096
          %215 = vsyncadd %s209, %s214
          %s216 = smul.addr %s18, 32
          %s217 = smul.addr %s216, 128
          %s218 = scalar_lea.hbm %s0, %s217
          %s219 = sshll.u32 %s212, 4
          %s220 = int_to_ptr.vmem [resolvable:$true] %s219
          %225 = dma.hbm_to_vmem [thread:$0]  %s218, 4096, %s220, %s209, 128, 128, 8
        $region36: #{tpu_custom_call.1} parent=31 // pred_fallthru
          _
      $region32: #{tpu_custom_call.1} parent=5 // pred_fallthru
        _
      %p226 = scmp.le.s32.totalorder 1, %s18
      %p227 = scmp.lt.s32.totalorder %s18, 3
      %p228 = pnand %p226, %p227
      %p229 = pneg %p228
      // Predicated region
      $region37: #{tpu_custom_call.1} parent=5 // pred_check
        _
      $region38: #{tpu_custom_call.1} parent=5 // pred_check_branch
        %231 = sbr.rel (%p228) target = $region40
      $region39: #{tpu_custom_call.1} parent=5 // pred_region
        %s232 = ssub.s32 %s18, 1
        %s233 = sand.u32 %s31, 1
        %s234 = scalar_lea.sflag [#allocation7], %s233
        %s235 = sand.u32 %s31, 1
        %s236 = smul.addr %s235, 256
        %s237 = scalar_lea.vmem [#allocation6], %s236
        // Predicated region
        $region41: #{tpu_custom_call.1} parent=39 // pred_check
          %p238 = pneg %p44
        $region42: #{tpu_custom_call.1} parent=39 // pred_check_branch
          %240 = sbr.rel (%p238) target = $region44
        $region43: #{tpu_custom_call.1} parent=39 // pred_region
          %241 = dma.done %s234, 4096
        $region44: #{tpu_custom_call.1} parent=39 // pred_fallthru
          _
        // Predicated region
        $region45: #{tpu_custom_call.1} parent=39 // pred_check
          %p242 = pneg %p65
        $region46: #{tpu_custom_call.1} parent=39 // pred_check_branch
          %244 = sbr.rel (%p242) target = $region48
        $region47: #{tpu_custom_call.1} parent=39 // pred_region
          %245 = dma.done [#allocation10], 18432
        $region48: #{tpu_custom_call.1} parent=39 // pred_fallthru
          _
        // Predicated region
        $region49: #{tpu_custom_call.1} parent=39 // pred_check
          %p246 = pneg %p107
        $region50: #{tpu_custom_call.1} parent=39 // pred_check_branch
          %248 = sbr.rel (%p246) target = $region52
        $region51: #{tpu_custom_call.1} parent=39 // pred_region
          %249 = dma.done [#allocation10], 18432
        $region52: #{tpu_custom_call.1} parent=39 // pred_fallthru
          _
        %s250 = sand.u32 %s31, 1
        %s251 = scalar_lea.sflag [#allocation7], %s250
        %s252 = sand.u32 %s31, 1
        %s253 = smul.addr %s252, 256
        %s254 = scalar_lea.vmem [#allocation6], %s253
        %p255 = pneg %p44
        %p256 = pneg %p41
        %p257 = pneg %p65
        %p258 = pneg %p62
        %p259 = pneg %p86
        %p260 = pneg %p83
        %p261 = pneg %p107
        %p262 = pneg %p104
        %p263 = pneg %p128
        %p264 = pneg %p125
        %p265 = pneg %p154
        %p266 = pneg %p151
        %s267 = sand.u32 %s141, 1
        %s268 = scalar_lea.sflag [#allocation8], %s267
        %s269 = sand.u32 %s141, 1
        %s270 = smul.addr %s269, 256
        %s271 = scalar_lea.vmem [#allocation12], %s270
        %272 = vst [vmem:[#allocation2] sm:$0xff] 0.0
        %273 = vst [vmem:[#allocation2 + $0x8] sm:$0xff] 0.0
        %274 = vst [vmem:[#allocation2 + $0x10] sm:$0x3] 0.0
        %s275 = scalar_lea.vmem [#allocation2], 408
        %276 = vst [vmem:[%s275] sm:$0xff] 0.0
        %277 = vst [vmem:[%s275 + $0x8] sm:$0xff] 0.0
        %278 = vst [vmem:[%s275 + $0x10] sm:$0x3] 0.0
        %279 = vst [vmem:[#allocation2] sm:$0x1] 0.0
        %280 = vst [vmem:[#allocation2 + $0x18] sm:$0x1] 0.0
        %281 = vst [vmem:[#allocation2 + $0x30] sm:$0x1] 0.0
        %282 = vst [vmem:[#allocation2 + $0x48] sm:$0x1] 0.0
        %283 = vst [vmem:[#allocation2 + $0x60] sm:$0x1] 0.0
        %284 = vst [vmem:[#allocation2 + $0x78] sm:$0x1] 0.0
        %285 = vst [vmem:[#allocation2 + $0x90] sm:$0x1] 0.0
        %286 = vst [vmem:[#allocation2 + $0xa8] sm:$0x1] 0.0
        %287 = vst [vmem:[#allocation2 + $0xc0] sm:$0x1] 0.0
        %288 = vst [vmem:[#allocation2 + $0xd8] sm:$0x1] 0.0
        %289 = vst [vmem:[#allocation2 + $0xf0] sm:$0x1] 0.0
        %290 = vst [vmem:[#allocation2 + $0x108] sm:$0x1] 0.0
        %291 = vst [vmem:[#allocation2 + $0x120] sm:$0x1] 0.0
        %292 = vst [vmem:[#allocation2 + $0x138] sm:$0x1] 0.0
        %293 = vst [vmem:[#allocation2 + $0x150] sm:$0x1] 0.0
        %294 = vst [vmem:[#allocation2 + $0x168] sm:$0x1] 0.0
        %295 = vst [vmem:[#allocation2 + $0x180] sm:$0x1] 0.0
        %296 = vst [vmem:[#allocation2 + $0x198] sm:$0x1] 0.0
        %297 = vst [vmem:[#allocation2 + $0x11] sm:$0x1] 0.0
        %298 = vst [vmem:[#allocation2 + $0x29] sm:$0x1] 0.0
        %299 = vst [vmem:[#allocation2 + $0x41] sm:$0x1] 0.0
        %300 = vst [vmem:[#allocation2 + $0x59] sm:$0x1] 0.0
        %301 = vst [vmem:[#allocation2 + $0x71] sm:$0x1] 0.0
        %302 = vst [vmem:[#allocation2 + $0x89] sm:$0x1] 0.0
        %303 = vst [vmem:[#allocation2 + $0xa1] sm:$0x1] 0.0
        %304 = vst [vmem:[#allocation2 + $0xb9] sm:$0x1] 0.0
        %305 = vst [vmem:[#allocation2 + $0xd1] sm:$0x1] 0.0
        %306 = vst [vmem:[#allocation2 + $0xe9] sm:$0x1] 0.0
        %307 = vst [vmem:[#allocation2 + $0x101] sm:$0x1] 0.0
        %308 = vst [vmem:[#allocation2 + $0x119] sm:$0x1] 0.0
        %309 = vst [vmem:[#allocation2 + $0x131] sm:$0x1] 0.0
        %310 = vst [vmem:[#allocation2 + $0x149] sm:$0x1] 0.0
        %311 = vst [vmem:[#allocation2 + $0x161] sm:$0x1] 0.0
        %312 = vst [vmem:[#allocation2 + $0x179] sm:$0x1] 0.0
        %313 = vst [vmem:[#allocation2 + $0x191] sm:$0x1] 0.0
        %314 = vst [vmem:[#allocation2 + $0x1a9] sm:$0x1] 0.0
        %315 = vst [vmem:[#allocation3] sm:$0xff] 0.0
        %316 = vst [vmem:[#allocation3 + $0x8] sm:$0xff] 0.0
        %317 = vst [vmem:[#allocation3 + $0x10] sm:$0x3] 0.0
        %s318 = scalar_lea.vmem [#allocation3], 408
        %319 = vst [vmem:[%s318] sm:$0xff] 0.0
        %320 = vst [vmem:[%s318 + $0x8] sm:$0xff] 0.0
        %321 = vst [vmem:[%s318 + $0x10] sm:$0x3] 0.0
        %322 = vst [vmem:[#allocation3] sm:$0x1] 0.0
        %323 = vst [vmem:[#allocation3 + $0x18] sm:$0x1] 0.0
        %324 = vst [vmem:[#allocation3 + $0x30] sm:$0x1] 0.0
        %325 = vst [vmem:[#allocation3 + $0x48] sm:$0x1] 0.0
        %326 = vst [vmem:[#allocation3 + $0x60] sm:$0x1] 0.0
        %327 = vst [vmem:[#allocation3 + $0x78] sm:$0x1] 0.0
        %328 = vst [vmem:[#allocation3 + $0x90] sm:$0x1] 0.0
        %329 = vst [vmem:[#allocation3 + $0xa8] sm:$0x1] 0.0
        %330 = vst [vmem:[#allocation3 + $0xc0] sm:$0x1] 0.0
        %331 = vst [vmem:[#allocation3 + $0xd8] sm:$0x1] 0.0
        %332 = vst [vmem:[#allocation3 + $0xf0] sm:$0x1] 0.0
        %333 = vst [vmem:[#allocation3 + $0x108] sm:$0x1] 0.0
        %334 = vst [vmem:[#allocation3 + $0x120] sm:$0x1] 0.0
        %335 = vst [vmem:[#allocation3 + $0x138] sm:$0x1] 0.0
        %336 = vst [vmem:[#allocation3 + $0x150] sm:$0x1] 0.0
        %337 = vst [vmem:[#allocation3 + $0x168] sm:$0x1] 0.0
        %338 = vst [vmem:[#allocation3 + $0x180] sm:$0x1] 0.0
        %339 = vst [vmem:[#allocation3 + $0x198] sm:$0x1] 0.0
        %340 = vst [vmem:[#allocation3 + $0x11] sm:$0x1] 0.0
        %341 = vst [vmem:[#allocation3 + $0x29] sm:$0x1] 0.0
        %342 = vst [vmem:[#allocation3 + $0x41] sm:$0x1] 0.0
        %343 = vst [vmem:[#allocation3 + $0x59] sm:$0x1] 0.0
        %344 = vst [vmem:[#allocation3 + $0x71] sm:$0x1] 0.0
        %345 = vst [vmem:[#allocation3 + $0x89] sm:$0x1] 0.0
        %346 = vst [vmem:[#allocation3 + $0xa1] sm:$0x1] 0.0
        %347 = vst [vmem:[#allocation3 + $0xb9] sm:$0x1] 0.0
        %348 = vst [vmem:[#allocation3 + $0xd1] sm:$0x1] 0.0
        %349 = vst [vmem:[#allocation3 + $0xe9] sm:$0x1] 0.0
        %350 = vst [vmem:[#allocation3 + $0x101] sm:$0x1] 0.0
        %351 = vst [vmem:[#allocation3 + $0x119] sm:$0x1] 0.0
        %352 = vst [vmem:[#allocation3 + $0x131] sm:$0x1] 0.0
        %353 = vst [vmem:[#allocation3 + $0x149] sm:$0x1] 0.0
        %354 = vst [vmem:[#allocation3 + $0x161] sm:$0x1] 0.0
        %355 = vst [vmem:[#allocation3 + $0x179] sm:$0x1] 0.0
        %356 = vst [vmem:[#allocation3 + $0x191] sm:$0x1] 0.0
        %357 = vst [vmem:[#allocation3 + $0x1a9] sm:$0x1] 0.0
        %v358 = vld [vmem:[%s237] sm:$0xff]
        %v359 = vld [vmem:[%s237 + $0x8] sm:$0xff]
        %v360 = vld [vmem:[%s237 + $0x10] sm:$0xff]
        %v361 = vld [vmem:[%s237 + $0x18] sm:$0xff]
        %v362 = vld [vmem:[%s237 + $0x20] sm:$0xff]
        %v363 = vld [vmem:[%s237 + $0x28] sm:$0xff]
        %v364 = vld [vmem:[%s237 + $0x30] sm:$0xff]
        %v365 = vld [vmem:[%s237 + $0x38] sm:$0xff]
        %v366 = vld [vmem:[%s237 + $0x40] sm:$0xff]
        %v367 = vld [vmem:[%s237 + $0x48] sm:$0xff]
        %v368 = vld [vmem:[%s237 + $0x50] sm:$0xff]
        %v369 = vld [vmem:[%s237 + $0x58] sm:$0xff]
        %v370 = vld [vmem:[%s237 + $0x60] sm:$0xff]
        %v371 = vld [vmem:[%s237 + $0x68] sm:$0xff]
        %v372 = vld [vmem:[%s237 + $0x70] sm:$0xff]
        %v373 = vld [vmem:[%s237 + $0x78] sm:$0xff]
        %v374 = vld [vmem:[%s237 + $0x80] sm:$0xff]
        %v375 = vld [vmem:[%s237 + $0x88] sm:$0xff]
        %v376 = vld [vmem:[%s237 + $0x90] sm:$0xff]
        %v377 = vld [vmem:[%s237 + $0x98] sm:$0xff]
        %v378 = vld [vmem:[%s237 + $0xa0] sm:$0xff]
        %v379 = vld [vmem:[%s237 + $0xa8] sm:$0xff]
        %v380 = vld [vmem:[%s237 + $0xb0] sm:$0xff]
        %v381 = vld [vmem:[%s237 + $0xb8] sm:$0xff]
        %v382 = vld [vmem:[%s237 + $0xc0] sm:$0xff]
        %v383 = vld [vmem:[%s237 + $0xc8] sm:$0xff]
        %v384 = vld [vmem:[%s237 + $0xd0] sm:$0xff]
        %v385 = vld [vmem:[%s237 + $0xd8] sm:$0xff]
        %v386 = vld [vmem:[%s237 + $0xe0] sm:$0xff]
        %v387 = vld [vmem:[%s237 + $0xe8] sm:$0xff]
        %v388 = vld [vmem:[%s237 + $0xf0] sm:$0xff]
        %v389 = vld [vmem:[%s237 + $0xf8] sm:$0xff]
        %s390 = scalar_lea.vmem [#allocation2], 24
        %391 = vst [vmem:[%s390 + $0x1] sm:$0xff] %v358
        %392 = vst [vmem:[%s390 + $0x9] sm:$0xff] %v359
        %393 = vst [vmem:[%s390 + $0x19] sm:$0xff] %v360
        %394 = vst [vmem:[%s390 + $0x21] sm:$0xff] %v361
        %395 = vst [vmem:[%s390 + $0x31] sm:$0xff] %v362
        %396 = vst [vmem:[%s390 + $0x39] sm:$0xff] %v363
        %397 = vst [vmem:[%s390 + $0x49] sm:$0xff] %v364
        %398 = vst [vmem:[%s390 + $0x51] sm:$0xff] %v365
        %399 = vst [vmem:[%s390 + $0x61] sm:$0xff] %v366
        %400 = vst [vmem:[%s390 + $0x69] sm:$0xff] %v367
        %401 = vst [vmem:[%s390 + $0x79] sm:$0xff] %v368
        %402 = vst [vmem:[%s390 + $0x81] sm:$0xff] %v369
        %403 = vst [vmem:[%s390 + $0x91] sm:$0xff] %v370
        %404 = vst [vmem:[%s390 + $0x99] sm:$0xff] %v371
        %405 = vst [vmem:[%s390 + $0xa9] sm:$0xff] %v372
        %406 = vst [vmem:[%s390 + $0xb1] sm:$0xff] %v373
        %407 = vst [vmem:[%s390 + $0xc1] sm:$0xff] %v374
        %408 = vst [vmem:[%s390 + $0xc9] sm:$0xff] %v375
        %409 = vst [vmem:[%s390 + $0xd9] sm:$0xff] %v376
        %410 = vst [vmem:[%s390 + $0xe1] sm:$0xff] %v377
        %411 = vst [vmem:[%s390 + $0xf1] sm:$0xff] %v378
        %412 = vst [vmem:[%s390 + $0xf9] sm:$0xff] %v379
        %413 = vst [vmem:[%s390 + $0x109] sm:$0xff] %v380
        %414 = vst [vmem:[%s390 + $0x111] sm:$0xff] %v381
        %415 = vst [vmem:[%s390 + $0x121] sm:$0xff] %v382
        %416 = vst [vmem:[%s390 + $0x129] sm:$0xff] %v383
        %417 = vst [vmem:[%s390 + $0x139] sm:$0xff] %v384
        %418 = vst [vmem:[%s390 + $0x141] sm:$0xff] %v385
        %419 = vst [vmem:[%s390 + $0x151] sm:$0xff] %v386
        %420 = vst [vmem:[%s390 + $0x159] sm:$0xff] %v387
        %421 = vst [vmem:[%s390 + $0x169] sm:$0xff] %v388
        %422 = vst [vmem:[%s390 + $0x171] sm:$0xff] %v389
        %v423 = vld [vmem:[%s2] sm:$0x1]
        %v425 = vlaneseq
        %v426 = vshrl.u32 %v425, 7
        %v427 = vsub.s32 0, %v426
        %v428 = vrot.slane %v423, %v427
        %430 = vst [vmem:[#allocation4] sm:$0xff] %v428
        %431 = vst [vmem:[#allocation4 + $0x8] sm:$0xff] %v428
        %432 = vst [vmem:[#allocation4 + $0x10] sm:$0xff] %v428
        %433 = vst [vmem:[#allocation4 + $0x18] sm:$0xff] %v428
        %434 = vst [vmem:[#allocation4 + $0x20] sm:$0xff] %v428
        %435 = vst [vmem:[#allocation4 + $0x28] sm:$0xff] %v428
        %436 = vst [vmem:[#allocation4 + $0x30] sm:$0xff] %v428
        %437 = vst [vmem:[#allocation4 + $0x38] sm:$0xff] %v428
        %438 = vst [vmem:[#allocation4 + $0x40] sm:$0xff] %v428
        %439 = vst [vmem:[#allocation4 + $0x48] sm:$0xff] %v428
        %440 = vst [vmem:[#allocation4 + $0x50] sm:$0xff] %v428
        %441 = vst [vmem:[#allocation4 + $0x58] sm:$0xff] %v428
        %442 = vst [vmem:[#allocation4 + $0x60] sm:$0xff] %v428
        %443 = vst [vmem:[#allocation4 + $0x68] sm:$0xff] %v428
        %444 = vst [vmem:[#allocation4 + $0x70] sm:$0xff] %v428
        %445 = vst [vmem:[#allocation4 + $0x78] sm:$0xff] %v428
        %446 = vst [vmem:[#allocation4 + $0x80] sm:$0xff] %v428
        %447 = vst [vmem:[#allocation4 + $0x88] sm:$0xff] %v428
        %448 = vst [vmem:[#allocation4 + $0x90] sm:$0xff] %v428
        %449 = vst [vmem:[#allocation4 + $0x98] sm:$0xff] %v428
        %450 = vst [vmem:[#allocation4 + $0xa0] sm:$0xff] %v428
        %451 = vst [vmem:[#allocation4 + $0xa8] sm:$0xff] %v428
        %452 = vst [vmem:[#allocation4 + $0xb0] sm:$0xff] %v428
        %453 = vst [vmem:[#allocation4 + $0xb8] sm:$0xff] %v428
        %454 = vst [vmem:[#allocation4 + $0xc0] sm:$0xff] %v428
        %455 = vst [vmem:[#allocation4 + $0xc8] sm:$0xff] %v428
        %456 = vst [vmem:[#allocation4 + $0xd0] sm:$0xff] %v428
        %457 = vst [vmem:[#allocation4 + $0xd8] sm:$0xff] %v428
        %458 = vst [vmem:[#allocation4 + $0xe0] sm:$0xff] %v428
        %459 = vst [vmem:[#allocation4 + $0xe8] sm:$0xff] %v428
        %460 = vst [vmem:[#allocation4 + $0xf0] sm:$0xff] %v428
        %461 = vst [vmem:[#allocation4 + $0xf8] sm:$0xff] %v428
        %v462 = vld [vmem:[#allocation2] sm:$0xff]
        %v463 = vld [vmem:[#allocation2 + $0x8] sm:$0xff]
        %v464 = vld [vmem:[#allocation2 + $0x18] sm:$0xff]
        %v465 = vld [vmem:[#allocation2 + $0x20] sm:$0xff]
        %v466 = vld [vmem:[#allocation2 + $0x30] sm:$0xff]
        %v467 = vld [vmem:[#allocation2 + $0x38] sm:$0xff]
        %v468 = vld [vmem:[#allocation2 + $0x48] sm:$0xff]
        %v469 = vld [vmem:[#allocation2 + $0x50] sm:$0xff]
        %v470 = vld [vmem:[#allocation2 + $0x60] sm:$0xff]
        %v471 = vld [vmem:[#allocation2 + $0x68] sm:$0xff]
        %v472 = vld [vmem:[#allocation2 + $0x78] sm:$0xff]
        %v473 = vld [vmem:[#allocation2 + $0x80] sm:$0xff]
        %v474 = vld [vmem:[#allocation2 + $0x90] sm:$0xff]
        %v475 = vld [vmem:[#allocation2 + $0x98] sm:$0xff]
        %v476 = vld [vmem:[#allocation2 + $0xa8] sm:$0xff]
        %v477 = vld [vmem:[#allocation2 + $0xb0] sm:$0xff]
        %v478 = vld [vmem:[#allocation2 + $0xc0] sm:$0xff]
        %v479 = vld [vmem:[#allocation2 + $0xc8] sm:$0xff]
        %v480 = vld [vmem:[#allocation2 + $0xd8] sm:$0xff]
        %v481 = vld [vmem:[#allocation2 + $0xe0] sm:$0xff]
        %v482 = vld [vmem:[#allocation2 + $0xf0] sm:$0xff]
        %v483 = vld [vmem:[#allocation2 + $0xf8] sm:$0xff]
        %v484 = vld [vmem:[#allocation2 + $0x108] sm:$0xff]
        %v485 = vld [vmem:[#allocation2 + $0x110] sm:$0xff]
        %v486 = vld [vmem:[#allocation2 + $0x120] sm:$0xff]
        %v487 = vld [vmem:[#allocation2 + $0x128] sm:$0xff]
        %v488 = vld [vmem:[#allocation2 + $0x138] sm:$0xff]
        %v489 = vld [vmem:[#allocation2 + $0x140] sm:$0xff]
        %v490 = vld [vmem:[#allocation2 + $0x150] sm:$0xff]
        %v491 = vld [vmem:[#allocation2 + $0x158] sm:$0xff]
        %v492 = vld [vmem:[#allocation2 + $0x168] sm:$0xff]
        %v493 = vld [vmem:[#allocation2 + $0x170] sm:$0xff]
        %v494 = vld [vmem:[#allocation4] sm:$0xff]
        %v495 = vld [vmem:[#allocation4 + $0x8] sm:$0xff]
        %v496 = vld [vmem:[#allocation4 + $0x10] sm:$0xff]
        %v497 = vld [vmem:[#allocation4 + $0x18] sm:$0xff]
        %v498 = vld [vmem:[#allocation4 + $0x20] sm:$0xff]
        %v499 = vld [vmem:[#allocation4 + $0x28] sm:$0xff]
        %v500 = vld [vmem:[#allocation4 + $0x30] sm:$0xff]
        %v501 = vld [vmem:[#allocation4 + $0x38] sm:$0xff]
        %v502 = vld [vmem:[#allocation4 + $0x40] sm:$0xff]
        %v503 = vld [vmem:[#allocation4 + $0x48] sm:$0xff]
        %v504 = vld [vmem:[#allocation4 + $0x50] sm:$0xff]
        %v505 = vld [vmem:[#allocation4 + $0x58] sm:$0xff]
        %v506 = vld [vmem:[#allocation4 + $0x60] sm:$0xff]
        %v507 = vld [vmem:[#allocation4 + $0x68] sm:$0xff]
        %v508 = vld [vmem:[#allocation4 + $0x70] sm:$0xff]
        %v509 = vld [vmem:[#allocation4 + $0x78] sm:$0xff]
        %v510 = vld [vmem:[#allocation4 + $0x80] sm:$0xff]
        %v511 = vld [vmem:[#allocation4 + $0x88] sm:$0xff]
        %v512 = vld [vmem:[#allocation4 + $0x90] sm:$0xff]
        %v513 = vld [vmem:[#allocation4 + $0x98] sm:$0xff]
        %v514 = vld [vmem:[#allocation4 + $0xa0] sm:$0xff]
        %v515 = vld [vmem:[#allocation4 + $0xa8] sm:$0xff]
        %v516 = vld [vmem:[#allocation4 + $0xb0] sm:$0xff]
        %v517 = vld [vmem:[#allocation4 + $0xb8] sm:$0xff]
        %v518 = vld [vmem:[#allocation4 + $0xc0] sm:$0xff]
        %v519 = vld [vmem:[#allocation4 + $0xc8] sm:$0xff]
        %v520 = vld [vmem:[#allocation4 + $0xd0] sm:$0xff]
        %v521 = vld [vmem:[#allocation4 + $0xd8] sm:$0xff]
        %v522 = vld [vmem:[#allocation4 + $0xe0] sm:$0xff]
        %v523 = vld [vmem:[#allocation4 + $0xe8] sm:$0xff]
        %v524 = vld [vmem:[#allocation4 + $0xf0] sm:$0xff]
        %v525 = vld [vmem:[#allocation4 + $0xf8] sm:$0xff]
        %v526 = vld [vmem:[#allocation9] sm:$0xff]
        %v527 = vld [vmem:[#allocation9 + $0x8] sm:$0xff]
        %v528 = vld [vmem:[#allocation9 + $0x10] sm:$0xff]
        %v529 = vld [vmem:[#allocation9 + $0x18] sm:$0xff]
        %v530 = vld [vmem:[#allocation9 + $0x20] sm:$0xff]
        %v531 = vld [vmem:[#allocation9 + $0x28] sm:$0xff]
        %v532 = vld [vmem:[#allocation9 + $0x30] sm:$0xff]
        %v533 = vld [vmem:[#allocation9 + $0x38] sm:$0xff]
        %v534 = vld [vmem:[#allocation9 + $0x40] sm:$0xff]
        %v535 = vld [vmem:[#allocation9 + $0x48] sm:$0xff]
        %v536 = vld [vmem:[#allocation9 + $0x50] sm:$0xff]
        %v537 = vld [vmem:[#allocation9 + $0x58] sm:$0xff]
        %v538 = vld [vmem:[#allocation9 + $0x60] sm:$0xff]
        %v539 = vld [vmem:[#allocation9 + $0x68] sm:$0xff]
        %v540 = vld [vmem:[#allocation9 + $0x70] sm:$0xff]
        %v541 = vld [vmem:[#allocation9 + $0x78] sm:$0xff]
        %542 = vmatprep.subr.mxu0 0.0
        %543 = vmatpush1.msra.mxu0 %v526
        %544 = vmatprep.subr.mxu0 0.0
        %545 = vmatpush1.msra.mxu0 %v527
        %546 = vmatprep.subr.mxu0 0.0
        %547 = vmatpush1.msra.mxu0 %v528
        %548 = vmatprep.subr.mxu0 0.0
        %549 = vmatpush1.msra.mxu0 %v529
        %550 = vmatprep.subr.mxu0 0.0
        %551 = vmatpush1.msra.mxu0 %v530
        %552 = vmatprep.subr.mxu0 0.0
        %553 = vmatpush1.msra.mxu0 %v531
        %554 = vmatprep.subr.mxu0 0.0
        %555 = vmatpush1.msra.mxu0 %v532
        %556 = vmatprep.subr.mxu0 0.0
        %557 = vmatpush1.msra.mxu0 %v533
        %558 = vmatprep.subr.mxu0 0.0
        %559 = vmatpush1.msra.mxu0 %v534
        %560 = vmatprep.subr.mxu0 0.0
        %561 = vmatpush1.msra.mxu0 %v535
        %562 = vmatprep.subr.mxu0 0.0
        %563 = vmatpush1.msra.mxu0 %v536
        %564 = vmatprep.subr.mxu0 0.0
        %565 = vmatpush1.msra.mxu0 %v537
        %566 = vmatprep.subr.mxu0 0.0
        %567 = vmatpush1.msra.mxu0 %v538
        %568 = vmatprep.subr.mxu0 0.0
        %569 = vmatpush1.msra.mxu0 %v539
        %570 = vmatprep.subr.mxu0 0.0
        %571 = vmatpush1.msra.mxu0 %v540
        %572 = vmatprep.subr.mxu0 0.0
        %573 = vmatpush1.msra.mxu0 %v541
        %574 = vmatprep.subr.mxu0 0.0
        %575 = vmatpush1.msra.mxu0 0.0
        %576 = vmatprep.subr.mxu0 0.0
        %577 = vmatpush1.msra.mxu0 0.0
        %578 = vmatprep.subr.mxu0 0.0
        %579 = vmatpush1.msra.mxu0 0.0
        %580 = vmatprep.subr.mxu0 0.0
        %581 = vmatpush1.msra.mxu0 0.0
        %582 = vmatprep.subr.mxu0 0.0
        %583 = vmatpush1.msra.mxu0 0.0
        %584 = vmatprep.subr.mxu0 0.0
        %585 = vmatpush1.msra.mxu0 0.0
        %586 = vmatprep.subr.mxu0 0.0
        %587 = vmatpush1.msra.mxu0 0.0
        %588 = vmatprep.subr.mxu0 0.0
        %589 = vmatpush1.msra.mxu0 0.0
        %590 = vmatprep.subr.mxu0 0.0
        %591 = vmatpush1.msra.mxu0 0.0
        %592 = vmatprep.subr.mxu0 0.0
        %593 = vmatpush1.msra.mxu0 0.0
        %594 = vmatprep.subr.mxu0 0.0
        %595 = vmatpush1.msra.mxu0 0.0
        %596 = vmatprep.subr.mxu0 0.0
        %597 = vmatpush1.msra.mxu0 0.0
        %598 = vmatprep.subr.mxu0 0.0
        %599 = vmatpush1.msra.mxu0 0.0
        %600 = vmatprep.subr.mxu0 0.0
        %601 = vmatpush1.msra.mxu0 0.0
        %602 = vmatprep.subr.mxu0 0.0
        %603 = vmatpush1.msra.mxu0 0.0
        %604 = vmatprep.subr.mxu0 0.0
        %605 = vmatpush1.msra.mxu0 0.0
        %606 = vmatprep.mubr.f32.mxu0 0.0
        %607 = vmatmul.mubr.f32.gmra.mrb[0].mxu0 %v462
        %v608 = vpop.f32.mrb[0].mxu0
        %v609 = vadd.f32 0.0, %v608
        %v610 = vpop.f32.mrb[0].mxu0
        %611 = vmatprep.mubr.f32.mxu0 0.0
        %612 = vmatmul.mubr.f32.gmra.mrb[0].mxu0 %v463
        %v613 = vpop.f32.mrb[0].mxu0
        %v614 = vadd.f32 0.0, %v613
        %v615 = vpop.f32.mrb[0].mxu0
        %616 = vmatprep.mubr.f32.mxu0 0.0
        %617 = vmatmul.mubr.f32.gmra.mrb[0].mxu0 %v464
        %v618 = vpop.f32.mrb[0].mxu0
        %v619 = vadd.f32 0.0, %v618
        %v620 = vpop.f32.mrb[0].mxu0
        %621 = vmatprep.mubr.f32.mxu0 0.0
        %622 = vmatmul.mubr.f32.gmra.mrb[0].mxu0 %v465
        %v623 = vpop.f32.mrb[0].mxu0
        %v624 = vadd.f32 0.0, %v623
        %v625 = vpop.f32.mrb[0].mxu0
        %626 = vmatprep.mubr.f32.mxu0 0.0
        %627 = vmatmul.mubr.f32.gmra.mrb[0].mxu0 %v466
        %v628 = vpop.f32.mrb[0].mxu0
        %v629 = vadd.f32 0.0, %v628
        %v630 = vpop.f32.mrb[0].mxu0
        %631 = vmatprep.mubr.f32.mxu0 0.0
        %632 = vmatmul.mubr.f32.gmra.mrb[0].mxu0 %v467
        %v633 = vpop.f32.mrb[0].mxu0
        %v634 = vadd.f32 0.0, %v633
        %v635 = vpop.f32.mrb[0].mxu0
        %636 = vmatprep.mubr.f32.mxu0 0.0
        %637 = vmatmul.mubr.f32.gmra.mrb[0].mxu0 %v468
        %v638 = vpop.f32.mrb[0].mxu0
        %v639 = vadd.f32 0.0, %v638
        %v640 = vpop.f32.mrb[0].mxu0
        %641 = vmatprep.mubr.f32.mxu0 0.0
        %642 = vmatmul.mubr.f32.gmra.mrb[0].mxu0 %v469
        %v643 = vpop.f32.mrb[0].mxu0
        %v644 = vadd.f32 0.0, %v643
        %v645 = vpop.f32.mrb[0].mxu0
        %646 = vmatprep.mubr.f32.mxu0 0.0
        %647 = vmatmul.mubr.f32.gmra.mrb[0].mxu0 %v470
        %v648 = vpop.f32.mrb[0].mxu0
        %v649 = vadd.f32 0.0, %v648
        %v650 = vpop.f32.mrb[0].mxu0
        %651 = vmatprep.mubr.f32.mxu0 0.0
        %652 = vmatmul.mubr.f32.gmra.mrb[0].mxu0 %v471
        %v653 = vpop.f32.mrb[0].mxu0
        %v654 = vadd.f32 0.0, %v653
        %v655 = vpop.f32.mrb[0].mxu0
        %656 = vmatprep.mubr.f32.mxu0 0.0
        %657 = vmatmul.mubr.f32.gmra.mrb[0].mxu0 %v472
        %v658 = vpop.f32.mrb[0].mxu0
        %v659 = vadd.f32 0.0, %v658
        %v660 = vpop.f32.mrb[0].mxu0
        %661 = vmatprep.mubr.f32.mxu0 0.0
        %662 = vmatmul.mubr.f32.gmra.mrb[0].mxu0 %v473
        %v663 = vpop.f32.mrb[0].mxu0
        %v664 = vadd.f32 0.0, %v663
        %v665 = vpop.f32.mrb[0].mxu0
        %666 = vmatprep.mubr.f32.mxu0 0.0
        %667 = vmatmul.mubr.f32.gmra.mrb[0].mxu0 %v474
        %v668 = vpop.f32.mrb[0].mxu0
        %v669 = vadd.f32 0.0, %v668
        %v670 = vpop.f32.mrb[0].mxu0
        %671 = vmatprep.mubr.f32.mxu0 0.0
        %672 = vmatmul.mubr.f32.gmra.mrb[0].mxu0 %v475
        %v673 = vpop.f32.mrb[0].mxu0
        %v674 = vadd.f32 0.0, %v673
        %v675 = vpop.f32.mrb[0].mxu0
        %676 = vmatprep.mubr.f32.mxu0 0.0
        %677 = vmatmul.mubr.f32.gmra.mrb[0].mxu0 %v476
        %v678 = vpop.f32.mrb[0].mxu0
        %v679 = vadd.f32 0.0, %v678
        %v680 = vpop.f32.mrb[0].mxu0
        %681 = vmatprep.mubr.f32.mxu0 0.0
        %682 = vmatmul.mubr.f32.gmra.mrb[0].mxu0 %v477
        %v683 = vpop.f32.mrb[0].mxu0
        %v684 = vadd.f32 0.0, %v683
        %v685 = vpop.f32.mrb[0].mxu0
        %686 = vmatprep.mubr.f32.mxu0 0.0
        %687 = vmatmul.mubr.f32.gmra.mrb[0].mxu0 %v478
        %v688 = vpop.f32.mrb[0].mxu0
        %v689 = vadd.f32 0.0, %v688
        %v690 = vpop.f32.mrb[0].mxu0
        %691 = vmatprep.mubr.f32.mxu0 0.0
        %692 = vmatmul.mubr.f32.gmra.mrb[0].mxu0 %v479
        %v693 = vpop.f32.mrb[0].mxu0
        %v694 = vadd.f32 0.0, %v693
        %v695 = vpop.f32.mrb[0].mxu0
        %696 = vmatprep.mubr.f32.mxu0 0.0
        %697 = vmatmul.mubr.f32.gmra.mrb[0].mxu0 %v480
        %v698 = vpop.f32.mrb[0].mxu0
        %v699 = vadd.f32 0.0, %v698
        %v700 = vpop.f32.mrb[0].mxu0
        %701 = vmatprep.mubr.f32.mxu0 0.0
        %702 = vmatmul.mubr.f32.gmra.mrb[0].mxu0 %v481
        %v703 = vpop.f32.mrb[0].mxu0
        %v704 = vadd.f32 0.0, %v703
        %v705 = vpop.f32.mrb[0].mxu0
        %706 = vmatprep.mubr.f32.mxu0 0.0
        %707 = vmatmul.mubr.f32.gmra.mrb[0].mxu0 %v482
        %v708 = vpop.f32.mrb[0].mxu0
        %v709 = vadd.f32 0.0, %v708
        %v710 = vpop.f32.mrb[0].mxu0
        %711 = vmatprep.mubr.f32.mxu0 0.0
        %712 = vmatmul.mubr.f32.gmra.mrb[0].mxu0 %v483
        %v713 = vpop.f32.mrb[0].mxu0
        %v714 = vadd.f32 0.0, %v713
        %v715 = vpop.f32.mrb[0].mxu0
        %716 = vmatprep.mubr.f32.mxu0 0.0
        %717 = vmatmul.mubr.f32.gmra.mrb[0].mxu0 %v484
        %v718 = vpop.f32.mrb[0].mxu0
        %v719 = vadd.f32 0.0, %v718
        %v720 = vpop.f32.mrb[0].mxu0
        %721 = vmatprep.mubr.f32.mxu0 0.0
        %722 = vmatmul.mubr.f32.gmra.mrb[0].mxu0 %v485
        %v723 = vpop.f32.mrb[0].mxu0
        %v724 = vadd.f32 0.0, %v723
        %v725 = vpop.f32.mrb[0].mxu0
        %726 = vmatprep.mubr.f32.mxu0 0.0
        %727 = vmatmul.mubr.f32.gmra.mrb[0].mxu0 %v486
        %v728 = vpop.f32.mrb[0].mxu0
        %v729 = vadd.f32 0.0, %v728
        %v730 = vpop.f32.mrb[0].mxu0
        %731 = vmatprep.mubr.f32.mxu0 0.0
        %732 = vmatmul.mubr.f32.gmra.mrb[0].mxu0 %v487
        %v733 = vpop.f32.mrb[0].mxu0
        %v734 = vadd.f32 0.0, %v733
        %v735 = vpop.f32.mrb[0].mxu0
        %736 = vmatprep.mubr.f32.mxu0 0.0
        %737 = vmatmul.mubr.f32.gmra.mrb[0].mxu0 %v488
        %v738 = vpop.f32.mrb[0].mxu0
        %v739 = vadd.f32 0.0, %v738
        %v740 = vpop.f32.mrb[0].mxu0
        %741 = vmatprep.mubr.f32.mxu0 0.0
        %742 = vmatmul.mubr.f32.gmra.mrb[0].mxu0 %v489
        %v743 = vpop.f32.mrb[0].mxu0
        %v744 = vadd.f32 0.0, %v743
        %v745 = vpop.f32.mrb[0].mxu0
        %746 = vmatprep.mubr.f32.mxu0 0.0
        %747 = vmatmul.mubr.f32.gmra.mrb[0].mxu0 %v490
        %v748 = vpop.f32.mrb[0].mxu0
        %v749 = vadd.f32 0.0, %v748
        %v750 = vpop.f32.mrb[0].mxu0
        %751 = vmatprep.mubr.f32.mxu0 0.0
        %752 = vmatmul.mubr.f32.gmra.mrb[0].mxu0 %v491
        %v753 = vpop.f32.mrb[0].mxu0
        %v754 = vadd.f32 0.0, %v753
        %v755 = vpop.f32.mrb[0].mxu0
        %756 = vmatprep.mubr.f32.mxu0 0.0
        %757 = vmatmul.mubr.f32.gmra.mrb[0].mxu0 %v492
        %v758 = vpop.f32.mrb[0].mxu0
        %v759 = vadd.f32 0.0, %v758
        %v760 = vpop.f32.mrb[0].mxu0
        %761 = vmatprep.mubr.f32.mxu0 0.0
        %762 = vmatmul.mubr.f32.gmra.mrb[0].mxu0 %v493
        %v763 = vpop.f32.mrb[0].mxu0
        %v764 = vadd.f32 0.0, %v763
        %v765 = vpop.f32.mrb[0].mxu0
        %766 = vdwg.mxu0
        %v767 = vadd.f32 %v494, %v609
        %v768 = vadd.f32 %v495, %v614
        %v769 = vadd.f32 %v496, %v619
        %v770 = vadd.f32 %v497, %v624
        %v771 = vadd.f32 %v498, %v629
        %v772 = vadd.f32 %v499, %v634
        %v773 = vadd.f32 %v500, %v639
        %v774 = vadd.f32 %v501, %v644
        %v775 = vadd.f32 %v502, %v649
        %v776 = vadd.f32 %v503, %v654
        %v777 = vadd.f32 %v504, %v659
        %v778 = vadd.f32 %v505, %v664
        %v779 = vadd.f32 %v506, %v669
        %v780 = vadd.f32 %v507, %v674
        %v781 = vadd.f32 %v508, %v679
        %v782 = vadd.f32 %v509, %v684
        %v783 = vadd.f32 %v510, %v689
        %v784 = vadd.f32 %v511, %v694
        %v785 = vadd.f32 %v512, %v699
        %v786 = vadd.f32 %v513, %v704
        %v787 = vadd.f32 %v514, %v709
        %v788 = vadd.f32 %v515, %v714
        %v789 = vadd.f32 %v516, %v719
        %v790 = vadd.f32 %v517, %v724
        %v791 = vadd.f32 %v518, %v729
        %v792 = vadd.f32 %v519, %v734
        %v793 = vadd.f32 %v520, %v739
        %v794 = vadd.f32 %v521, %v744
        %v795 = vadd.f32 %v522, %v749
        %v796 = vadd.f32 %v523, %v754
        %v797 = vadd.f32 %v524, %v759
        %v798 = vadd.f32 %v525, %v764
        %799 = vst [vmem:[#allocation4] sm:$0xff] %v767
        %800 = vst [vmem:[#allocation4 + $0x8] sm:$0xff] %v768
        %801 = vst [vmem:[#allocation4 + $0x10] sm:$0xff] %v769
        %802 = vst [vmem:[#allocation4 + $0x18] sm:$0xff] %v770
        %803 = vst [vmem:[#allocation4 + $0x20] sm:$0xff] %v771
        %804 = vst [vmem:[#allocation4 + $0x28] sm:$0xff] %v772
        %805 = vst [vmem:[#allocation4 + $0x30] sm:$0xff] %v773
        %806 = vst [vmem:[#allocation4 + $0x38] sm:$0xff] %v774
        %807 = vst [vmem:[#allocation4 + $0x40] sm:$0xff] %v775
        %808 = vst [vmem:[#allocation4 + $0x48] sm:$0xff] %v776
        %809 = vst [vmem:[#allocation4 + $0x50] sm:$0xff] %v777
        %810 = vst [vmem:[#allocation4 + $0x58] sm:$0xff] %v778
        %811 = vst [vmem:[#allocation4 + $0x60] sm:$0xff] %v779
        %812 = vst [vmem:[#allocation4 + $0x68] sm:$0xff] %v780
        %813 = vst [vmem:[#allocation4 + $0x70] sm:$0xff] %v781
        %814 = vst [vmem:[#allocation4 + $0x78] sm:$0xff] %v782
        %815 = vst [vmem:[#allocation4 + $0x80] sm:$0xff] %v783
        %816 = vst [vmem:[#allocation4 + $0x88] sm:$0xff] %v784
        %817 = vst [vmem:[#allocation4 + $0x90] sm:$0xff] %v785
        %818 = vst [vmem:[#allocation4 + $0x98] sm:$0xff] %v786
        %819 = vst [vmem:[#allocation4 + $0xa0] sm:$0xff] %v787
        %820 = vst [vmem:[#allocation4 + $0xa8] sm:$0xff] %v788
        %821 = vst [vmem:[#allocation4 + $0xb0] sm:$0xff] %v789
        %822 = vst [vmem:[#allocation4 + $0xb8] sm:$0xff] %v790
        %823 = vst [vmem:[#allocation4 + $0xc0] sm:$0xff] %v791
        %824 = vst [vmem:[#allocation4 + $0xc8] sm:$0xff] %v792
        %825 = vst [vmem:[#allocation4 + $0xd0] sm:$0xff] %v793
        %826 = vst [vmem:[#allocation4 + $0xd8] sm:$0xff] %v794
        %827 = vst [vmem:[#allocation4 + $0xe0] sm:$0xff] %v795
        %828 = vst [vmem:[#allocation4 + $0xe8] sm:$0xff] %v796
        %829 = vst [vmem:[#allocation4 + $0xf0] sm:$0xff] %v797
        %830 = vst [vmem:[#allocation4 + $0xf8] sm:$0xff] %v798
        %v831 = vld [vmem:[#allocation2 + $0x1] sm:$0xff]
        %v832 = vld [vmem:[#allocation2 + $0x9] sm:$0xff]
        %v833 = vld [vmem:[#allocation2 + $0x19] sm:$0xff]
        %v834 = vld [vmem:[#allocation2 + $0x21] sm:$0xff]
        %v835 = vld [vmem:[#allocation2 + $0x31] sm:$0xff]
        %v836 = vld [vmem:[#allocation2 + $0x39] sm:$0xff]
        %v837 = vld [vmem:[#allocation2 + $0x49] sm:$0xff]
        %v838 = vld [vmem:[#allocation2 + $0x51] sm:$0xff]
        %v839 = vld [vmem:[#allocation2 + $0x61] sm:$0xff]
        %v840 = vld [vmem:[#allocation2 + $0x69] sm:$0xff]
        %v841 = vld [vmem:[#allocation2 + $0x79] sm:$0xff]
        %v842 = vld [vmem:[#allocation2 + $0x81] sm:$0xff]
        %v843 = vld [vmem:[#allocation2 + $0x91] sm:$0xff]
        %v844 = vld [vmem:[#allocation2 + $0x99] sm:$0xff]
        %v845 = vld [vmem:[#allocation2 + $0xa9] sm:$0xff]
        %v846 = vld [vmem:[#allocation2 + $0xb1] sm:$0xff]
        %v847 = vld [vmem:[#allocation2 + $0xc1] sm:$0xff]
        %v848 = vld [vmem:[#allocation2 + $0xc9] sm:$0xff]
        %v849 = vld [vmem:[#allocation2 + $0xd9] sm:$0xff]
        %v850 = vld [vmem:[#allocation2 + $0xe1] sm:$0xff]
        %v851 = vld [vmem:[#allocation2 + $0xf1] sm:$0xff]
        %v852 = vld [vmem:[#allocation2 + $0xf9] sm:$0xff]
        %v853 = vld [vmem:[#allocation2 + $0x109] sm:$0xff]
        %v854 = vld [vmem:[#allocation2 + $0x111] sm:$0xff]
        %v855 = vld [vmem:[#allocation2 + $0x121] sm:$0xff]
        %v856 = vld [vmem:[#allocation2 + $0x129] sm:$0xff]
        %v857 = vld [vmem:[#allocation2 + $0x139] sm:$0xff]
        %v858 = vld [vmem:[#allocation2 + $0x141] sm:$0xff]
        %v859 = vld [vmem:[#allocation2 + $0x151] sm:$0xff]
        %v860 = vld [vmem:[#allocation2 + $0x159] sm:$0xff]
        %v861 = vld [vmem:[#allocation2 + $0x169] sm:$0xff]
        %v862 = vld [vmem:[#allocation2 + $0x171] sm:$0xff]
        %v863 = vld [vmem:[#allocation4] sm:$0xff]
        %v864 = vld [vmem:[#allocation4 + $0x8] sm:$0xff]
        %v865 = vld [vmem:[#allocation4 + $0x10] sm:$0xff]
        %v866 = vld [vmem:[#allocation4 + $0x18] sm:$0xff]
        %v867 = vld [vmem:[#allocation4 + $0x20] sm:$0xff]
        %v868 = vld [vmem:[#allocation4 + $0x28] sm:$0xff]
        %v869 = vld [vmem:[#allocation4 + $0x30] sm:$0xff]
        %v870 = vld [vmem:[#allocation4 + $0x38] sm:$0xff]
        %v871 = vld [vmem:[#allocation4 + $0x40] sm:$0xff]
        %v872 = vld [vmem:[#allocation4 + $0x48] sm:$0xff]
        %v873 = vld [vmem:[#allocation4 + $0x50] sm:$0xff]
        %v874 = vld [vmem:[#allocation4 + $0x58] sm:$0xff]
        %v875 = vld [vmem:[#allocation4 + $0x60] sm:$0xff]
        %v876 = vld [vmem:[#allocation4 + $0x68] sm:$0xff]
        %v877 = vld [vmem:[#allocation4 + $0x70] sm:$0xff]
        %v878 = vld [vmem:[#allocation4 + $0x78] sm:$0xff]
        %v879 = vld [vmem:[#allocation4 + $0x80] sm:$0xff]
        %v880 = vld [vmem:[#allocation4 + $0x88] sm:$0xff]
        %v881 = vld [vmem:[#allocation4 + $0x90] sm:$0xff]
        %v882 = vld [vmem:[#allocation4 + $0x98] sm:$0xff]
        %v883 = vld [vmem:[#allocation4 + $0xa0] sm:$0xff]
        %v884 = vld [vmem:[#allocation4 + $0xa8] sm:$0xff]
        %v885 = vld [vmem:[#allocation4 + $0xb0] sm:$0xff]
        %v886 = vld [vmem:[#allocation4 + $0xb8] sm:$0xff]
        %v887 = vld [vmem:[#allocation4 + $0xc0] sm:$0xff]
        %v888 = vld [vmem:[#allocation4 + $0xc8] sm:$0xff]
        %v889 = vld [vmem:[#allocation4 + $0xd0] sm:$0xff]
        %v890 = vld [vmem:[#allocation4 + $0xd8] sm:$0xff]
        %v891 = vld [vmem:[#allocation4 + $0xe0] sm:$0xff]
        %v892 = vld [vmem:[#allocation4 + $0xe8] sm:$0xff]
        %v893 = vld [vmem:[#allocation4 + $0xf0] sm:$0xff]
        %v894 = vld [vmem:[#allocation4 + $0xf8] sm:$0xff]
        %s895 = scalar_lea.vmem [#allocation9], 128
        %v896 = vld [vmem:[%s895] sm:$0xff]
        %v897 = vld [vmem:[%s895 + $0x8] sm:$0xff]
        %v898 = vld [vmem:[%s895 + $0x10] sm:$0xff]
        %v899 = vld [vmem:[%s895 + $0x18] sm:$0xff]
        %v900 = vld [vmem:[%s895 + $0x20] sm:$0xff]
        %v901 = vld [vmem:[%s895 + $0x28] sm:$0xff]
        %v902 = vld [vmem:[%s895 + $0x30] sm:$0xff]
        %v903 = vld [vmem:[%s895 + $0x38] sm:$0xff]
        %v904 = vld [vmem:[%s895 + $0x40] sm:$0xff]
        %v905 = vld [vmem:[%s895 + $0x48] sm:$0xff]
        %v906 = vld [vmem:[%s895 + $0x50] sm:$0xff]
        %v907 = vld [vmem:[%s895 + $0x58] sm:$0xff]
        %v908 = vld [vmem:[%s895 + $0x60] sm:$0xff]
        %v909 = vld [vmem:[%s895 + $0x68] sm:$0xff]
        %v910 = vld [vmem:[%s895 + $0x70] sm:$0xff]
        %v911 = vld [vmem:[%s895 + $0x78] sm:$0xff]
        %912 = vmatprep.subr.mxu0 0.0
        %913 = vmatpush1.msra.mxu0 %v896
        %914 = vmatprep.subr.mxu0 0.0
        %915 = vmatpush1.msra.mxu0 %v897
        %916 = vmatprep.subr.mxu0 0.0
        %917 = vmatpush1.msra.mxu0 %v898
        %918 = vmatprep.subr.mxu0 0.0
        %919 = vmatpush1.msra.mxu0 %v899
        %920 = vmatprep.subr.mxu0 0.0
        %921 = vmatpush1.msra.mxu0 %v900
        %922 = vmatprep.subr.mxu0 0.0
        %923 = vmatpush1.msra.mxu0 %v901
        %924 = vmatprep.subr.mxu0 0.0
        %925 = vmatpush1.msra.mxu0 %v902
        %926 = vmatprep.subr.mxu0 0.0
        %927 = vmatpush1.msra.mxu0 %v903
        %928 = vmatprep.subr.mxu0 0.0
        %929 = vmatpush1.msra.mxu0 %v904
        %930 = vmatprep.subr.mxu0 0.0
        %931 = vmatpush1.msra.mxu0 %v905
        %932 = vmatprep.subr.mxu0 0.0
        %933 = vmatpush1.msra.mxu0 %v906
        %934 = vmatprep.subr.mxu0 0.0
        %935 = vmatpush1.msra.mxu0 %v907
        %936 = vmatprep.subr.mxu0 0.0
        %937 = vmatpush1.msra.mxu0 %v908
        %938 = vmatprep.subr.mxu0 0.0
        %939 = vmatpush1.msra.mxu0 %v909
        %940 = vmatprep.subr.mxu0 0.0
        %941 = vmatpush1.msra.mxu0 %v910
        %942 = vmatprep.subr.mxu0 0.0
        %943 = vmatpush1.msra.mxu0 %v911
        %944 = vmatprep.subr.mxu0 0.0
        %945 = vmatpush1.msra.mxu0 0.0
        %946 = vmatprep.subr.mxu0 0.0
        %947 = vmatpush1.msra.mxu0 0.0
        %948 = vmatprep.subr.mxu0 0.0
        %949 = vmatpush1.msra.mxu0 0.0
        %950 = vmatprep.subr.mxu0 0.0
        %951 = vmatpush1.msra.mxu0 0.0
        %952 = vmatprep.subr.mxu0 0.0
        %953 = vmatpush1.msra.mxu0 0.0
        %954 = vmatprep.subr.mxu0 0.0
        %955 = vmatpush1.msra.mxu0 0.0
        %956 = vmatprep.subr.mxu0 0.0
        %957 = vmatpush1.msra.mxu0 0.0
        %958 = vmatprep.subr.mxu0 0.0
        %959 = vmatpush1.msra.mxu0 0.0
        %960 = vmatprep.subr.mxu0 0.0
        %961 = vmatpush1.msra.mxu0 0.0
        %962 = vmatprep.subr.mxu0 0.0
        %963 = vmatpush1.msra.mxu0 0.0
        %964 = vmatprep.subr.mxu0 0.0
        %965 = vmatpush1.msra.mxu0 0.0
        %966 = vmatprep.subr.mxu0 0.0
        %967 = vmatpush1.msra.mxu0 0.0
        %968 = vmatprep.subr.mxu0 0.0
        %969 = vmatpush1.msra.mxu0 0.0
        %970 = vmatprep.subr.mxu0 0.0
        %971 = vmatpush1.msra.mxu0 0.0
        %972 = vmatprep.subr.mxu0 0.0
        %973 = vmatpush1.msra.mxu0 0.0
        %974 = vmatprep.subr.mxu0 0.0
        %975 = vmatpush1.msra.mxu0 0.0
        %976 = vmatprep.mubr.f32.mxu0 0.0
        %977 = vmatmul.mubr.f32.gmra.mrb[0].mxu0 %v831
        %v978 = vpop.f32.mrb[0].mxu0
        %v979 = vadd.f32 0.0, %v978
        %v980 = vpop.f32.mrb[0].mxu0
        %981 = vmatprep.mubr.f32.mxu0 0.0
        %982 = vmatmul.mubr.f32.gmra.mrb[0].mxu0 %v832
        %v983 = vpop.f32.mrb[0].mxu0
        %v984 = vadd.f32 0.0, %v983
        %v985 = vpop.f32.mrb[0].mxu0
        %986 = vmatprep.mubr.f32.mxu0 0.0
        %987 = vmatmul.mubr.f32.gmra.mrb[0].mxu0 %v833
        %v988 = vpop.f32.mrb[0].mxu0
        %v989 = vadd.f32 0.0, %v988
        %v990 = vpop.f32.mrb[0].mxu0
        %991 = vmatprep.mubr.f32.mxu0 0.0
        %992 = vmatmul.mubr.f32.gmra.mrb[0].mxu0 %v834
        %v993 = vpop.f32.mrb[0].mxu0
        %v994 = vadd.f32 0.0, %v993
        %v995 = vpop.f32.mrb[0].mxu0
        %996 = vmatprep.mubr.f32.mxu0 0.0
        %997 = vmatmul.mubr.f32.gmra.mrb[0].mxu0 %v835
        %v998 = vpop.f32.mrb[0].mxu0
        %v999 = vadd.f32 0.0, %v998
        %v1000 = vpop.f32.mrb[0].mxu0
        %1001 = vmatprep.mubr.f32.mxu0 0.0
        %1002 = vmatmul.mubr.f32.gmra.mrb[0].mxu0 %v836
        %v1003 = vpop.f32.mrb[0].mxu0
        %v1004 = vadd.f32 0.0, %v1003
        %v1005 = vpop.f32.mrb[0].mxu0
        %1006 = vmatprep.mubr.f32.mxu0 0.0
        %1007 = vmatmul.mubr.f32.gmra.mrb[0].mxu0 %v837
        %v1008 = vpop.f32.mrb[0].mxu0
        %v1009 = vadd.f32 0.0, %v1008
        %v1010 = vpop.f32.mrb[0].mxu0
        %1011 = vmatprep.mubr.f32.mxu0 0.0
        %1012 = vmatmul.mubr.f32.gmra.mrb[0].mxu0 %v838
        %v1013 = vpop.f32.mrb[0].mxu0
        %v1014 = vadd.f32 0.0, %v1013
        %v1015 = vpop.f32.mrb[0].mxu0
        %1016 = vmatprep.mubr.f32.mxu0 0.0
        %1017 = vmatmul.mubr.f32.gmra.mrb[0].mxu0 %v839
        %v1018 = vpop.f32.mrb[0].mxu0
        %v1019 = vadd.f32 0.0, %v1018
        %v1020 = vpop.f32.mrb[0].mxu0
        %1021 = vmatprep.mubr.f32.mxu0 0.0
        %1022 = vmatmul.mubr.f32.gmra.mrb[0].mxu0 %v840
        %v1023 = vpop.f32.mrb[0].mxu0
        %v1024 = vadd.f32 0.0, %v1023
        %v1025 = vpop.f32.mrb[0].mxu0
        %1026 = vmatprep.mubr.f32.mxu0 0.0
        %1027 = vmatmul.mubr.f32.gmra.mrb[0].mxu0 %v841
        %v1028 = vpop.f32.mrb[0].mxu0
        %v1029 = vadd.f32 0.0, %v1028
        %v1030 = vpop.f32.mrb[0].mxu0
        %1031 = vmatprep.mubr.f32.mxu0 0.0
        %1032 = vmatmul.mubr.f32.gmra.mrb[0].mxu0 %v842
        %v1033 = vpop.f32.mrb[0].mxu0
        %v1034 = vadd.f32 0.0, %v1033
        %v1035 = vpop.f32.mrb[0].mxu0
        %1036 = vmatprep.mubr.f32.mxu0 0.0
        %1037 = vmatmul.mubr.f32.gmra.mrb[0].mxu0 %v843
        %v1038 = vpop.f32.mrb[0].mxu0
        %v1039 = vadd.f32 0.0, %v1038
        %v1040 = vpop.f32.mrb[0].mxu0
        %1041 = vmatprep.mubr.f32.mxu0 0.0
        %1042 = vmatmul.mubr.f32.gmra.mrb[0].mxu0 %v844
        %v1043 = vpop.f32.mrb[0].mxu0
        %v1044 = vadd.f32 0.0, %v1043
        %v1045 = vpop.f32.mrb[0].mxu0
        %1046 = vmatprep.mubr.f32.mxu0 0.0
        %1047 = vmatmul.mubr.f32.gmra.mrb[0].mxu0 %v845
        %v1048 = vpop.f32.mrb[0].mxu0
        %v1049 = vadd.f32 0.0, %v1048
        %v1050 = vpop.f32.mrb[0].mxu0
        %1051 = vmatprep.mubr.f32.mxu0 0.0
        %1052 = vmatmul.mubr.f32.gmra.mrb[0].mxu0 %v846
        %v1053 = vpop.f32.mrb[0].mxu0
        %v1054 = vadd.f32 0.0, %v1053
        %v1055 = vpop.f32.mrb[0].mxu0
        %1056 = vmatprep.mubr.f32.mxu0 0.0
        %1057 = vmatmul.mubr.f32.gmra.mrb[0].mxu0 %v847
        %v1058 = vpop.f32.mrb[0].mxu0
        %v1059 = vadd.f32 0.0, %v1058
        %v1060 = vpop.f32.mrb[0].mxu0
        %1061 = vmatprep.mubr.f32.mxu0 0.0
        %1062 = vmatmul.mubr.f32.gmra.mrb[0].mxu0 %v848
        %v1063 = vpop.f32.mrb[0].mxu0
        %v1064 = vadd.f32 0.0, %v1063
        %v1065 = vpop.f32.mrb[0].mxu0
        %1066 = vmatprep.mubr.f32.mxu0 0.0
        %1067 = vmatmul.mubr.f32.gmra.mrb[0].mxu0 %v849
        %v1068 = vpop.f32.mrb[0].mxu0
        %v1069 = vadd.f32 0.0, %v1068
        %v1070 = vpop.f32.mrb[0].mxu0
        %1071 = vmatprep.mubr.f32.mxu0 0.0
        %1072 = vmatmul.mubr.f32.gmra.mrb[0].mxu0 %v850
        %v1073 = vpop.f32.mrb[0].mxu0
        %v1074 = vadd.f32 0.0, %v1073
        %v1075 = vpop.f32.mrb[0].mxu0
        %1076 = vmatprep.mubr.f32.mxu0 0.0
        %1077 = vmatmul.mubr.f32.gmra.mrb[0].mxu0 %v851
        %v1078 = vpop.f32.mrb[0].mxu0
        %v1079 = vadd.f32 0.0, %v1078
        %v1080 = vpop.f32.mrb[0].mxu0
        %1081 = vmatprep.mubr.f32.mxu0 0.0
        %1082 = vmatmul.mubr.f32.gmra.mrb[0].mxu0 %v852
        %v1083 = vpop.f32.mrb[0].mxu0
        %v1084 = vadd.f32 0.0, %v1083
        %v1085 = vpop.f32.mrb[0].mxu0
        %1086 = vmatprep.mubr.f32.mxu0 0.0
        %1087 = vmatmul.mubr.f32.gmra.mrb[0].mxu0 %v853
        %v1088 = vpop.f32.mrb[0].mxu0
        %v1089 = vadd.f32 0.0, %v1088
        %v1090 = vpop.f32.mrb[0].mxu0
        %1091 = vmatprep.mubr.f32.mxu0 0.0
        %1092 = vmatmul.mubr.f32.gmra.mrb[0].mxu0 %v854
        %v1093 = vpop.f32.mrb[0].mxu0
        %v1094 = vadd.f32 0.0, %v1093
        %v1095 = vpop.f32.mrb[0].mxu0
        %1096 = vmatprep.mubr.f32.mxu0 0.0
        %1097 = vmatmul.mubr.f32.gmra.mrb[0].mxu0 %v855
        %v1098 = vpop.f32.mrb[0].mxu0
        %v1099 = vadd.f32 0.0, %v1098
        %v1100 = vpop.f32.mrb[0].mxu0
        %1101 = vmatprep.mubr.f32.mxu0 0.0
        %1102 = vmatmul.mubr.f32.gmra.mrb[0].mxu0 %v856
        %v1103 = vpop.f32.mrb[0].mxu0
        %v1104 = vadd.f32 0.0, %v1103
        %v1105 = vpop.f32.mrb[0].mxu0
        %1106 = vmatprep.mubr.f32.mxu0 0.0
        %1107 = vmatmul.mubr.f32.gmra.mrb[0].mxu0 %v857
        %v1108 = vpop.f32.mrb[0].mxu0
        %v1109 = vadd.f32 0.0, %v1108
        %v1110 = vpop.f32.mrb[0].mxu0
        %1111 = vmatprep.mubr.f32.mxu0 0.0
        %1112 = vmatmul.mubr.f32.gmra.mrb[0].mxu0 %v858
        %v1113 = vpop.f32.mrb[0].mxu0
        %v1114 = vadd.f32 0.0, %v1113
        %v1115 = vpop.f32.mrb[0].mxu0
        %1116 = vmatprep.mubr.f32.mxu0 0.0
        %1117 = vmatmul.mubr.f32.gmra.mrb[0].mxu0 %v859
        %v1118 = vpop.f32.mrb[0].mxu0
        %v1119 = vadd.f32 0.0, %v1118
        %v1120 = vpop.f32.mrb[0].mxu0
        %1121 = vmatprep.mubr.f32.mxu0 0.0
        %1122 = vmatmul.mubr.f32.gmra.mrb[0].mxu0 %v860
        %v1123 = vpop.f32.mrb[0].mxu0
        %v1124 = vadd.f32 0.0, %v1123
        %v1125 = vpop.f32.mrb[0].mxu0
        %1126 = vmatprep.mubr.f32.mxu0 0.0
        %1127 = vmatmul.mubr.f32.gmra.mrb[0].mxu0 %v861
        %v1128 = vpop.f32.mrb[0].mxu0
        %v1129 = vadd.f32 0.0, %v1128
        %v1130 = vpop.f32.mrb[0].mxu0
        %1131 = vmatprep.mubr.f32.mxu0 0.0
        %1132 = vmatmul.mubr.f32.gmra.mrb[0].mxu0 %v862
        %v1133 = vpop.f32.mrb[0].mxu0
        %v1134 = vadd.f32 0.0, %v1133
        %v1135 = vpop.f32.mrb[0].mxu0
        %1136 = vdwg.mxu0
        %v1137 = vadd.f32 %v863, %v979
        %v1138 = vadd.f32 %v864, %v984
        %v1139 = vadd.f32 %v865, %v989
        %v1140 = vadd.f32 %v866, %v994
        %v1141 = vadd.f32 %v867, %v999
        %v1142 = vadd.f32 %v868, %v1004
        %v1143 = vadd.f32 %v869, %v1009
        %v1144 = vadd.f32 %v870, %v1014
        %v1145 = vadd.f32 %v871, %v1019
        %v1146 = vadd.f32 %v872, %v1024
        %v1147 = vadd.f32 %v873, %v1029
        %v1148 = vadd.f32 %v874, %v1034
        %v1149 = vadd.f32 %v875, %v1039
        %v1150 = vadd.f32 %v876, %v1044
        %v1151 = vadd.f32 %v877, %v1049
        %v1152 = vadd.f32 %v878, %v1054
        %v1153 = vadd.f32 %v879, %v1059
        %v1154 = vadd.f32 %v880, %v1064
        %v1155 = vadd.f32 %v881, %v1069
        %v1156 = vadd.f32 %v882, %v1074
        %v1157 = vadd.f32 %v883, %v1079
        %v1158 = vadd.f32 %v884, %v1084
        %v1159 = vadd.f32 %v885, %v1089
        %v1160 = vadd.f32 %v886, %v1094
        %v1161 = vadd.f32 %v887, %v1099
        %v1162 = vadd.f32 %v888, %v1104
        %v1163 = vadd.f32 %v889, %v1109
        %v1164 = vadd.f32 %v890, %v1114
        %v1165 = vadd.f32 %v891, %v1119
        %v1166 = vadd.f32 %v892, %v1124
        %v1167 = vadd.f32 %v893, %v1129
        %v1168 = vadd.f32 %v894, %v1134
        %1169 = vst [vmem:[#allocation4] sm:$0xff] %v1137
        %1170 = vst [vmem:[#allocation4 + $0x8] sm:$0xff] %v1138
        %1171 = vst [vmem:[#allocation4 + $0x10] sm:$0xff] %v1139
        %1172 = vst [vmem:[#allocation4 + $0x18] sm:$0xff] %v1140
        %1173 = vst [vmem:[#allocation4 + $0x20] sm:$0xff] %v1141
        %1174 = vst [vmem:[#allocation4 + $0x28] sm:$0xff] %v1142
        %1175 = vst [vmem:[#allocation4 + $0x30] sm:$0xff] %v1143
        %1176 = vst [vmem:[#allocation4 + $0x38] sm:$0xff] %v1144
        %1177 = vst [vmem:[#allocation4 + $0x40] sm:$0xff] %v1145
        %1178 = vst [vmem:[#allocation4 + $0x48] sm:$0xff] %v1146
        %1179 = vst [vmem:[#allocation4 + $0x50] sm:$0xff] %v1147
        %1180 = vst [vmem:[#allocation4 + $0x58] sm:$0xff] %v1148
        %1181 = vst [vmem:[#allocation4 + $0x60] sm:$0xff] %v1149
        %1182 = vst [vmem:[#allocation4 + $0x68] sm:$0xff] %v1150
        %1183 = vst [vmem:[#allocation4 + $0x70] sm:$0xff] %v1151
        %1184 = vst [vmem:[#allocation4 + $0x78] sm:$0xff] %v1152
        %1185 = vst [vmem:[#allocation4 + $0x80] sm:$0xff] %v1153
        %1186 = vst [vmem:[#allocation4 + $0x88] sm:$0xff] %v1154
        %1187 = vst [vmem:[#allocation4 + $0x90] sm:$0xff] %v1155
        %1188 = vst [vmem:[#allocation4 + $0x98] sm:$0xff] %v1156
        %1189 = vst [vmem:[#allocation4 + $0xa0] sm:$0xff] %v1157
        %1190 = vst [vmem:[#allocation4 + $0xa8] sm:$0xff] %v1158
        %1191 = vst [vmem:[#allocation4 + $0xb0] sm:$0xff] %v1159
        %1192 = vst [vmem:[#allocation4 + $0xb8] sm:$0xff] %v1160
        %1193 = vst [vmem:[#allocation4 + $0xc0] sm:$0xff] %v1161
        %1194 = vst [vmem:[#allocation4 + $0xc8] sm:$0xff] %v1162
        %1195 = vst [vmem:[#allocation4 + $0xd0] sm:$0xff] %v1163
        %1196 = vst [vmem:[#allocation4 + $0xd8] sm:$0xff] %v1164
        %1197 = vst [vmem:[#allocation4 + $0xe0] sm:$0xff] %v1165
        %1198 = vst [vmem:[#allocation4 + $0xe8] sm:$0xff] %v1166
        %1199 = vst [vmem:[#allocation4 + $0xf0] sm:$0xff] %v1167
        %1200 = vst [vmem:[#allocation4 + $0xf8] sm:$0xff] %v1168
        %v1201 = vld [vmem:[#allocation2 + $0x2] sm:$0xff]
        %v1202 = vld [vmem:[#allocation2 + $0xa] sm:$0xff]
        %v1203 = vld [vmem:[#allocation2 + $0x1a] sm:$0xff]
        %v1204 = vld [vmem:[#allocation2 + $0x22] sm:$0xff]
        %v1205 = vld [vmem:[#allocation2 + $0x32] sm:$0xff]
        %v1206 = vld [vmem:[#allocation2 + $0x3a] sm:$0xff]
        %v1207 = vld [vmem:[#allocation2 + $0x4a] sm:$0xff]
        %v1208 = vld [vmem:[#allocation2 + $0x52] sm:$0xff]
        %v1209 = vld [vmem:[#allocation2 + $0x62] sm:$0xff]
        %v1210 = vld [vmem:[#allocation2 + $0x6a] sm:$0xff]
        %v1211 = vld [vmem:[#allocation2 + $0x7a] sm:$0xff]
        %v1212 = vld [vmem:[#allocation2 + $0x82] sm:$0xff]
        %v1213 = vld [vmem:[#allocation2 + $0x92] sm:$0xff]
        %v1214 = vld [vmem:[#allocation2 + $0x9a] sm:$0xff]
        %v1215 = vld [vmem:[#allocation2 + $0xaa] sm:$0xff]
        %v1216 = vld [vmem:[#allocation2 + $0xb2] sm:$0xff]
        %v1217 = vld [vmem:[#allocation2 + $0xc2] sm:$0xff]
        %v1218 = vld [vmem:[#allocation2 + $0xca] sm:$0xff]
        %v1219 = vld [vmem:[#allocation2 + $0xda] sm:$0xff]
        %v1220 = vld [vmem:[#allocation2 + $0xe2] sm:$0xff]
        %v1221 = vld [vmem:[#allocation2 + $0xf2] sm:$0xff]
        %v1222 = vld [vmem:[#allocation2 + $0xfa] sm:$0xff]
        %v1223 = vld [vmem:[#allocation2 + $0x10a] sm:$0xff]
        %v1224 = vld [vmem:[#allocation2 + $0x112] sm:$0xff]
        %v1225 = vld [vmem:[#allocation2 + $0x122] sm:$0xff]
        %v1226 = vld [vmem:[#allocation2 + $0x12a] sm:$0xff]
        %v1227 = vld [vmem:[#allocation2 + $0x13a] sm:$0xff]
        %v1228 = vld [vmem:[#allocation2 + $0x142] sm:$0xff]
        %v1229 = vld [vmem:[#allocation2 + $0x152] sm:$0xff]
        %v1230 = vld [vmem:[#allocation2 + $0x15a] sm:$0xff]
        %v1231 = vld [vmem:[#allocation2 + $0x16a] sm:$0xff]
        %v1232 = vld [vmem:[#allocation2 + $0x172] sm:$0xff]
        %v1233 = vld [vmem:[#allocation4] sm:$0xff]
        %v1234 = vld [vmem:[#allocation4 + $0x8] sm:$0xff]
        %v1235 = vld [vmem:[#allocation4 + $0x10] sm:$0xff]
        %v1236 = vld [vmem:[#allocation4 + $0x18] sm:$0xff]
        %v1237 = vld [vmem:[#allocation4 + $0x20] sm:$0xff]
        %v1238 = vld [vmem:[#allocation4 + $0x28] sm:$0xff]
        %v1239 = vld [vmem:[#allocation4 + $0x30] sm:$0xff]
        %v1240 = vld [vmem:[#allocation4 + $0x38] sm:$0xff]
        %v1241 = vld [vmem:[#allocation4 + $0x40] sm:$0xff]
        %v1242 = vld [vmem:[#allocation4 + $0x48] sm:$0xff]
        %v1243 = vld [vmem:[#allocation4 + $0x50] sm:$0xff]
        %v1244 = vld [vmem:[#allocation4 + $0x58] sm:$0xff]
        %v1245 = vld [vmem:[#allocation4 + $0x60] sm:$0xff]
        %v1246 = vld [vmem:[#allocation4 + $0x68] sm:$0xff]
        %v1247 = vld [vmem:[#allocation4 + $0x70] sm:$0xff]
        %v1248 = vld [vmem:[#allocation4 + $0x78] sm:$0xff]
        %v1249 = vld [vmem:[#allocation4 + $0x80] sm:$0xff]
        %v1250 = vld [vmem:[#allocation4 + $0x88] sm:$0xff]
        %v1251 = vld [vmem:[#allocation4 + $0x90] sm:$0xff]
        %v1252 = vld [vmem:[#allocation4 + $0x98] sm:$0xff]
        %v1253 = vld [vmem:[#allocation4 + $0xa0] sm:$0xff]
        %v1254 = vld [vmem:[#allocation4 + $0xa8] sm:$0xff]
        %v1255 = vld [vmem:[#allocation4 + $0xb0] sm:$0xff]
        %v1256 = vld [vmem:[#allocation4 + $0xb8] sm:$0xff]
        %v1257 = vld [vmem:[#allocation4 + $0xc0] sm:$0xff]
        %v1258 = vld [vmem:[#allocation4 + $0xc8] sm:$0xff]
        %v1259 = vld [vmem:[#allocation4 + $0xd0] sm:$0xff]
        %v1260 = vld [vmem:[#allocation4 + $0xd8] sm:$0xff]
        %v1261 = vld [vmem:[#allocation4 + $0xe0] sm:$0xff]
        %v1262 = vld [vmem:[#allocation4 + $0xe8] sm:$0xff]
        %v1263 = vld [vmem:[#allocation4 + $0xf0] sm:$0xff]
        %v1264 = vld [vmem:[#allocation4 + $0xf8] sm:$0xff]
        %s1265 = scalar_lea.vmem [#allocation9], 256
        %v1266 = vld [vmem:[%s1265] sm:$0xff]
        %v1267 = vld [vmem:[%s1265 + $0x8] sm:$0xff]
        %v1268 = vld [vmem:[%s1265 + $0x10] sm:$0xff]
        %v1269 = vld [vmem:[%s1265 + $0x18] sm:$0xff]
        %v1270 = vld [vmem:[%s1265 + $0x20] sm:$0xff]
        %v1271 = vld [vmem:[%s1265 + $0x28] sm:$0xff]
        %v1272 = vld [vmem:[%s1265 + $0x30] sm:$0xff]
        %v1273 = vld [vmem:[%s1265 + $0x38] sm:$0xff]
        %v1274 = vld [vmem:[%s1265 + $0x40] sm:$0xff]
        %v1275 = vld [vmem:[%s1265 + $0x48] sm:$0xff]
        %v1276 = vld [vmem:[%s1265 + $0x50] sm:$0xff]
        %v1277 = vld [vmem:[%s1265 + $0x58] sm:$0xff]
        %v1278 = vld [vmem:[%s1265 + $0x60] sm:$0xff]
        %v1279 = vld [vmem:[%s1265 + $0x68] sm:$0xff]
        %v1280 = vld [vmem:[%s1265 + $0x70] sm:$0xff]
        %v1281 = vld [vmem:[%s1265 + $0x78] sm:$0xff]
        %1282 = vmatprep.subr.mxu0 0.0
        %1283 = vmatpush1.msra.mxu0 %v1266
        %1284 = vmatprep.subr.mxu0 0.0
        %1285 = vmatpush1.msra.mxu0 %v1267
        %1286 = vmatprep.subr.mxu0 0.0
        %1287 = vmatpush1.msra.mxu0 %v1268
        %1288 = vmatprep.subr.mxu0 0.0
        %1289 = vmatpush1.msra.mxu0 %v1269
        %1290 = vmatprep.subr.mxu0 0.0
        %1291 = vmatpush1.msra.mxu0 %v1270
        %1292 = vmatprep.subr.mxu0 0.0
        %1293 = vmatpush1.msra.mxu0 %v1271
        %1294 = vmatprep.subr.mxu0 0.0
        %1295 = vmatpush1.msra.mxu0 %v1272
        %1296 = vmatprep.subr.mxu0 0.0
        %1297 = vmatpush1.msra.mxu0 %v1273
        %1298 = vmatprep.subr.mxu0 0.0
        %1299 = vmatpush1.msra.mxu0 %v1274
        %1300 = vmatprep.subr.mxu0 0.0
        %1301 = vmatpush1.msra.mxu0 %v1275
        %1302 = vmatprep.subr.mxu0 0.0
        %1303 = vmatpush1.msra.mxu0 %v1276
        %1304 = vmatprep.subr.mxu0 0.0
        %1305 = vmatpush1.msra.mxu0 %v1277
        %1306 = vmatprep.subr.mxu0 0.0
        %1307 = vmatpush1.msra.mxu0 %v1278
        %1308 = vmatprep.subr.mxu0 0.0
        %1309 = vmatpush1.msra.mxu0 %v1279
        %1310 = vmatprep.subr.mxu0 0.0
        %1311 = vmatpush1.msra.mxu0 %v1280
        %1312 = vmatprep.subr.mxu0 0.0
        %1313 = vmatpush1.msra.mxu0 %v1281
        %1314 = vmatprep.subr.mxu0 0.0
        %1315 = vmatpush1.msra.mxu0 0.0
        %1316 = vmatprep.subr.mxu0 0.0
        %1317 = vmatpush1.msra.mxu0 0.0
        %1318 = vmatprep.subr.mxu0 0.0
        %1319 = vmatpush1.msra.mxu0 0.0
        %1320 = vmatprep.subr.mxu0 0.0
        %1321 = vmatpush1.msra.mxu0 0.0
        %1322 = vmatprep.subr.mxu0 0.0
        %1323 = vmatpush1.msra.mxu0 0.0
        %1324 = vmatprep.subr.mxu0 0.0
        %1325 = vmatpush1.msra.mxu0 0.0
        %1326 = vmatprep.subr.mxu0 0.0
        %1327 = vmatpush1.msra.mxu0 0.0
        %1328 = vmatprep.subr.mxu0 0.0
        %1329 = vmatpush1.msra.mxu0 0.0
        %1330 = vmatprep.subr.mxu0 0.0
        %1331 = vmatpush1.msra.mxu0 0.0
        %1332 = vmatprep.subr.mxu0 0.0
        %1333 = vmatpush1.msra.mxu0 0.0
        %1334 = vmatprep.subr.mxu0 0.0
        %1335 = vmatpush1.msra.mxu0 0.0
        %1336 = vmatprep.subr.mxu0 0.0
        %1337 = vmatpush1.msra.mxu0 0.0
        %1338 = vmatprep.subr.mxu0 0.0
        %1339 = vmatpush1.msra.mxu0 0.0
        %1340 = vmatprep.subr.mxu0 0.0
        %1341 = vmatpush1.msra.mxu0 0.0
        %1342 = vmatprep.subr.mxu0 0.0
        %1343 = vmatpush1.msra.mxu0 0.0
        %1344 = vmatprep.subr.mxu0 0.0
        %1345 = vmatpush1.msra.mxu0 0.0
        %1346 = vmatprep.mubr.f32.mxu0 0.0
        %1347 = vmatmul.mubr.f32.gmra.mrb[0].mxu0 %v1201
        %v1348 = vpop.f32.mrb[0].mxu0
        %v1349 = vadd.f32 0.0, %v1348
        %v1350 = vpop.f32.mrb[0].mxu0
        %1351 = vmatprep.mubr.f32.mxu0 0.0
        %1352 = vmatmul.mubr.f32.gmra.mrb[0].mxu0 %v1202
        %v1353 = vpop.f32.mrb[0].mxu0
        %v1354 = vadd.f32 0.0, %v1353
        %v1355 = vpop.f32.mrb[0].mxu0
        %1356 = vmatprep.mubr.f32.mxu0 0.0
        %1357 = vmatmul.mubr.f32.gmra.mrb[0].mxu0 %v1203
        %v1358 = vpop.f32.mrb[0].mxu0
        %v1359 = vadd.f32 0.0, %v1358
        %v1360 = vpop.f32.mrb[0].mxu0
        %1361 = vmatprep.mubr.f32.mxu0 0.0
        %1362 = vmatmul.mubr.f32.gmra.mrb[0].mxu0 %v1204
        %v1363 = vpop.f32.mrb[0].mxu0
        %v1364 = vadd.f32 0.0, %v1363
        %v1365 = vpop.f32.mrb[0].mxu0
        %1366 = vmatprep.mubr.f32.mxu0 0.0
        %1367 = vmatmul.mubr.f32.gmra.mrb[0].mxu0 %v1205
        %v1368 = vpop.f32.mrb[0].mxu0
        %v1369 = vadd.f32 0.0, %v1368
        %v1370 = vpop.f32.mrb[0].mxu0
        %1371 = vmatprep.mubr.f32.mxu0 0.0
        %1372 = vmatmul.mubr.f32.gmra.mrb[0].mxu0 %v1206
        %v1373 = vpop.f32.mrb[0].mxu0
        %v1374 = vadd.f32 0.0, %v1373
        %v1375 = vpop.f32.mrb[0].mxu0
        %1376 = vmatprep.mubr.f32.mxu0 0.0
        %1377 = vmatmul.mubr.f32.gmra.mrb[0].mxu0 %v1207
        %v1378 = vpop.f32.mrb[0].mxu0
        %v1379 = vadd.f32 0.0, %v1378
        %v1380 = vpop.f32.mrb[0].mxu0
        %1381 = vmatprep.mubr.f32.mxu0 0.0
        %1382 = vmatmul.mubr.f32.gmra.mrb[0].mxu0 %v1208
        %v1383 = vpop.f32.mrb[0].mxu0
        %v1384 = vadd.f32 0.0, %v1383
        %v1385 = vpop.f32.mrb[0].mxu0
        %1386 = vmatprep.mubr.f32.mxu0 0.0
        %1387 = vmatmul.mubr.f32.gmra.mrb[0].mxu0 %v1209
        %v1388 = vpop.f32.mrb[0].mxu0
        %v1389 = vadd.f32 0.0, %v1388
        %v1390 = vpop.f32.mrb[0].mxu0
        %1391 = vmatprep.mubr.f32.mxu0 0.0
        %1392 = vmatmul.mubr.f32.gmra.mrb[0].mxu0 %v1210
        %v1393 = vpop.f32.mrb[0].mxu0
        %v1394 = vadd.f32 0.0, %v1393
        %v1395 = vpop.f32.mrb[0].mxu0
        %1396 = vmatprep.mubr.f32.mxu0 0.0
        %1397 = vmatmul.mubr.f32.gmra.mrb[0].mxu0 %v1211
        %v1398 = vpop.f32.mrb[0].mxu0
        %v1399 = vadd.f32 0.0, %v1398
        %v1400 = vpop.f32.mrb[0].mxu0
        %1401 = vmatprep.mubr.f32.mxu0 0.0
        %1402 = vmatmul.mubr.f32.gmra.mrb[0].mxu0 %v1212
        %v1403 = vpop.f32.mrb[0].mxu0
        %v1404 = vadd.f32 0.0, %v1403
        %v1405 = vpop.f32.mrb[0].mxu0
        %1406 = vmatprep.mubr.f32.mxu0 0.0
        %1407 = vmatmul.mubr.f32.gmra.mrb[0].mxu0 %v1213
        %v1408 = vpop.f32.mrb[0].mxu0
        %v1409 = vadd.f32 0.0, %v1408
        %v1410 = vpop.f32.mrb[0].mxu0
        %1411 = vmatprep.mubr.f32.mxu0 0.0
        %1412 = vmatmul.mubr.f32.gmra.mrb[0].mxu0 %v1214
        %v1413 = vpop.f32.mrb[0].mxu0
        %v1414 = vadd.f32 0.0, %v1413
        %v1415 = vpop.f32.mrb[0].mxu0
        %1416 = vmatprep.mubr.f32.mxu0 0.0
        %1417 = vmatmul.mubr.f32.gmra.mrb[0].mxu0 %v1215
        %v1418 = vpop.f32.mrb[0].mxu0
        %v1419 = vadd.f32 0.0, %v1418
        %v1420 = vpop.f32.mrb[0].mxu0
        %1421 = vmatprep.mubr.f32.mxu0 0.0
        %1422 = vmatmul.mubr.f32.gmra.mrb[0].mxu0 %v1216
        %v1423 = vpop.f32.mrb[0].mxu0
        %v1424 = vadd.f32 0.0, %v1423
        %v1425 = vpop.f32.mrb[0].mxu0
        %1426 = vmatprep.mubr.f32.mxu0 0.0
        %1427 = vmatmul.mubr.f32.gmra.mrb[0].mxu0 %v1217
        %v1428 = vpop.f32.mrb[0].mxu0
        %v1429 = vadd.f32 0.0, %v1428
        %v1430 = vpop.f32.mrb[0].mxu0
        %1431 = vmatprep.mubr.f32.mxu0 0.0
        %1432 = vmatmul.mubr.f32.gmra.mrb[0].mxu0 %v1218
        %v1433 = vpop.f32.mrb[0].mxu0
        %v1434 = vadd.f32 0.0, %v1433
        %v1435 = vpop.f32.mrb[0].mxu0
        %1436 = vmatprep.mubr.f32.mxu0 0.0
        %1437 = vmatmul.mubr.f32.gmra.mrb[0].mxu0 %v1219
        %v1438 = vpop.f32.mrb[0].mxu0
        %v1439 = vadd.f32 0.0, %v1438
        %v1440 = vpop.f32.mrb[0].mxu0
        %1441 = vmatprep.mubr.f32.mxu0 0.0
        %1442 = vmatmul.mubr.f32.gmra.mrb[0].mxu0 %v1220
        %v1443 = vpop.f32.mrb[0].mxu0
        %v1444 = vadd.f32 0.0, %v1443
        %v1445 = vpop.f32.mrb[0].mxu0
        %1446 = vmatprep.mubr.f32.mxu0 0.0
        %1447 = vmatmul.mubr.f32.gmra.mrb[0].mxu0 %v1221
        %v1448 = vpop.f32.mrb[0].mxu0
        %v1449 = vadd.f32 0.0, %v1448
        %v1450 = vpop.f32.mrb[0].mxu0
        %1451 = vmatprep.mubr.f32.mxu0 0.0
        %1452 = vmatmul.mubr.f32.gmra.mrb[0].mxu0 %v1222
        %v1453 = vpop.f32.mrb[0].mxu0
        %v1454 = vadd.f32 0.0, %v1453
        %v1455 = vpop.f32.mrb[0].mxu0
        %1456 = vmatprep.mubr.f32.mxu0 0.0
        %1457 = vmatmul.mubr.f32.gmra.mrb[0].mxu0 %v1223
        %v1458 = vpop.f32.mrb[0].mxu0
        %v1459 = vadd.f32 0.0, %v1458
        %v1460 = vpop.f32.mrb[0].mxu0
        %1461 = vmatprep.mubr.f32.mxu0 0.0
        %1462 = vmatmul.mubr.f32.gmra.mrb[0].mxu0 %v1224
        %v1463 = vpop.f32.mrb[0].mxu0
        %v1464 = vadd.f32 0.0, %v1463
        %v1465 = vpop.f32.mrb[0].mxu0
        %1466 = vmatprep.mubr.f32.mxu0 0.0
        %1467 = vmatmul.mubr.f32.gmra.mrb[0].mxu0 %v1225
        %v1468 = vpop.f32.mrb[0].mxu0
        %v1469 = vadd.f32 0.0, %v1468
        %v1470 = vpop.f32.mrb[0].mxu0
        %1471 = vmatprep.mubr.f32.mxu0 0.0
        %1472 = vmatmul.mubr.f32.gmra.mrb[0].mxu0 %v1226
        %v1473 = vpop.f32.mrb[0].mxu0
        %v1474 = vadd.f32 0.0, %v1473
        %v1475 = vpop.f32.mrb[0].mxu0
        %1476 = vmatprep.mubr.f32.mxu0 0.0
        %1477 = vmatmul.mubr.f32.gmra.mrb[0].mxu0 %v1227
        %v1478 = vpop.f32.mrb[0].mxu0
        %v1479 = vadd.f32 0.0, %v1478
        %v1480 = vpop.f32.mrb[0].mxu0
        %1481 = vmatprep.mubr.f32.mxu0 0.0
        %1482 = vmatmul.mubr.f32.gmra.mrb[0].mxu0 %v1228
        %v1483 = vpop.f32.mrb[0].mxu0
        %v1484 = vadd.f32 0.0, %v1483
        %v1485 = vpop.f32.mrb[0].mxu0
        %1486 = vmatprep.mubr.f32.mxu0 0.0
        %1487 = vmatmul.mubr.f32.gmra.mrb[0].mxu0 %v1229
        %v1488 = vpop.f32.mrb[0].mxu0
        %v1489 = vadd.f32 0.0, %v1488
        %v1490 = vpop.f32.mrb[0].mxu0
        %1491 = vmatprep.mubr.f32.mxu0 0.0
        %1492 = vmatmul.mubr.f32.gmra.mrb[0].mxu0 %v1230
        %v1493 = vpop.f32.mrb[0].mxu0
        %v1494 = vadd.f32 0.0, %v1493
        %v1495 = vpop.f32.mrb[0].mxu0
        %1496 = vmatprep.mubr.f32.mxu0 0.0
        %1497 = vmatmul.mubr.f32.gmra.mrb[0].mxu0 %v1231
        %v1498 = vpop.f32.mrb[0].mxu0
        %v1499 = vadd.f32 0.0, %v1498
        %v1500 = vpop.f32.mrb[0].mxu0
        %1501 = vmatprep.mubr.f32.mxu0 0.0
        %1502 = vmatmul.mubr.f32.gmra.mrb[0].mxu0 %v1232
        %v1503 = vpop.f32.mrb[0].mxu0
        %v1504 = vadd.f32 0.0, %v1503
        %v1505 = vpop.f32.mrb[0].mxu0
        %1506 = vdwg.mxu0
        %v1507 = vadd.f32 %v1233, %v1349
        %v1508 = vadd.f32 %v1234, %v1354
        %v1509 = vadd.f32 %v1235, %v1359
        %v1510 = vadd.f32 %v1236, %v1364
        %v1511 = vadd.f32 %v1237, %v1369
        %v1512 = vadd.f32 %v1238, %v1374
        %v1513 = vadd.f32 %v1239, %v1379
        %v1514 = vadd.f32 %v1240, %v1384
        %v1515 = vadd.f32 %v1241, %v1389
        %v1516 = vadd.f32 %v1242, %v1394
        %v1517 = vadd.f32 %v1243, %v1399
        %v1518 = vadd.f32 %v1244, %v1404
        %v1519 = vadd.f32 %v1245, %v1409
        %v1520 = vadd.f32 %v1246, %v1414
        %v1521 = vadd.f32 %v1247, %v1419
        %v1522 = vadd.f32 %v1248, %v1424
        %v1523 = vadd.f32 %v1249, %v1429
        %v1524 = vadd.f32 %v1250, %v1434
        %v1525 = vadd.f32 %v1251, %v1439
        %v1526 = vadd.f32 %v1252, %v1444
        %v1527 = vadd.f32 %v1253, %v1449
        %v1528 = vadd.f32 %v1254, %v1454
        %v1529 = vadd.f32 %v1255, %v1459
        %v1530 = vadd.f32 %v1256, %v1464
        %v1531 = vadd.f32 %v1257, %v1469
        %v1532 = vadd.f32 %v1258, %v1474
        %v1533 = vadd.f32 %v1259, %v1479
        %v1534 = vadd.f32 %v1260, %v1484
        %v1535 = vadd.f32 %v1261, %v1489
        %v1536 = vadd.f32 %v1262, %v1494
        %v1537 = vadd.f32 %v1263, %v1499
        %v1538 = vadd.f32 %v1264, %v1504
        %1539 = vst [vmem:[#allocation4] sm:$0xff] %v1507
        %1540 = vst [vmem:[#allocation4 + $0x8] sm:$0xff] %v1508
        %1541 = vst [vmem:[#allocation4 + $0x10] sm:$0xff] %v1509
        %1542 = vst [vmem:[#allocation4 + $0x18] sm:$0xff] %v1510
        %1543 = vst [vmem:[#allocation4 + $0x20] sm:$0xff] %v1511
        %1544 = vst [vmem:[#allocation4 + $0x28] sm:$0xff] %v1512
        %1545 = vst [vmem:[#allocation4 + $0x30] sm:$0xff] %v1513
        %1546 = vst [vmem:[#allocation4 + $0x38] sm:$0xff] %v1514
        %1547 = vst [vmem:[#allocation4 + $0x40] sm:$0xff] %v1515
        %1548 = vst [vmem:[#allocation4 + $0x48] sm:$0xff] %v1516
        %1549 = vst [vmem:[#allocation4 + $0x50] sm:$0xff] %v1517
        %1550 = vst [vmem:[#allocation4 + $0x58] sm:$0xff] %v1518
        %1551 = vst [vmem:[#allocation4 + $0x60] sm:$0xff] %v1519
        %1552 = vst [vmem:[#allocation4 + $0x68] sm:$0xff] %v1520
        %1553 = vst [vmem:[#allocation4 + $0x70] sm:$0xff] %v1521
        %1554 = vst [vmem:[#allocation4 + $0x78] sm:$0xff] %v1522
        %1555 = vst [vmem:[#allocation4 + $0x80] sm:$0xff] %v1523
        %1556 = vst [vmem:[#allocation4 + $0x88] sm:$0xff] %v1524
        %1557 = vst [vmem:[#allocation4 + $0x90] sm:$0xff] %v1525
        %1558 = vst [vmem:[#allocation4 + $0x98] sm:$0xff] %v1526
        %1559 = vst [vmem:[#allocation4 + $0xa0] sm:$0xff] %v1527
        %1560 = vst [vmem:[#allocation4 + $0xa8] sm:$0xff] %v1528
        %1561 = vst [vmem:[#allocation4 + $0xb0] sm:$0xff] %v1529
        %1562 = vst [vmem:[#allocation4 + $0xb8] sm:$0xff] %v1530
        %1563 = vst [vmem:[#allocation4 + $0xc0] sm:$0xff] %v1531
        %1564 = vst [vmem:[#allocation4 + $0xc8] sm:$0xff] %v1532
        %1565 = vst [vmem:[#allocation4 + $0xd0] sm:$0xff] %v1533
        %1566 = vst [vmem:[#allocation4 + $0xd8] sm:$0xff] %v1534
        %1567 = vst [vmem:[#allocation4 + $0xe0] sm:$0xff] %v1535
        %1568 = vst [vmem:[#allocation4 + $0xe8] sm:$0xff] %v1536
        %1569 = vst [vmem:[#allocation4 + $0xf0] sm:$0xff] %v1537
        %1570 = vst [vmem:[#allocation4 + $0xf8] sm:$0xff] %v1538
        %v1571 = vld [vmem:[%s390] sm:$0xff]
        %v1572 = vld [vmem:[%s390 + $0x8] sm:$0xff]
        %v1573 = vld [vmem:[%s390 + $0x18] sm:$0xff]
        %v1574 = vld [vmem:[%s390 + $0x20] sm:$0xff]
        %v1575 = vld [vmem:[%s390 + $0x30] sm:$0xff]
        %v1576 = vld [vmem:[%s390 + $0x38] sm:$0xff]
        %v1577 = vld [vmem:[%s390 + $0x48] sm:$0xff]
        %v1578 = vld [vmem:[%s390 + $0x50] sm:$0xff]
        %v1579 = vld [vmem:[%s390 + $0x60] sm:$0xff]
        %v1580 = vld [vmem:[%s390 + $0x68] sm:$0xff]
        %v1581 = vld [vmem:[%s390 + $0x78] sm:$0xff]
        %v1582 = vld [vmem:[%s390 + $0x80] sm:$0xff]
        %v1583 = vld [vmem:[%s390 + $0x90] sm:$0xff]
        %v1584 = vld [vmem:[%s390 + $0x98] sm:$0xff]
        %v1585 = vld [vmem:[%s390 + $0xa8] sm:$0xff]
        %v1586 = vld [vmem:[%s390 + $0xb0] sm:$0xff]
        %v1587 = vld [vmem:[%s390 + $0xc0] sm:$0xff]
        %v1588 = vld [vmem:[%s390 + $0xc8] sm:$0xff]
        %v1589 = vld [vmem:[%s390 + $0xd8] sm:$0xff]
        %v1590 = vld [vmem:[%s390 + $0xe0] sm:$0xff]
        %v1591 = vld [vmem:[%s390 + $0xf0] sm:$0xff]
        %v1592 = vld [vmem:[%s390 + $0xf8] sm:$0xff]
        %v1593 = vld [vmem:[%s390 + $0x108] sm:$0xff]
        %v1594 = vld [vmem:[%s390 + $0x110] sm:$0xff]
        %v1595 = vld [vmem:[%s390 + $0x120] sm:$0xff]
        %v1596 = vld [vmem:[%s390 + $0x128] sm:$0xff]
        %v1597 = vld [vmem:[%s390 + $0x138] sm:$0xff]
        %v1598 = vld [vmem:[%s390 + $0x140] sm:$0xff]
        %v1599 = vld [vmem:[%s390 + $0x150] sm:$0xff]
        %v1600 = vld [vmem:[%s390 + $0x158] sm:$0xff]
        %v1601 = vld [vmem:[%s390 + $0x168] sm:$0xff]
        %v1602 = vld [vmem:[%s390 + $0x170] sm:$0xff]
        %v1603 = vld [vmem:[#allocation4] sm:$0xff]
        %v1604 = vld [vmem:[#allocation4 + $0x8] sm:$0xff]
        %v1605 = vld [vmem:[#allocation4 + $0x10] sm:$0xff]
        %v1606 = vld [vmem:[#allocation4 + $0x18] sm:$0xff]
        %v1607 = vld [vmem:[#allocation4 + $0x20] sm:$0xff]
        %v1608 = vld [vmem:[#allocation4 + $0x28] sm:$0xff]
        %v1609 = vld [vmem:[#allocation4 + $0x30] sm:$0xff]
        %v1610 = vld [vmem:[#allocation4 + $0x38] sm:$0xff]
        %v1611 = vld [vmem:[#allocation4 + $0x40] sm:$0xff]
        %v1612 = vld [vmem:[#allocation4 + $0x48] sm:$0xff]
        %v1613 = vld [vmem:[#allocation4 + $0x50] sm:$0xff]
        %v1614 = vld [vmem:[#allocation4 + $0x58] sm:$0xff]
        %v1615 = vld [vmem:[#allocation4 + $0x60] sm:$0xff]
        %v1616 = vld [vmem:[#allocation4 + $0x68] sm:$0xff]
        %v1617 = vld [vmem:[#allocation4 + $0x70] sm:$0xff]
        %v1618 = vld [vmem:[#allocation4 + $0x78] sm:$0xff]
        %v1619 = vld [vmem:[#allocation4 + $0x80] sm:$0xff]
        %v1620 = vld [vmem:[#allocation4 + $0x88] sm:$0xff]
        %v1621 = vld [vmem:[#allocation4 + $0x90] sm:$0xff]
        %v1622 = vld [vmem:[#allocation4 + $0x98] sm:$0xff]
        %v1623 = vld [vmem:[#allocation4 + $0xa0] sm:$0xff]
        %v1624 = vld [vmem:[#allocation4 + $0xa8] sm:$0xff]
        %v1625 = vld [vmem:[#allocation4 + $0xb0] sm:$0xff]
        %v1626 = vld [vmem:[#allocation4 + $0xb8] sm:$0xff]
        %v1627 = vld [vmem:[#allocation4 + $0xc0] sm:$0xff]
        %v1628 = vld [vmem:[#allocation4 + $0xc8] sm:$0xff]
        %v1629 = vld [vmem:[#allocation4 + $0xd0] sm:$0xff]
        %v1630 = vld [vmem:[#allocation4 + $0xd8] sm:$0xff]
        %v1631 = vld [vmem:[#allocation4 + $0xe0] sm:$0xff]
        %v1632 = vld [vmem:[#allocation4 + $0xe8] sm:$0xff]
        %v1633 = vld [vmem:[#allocation4 + $0xf0] sm:$0xff]
        %v1634 = vld [vmem:[#allocation4 + $0xf8] sm:$0xff]
        %s1635 = scalar_lea.vmem [#allocation9], 384
        %v1636 = vld [vmem:[%s1635] sm:$0xff]
        %v1637 = vld [vmem:[%s1635 + $0x8] sm:$0xff]
        %v1638 = vld [vmem:[%s1635 + $0x10] sm:$0xff]
        %v1639 = vld [vmem:[%s1635 + $0x18] sm:$0xff]
        %v1640 = vld [vmem:[%s1635 + $0x20] sm:$0xff]
        %v1641 = vld [vmem:[%s1635 + $0x28] sm:$0xff]
        %v1642 = vld [vmem:[%s1635 + $0x30] sm:$0xff]
        %v1643 = vld [vmem:[%s1635 + $0x38] sm:$0xff]
        %v1644 = vld [vmem:[%s1635 + $0x40] sm:$0xff]
        %v1645 = vld [vmem:[%s1635 + $0x48] sm:$0xff]
        %v1646 = vld [vmem:[%s1635 + $0x50] sm:$0xff]
        %v1647 = vld [vmem:[%s1635 + $0x58] sm:$0xff]
        %v1648 = vld [vmem:[%s1635 + $0x60] sm:$0xff]
        %v1649 = vld [vmem:[%s1635 + $0x68] sm:$0xff]
        %v1650 = vld [vmem:[%s1635 + $0x70] sm:$0xff]
        %v1651 = vld [vmem:[%s1635 + $0x78] sm:$0xff]
        %1652 = vmatprep.subr.mxu0 0.0
        %1653 = vmatpush1.msra.mxu0 %v1636
        %1654 = vmatprep.subr.mxu0 0.0
        %1655 = vmatpush1.msra.mxu0 %v1637
        %1656 = vmatprep.subr.mxu0 0.0
        %1657 = vmatpush1.msra.mxu0 %v1638
        %1658 = vmatprep.subr.mxu0 0.0
        %1659 = vmatpush1.msra.mxu0 %v1639
        %1660 = vmatprep.subr.mxu0 0.0
        %1661 = vmatpush1.msra.mxu0 %v1640
        %1662 = vmatprep.subr.mxu0 0.0
        %1663 = vmatpush1.msra.mxu0 %v1641
        %1664 = vmatprep.subr.mxu0 0.0
        %1665 = vmatpush1.msra.mxu0 %v1642
        %1666 = vmatprep.subr.mxu0 0.0
        %1667 = vmatpush1.msra.mxu0 %v1643
        %1668 = vmatprep.subr.mxu0 0.0
        %1669 = vmatpush1.msra.mxu0 %v1644
        %1670 = vmatprep.subr.mxu0 0.0
        %1671 = vmatpush1.msra.mxu0 %v1645
        %1672 = vmatprep.subr.mxu0 0.0
        %1673 = vmatpush1.msra.mxu0 %v1646
        %1674 = vmatprep.subr.mxu0 0.0
        %1675 = vmatpush1.msra.mxu0 %v1647
        %1676 = vmatprep.subr.mxu0 0.0
        %1677 = vmatpush1.msra.mxu0 %v1648
        %1678 = vmatprep.subr.mxu0 0.0
        %1679 = vmatpush1.msra.mxu0 %v1649
        %1680 = vmatprep.subr.mxu0 0.0
        %1681 = vmatpush1.msra.mxu0 %v1650
        %1682 = vmatprep.subr.mxu0 0.0
        %1683 = vmatpush1.msra.mxu0 %v1651
        %1684 = vmatprep.subr.mxu0 0.0
        %1685 = vmatpush1.msra.mxu0 0.0
        %1686 = vmatprep.subr.mxu0 0.0
        %1687 = vmatpush1.msra.mxu0 0.0
        %1688 = vmatprep.subr.mxu0 0.0
        %1689 = vmatpush1.msra.mxu0 0.0
        %1690 = vmatprep.subr.mxu0 0.0
        %1691 = vmatpush1.msra.mxu0 0.0
        %1692 = vmatprep.subr.mxu0 0.0
        %1693 = vmatpush1.msra.mxu0 0.0
        %1694 = vmatprep.subr.mxu0 0.0
        %1695 = vmatpush1.msra.mxu0 0.0
        %1696 = vmatprep.subr.mxu0 0.0
        %1697 = vmatpush1.msra.mxu0 0.0
        %1698 = vmatprep.subr.mxu0 0.0
        %1699 = vmatpush1.msra.mxu0 0.0
        %1700 = vmatprep.subr.mxu0 0.0
        %1701 = vmatpush1.msra.mxu0 0.0
        %1702 = vmatprep.subr.mxu0 0.0
        %1703 = vmatpush1.msra.mxu0 0.0
        %1704 = vmatprep.subr.mxu0 0.0
        %1705 = vmatpush1.msra.mxu0 0.0
        %1706 = vmatprep.subr.mxu0 0.0
        %1707 = vmatpush1.msra.mxu0 0.0
        %1708 = vmatprep.subr.mxu0 0.0
        %1709 = vmatpush1.msra.mxu0 0.0
        %1710 = vmatprep.subr.mxu0 0.0
        %1711 = vmatpush1.msra.mxu0 0.0
        %1712 = vmatprep.subr.mxu0 0.0
        %1713 = vmatpush1.msra.mxu0 0.0
        %1714 = vmatprep.subr.mxu0 0.0
        %1715 = vmatpush1.msra.mxu0 0.0
        %1716 = vmatprep.mubr.f32.mxu0 0.0
        %1717 = vmatmul.mubr.f32.gmra.mrb[0].mxu0 %v1571
        %v1718 = vpop.f32.mrb[0].mxu0
        %v1719 = vadd.f32 0.0, %v1718
        %v1720 = vpop.f32.mrb[0].mxu0
        %1721 = vmatprep.mubr.f32.mxu0 0.0
        %1722 = vmatmul.mubr.f32.gmra.mrb[0].mxu0 %v1572
        %v1723 = vpop.f32.mrb[0].mxu0
        %v1724 = vadd.f32 0.0, %v1723
        %v1725 = vpop.f32.mrb[0].mxu0
        %1726 = vmatprep.mubr.f32.mxu0 0.0
        %1727 = vmatmul.mubr.f32.gmra.mrb[0].mxu0 %v1573
        %v1728 = vpop.f32.mrb[0].mxu0
        %v1729 = vadd.f32 0.0, %v1728
        %v1730 = vpop.f32.mrb[0].mxu0
        %1731 = vmatprep.mubr.f32.mxu0 0.0
        %1732 = vmatmul.mubr.f32.gmra.mrb[0].mxu0 %v1574
        %v1733 = vpop.f32.mrb[0].mxu0
        %v1734 = vadd.f32 0.0, %v1733
        %v1735 = vpop.f32.mrb[0].mxu0
        %1736 = vmatprep.mubr.f32.mxu0 0.0
        %1737 = vmatmul.mubr.f32.gmra.mrb[0].mxu0 %v1575
        %v1738 = vpop.f32.mrb[0].mxu0
        %v1739 = vadd.f32 0.0, %v1738
        %v1740 = vpop.f32.mrb[0].mxu0
        %1741 = vmatprep.mubr.f32.mxu0 0.0
        %1742 = vmatmul.mubr.f32.gmra.mrb[0].mxu0 %v1576
        %v1743 = vpop.f32.mrb[0].mxu0
        %v1744 = vadd.f32 0.0, %v1743
        %v1745 = vpop.f32.mrb[0].mxu0
        %1746 = vmatprep.mubr.f32.mxu0 0.0
        %1747 = vmatmul.mubr.f32.gmra.mrb[0].mxu0 %v1577
        %v1748 = vpop.f32.mrb[0].mxu0
        %v1749 = vadd.f32 0.0, %v1748
        %v1750 = vpop.f32.mrb[0].mxu0
        %1751 = vmatprep.mubr.f32.mxu0 0.0
        %1752 = vmatmul.mubr.f32.gmra.mrb[0].mxu0 %v1578
        %v1753 = vpop.f32.mrb[0].mxu0
        %v1754 = vadd.f32 0.0, %v1753
        %v1755 = vpop.f32.mrb[0].mxu0
        %1756 = vmatprep.mubr.f32.mxu0 0.0
        %1757 = vmatmul.mubr.f32.gmra.mrb[0].mxu0 %v1579
        %v1758 = vpop.f32.mrb[0].mxu0
        %v1759 = vadd.f32 0.0, %v1758
        %v1760 = vpop.f32.mrb[0].mxu0
        %1761 = vmatprep.mubr.f32.mxu0 0.0
        %1762 = vmatmul.mubr.f32.gmra.mrb[0].mxu0 %v1580
        %v1763 = vpop.f32.mrb[0].mxu0
        %v1764 = vadd.f32 0.0, %v1763
        %v1765 = vpop.f32.mrb[0].mxu0
        %1766 = vmatprep.mubr.f32.mxu0 0.0
        %1767 = vmatmul.mubr.f32.gmra.mrb[0].mxu0 %v1581
        %v1768 = vpop.f32.mrb[0].mxu0
        %v1769 = vadd.f32 0.0, %v1768
        %v1770 = vpop.f32.mrb[0].mxu0
        %1771 = vmatprep.mubr.f32.mxu0 0.0
        %1772 = vmatmul.mubr.f32.gmra.mrb[0].mxu0 %v1582
        %v1773 = vpop.f32.mrb[0].mxu0
        %v1774 = vadd.f32 0.0, %v1773
        %v1775 = vpop.f32.mrb[0].mxu0
        %1776 = vmatprep.mubr.f32.mxu0 0.0
        %1777 = vmatmul.mubr.f32.gmra.mrb[0].mxu0 %v1583
        %v1778 = vpop.f32.mrb[0].mxu0
        %v1779 = vadd.f32 0.0, %v1778
        %v1780 = vpop.f32.mrb[0].mxu0
        %1781 = vmatprep.mubr.f32.mxu0 0.0
        %1782 = vmatmul.mubr.f32.gmra.mrb[0].mxu0 %v1584
        %v1783 = vpop.f32.mrb[0].mxu0
        %v1784 = vadd.f32 0.0, %v1783
        %v1785 = vpop.f32.mrb[0].mxu0
        %1786 = vmatprep.mubr.f32.mxu0 0.0
        %1787 = vmatmul.mubr.f32.gmra.mrb[0].mxu0 %v1585
        %v1788 = vpop.f32.mrb[0].mxu0
        %v1789 = vadd.f32 0.0, %v1788
        %v1790 = vpop.f32.mrb[0].mxu0
        %1791 = vmatprep.mubr.f32.mxu0 0.0
        %1792 = vmatmul.mubr.f32.gmra.mrb[0].mxu0 %v1586
        %v1793 = vpop.f32.mrb[0].mxu0
        %v1794 = vadd.f32 0.0, %v1793
        %v1795 = vpop.f32.mrb[0].mxu0
        %1796 = vmatprep.mubr.f32.mxu0 0.0
        %1797 = vmatmul.mubr.f32.gmra.mrb[0].mxu0 %v1587
        %v1798 = vpop.f32.mrb[0].mxu0
        %v1799 = vadd.f32 0.0, %v1798
        %v1800 = vpop.f32.mrb[0].mxu0
        %1801 = vmatprep.mubr.f32.mxu0 0.0
        %1802 = vmatmul.mubr.f32.gmra.mrb[0].mxu0 %v1588
        %v1803 = vpop.f32.mrb[0].mxu0
        %v1804 = vadd.f32 0.0, %v1803
        %v1805 = vpop.f32.mrb[0].mxu0
        %1806 = vmatprep.mubr.f32.mxu0 0.0
        %1807 = vmatmul.mubr.f32.gmra.mrb[0].mxu0 %v1589
        %v1808 = vpop.f32.mrb[0].mxu0
        %v1809 = vadd.f32 0.0, %v1808
        %v1810 = vpop.f32.mrb[0].mxu0
        %1811 = vmatprep.mubr.f32.mxu0 0.0
        %1812 = vmatmul.mubr.f32.gmra.mrb[0].mxu0 %v1590
        %v1813 = vpop.f32.mrb[0].mxu0
        %v1814 = vadd.f32 0.0, %v1813
        %v1815 = vpop.f32.mrb[0].mxu0
        %1816 = vmatprep.mubr.f32.mxu0 0.0
        %1817 = vmatmul.mubr.f32.gmra.mrb[0].mxu0 %v1591
        %v1818 = vpop.f32.mrb[0].mxu0
        %v1819 = vadd.f32 0.0, %v1818
        %v1820 = vpop.f32.mrb[0].mxu0
        %1821 = vmatprep.mubr.f32.mxu0 0.0
        %1822 = vmatmul.mubr.f32.gmra.mrb[0].mxu0 %v1592
        %v1823 = vpop.f32.mrb[0].mxu0
        %v1824 = vadd.f32 0.0, %v1823
        %v1825 = vpop.f32.mrb[0].mxu0
        %1826 = vmatprep.mubr.f32.mxu0 0.0
        %1827 = vmatmul.mubr.f32.gmra.mrb[0].mxu0 %v1593
        %v1828 = vpop.f32.mrb[0].mxu0
        %v1829 = vadd.f32 0.0, %v1828
        %v1830 = vpop.f32.mrb[0].mxu0
        %1831 = vmatprep.mubr.f32.mxu0 0.0
        %1832 = vmatmul.mubr.f32.gmra.mrb[0].mxu0 %v1594
        %v1833 = vpop.f32.mrb[0].mxu0
        %v1834 = vadd.f32 0.0, %v1833
        %v1835 = vpop.f32.mrb[0].mxu0
        %1836 = vmatprep.mubr.f32.mxu0 0.0
        %1837 = vmatmul.mubr.f32.gmra.mrb[0].mxu0 %v1595
        %v1838 = vpop.f32.mrb[0].mxu0
        %v1839 = vadd.f32 0.0, %v1838
        %v1840 = vpop.f32.mrb[0].mxu0
        %1841 = vmatprep.mubr.f32.mxu0 0.0
        %1842 = vmatmul.mubr.f32.gmra.mrb[0].mxu0 %v1596
        %v1843 = vpop.f32.mrb[0].mxu0
        %v1844 = vadd.f32 0.0, %v1843
        %v1845 = vpop.f32.mrb[0].mxu0
        %1846 = vmatprep.mubr.f32.mxu0 0.0
        %1847 = vmatmul.mubr.f32.gmra.mrb[0].mxu0 %v1597
        %v1848 = vpop.f32.mrb[0].mxu0
        %v1849 = vadd.f32 0.0, %v1848
        %v1850 = vpop.f32.mrb[0].mxu0
        %1851 = vmatprep.mubr.f32.mxu0 0.0
        %1852 = vmatmul.mubr.f32.gmra.mrb[0].mxu0 %v1598
        %v1853 = vpop.f32.mrb[0].mxu0
        %v1854 = vadd.f32 0.0, %v1853
        %v1855 = vpop.f32.mrb[0].mxu0
        %1856 = vmatprep.mubr.f32.mxu0 0.0
        %1857 = vmatmul.mubr.f32.gmra.mrb[0].mxu0 %v1599
        %v1858 = vpop.f32.mrb[0].mxu0
        %v1859 = vadd.f32 0.0, %v1858
        %v1860 = vpop.f32.mrb[0].mxu0
        %1861 = vmatprep.mubr.f32.mxu0 0.0
        %1862 = vmatmul.mubr.f32.gmra.mrb[0].mxu0 %v1600
        %v1863 = vpop.f32.mrb[0].mxu0
        %v1864 = vadd.f32 0.0, %v1863
        %v1865 = vpop.f32.mrb[0].mxu0
        %1866 = vmatprep.mubr.f32.mxu0 0.0
        %1867 = vmatmul.mubr.f32.gmra.mrb[0].mxu0 %v1601
        %v1868 = vpop.f32.mrb[0].mxu0
        %v1869 = vadd.f32 0.0, %v1868
        %v1870 = vpop.f32.mrb[0].mxu0
        %1871 = vmatprep.mubr.f32.mxu0 0.0
        %1872 = vmatmul.mubr.f32.gmra.mrb[0].mxu0 %v1602
        %v1873 = vpop.f32.mrb[0].mxu0
        %v1874 = vadd.f32 0.0, %v1873
        %v1875 = vpop.f32.mrb[0].mxu0
        %1876 = vdwg.mxu0
        %v1877 = vadd.f32 %v1603, %v1719
        %v1878 = vadd.f32 %v1604, %v1724
        %v1879 = vadd.f32 %v1605, %v1729
        %v1880 = vadd.f32 %v1606, %v1734
        %v1881 = vadd.f32 %v1607, %v1739
        %v1882 = vadd.f32 %v1608, %v1744
        %v1883 = vadd.f32 %v1609, %v1749
        %v1884 = vadd.f32 %v1610, %v1754
        %v1885 = vadd.f32 %v1611, %v1759
        %v1886 = vadd.f32 %v1612, %v1764
        %v1887 = vadd.f32 %v1613, %v1769
        %v1888 = vadd.f32 %v1614, %v1774
        %v1889 = vadd.f32 %v1615, %v1779
        %v1890 = vadd.f32 %v1616, %v1784
        %v1891 = vadd.f32 %v1617, %v1789
        %v1892 = vadd.f32 %v1618, %v1794
        %v1893 = vadd.f32 %v1619, %v1799
        %v1894 = vadd.f32 %v1620, %v1804
        %v1895 = vadd.f32 %v1621, %v1809
        %v1896 = vadd.f32 %v1622, %v1814
        %v1897 = vadd.f32 %v1623, %v1819
        %v1898 = vadd.f32 %v1624, %v1824
        %v1899 = vadd.f32 %v1625, %v1829
        %v1900 = vadd.f32 %v1626, %v1834
        %v1901 = vadd.f32 %v1627, %v1839
        %v1902 = vadd.f32 %v1628, %v1844
        %v1903 = vadd.f32 %v1629, %v1849
        %v1904 = vadd.f32 %v1630, %v1854
        %v1905 = vadd.f32 %v1631, %v1859
        %v1906 = vadd.f32 %v1632, %v1864
        %v1907 = vadd.f32 %v1633, %v1869
        %v1908 = vadd.f32 %v1634, %v1874
        %1909 = vst [vmem:[#allocation4] sm:$0xff] %v1877
        %1910 = vst [vmem:[#allocation4 + $0x8] sm:$0xff] %v1878
        %1911 = vst [vmem:[#allocation4 + $0x10] sm:$0xff] %v1879
        %1912 = vst [vmem:[#allocation4 + $0x18] sm:$0xff] %v1880
        %1913 = vst [vmem:[#allocation4 + $0x20] sm:$0xff] %v1881
        %1914 = vst [vmem:[#allocation4 + $0x28] sm:$0xff] %v1882
        %1915 = vst [vmem:[#allocation4 + $0x30] sm:$0xff] %v1883
        %1916 = vst [vmem:[#allocation4 + $0x38] sm:$0xff] %v1884
        %1917 = vst [vmem:[#allocation4 + $0x40] sm:$0xff] %v1885
        %1918 = vst [vmem:[#allocation4 + $0x48] sm:$0xff] %v1886
        %1919 = vst [vmem:[#allocation4 + $0x50] sm:$0xff] %v1887
        %1920 = vst [vmem:[#allocation4 + $0x58] sm:$0xff] %v1888
        %1921 = vst [vmem:[#allocation4 + $0x60] sm:$0xff] %v1889
        %1922 = vst [vmem:[#allocation4 + $0x68] sm:$0xff] %v1890
        %1923 = vst [vmem:[#allocation4 + $0x70] sm:$0xff] %v1891
        %1924 = vst [vmem:[#allocation4 + $0x78] sm:$0xff] %v1892
        %1925 = vst [vmem:[#allocation4 + $0x80] sm:$0xff] %v1893
        %1926 = vst [vmem:[#allocation4 + $0x88] sm:$0xff] %v1894
        %1927 = vst [vmem:[#allocation4 + $0x90] sm:$0xff] %v1895
        %1928 = vst [vmem:[#allocation4 + $0x98] sm:$0xff] %v1896
        %1929 = vst [vmem:[#allocation4 + $0xa0] sm:$0xff] %v1897
        %1930 = vst [vmem:[#allocation4 + $0xa8] sm:$0xff] %v1898
        %1931 = vst [vmem:[#allocation4 + $0xb0] sm:$0xff] %v1899
        %1932 = vst [vmem:[#allocation4 + $0xb8] sm:$0xff] %v1900
        %1933 = vst [vmem:[#allocation4 + $0xc0] sm:$0xff] %v1901
        %1934 = vst [vmem:[#allocation4 + $0xc8] sm:$0xff] %v1902
        %1935 = vst [vmem:[#allocation4 + $0xd0] sm:$0xff] %v1903
        %1936 = vst [vmem:[#allocation4 + $0xd8] sm:$0xff] %v1904
        %1937 = vst [vmem:[#allocation4 + $0xe0] sm:$0xff] %v1905
        %1938 = vst [vmem:[#allocation4 + $0xe8] sm:$0xff] %v1906
        %1939 = vst [vmem:[#allocation4 + $0xf0] sm:$0xff] %v1907
        %1940 = vst [vmem:[#allocation4 + $0xf8] sm:$0xff] %v1908
        %v1941 = vld [vmem:[%s390 + $0x1] sm:$0xff]
        %v1942 = vld [vmem:[%s390 + $0x9] sm:$0xff]
        %v1943 = vld [vmem:[%s390 + $0x19] sm:$0xff]
        %v1944 = vld [vmem:[%s390 + $0x21] sm:$0xff]
        %v1945 = vld [vmem:[%s390 + $0x31] sm:$0xff]
        %v1946 = vld [vmem:[%s390 + $0x39] sm:$0xff]
        %v1947 = vld [vmem:[%s390 + $0x49] sm:$0xff]
        %v1948 = vld [vmem:[%s390 + $0x51] sm:$0xff]
        %v1949 = vld [vmem:[%s390 + $0x61] sm:$0xff]
        %v1950 = vld [vmem:[%s390 + $0x69] sm:$0xff]
        %v1951 = vld [vmem:[%s390 + $0x79] sm:$0xff]
        %v1952 = vld [vmem:[%s390 + $0x81] sm:$0xff]
        %v1953 = vld [vmem:[%s390 + $0x91] sm:$0xff]
        %v1954 = vld [vmem:[%s390 + $0x99] sm:$0xff]
        %v1955 = vld [vmem:[%s390 + $0xa9] sm:$0xff]
        %v1956 = vld [vmem:[%s390 + $0xb1] sm:$0xff]
        %v1957 = vld [vmem:[%s390 + $0xc1] sm:$0xff]
        %v1958 = vld [vmem:[%s390 + $0xc9] sm:$0xff]
        %v1959 = vld [vmem:[%s390 + $0xd9] sm:$0xff]
        %v1960 = vld [vmem:[%s390 + $0xe1] sm:$0xff]
        %v1961 = vld [vmem:[%s390 + $0xf1] sm:$0xff]
        %v1962 = vld [vmem:[%s390 + $0xf9] sm:$0xff]
        %v1963 = vld [vmem:[%s390 + $0x109] sm:$0xff]
        %v1964 = vld [vmem:[%s390 + $0x111] sm:$0xff]
        %v1965 = vld [vmem:[%s390 + $0x121] sm:$0xff]
        %v1966 = vld [vmem:[%s390 + $0x129] sm:$0xff]
        %v1967 = vld [vmem:[%s390 + $0x139] sm:$0xff]
        %v1968 = vld [vmem:[%s390 + $0x141] sm:$0xff]
        %v1969 = vld [vmem:[%s390 + $0x151] sm:$0xff]
        %v1970 = vld [vmem:[%s390 + $0x159] sm:$0xff]
        %v1971 = vld [vmem:[%s390 + $0x169] sm:$0xff]
        %v1972 = vld [vmem:[%s390 + $0x171] sm:$0xff]
        %v1973 = vld [vmem:[#allocation4] sm:$0xff]
        %v1974 = vld [vmem:[#allocation4 + $0x8] sm:$0xff]
        %v1975 = vld [vmem:[#allocation4 + $0x10] sm:$0xff]
        %v1976 = vld [vmem:[#allocation4 + $0x18] sm:$0xff]
        %v1977 = vld [vmem:[#allocation4 + $0x20] sm:$0xff]
        %v1978 = vld [vmem:[#allocation4 + $0x28] sm:$0xff]
        %v1979 = vld [vmem:[#allocation4 + $0x30] sm:$0xff]
        %v1980 = vld [vmem:[#allocation4 + $0x38] sm:$0xff]
        %v1981 = vld [vmem:[#allocation4 + $0x40] sm:$0xff]
        %v1982 = vld [vmem:[#allocation4 + $0x48] sm:$0xff]
        %v1983 = vld [vmem:[#allocation4 + $0x50] sm:$0xff]
        %v1984 = vld [vmem:[#allocation4 + $0x58] sm:$0xff]
        %v1985 = vld [vmem:[#allocation4 + $0x60] sm:$0xff]
        %v1986 = vld [vmem:[#allocation4 + $0x68] sm:$0xff]
        %v1987 = vld [vmem:[#allocation4 + $0x70] sm:$0xff]
        %v1988 = vld [vmem:[#allocation4 + $0x78] sm:$0xff]
        %v1989 = vld [vmem:[#allocation4 + $0x80] sm:$0xff]
        %v1990 = vld [vmem:[#allocation4 + $0x88] sm:$0xff]
        %v1991 = vld [vmem:[#allocation4 + $0x90] sm:$0xff]
        %v1992 = vld [vmem:[#allocation4 + $0x98] sm:$0xff]
        %v1993 = vld [vmem:[#allocation4 + $0xa0] sm:$0xff]
        %v1994 = vld [vmem:[#allocation4 + $0xa8] sm:$0xff]
        %v1995 = vld [vmem:[#allocation4 + $0xb0] sm:$0xff]
        %v1996 = vld [vmem:[#allocation4 + $0xb8] sm:$0xff]
        %v1997 = vld [vmem:[#allocation4 + $0xc0] sm:$0xff]
        %v1998 = vld [vmem:[#allocation4 + $0xc8] sm:$0xff]
        %v1999 = vld [vmem:[#allocation4 + $0xd0] sm:$0xff]
        %v2000 = vld [vmem:[#allocation4 + $0xd8] sm:$0xff]
        %v2001 = vld [vmem:[#allocation4 + $0xe0] sm:$0xff]
        %v2002 = vld [vmem:[#allocation4 + $0xe8] sm:$0xff]
        %v2003 = vld [vmem:[#allocation4 + $0xf0] sm:$0xff]
        %v2004 = vld [vmem:[#allocation4 + $0xf8] sm:$0xff]
        %s2005 = scalar_lea.vmem [#allocation9], 512
        %v2006 = vld [vmem:[%s2005] sm:$0xff]
        %v2007 = vld [vmem:[%s2005 + $0x8] sm:$0xff]
        %v2008 = vld [vmem:[%s2005 + $0x10] sm:$0xff]
        %v2009 = vld [vmem:[%s2005 + $0x18] sm:$0xff]
        %v2010 = vld [vmem:[%s2005 + $0x20] sm:$0xff]
        %v2011 = vld [vmem:[%s2005 + $0x28] sm:$0xff]
        %v2012 = vld [vmem:[%s2005 + $0x30] sm:$0xff]
        %v2013 = vld [vmem:[%s2005 + $0x38] sm:$0xff]
        %v2014 = vld [vmem:[%s2005 + $0x40] sm:$0xff]
        %v2015 = vld [vmem:[%s2005 + $0x48] sm:$0xff]
        %v2016 = vld [vmem:[%s2005 + $0x50] sm:$0xff]
        %v2017 = vld [vmem:[%s2005 + $0x58] sm:$0xff]
        %v2018 = vld [vmem:[%s2005 + $0x60] sm:$0xff]
        %v2019 = vld [vmem:[%s2005 + $0x68] sm:$0xff]
        %v2020 = vld [vmem:[%s2005 + $0x70] sm:$0xff]
        %v2021 = vld [vmem:[%s2005 + $0x78] sm:$0xff]
        %2022 = vmatprep.subr.mxu0 0.0
        %2023 = vmatpush1.msra.mxu0 %v2006
        %2024 = vmatprep.subr.mxu0 0.0
        %2025 = vmatpush1.msra.mxu0 %v2007
        %2026 = vmatprep.subr.mxu0 0.0
        %2027 = vmatpush1.msra.mxu0 %v2008
        %2028 = vmatprep.subr.mxu0 0.0
        %2029 = vmatpush1.msra.mxu0 %v2009
        %2030 = vmatprep.subr.mxu0 0.0
        %2031 = vmatpush1.msra.mxu0 %v2010
        %2032 = vmatprep.subr.mxu0 0.0
        %2033 = vmatpush1.msra.mxu0 %v2011
        %2034 = vmatprep.subr.mxu0 0.0
        %2035 = vmatpush1.msra.mxu0 %v2012
        %2036 = vmatprep.subr.mxu0 0.0
        %2037 = vmatpush1.msra.mxu0 %v2013
        %2038 = vmatprep.subr.mxu0 0.0
        %2039 = vmatpush1.msra.mxu0 %v2014
        %2040 = vmatprep.subr.mxu0 0.0
        %2041 = vmatpush1.msra.mxu0 %v2015
        %2042 = vmatprep.subr.mxu0 0.0
        %2043 = vmatpush1.msra.mxu0 %v2016
        %2044 = vmatprep.subr.mxu0 0.0
        %2045 = vmatpush1.msra.mxu0 %v2017
        %2046 = vmatprep.subr.mxu0 0.0
        %2047 = vmatpush1.msra.mxu0 %v2018
        %2048 = vmatprep.subr.mxu0 0.0
        %2049 = vmatpush1.msra.mxu0 %v2019
        %2050 = vmatprep.subr.mxu0 0.0
        %2051 = vmatpush1.msra.mxu0 %v2020
        %2052 = vmatprep.subr.mxu0 0.0
        %2053 = vmatpush1.msra.mxu0 %v2021
        %2054 = vmatprep.subr.mxu0 0.0
        %2055 = vmatpush1.msra.mxu0 0.0
        %2056 = vmatprep.subr.mxu0 0.0
        %2057 = vmatpush1.msra.mxu0 0.0
        %2058 = vmatprep.subr.mxu0 0.0
        %2059 = vmatpush1.msra.mxu0 0.0
        %2060 = vmatprep.subr.mxu0 0.0
        %2061 = vmatpush1.msra.mxu0 0.0
        %2062 = vmatprep.subr.mxu0 0.0
        %2063 = vmatpush1.msra.mxu0 0.0
        %2064 = vmatprep.subr.mxu0 0.0
        %2065 = vmatpush1.msra.mxu0 0.0
        %2066 = vmatprep.subr.mxu0 0.0
        %2067 = vmatpush1.msra.mxu0 0.0
        %2068 = vmatprep.subr.mxu0 0.0
        %2069 = vmatpush1.msra.mxu0 0.0
        %2070 = vmatprep.subr.mxu0 0.0
        %2071 = vmatpush1.msra.mxu0 0.0
        %2072 = vmatprep.subr.mxu0 0.0
        %2073 = vmatpush1.msra.mxu0 0.0
        %2074 = vmatprep.subr.mxu0 0.0
        %2075 = vmatpush1.msra.mxu0 0.0
        %2076 = vmatprep.subr.mxu0 0.0
        %2077 = vmatpush1.msra.mxu0 0.0
        %2078 = vmatprep.subr.mxu0 0.0
        %2079 = vmatpush1.msra.mxu0 0.0
        %2080 = vmatprep.subr.mxu0 0.0
        %2081 = vmatpush1.msra.mxu0 0.0
        %2082 = vmatprep.subr.mxu0 0.0
        %2083 = vmatpush1.msra.mxu0 0.0
        %2084 = vmatprep.subr.mxu0 0.0
        %2085 = vmatpush1.msra.mxu0 0.0
        %2086 = vmatprep.mubr.f32.mxu0 0.0
        %2087 = vmatmul.mubr.f32.gmra.mrb[0].mxu0 %v1941
        %v2088 = vpop.f32.mrb[0].mxu0
        %v2089 = vadd.f32 0.0, %v2088
        %v2090 = vpop.f32.mrb[0].mxu0
        %2091 = vmatprep.mubr.f32.mxu0 0.0
        %2092 = vmatmul.mubr.f32.gmra.mrb[0].mxu0 %v1942
        %v2093 = vpop.f32.mrb[0].mxu0
        %v2094 = vadd.f32 0.0, %v2093
        %v2095 = vpop.f32.mrb[0].mxu0
        %2096 = vmatprep.mubr.f32.mxu0 0.0
        %2097 = vmatmul.mubr.f32.gmra.mrb[0].mxu0 %v1943
        %v2098 = vpop.f32.mrb[0].mxu0
        %v2099 = vadd.f32 0.0, %v2098
        %v2100 = vpop.f32.mrb[0].mxu0
        %2101 = vmatprep.mubr.f32.mxu0 0.0
        %2102 = vmatmul.mubr.f32.gmra.mrb[0].mxu0 %v1944
        %v2103 = vpop.f32.mrb[0].mxu0
        %v2104 = vadd.f32 0.0, %v2103
        %v2105 = vpop.f32.mrb[0].mxu0
        %2106 = vmatprep.mubr.f32.mxu0 0.0
        %2107 = vmatmul.mubr.f32.gmra.mrb[0].mxu0 %v1945
        %v2108 = vpop.f32.mrb[0].mxu0
        %v2109 = vadd.f32 0.0, %v2108
        %v2110 = vpop.f32.mrb[0].mxu0
        %2111 = vmatprep.mubr.f32.mxu0 0.0
        %2112 = vmatmul.mubr.f32.gmra.mrb[0].mxu0 %v1946
        %v2113 = vpop.f32.mrb[0].mxu0
        %v2114 = vadd.f32 0.0, %v2113
        %v2115 = vpop.f32.mrb[0].mxu0
        %2116 = vmatprep.mubr.f32.mxu0 0.0
        %2117 = vmatmul.mubr.f32.gmra.mrb[0].mxu0 %v1947
        %v2118 = vpop.f32.mrb[0].mxu0
        %v2119 = vadd.f32 0.0, %v2118
        %v2120 = vpop.f32.mrb[0].mxu0
        %2121 = vmatprep.mubr.f32.mxu0 0.0
        %2122 = vmatmul.mubr.f32.gmra.mrb[0].mxu0 %v1948
        %v2123 = vpop.f32.mrb[0].mxu0
        %v2124 = vadd.f32 0.0, %v2123
        %v2125 = vpop.f32.mrb[0].mxu0
        %2126 = vmatprep.mubr.f32.mxu0 0.0
        %2127 = vmatmul.mubr.f32.gmra.mrb[0].mxu0 %v1949
        %v2128 = vpop.f32.mrb[0].mxu0
        %v2129 = vadd.f32 0.0, %v2128
        %v2130 = vpop.f32.mrb[0].mxu0
        %2131 = vmatprep.mubr.f32.mxu0 0.0
        %2132 = vmatmul.mubr.f32.gmra.mrb[0].mxu0 %v1950
        %v2133 = vpop.f32.mrb[0].mxu0
        %v2134 = vadd.f32 0.0, %v2133
        %v2135 = vpop.f32.mrb[0].mxu0
        %2136 = vmatprep.mubr.f32.mxu0 0.0
        %2137 = vmatmul.mubr.f32.gmra.mrb[0].mxu0 %v1951
        %v2138 = vpop.f32.mrb[0].mxu0
        %v2139 = vadd.f32 0.0, %v2138
        %v2140 = vpop.f32.mrb[0].mxu0
        %2141 = vmatprep.mubr.f32.mxu0 0.0
        %2142 = vmatmul.mubr.f32.gmra.mrb[0].mxu0 %v1952
        %v2143 = vpop.f32.mrb[0].mxu0
        %v2144 = vadd.f32 0.0, %v2143
        %v2145 = vpop.f32.mrb[0].mxu0
        %2146 = vmatprep.mubr.f32.mxu0 0.0
        %2147 = vmatmul.mubr.f32.gmra.mrb[0].mxu0 %v1953
        %v2148 = vpop.f32.mrb[0].mxu0
        %v2149 = vadd.f32 0.0, %v2148
        %v2150 = vpop.f32.mrb[0].mxu0
        %2151 = vmatprep.mubr.f32.mxu0 0.0
        %2152 = vmatmul.mubr.f32.gmra.mrb[0].mxu0 %v1954
        %v2153 = vpop.f32.mrb[0].mxu0
        %v2154 = vadd.f32 0.0, %v2153
        %v2155 = vpop.f32.mrb[0].mxu0
        %2156 = vmatprep.mubr.f32.mxu0 0.0
        %2157 = vmatmul.mubr.f32.gmra.mrb[0].mxu0 %v1955
        %v2158 = vpop.f32.mrb[0].mxu0
        %v2159 = vadd.f32 0.0, %v2158
        %v2160 = vpop.f32.mrb[0].mxu0
        %2161 = vmatprep.mubr.f32.mxu0 0.0
        %2162 = vmatmul.mubr.f32.gmra.mrb[0].mxu0 %v1956
        %v2163 = vpop.f32.mrb[0].mxu0
        %v2164 = vadd.f32 0.0, %v2163
        %v2165 = vpop.f32.mrb[0].mxu0
        %2166 = vmatprep.mubr.f32.mxu0 0.0
        %2167 = vmatmul.mubr.f32.gmra.mrb[0].mxu0 %v1957
        %v2168 = vpop.f32.mrb[0].mxu0
        %v2169 = vadd.f32 0.0, %v2168
        %v2170 = vpop.f32.mrb[0].mxu0
        %2171 = vmatprep.mubr.f32.mxu0 0.0
        %2172 = vmatmul.mubr.f32.gmra.mrb[0].mxu0 %v1958
        %v2173 = vpop.f32.mrb[0].mxu0
        %v2174 = vadd.f32 0.0, %v2173
        %v2175 = vpop.f32.mrb[0].mxu0
        %2176 = vmatprep.mubr.f32.mxu0 0.0
        %2177 = vmatmul.mubr.f32.gmra.mrb[0].mxu0 %v1959
        %v2178 = vpop.f32.mrb[0].mxu0
        %v2179 = vadd.f32 0.0, %v2178
        %v2180 = vpop.f32.mrb[0].mxu0
        %2181 = vmatprep.mubr.f32.mxu0 0.0
        %2182 = vmatmul.mubr.f32.gmra.mrb[0].mxu0 %v1960
        %v2183 = vpop.f32.mrb[0].mxu0
        %v2184 = vadd.f32 0.0, %v2183
        %v2185 = vpop.f32.mrb[0].mxu0
        %2186 = vmatprep.mubr.f32.mxu0 0.0
        %2187 = vmatmul.mubr.f32.gmra.mrb[0].mxu0 %v1961
        %v2188 = vpop.f32.mrb[0].mxu0
        %v2189 = vadd.f32 0.0, %v2188
        %v2190 = vpop.f32.mrb[0].mxu0
        %2191 = vmatprep.mubr.f32.mxu0 0.0
        %2192 = vmatmul.mubr.f32.gmra.mrb[0].mxu0 %v1962
        %v2193 = vpop.f32.mrb[0].mxu0
        %v2194 = vadd.f32 0.0, %v2193
        %v2195 = vpop.f32.mrb[0].mxu0
        %2196 = vmatprep.mubr.f32.mxu0 0.0
        %2197 = vmatmul.mubr.f32.gmra.mrb[0].mxu0 %v1963
        %v2198 = vpop.f32.mrb[0].mxu0
        %v2199 = vadd.f32 0.0, %v2198
        %v2200 = vpop.f32.mrb[0].mxu0
        %2201 = vmatprep.mubr.f32.mxu0 0.0
        %2202 = vmatmul.mubr.f32.gmra.mrb[0].mxu0 %v1964
        %v2203 = vpop.f32.mrb[0].mxu0
        %v2204 = vadd.f32 0.0, %v2203
        %v2205 = vpop.f32.mrb[0].mxu0
        %2206 = vmatprep.mubr.f32.mxu0 0.0
        %2207 = vmatmul.mubr.f32.gmra.mrb[0].mxu0 %v1965
        %v2208 = vpop.f32.mrb[0].mxu0
        %v2209 = vadd.f32 0.0, %v2208
        %v2210 = vpop.f32.mrb[0].mxu0
        %2211 = vmatprep.mubr.f32.mxu0 0.0
        %2212 = vmatmul.mubr.f32.gmra.mrb[0].mxu0 %v1966
        %v2213 = vpop.f32.mrb[0].mxu0
        %v2214 = vadd.f32 0.0, %v2213
        %v2215 = vpop.f32.mrb[0].mxu0
        %2216 = vmatprep.mubr.f32.mxu0 0.0
        %2217 = vmatmul.mubr.f32.gmra.mrb[0].mxu0 %v1967
        %v2218 = vpop.f32.mrb[0].mxu0
        %v2219 = vadd.f32 0.0, %v2218
        %v2220 = vpop.f32.mrb[0].mxu0
        %2221 = vmatprep.mubr.f32.mxu0 0.0
        %2222 = vmatmul.mubr.f32.gmra.mrb[0].mxu0 %v1968
        %v2223 = vpop.f32.mrb[0].mxu0
        %v2224 = vadd.f32 0.0, %v2223
        %v2225 = vpop.f32.mrb[0].mxu0
        %2226 = vmatprep.mubr.f32.mxu0 0.0
        %2227 = vmatmul.mubr.f32.gmra.mrb[0].mxu0 %v1969
        %v2228 = vpop.f32.mrb[0].mxu0
        %v2229 = vadd.f32 0.0, %v2228
        %v2230 = vpop.f32.mrb[0].mxu0
        %2231 = vmatprep.mubr.f32.mxu0 0.0
        %2232 = vmatmul.mubr.f32.gmra.mrb[0].mxu0 %v1970
        %v2233 = vpop.f32.mrb[0].mxu0
        %v2234 = vadd.f32 0.0, %v2233
        %v2235 = vpop.f32.mrb[0].mxu0
        %2236 = vmatprep.mubr.f32.mxu0 0.0
        %2237 = vmatmul.mubr.f32.gmra.mrb[0].mxu0 %v1971
        %v2238 = vpop.f32.mrb[0].mxu0
        %v2239 = vadd.f32 0.0, %v2238
        %v2240 = vpop.f32.mrb[0].mxu0
        %2241 = vmatprep.mubr.f32.mxu0 0.0
        %2242 = vmatmul.mubr.f32.gmra.mrb[0].mxu0 %v1972
        %v2243 = vpop.f32.mrb[0].mxu0
        %v2244 = vadd.f32 0.0, %v2243
        %v2245 = vpop.f32.mrb[0].mxu0
        %2246 = vdwg.mxu0
        %v2247 = vadd.f32 %v1973, %v2089
        %v2248 = vadd.f32 %v1974, %v2094
        %v2249 = vadd.f32 %v1975, %v2099
        %v2250 = vadd.f32 %v1976, %v2104
        %v2251 = vadd.f32 %v1977, %v2109
        %v2252 = vadd.f32 %v1978, %v2114
        %v2253 = vadd.f32 %v1979, %v2119
        %v2254 = vadd.f32 %v1980, %v2124
        %v2255 = vadd.f32 %v1981, %v2129
        %v2256 = vadd.f32 %v1982, %v2134
        %v2257 = vadd.f32 %v1983, %v2139
        %v2258 = vadd.f32 %v1984, %v2144
        %v2259 = vadd.f32 %v1985, %v2149
        %v2260 = vadd.f32 %v1986, %v2154
        %v2261 = vadd.f32 %v1987, %v2159
        %v2262 = vadd.f32 %v1988, %v2164
        %v2263 = vadd.f32 %v1989, %v2169
        %v2264 = vadd.f32 %v1990, %v2174
        %v2265 = vadd.f32 %v1991, %v2179
        %v2266 = vadd.f32 %v1992, %v2184
        %v2267 = vadd.f32 %v1993, %v2189
        %v2268 = vadd.f32 %v1994, %v2194
        %v2269 = vadd.f32 %v1995, %v2199
        %v2270 = vadd.f32 %v1996, %v2204
        %v2271 = vadd.f32 %v1997, %v2209
        %v2272 = vadd.f32 %v1998, %v2214
        %v2273 = vadd.f32 %v1999, %v2219
        %v2274 = vadd.f32 %v2000, %v2224
        %v2275 = vadd.f32 %v2001, %v2229
        %v2276 = vadd.f32 %v2002, %v2234
        %v2277 = vadd.f32 %v2003, %v2239
        %v2278 = vadd.f32 %v2004, %v2244
        %2279 = vst [vmem:[#allocation4] sm:$0xff] %v2247
        %2280 = vst [vmem:[#allocation4 + $0x8] sm:$0xff] %v2248
        %2281 = vst [vmem:[#allocation4 + $0x10] sm:$0xff] %v2249
        %2282 = vst [vmem:[#allocation4 + $0x18] sm:$0xff] %v2250
        %2283 = vst [vmem:[#allocation4 + $0x20] sm:$0xff] %v2251
        %2284 = vst [vmem:[#allocation4 + $0x28] sm:$0xff] %v2252
        %2285 = vst [vmem:[#allocation4 + $0x30] sm:$0xff] %v2253
        %2286 = vst [vmem:[#allocation4 + $0x38] sm:$0xff] %v2254
        %2287 = vst [vmem:[#allocation4 + $0x40] sm:$0xff] %v2255
        %2288 = vst [vmem:[#allocation4 + $0x48] sm:$0xff] %v2256
        %2289 = vst [vmem:[#allocation4 + $0x50] sm:$0xff] %v2257
        %2290 = vst [vmem:[#allocation4 + $0x58] sm:$0xff] %v2258
        %2291 = vst [vmem:[#allocation4 + $0x60] sm:$0xff] %v2259
        %2292 = vst [vmem:[#allocation4 + $0x68] sm:$0xff] %v2260
        %2293 = vst [vmem:[#allocation4 + $0x70] sm:$0xff] %v2261
        %2294 = vst [vmem:[#allocation4 + $0x78] sm:$0xff] %v2262
        %2295 = vst [vmem:[#allocation4 + $0x80] sm:$0xff] %v2263
        %2296 = vst [vmem:[#allocation4 + $0x88] sm:$0xff] %v2264
        %2297 = vst [vmem:[#allocation4 + $0x90] sm:$0xff] %v2265
        %2298 = vst [vmem:[#allocation4 + $0x98] sm:$0xff] %v2266
        %2299 = vst [vmem:[#allocation4 + $0xa0] sm:$0xff] %v2267
        %2300 = vst [vmem:[#allocation4 + $0xa8] sm:$0xff] %v2268
        %2301 = vst [vmem:[#allocation4 + $0xb0] sm:$0xff] %v2269
        %2302 = vst [vmem:[#allocation4 + $0xb8] sm:$0xff] %v2270
        %2303 = vst [vmem:[#allocation4 + $0xc0] sm:$0xff] %v2271
        %2304 = vst [vmem:[#allocation4 + $0xc8] sm:$0xff] %v2272
        %2305 = vst [vmem:[#allocation4 + $0xd0] sm:$0xff] %v2273
        %2306 = vst [vmem:[#allocation4 + $0xd8] sm:$0xff] %v2274
        %2307 = vst [vmem:[#allocation4 + $0xe0] sm:$0xff] %v2275
        %2308 = vst [vmem:[#allocation4 + $0xe8] sm:$0xff] %v2276
        %2309 = vst [vmem:[#allocation4 + $0xf0] sm:$0xff] %v2277
        %2310 = vst [vmem:[#allocation4 + $0xf8] sm:$0xff] %v2278
        %v2311 = vld [vmem:[%s390 + $0x2] sm:$0xff]
        %v2312 = vld [vmem:[%s390 + $0xa] sm:$0xff]
        %v2313 = vld [vmem:[%s390 + $0x1a] sm:$0xff]
        %v2314 = vld [vmem:[%s390 + $0x22] sm:$0xff]
        %v2315 = vld [vmem:[%s390 + $0x32] sm:$0xff]
        %v2316 = vld [vmem:[%s390 + $0x3a] sm:$0xff]
        %v2317 = vld [vmem:[%s390 + $0x4a] sm:$0xff]
        %v2318 = vld [vmem:[%s390 + $0x52] sm:$0xff]
        %v2319 = vld [vmem:[%s390 + $0x62] sm:$0xff]
        %v2320 = vld [vmem:[%s390 + $0x6a] sm:$0xff]
        %v2321 = vld [vmem:[%s390 + $0x7a] sm:$0xff]
        %v2322 = vld [vmem:[%s390 + $0x82] sm:$0xff]
        %v2323 = vld [vmem:[%s390 + $0x92] sm:$0xff]
        %v2324 = vld [vmem:[%s390 + $0x9a] sm:$0xff]
        %v2325 = vld [vmem:[%s390 + $0xaa] sm:$0xff]
        %v2326 = vld [vmem:[%s390 + $0xb2] sm:$0xff]
        %v2327 = vld [vmem:[%s390 + $0xc2] sm:$0xff]
        %v2328 = vld [vmem:[%s390 + $0xca] sm:$0xff]
        %v2329 = vld [vmem:[%s390 + $0xda] sm:$0xff]
        %v2330 = vld [vmem:[%s390 + $0xe2] sm:$0xff]
        %v2331 = vld [vmem:[%s390 + $0xf2] sm:$0xff]
        %v2332 = vld [vmem:[%s390 + $0xfa] sm:$0xff]
        %v2333 = vld [vmem:[%s390 + $0x10a] sm:$0xff]
        %v2334 = vld [vmem:[%s390 + $0x112] sm:$0xff]
        %v2335 = vld [vmem:[%s390 + $0x122] sm:$0xff]
        %v2336 = vld [vmem:[%s390 + $0x12a] sm:$0xff]
        %v2337 = vld [vmem:[%s390 + $0x13a] sm:$0xff]
        %v2338 = vld [vmem:[%s390 + $0x142] sm:$0xff]
        %v2339 = vld [vmem:[%s390 + $0x152] sm:$0xff]
        %v2340 = vld [vmem:[%s390 + $0x15a] sm:$0xff]
        %v2341 = vld [vmem:[%s390 + $0x16a] sm:$0xff]
        %v2342 = vld [vmem:[%s390 + $0x172] sm:$0xff]
        %v2343 = vld [vmem:[#allocation4] sm:$0xff]
        %v2344 = vld [vmem:[#allocation4 + $0x8] sm:$0xff]
        %v2345 = vld [vmem:[#allocation4 + $0x10] sm:$0xff]
        %v2346 = vld [vmem:[#allocation4 + $0x18] sm:$0xff]
        %v2347 = vld [vmem:[#allocation4 + $0x20] sm:$0xff]
        %v2348 = vld [vmem:[#allocation4 + $0x28] sm:$0xff]
        %v2349 = vld [vmem:[#allocation4 + $0x30] sm:$0xff]
        %v2350 = vld [vmem:[#allocation4 + $0x38] sm:$0xff]
        %v2351 = vld [vmem:[#allocation4 + $0x40] sm:$0xff]
        %v2352 = vld [vmem:[#allocation4 + $0x48] sm:$0xff]
        %v2353 = vld [vmem:[#allocation4 + $0x50] sm:$0xff]
        %v2354 = vld [vmem:[#allocation4 + $0x58] sm:$0xff]
        %v2355 = vld [vmem:[#allocation4 + $0x60] sm:$0xff]
        %v2356 = vld [vmem:[#allocation4 + $0x68] sm:$0xff]
        %v2357 = vld [vmem:[#allocation4 + $0x70] sm:$0xff]
        %v2358 = vld [vmem:[#allocation4 + $0x78] sm:$0xff]
        %v2359 = vld [vmem:[#allocation4 + $0x80] sm:$0xff]
        %v2360 = vld [vmem:[#allocation4 + $0x88] sm:$0xff]
        %v2361 = vld [vmem:[#allocation4 + $0x90] sm:$0xff]
        %v2362 = vld [vmem:[#allocation4 + $0x98] sm:$0xff]
        %v2363 = vld [vmem:[#allocation4 + $0xa0] sm:$0xff]
        %v2364 = vld [vmem:[#allocation4 + $0xa8] sm:$0xff]
        %v2365 = vld [vmem:[#allocation4 + $0xb0] sm:$0xff]
        %v2366 = vld [vmem:[#allocation4 + $0xb8] sm:$0xff]
        %v2367 = vld [vmem:[#allocation4 + $0xc0] sm:$0xff]
        %v2368 = vld [vmem:[#allocation4 + $0xc8] sm:$0xff]
        %v2369 = vld [vmem:[#allocation4 + $0xd0] sm:$0xff]
        %v2370 = vld [vmem:[#allocation4 + $0xd8] sm:$0xff]
        %v2371 = vld [vmem:[#allocation4 + $0xe0] sm:$0xff]
        %v2372 = vld [vmem:[#allocation4 + $0xe8] sm:$0xff]
        %v2373 = vld [vmem:[#allocation4 + $0xf0] sm:$0xff]
        %v2374 = vld [vmem:[#allocation4 + $0xf8] sm:$0xff]
        %s2375 = scalar_lea.vmem [#allocation9], 640
        %v2376 = vld [vmem:[%s2375] sm:$0xff]
        %v2377 = vld [vmem:[%s2375 + $0x8] sm:$0xff]
        %v2378 = vld [vmem:[%s2375 + $0x10] sm:$0xff]
        %v2379 = vld [vmem:[%s2375 + $0x18] sm:$0xff]
        %v2380 = vld [vmem:[%s2375 + $0x20] sm:$0xff]
        %v2381 = vld [vmem:[%s2375 + $0x28] sm:$0xff]
        %v2382 = vld [vmem:[%s2375 + $0x30] sm:$0xff]
        %v2383 = vld [vmem:[%s2375 + $0x38] sm:$0xff]
        %v2384 = vld [vmem:[%s2375 + $0x40] sm:$0xff]
        %v2385 = vld [vmem:[%s2375 + $0x48] sm:$0xff]
        %v2386 = vld [vmem:[%s2375 + $0x50] sm:$0xff]
        %v2387 = vld [vmem:[%s2375 + $0x58] sm:$0xff]
        %v2388 = vld [vmem:[%s2375 + $0x60] sm:$0xff]
        %v2389 = vld [vmem:[%s2375 + $0x68] sm:$0xff]
        %v2390 = vld [vmem:[%s2375 + $0x70] sm:$0xff]
        %v2391 = vld [vmem:[%s2375 + $0x78] sm:$0xff]
        %2392 = vmatprep.subr.mxu0 0.0
        %2393 = vmatpush1.msra.mxu0 %v2376
        %2394 = vmatprep.subr.mxu0 0.0
        %2395 = vmatpush1.msra.mxu0 %v2377
        %2396 = vmatprep.subr.mxu0 0.0
        %2397 = vmatpush1.msra.mxu0 %v2378
        %2398 = vmatprep.subr.mxu0 0.0
        %2399 = vmatpush1.msra.mxu0 %v2379
        %2400 = vmatprep.subr.mxu0 0.0
        %2401 = vmatpush1.msra.mxu0 %v2380
        %2402 = vmatprep.subr.mxu0 0.0
        %2403 = vmatpush1.msra.mxu0 %v2381
        %2404 = vmatprep.subr.mxu0 0.0
        %2405 = vmatpush1.msra.mxu0 %v2382
        %2406 = vmatprep.subr.mxu0 0.0
        %2407 = vmatpush1.msra.mxu0 %v2383
        %2408 = vmatprep.subr.mxu0 0.0
        %2409 = vmatpush1.msra.mxu0 %v2384
        %2410 = vmatprep.subr.mxu0 0.0
        %2411 = vmatpush1.msra.mxu0 %v2385
        %2412 = vmatprep.subr.mxu0 0.0
        %2413 = vmatpush1.msra.mxu0 %v2386
        %2414 = vmatprep.subr.mxu0 0.0
        %2415 = vmatpush1.msra.mxu0 %v2387
        %2416 = vmatprep.subr.mxu0 0.0
        %2417 = vmatpush1.msra.mxu0 %v2388
        %2418 = vmatprep.subr.mxu0 0.0
        %2419 = vmatpush1.msra.mxu0 %v2389
        %2420 = vmatprep.subr.mxu0 0.0
        %2421 = vmatpush1.msra.mxu0 %v2390
        %2422 = vmatprep.subr.mxu0 0.0
        %2423 = vmatpush1.msra.mxu0 %v2391
        %2424 = vmatprep.subr.mxu0 0.0
        %2425 = vmatpush1.msra.mxu0 0.0
        %2426 = vmatprep.subr.mxu0 0.0
        %2427 = vmatpush1.msra.mxu0 0.0
        %2428 = vmatprep.subr.mxu0 0.0
        %2429 = vmatpush1.msra.mxu0 0.0
        %2430 = vmatprep.subr.mxu0 0.0
        %2431 = vmatpush1.msra.mxu0 0.0
        %2432 = vmatprep.subr.mxu0 0.0
        %2433 = vmatpush1.msra.mxu0 0.0
        %2434 = vmatprep.subr.mxu0 0.0
        %2435 = vmatpush1.msra.mxu0 0.0
        %2436 = vmatprep.subr.mxu0 0.0
        %2437 = vmatpush1.msra.mxu0 0.0
        %2438 = vmatprep.subr.mxu0 0.0
        %2439 = vmatpush1.msra.mxu0 0.0
        %2440 = vmatprep.subr.mxu0 0.0
        %2441 = vmatpush1.msra.mxu0 0.0
        %2442 = vmatprep.subr.mxu0 0.0
        %2443 = vmatpush1.msra.mxu0 0.0
        %2444 = vmatprep.subr.mxu0 0.0
        %2445 = vmatpush1.msra.mxu0 0.0
        %2446 = vmatprep.subr.mxu0 0.0
        %2447 = vmatpush1.msra.mxu0 0.0
        %2448 = vmatprep.subr.mxu0 0.0
        %2449 = vmatpush1.msra.mxu0 0.0
        %2450 = vmatprep.subr.mxu0 0.0
        %2451 = vmatpush1.msra.mxu0 0.0
        %2452 = vmatprep.subr.mxu0 0.0
        %2453 = vmatpush1.msra.mxu0 0.0
        %2454 = vmatprep.subr.mxu0 0.0
        %2455 = vmatpush1.msra.mxu0 0.0
        %2456 = vmatprep.mubr.f32.mxu0 0.0
        %2457 = vmatmul.mubr.f32.gmra.mrb[0].mxu0 %v2311
        %v2458 = vpop.f32.mrb[0].mxu0
        %v2459 = vadd.f32 0.0, %v2458
        %v2460 = vpop.f32.mrb[0].mxu0
        %2461 = vmatprep.mubr.f32.mxu0 0.0
        %2462 = vmatmul.mubr.f32.gmra.mrb[0].mxu0 %v2312
        %v2463 = vpop.f32.mrb[0].mxu0
        %v2464 = vadd.f32 0.0, %v2463
        %v2465 = vpop.f32.mrb[0].mxu0
        %2466 = vmatprep.mubr.f32.mxu0 0.0
        %2467 = vmatmul.mubr.f32.gmra.mrb[0].mxu0 %v2313
        %v2468 = vpop.f32.mrb[0].mxu0
        %v2469 = vadd.f32 0.0, %v2468
        %v2470 = vpop.f32.mrb[0].mxu0
        %2471 = vmatprep.mubr.f32.mxu0 0.0
        %2472 = vmatmul.mubr.f32.gmra.mrb[0].mxu0 %v2314
        %v2473 = vpop.f32.mrb[0].mxu0
        %v2474 = vadd.f32 0.0, %v2473
        %v2475 = vpop.f32.mrb[0].mxu0
        %2476 = vmatprep.mubr.f32.mxu0 0.0
        %2477 = vmatmul.mubr.f32.gmra.mrb[0].mxu0 %v2315
        %v2478 = vpop.f32.mrb[0].mxu0
        %v2479 = vadd.f32 0.0, %v2478
        %v2480 = vpop.f32.mrb[0].mxu0
        %2481 = vmatprep.mubr.f32.mxu0 0.0
        %2482 = vmatmul.mubr.f32.gmra.mrb[0].mxu0 %v2316
        %v2483 = vpop.f32.mrb[0].mxu0
        %v2484 = vadd.f32 0.0, %v2483
        %v2485 = vpop.f32.mrb[0].mxu0
        %2486 = vmatprep.mubr.f32.mxu0 0.0
        %2487 = vmatmul.mubr.f32.gmra.mrb[0].mxu0 %v2317
        %v2488 = vpop.f32.mrb[0].mxu0
        %v2489 = vadd.f32 0.0, %v2488
        %v2490 = vpop.f32.mrb[0].mxu0
        %2491 = vmatprep.mubr.f32.mxu0 0.0
        %2492 = vmatmul.mubr.f32.gmra.mrb[0].mxu0 %v2318
        %v2493 = vpop.f32.mrb[0].mxu0
        %v2494 = vadd.f32 0.0, %v2493
        %v2495 = vpop.f32.mrb[0].mxu0
        %2496 = vmatprep.mubr.f32.mxu0 0.0
        %2497 = vmatmul.mubr.f32.gmra.mrb[0].mxu0 %v2319
        %v2498 = vpop.f32.mrb[0].mxu0
        %v2499 = vadd.f32 0.0, %v2498
        %v2500 = vpop.f32.mrb[0].mxu0
        %2501 = vmatprep.mubr.f32.mxu0 0.0
        %2502 = vmatmul.mubr.f32.gmra.mrb[0].mxu0 %v2320
        %v2503 = vpop.f32.mrb[0].mxu0
        %v2504 = vadd.f32 0.0, %v2503
        %v2505 = vpop.f32.mrb[0].mxu0
        %2506 = vmatprep.mubr.f32.mxu0 0.0
        %2507 = vmatmul.mubr.f32.gmra.mrb[0].mxu0 %v2321
        %v2508 = vpop.f32.mrb[0].mxu0
        %v2509 = vadd.f32 0.0, %v2508
        %v2510 = vpop.f32.mrb[0].mxu0
        %2511 = vmatprep.mubr.f32.mxu0 0.0
        %2512 = vmatmul.mubr.f32.gmra.mrb[0].mxu0 %v2322
        %v2513 = vpop.f32.mrb[0].mxu0
        %v2514 = vadd.f32 0.0, %v2513
        %v2515 = vpop.f32.mrb[0].mxu0
        %2516 = vmatprep.mubr.f32.mxu0 0.0
        %2517 = vmatmul.mubr.f32.gmra.mrb[0].mxu0 %v2323
        %v2518 = vpop.f32.mrb[0].mxu0
        %v2519 = vadd.f32 0.0, %v2518
        %v2520 = vpop.f32.mrb[0].mxu0
        %2521 = vmatprep.mubr.f32.mxu0 0.0
        %2522 = vmatmul.mubr.f32.gmra.mrb[0].mxu0 %v2324
        %v2523 = vpop.f32.mrb[0].mxu0
        %v2524 = vadd.f32 0.0, %v2523
        %v2525 = vpop.f32.mrb[0].mxu0
        %2526 = vmatprep.mubr.f32.mxu0 0.0
        %2527 = vmatmul.mubr.f32.gmra.mrb[0].mxu0 %v2325
        %v2528 = vpop.f32.mrb[0].mxu0
        %v2529 = vadd.f32 0.0, %v2528
        %v2530 = vpop.f32.mrb[0].mxu0
        %2531 = vmatprep.mubr.f32.mxu0 0.0
        %2532 = vmatmul.mubr.f32.gmra.mrb[0].mxu0 %v2326
        %v2533 = vpop.f32.mrb[0].mxu0
        %v2534 = vadd.f32 0.0, %v2533
        %v2535 = vpop.f32.mrb[0].mxu0
        %2536 = vmatprep.mubr.f32.mxu0 0.0
        %2537 = vmatmul.mubr.f32.gmra.mrb[0].mxu0 %v2327
        %v2538 = vpop.f32.mrb[0].mxu0
        %v2539 = vadd.f32 0.0, %v2538
        %v2540 = vpop.f32.mrb[0].mxu0
        %2541 = vmatprep.mubr.f32.mxu0 0.0
        %2542 = vmatmul.mubr.f32.gmra.mrb[0].mxu0 %v2328
        %v2543 = vpop.f32.mrb[0].mxu0
        %v2544 = vadd.f32 0.0, %v2543
        %v2545 = vpop.f32.mrb[0].mxu0
        %2546 = vmatprep.mubr.f32.mxu0 0.0
        %2547 = vmatmul.mubr.f32.gmra.mrb[0].mxu0 %v2329
        %v2548 = vpop.f32.mrb[0].mxu0
        %v2549 = vadd.f32 0.0, %v2548
        %v2550 = vpop.f32.mrb[0].mxu0
        %2551 = vmatprep.mubr.f32.mxu0 0.0
        %2552 = vmatmul.mubr.f32.gmra.mrb[0].mxu0 %v2330
        %v2553 = vpop.f32.mrb[0].mxu0
        %v2554 = vadd.f32 0.0, %v2553
        %v2555 = vpop.f32.mrb[0].mxu0
        %2556 = vmatprep.mubr.f32.mxu0 0.0
        %2557 = vmatmul.mubr.f32.gmra.mrb[0].mxu0 %v2331
        %v2558 = vpop.f32.mrb[0].mxu0
        %v2559 = vadd.f32 0.0, %v2558
        %v2560 = vpop.f32.mrb[0].mxu0
        %2561 = vmatprep.mubr.f32.mxu0 0.0
        %2562 = vmatmul.mubr.f32.gmra.mrb[0].mxu0 %v2332
        %v2563 = vpop.f32.mrb[0].mxu0
        %v2564 = vadd.f32 0.0, %v2563
        %v2565 = vpop.f32.mrb[0].mxu0
        %2566 = vmatprep.mubr.f32.mxu0 0.0
        %2567 = vmatmul.mubr.f32.gmra.mrb[0].mxu0 %v2333
        %v2568 = vpop.f32.mrb[0].mxu0
        %v2569 = vadd.f32 0.0, %v2568
        %v2570 = vpop.f32.mrb[0].mxu0
        %2571 = vmatprep.mubr.f32.mxu0 0.0
        %2572 = vmatmul.mubr.f32.gmra.mrb[0].mxu0 %v2334
        %v2573 = vpop.f32.mrb[0].mxu0
        %v2574 = vadd.f32 0.0, %v2573
        %v2575 = vpop.f32.mrb[0].mxu0
        %2576 = vmatprep.mubr.f32.mxu0 0.0
        %2577 = vmatmul.mubr.f32.gmra.mrb[0].mxu0 %v2335
        %v2578 = vpop.f32.mrb[0].mxu0
        %v2579 = vadd.f32 0.0, %v2578
        %v2580 = vpop.f32.mrb[0].mxu0
        %2581 = vmatprep.mubr.f32.mxu0 0.0
        %2582 = vmatmul.mubr.f32.gmra.mrb[0].mxu0 %v2336
        %v2583 = vpop.f32.mrb[0].mxu0
        %v2584 = vadd.f32 0.0, %v2583
        %v2585 = vpop.f32.mrb[0].mxu0
        %2586 = vmatprep.mubr.f32.mxu0 0.0
        %2587 = vmatmul.mubr.f32.gmra.mrb[0].mxu0 %v2337
        %v2588 = vpop.f32.mrb[0].mxu0
        %v2589 = vadd.f32 0.0, %v2588
        %v2590 = vpop.f32.mrb[0].mxu0
        %2591 = vmatprep.mubr.f32.mxu0 0.0
        %2592 = vmatmul.mubr.f32.gmra.mrb[0].mxu0 %v2338
        %v2593 = vpop.f32.mrb[0].mxu0
        %v2594 = vadd.f32 0.0, %v2593
        %v2595 = vpop.f32.mrb[0].mxu0
        %2596 = vmatprep.mubr.f32.mxu0 0.0
        %2597 = vmatmul.mubr.f32.gmra.mrb[0].mxu0 %v2339
        %v2598 = vpop.f32.mrb[0].mxu0
        %v2599 = vadd.f32 0.0, %v2598
        %v2600 = vpop.f32.mrb[0].mxu0
        %2601 = vmatprep.mubr.f32.mxu0 0.0
        %2602 = vmatmul.mubr.f32.gmra.mrb[0].mxu0 %v2340
        %v2603 = vpop.f32.mrb[0].mxu0
        %v2604 = vadd.f32 0.0, %v2603
        %v2605 = vpop.f32.mrb[0].mxu0
        %2606 = vmatprep.mubr.f32.mxu0 0.0
        %2607 = vmatmul.mubr.f32.gmra.mrb[0].mxu0 %v2341
        %v2608 = vpop.f32.mrb[0].mxu0
        %v2609 = vadd.f32 0.0, %v2608
        %v2610 = vpop.f32.mrb[0].mxu0
        %2611 = vmatprep.mubr.f32.mxu0 0.0
        %2612 = vmatmul.mubr.f32.gmra.mrb[0].mxu0 %v2342
        %v2613 = vpop.f32.mrb[0].mxu0
        %v2614 = vadd.f32 0.0, %v2613
        %v2615 = vpop.f32.mrb[0].mxu0
        %2616 = vdwg.mxu0
        %v2617 = vadd.f32 %v2343, %v2459
        %v2618 = vadd.f32 %v2344, %v2464
        %v2619 = vadd.f32 %v2345, %v2469
        %v2620 = vadd.f32 %v2346, %v2474
        %v2621 = vadd.f32 %v2347, %v2479
        %v2622 = vadd.f32 %v2348, %v2484
        %v2623 = vadd.f32 %v2349, %v2489
        %v2624 = vadd.f32 %v2350, %v2494
        %v2625 = vadd.f32 %v2351, %v2499
        %v2626 = vadd.f32 %v2352, %v2504
        %v2627 = vadd.f32 %v2353, %v2509
        %v2628 = vadd.f32 %v2354, %v2514
        %v2629 = vadd.f32 %v2355, %v2519
        %v2630 = vadd.f32 %v2356, %v2524
        %v2631 = vadd.f32 %v2357, %v2529
        %v2632 = vadd.f32 %v2358, %v2534
        %v2633 = vadd.f32 %v2359, %v2539
        %v2634 = vadd.f32 %v2360, %v2544
        %v2635 = vadd.f32 %v2361, %v2549
        %v2636 = vadd.f32 %v2362, %v2554
        %v2637 = vadd.f32 %v2363, %v2559
        %v2638 = vadd.f32 %v2364, %v2564
        %v2639 = vadd.f32 %v2365, %v2569
        %v2640 = vadd.f32 %v2366, %v2574
        %v2641 = vadd.f32 %v2367, %v2579
        %v2642 = vadd.f32 %v2368, %v2584
        %v2643 = vadd.f32 %v2369, %v2589
        %v2644 = vadd.f32 %v2370, %v2594
        %v2645 = vadd.f32 %v2371, %v2599
        %v2646 = vadd.f32 %v2372, %v2604
        %v2647 = vadd.f32 %v2373, %v2609
        %v2648 = vadd.f32 %v2374, %v2614
        %2649 = vst [vmem:[#allocation4] sm:$0xff] %v2617
        %2650 = vst [vmem:[#allocation4 + $0x8] sm:$0xff] %v2618
        %2651 = vst [vmem:[#allocation4 + $0x10] sm:$0xff] %v2619
        %2652 = vst [vmem:[#allocation4 + $0x18] sm:$0xff] %v2620
        %2653 = vst [vmem:[#allocation4 + $0x20] sm:$0xff] %v2621
        %2654 = vst [vmem:[#allocation4 + $0x28] sm:$0xff] %v2622
        %2655 = vst [vmem:[#allocation4 + $0x30] sm:$0xff] %v2623
        %2656 = vst [vmem:[#allocation4 + $0x38] sm:$0xff] %v2624
        %2657 = vst [vmem:[#allocation4 + $0x40] sm:$0xff] %v2625
        %2658 = vst [vmem:[#allocation4 + $0x48] sm:$0xff] %v2626
        %2659 = vst [vmem:[#allocation4 + $0x50] sm:$0xff] %v2627
        %2660 = vst [vmem:[#allocation4 + $0x58] sm:$0xff] %v2628
        %2661 = vst [vmem:[#allocation4 + $0x60] sm:$0xff] %v2629
        %2662 = vst [vmem:[#allocation4 + $0x68] sm:$0xff] %v2630
        %2663 = vst [vmem:[#allocation4 + $0x70] sm:$0xff] %v2631
        %2664 = vst [vmem:[#allocation4 + $0x78] sm:$0xff] %v2632
        %2665 = vst [vmem:[#allocation4 + $0x80] sm:$0xff] %v2633
        %2666 = vst [vmem:[#allocation4 + $0x88] sm:$0xff] %v2634
        %2667 = vst [vmem:[#allocation4 + $0x90] sm:$0xff] %v2635
        %2668 = vst [vmem:[#allocation4 + $0x98] sm:$0xff] %v2636
        %2669 = vst [vmem:[#allocation4 + $0xa0] sm:$0xff] %v2637
        %2670 = vst [vmem:[#allocation4 + $0xa8] sm:$0xff] %v2638
        %2671 = vst [vmem:[#allocation4 + $0xb0] sm:$0xff] %v2639
        %2672 = vst [vmem:[#allocation4 + $0xb8] sm:$0xff] %v2640
        %2673 = vst [vmem:[#allocation4 + $0xc0] sm:$0xff] %v2641
        %2674 = vst [vmem:[#allocation4 + $0xc8] sm:$0xff] %v2642
        %2675 = vst [vmem:[#allocation4 + $0xd0] sm:$0xff] %v2643
        %2676 = vst [vmem:[#allocation4 + $0xd8] sm:$0xff] %v2644
        %2677 = vst [vmem:[#allocation4 + $0xe0] sm:$0xff] %v2645
        %2678 = vst [vmem:[#allocation4 + $0xe8] sm:$0xff] %v2646
        %2679 = vst [vmem:[#allocation4 + $0xf0] sm:$0xff] %v2647
        %2680 = vst [vmem:[#allocation4 + $0xf8] sm:$0xff] %v2648
        %s2681 = scalar_lea.vmem [#allocation2], 48
        %v2682 = vld [vmem:[%s2681] sm:$0xff]
        %v2683 = vld [vmem:[%s2681 + $0x8] sm:$0xff]
        %v2684 = vld [vmem:[%s2681 + $0x18] sm:$0xff]
        %v2685 = vld [vmem:[%s2681 + $0x20] sm:$0xff]
        %v2686 = vld [vmem:[%s2681 + $0x30] sm:$0xff]
        %v2687 = vld [vmem:[%s2681 + $0x38] sm:$0xff]
        %v2688 = vld [vmem:[%s2681 + $0x48] sm:$0xff]
        %v2689 = vld [vmem:[%s2681 + $0x50] sm:$0xff]
        %v2690 = vld [vmem:[%s2681 + $0x60] sm:$0xff]
        %v2691 = vld [vmem:[%s2681 + $0x68] sm:$0xff]
        %v2692 = vld [vmem:[%s2681 + $0x78] sm:$0xff]
        %v2693 = vld [vmem:[%s2681 + $0x80] sm:$0xff]
        %v2694 = vld [vmem:[%s2681 + $0x90] sm:$0xff]
        %v2695 = vld [vmem:[%s2681 + $0x98] sm:$0xff]
        %v2696 = vld [vmem:[%s2681 + $0xa8] sm:$0xff]
        %v2697 = vld [vmem:[%s2681 + $0xb0] sm:$0xff]
        %v2698 = vld [vmem:[%s2681 + $0xc0] sm:$0xff]
        %v2699 = vld [vmem:[%s2681 + $0xc8] sm:$0xff]
        %v2700 = vld [vmem:[%s2681 + $0xd8] sm:$0xff]
        %v2701 = vld [vmem:[%s2681 + $0xe0] sm:$0xff]
        %v2702 = vld [vmem:[%s2681 + $0xf0] sm:$0xff]
        %v2703 = vld [vmem:[%s2681 + $0xf8] sm:$0xff]
        %v2704 = vld [vmem:[%s2681 + $0x108] sm:$0xff]
        %v2705 = vld [vmem:[%s2681 + $0x110] sm:$0xff]
        %v2706 = vld [vmem:[%s2681 + $0x120] sm:$0xff]
        %v2707 = vld [vmem:[%s2681 + $0x128] sm:$0xff]
        %v2708 = vld [vmem:[%s2681 + $0x138] sm:$0xff]
        %v2709 = vld [vmem:[%s2681 + $0x140] sm:$0xff]
        %v2710 = vld [vmem:[%s2681 + $0x150] sm:$0xff]
        %v2711 = vld [vmem:[%s2681 + $0x158] sm:$0xff]
        %v2712 = vld [vmem:[%s2681 + $0x168] sm:$0xff]
        %v2713 = vld [vmem:[%s2681 + $0x170] sm:$0xff]
        %v2714 = vld [vmem:[#allocation4] sm:$0xff]
        %v2715 = vld [vmem:[#allocation4 + $0x8] sm:$0xff]
        %v2716 = vld [vmem:[#allocation4 + $0x10] sm:$0xff]
        %v2717 = vld [vmem:[#allocation4 + $0x18] sm:$0xff]
        %v2718 = vld [vmem:[#allocation4 + $0x20] sm:$0xff]
        %v2719 = vld [vmem:[#allocation4 + $0x28] sm:$0xff]
        %v2720 = vld [vmem:[#allocation4 + $0x30] sm:$0xff]
        %v2721 = vld [vmem:[#allocation4 + $0x38] sm:$0xff]
        %v2722 = vld [vmem:[#allocation4 + $0x40] sm:$0xff]
        %v2723 = vld [vmem:[#allocation4 + $0x48] sm:$0xff]
        %v2724 = vld [vmem:[#allocation4 + $0x50] sm:$0xff]
        %v2725 = vld [vmem:[#allocation4 + $0x58] sm:$0xff]
        %v2726 = vld [vmem:[#allocation4 + $0x60] sm:$0xff]
        %v2727 = vld [vmem:[#allocation4 + $0x68] sm:$0xff]
        %v2728 = vld [vmem:[#allocation4 + $0x70] sm:$0xff]
        %v2729 = vld [vmem:[#allocation4 + $0x78] sm:$0xff]
        %v2730 = vld [vmem:[#allocation4 + $0x80] sm:$0xff]
        %v2731 = vld [vmem:[#allocation4 + $0x88] sm:$0xff]
        %v2732 = vld [vmem:[#allocation4 + $0x90] sm:$0xff]
        %v2733 = vld [vmem:[#allocation4 + $0x98] sm:$0xff]
        %v2734 = vld [vmem:[#allocation4 + $0xa0] sm:$0xff]
        %v2735 = vld [vmem:[#allocation4 + $0xa8] sm:$0xff]
        %v2736 = vld [vmem:[#allocation4 + $0xb0] sm:$0xff]
        %v2737 = vld [vmem:[#allocation4 + $0xb8] sm:$0xff]
        %v2738 = vld [vmem:[#allocation4 + $0xc0] sm:$0xff]
        %v2739 = vld [vmem:[#allocation4 + $0xc8] sm:$0xff]
        %v2740 = vld [vmem:[#allocation4 + $0xd0] sm:$0xff]
        %v2741 = vld [vmem:[#allocation4 + $0xd8] sm:$0xff]
        %v2742 = vld [vmem:[#allocation4 + $0xe0] sm:$0xff]
        %v2743 = vld [vmem:[#allocation4 + $0xe8] sm:$0xff]
        %v2744 = vld [vmem:[#allocation4 + $0xf0] sm:$0xff]
        %v2745 = vld [vmem:[#allocation4 + $0xf8] sm:$0xff]
        %s2746 = scalar_lea.vmem [#allocation9], 768
        %v2747 = vld [vmem:[%s2746] sm:$0xff]
        %v2748 = vld [vmem:[%s2746 + $0x8] sm:$0xff]
        %v2749 = vld [vmem:[%s2746 + $0x10] sm:$0xff]
        %v2750 = vld [vmem:[%s2746 + $0x18] sm:$0xff]
        %v2751 = vld [vmem:[%s2746 + $0x20] sm:$0xff]
        %v2752 = vld [vmem:[%s2746 + $0x28] sm:$0xff]
        %v2753 = vld [vmem:[%s2746 + $0x30] sm:$0xff]
        %v2754 = vld [vmem:[%s2746 + $0x38] sm:$0xff]
        %v2755 = vld [vmem:[%s2746 + $0x40] sm:$0xff]
        %v2756 = vld [vmem:[%s2746 + $0x48] sm:$0xff]
        %v2757 = vld [vmem:[%s2746 + $0x50] sm:$0xff]
        %v2758 = vld [vmem:[%s2746 + $0x58] sm:$0xff]
        %v2759 = vld [vmem:[%s2746 + $0x60] sm:$0xff]
        %v2760 = vld [vmem:[%s2746 + $0x68] sm:$0xff]
        %v2761 = vld [vmem:[%s2746 + $0x70] sm:$0xff]
        %v2762 = vld [vmem:[%s2746 + $0x78] sm:$0xff]
        %2763 = vmatprep.subr.mxu0 0.0
        %2764 = vmatpush1.msra.mxu0 %v2747
        %2765 = vmatprep.subr.mxu0 0.0
        %2766 = vmatpush1.msra.mxu0 %v2748
        %2767 = vmatprep.subr.mxu0 0.0
        %2768 = vmatpush1.msra.mxu0 %v2749
        %2769 = vmatprep.subr.mxu0 0.0
        %2770 = vmatpush1.msra.mxu0 %v2750
        %2771 = vmatprep.subr.mxu0 0.0
        %2772 = vmatpush1.msra.mxu0 %v2751
        %2773 = vmatprep.subr.mxu0 0.0
        %2774 = vmatpush1.msra.mxu0 %v2752
        %2775 = vmatprep.subr.mxu0 0.0
        %2776 = vmatpush1.msra.mxu0 %v2753
        %2777 = vmatprep.subr.mxu0 0.0
        %2778 = vmatpush1.msra.mxu0 %v2754
        %2779 = vmatprep.subr.mxu0 0.0
        %2780 = vmatpush1.msra.mxu0 %v2755
        %2781 = vmatprep.subr.mxu0 0.0
        %2782 = vmatpush1.msra.mxu0 %v2756
        %2783 = vmatprep.subr.mxu0 0.0
        %2784 = vmatpush1.msra.mxu0 %v2757
        %2785 = vmatprep.subr.mxu0 0.0
        %2786 = vmatpush1.msra.mxu0 %v2758
        %2787 = vmatprep.subr.mxu0 0.0
        %2788 = vmatpush1.msra.mxu0 %v2759
        %2789 = vmatprep.subr.mxu0 0.0
        %2790 = vmatpush1.msra.mxu0 %v2760
        %2791 = vmatprep.subr.mxu0 0.0
        %2792 = vmatpush1.msra.mxu0 %v2761
        %2793 = vmatprep.subr.mxu0 0.0
        %2794 = vmatpush1.msra.mxu0 %v2762
        %2795 = vmatprep.subr.mxu0 0.0
        %2796 = vmatpush1.msra.mxu0 0.0
        %2797 = vmatprep.subr.mxu0 0.0
        %2798 = vmatpush1.msra.mxu0 0.0
        %2799 = vmatprep.subr.mxu0 0.0
        %2800 = vmatpush1.msra.mxu0 0.0
        %2801 = vmatprep.subr.mxu0 0.0
        %2802 = vmatpush1.msra.mxu0 0.0
        %2803 = vmatprep.subr.mxu0 0.0
        %2804 = vmatpush1.msra.mxu0 0.0
        %2805 = vmatprep.subr.mxu0 0.0
        %2806 = vmatpush1.msra.mxu0 0.0
        %2807 = vmatprep.subr.mxu0 0.0
        %2808 = vmatpush1.msra.mxu0 0.0
        %2809 = vmatprep.subr.mxu0 0.0
        %2810 = vmatpush1.msra.mxu0 0.0
        %2811 = vmatprep.subr.mxu0 0.0
        %2812 = vmatpush1.msra.mxu0 0.0
        %2813 = vmatprep.subr.mxu0 0.0
        %2814 = vmatpush1.msra.mxu0 0.0
        %2815 = vmatprep.subr.mxu0 0.0
        %2816 = vmatpush1.msra.mxu0 0.0
        %2817 = vmatprep.subr.mxu0 0.0
        %2818 = vmatpush1.msra.mxu0 0.0
        %2819 = vmatprep.subr.mxu0 0.0
        %2820 = vmatpush1.msra.mxu0 0.0
        %2821 = vmatprep.subr.mxu0 0.0
        %2822 = vmatpush1.msra.mxu0 0.0
        %2823 = vmatprep.subr.mxu0 0.0
        %2824 = vmatpush1.msra.mxu0 0.0
        %2825 = vmatprep.subr.mxu0 0.0
        %2826 = vmatpush1.msra.mxu0 0.0
        %2827 = vmatprep.mubr.f32.mxu0 0.0
        %2828 = vmatmul.mubr.f32.gmra.mrb[0].mxu0 %v2682
        %v2829 = vpop.f32.mrb[0].mxu0
        %v2830 = vadd.f32 0.0, %v2829
        %v2831 = vpop.f32.mrb[0].mxu0
        %2832 = vmatprep.mubr.f32.mxu0 0.0
        %2833 = vmatmul.mubr.f32.gmra.mrb[0].mxu0 %v2683
        %v2834 = vpop.f32.mrb[0].mxu0
        %v2835 = vadd.f32 0.0, %v2834
        %v2836 = vpop.f32.mrb[0].mxu0
        %2837 = vmatprep.mubr.f32.mxu0 0.0
        %2838 = vmatmul.mubr.f32.gmra.mrb[0].mxu0 %v2684
        %v2839 = vpop.f32.mrb[0].mxu0
        %v2840 = vadd.f32 0.0, %v2839
        %v2841 = vpop.f32.mrb[0].mxu0
        %2842 = vmatprep.mubr.f32.mxu0 0.0
        %2843 = vmatmul.mubr.f32.gmra.mrb[0].mxu0 %v2685
        %v2844 = vpop.f32.mrb[0].mxu0
        %v2845 = vadd.f32 0.0, %v2844
        %v2846 = vpop.f32.mrb[0].mxu0
        %2847 = vmatprep.mubr.f32.mxu0 0.0
        %2848 = vmatmul.mubr.f32.gmra.mrb[0].mxu0 %v2686
        %v2849 = vpop.f32.mrb[0].mxu0
        %v2850 = vadd.f32 0.0, %v2849
        %v2851 = vpop.f32.mrb[0].mxu0
        %2852 = vmatprep.mubr.f32.mxu0 0.0
        %2853 = vmatmul.mubr.f32.gmra.mrb[0].mxu0 %v2687
        %v2854 = vpop.f32.mrb[0].mxu0
        %v2855 = vadd.f32 0.0, %v2854
        %v2856 = vpop.f32.mrb[0].mxu0
        %2857 = vmatprep.mubr.f32.mxu0 0.0
        %2858 = vmatmul.mubr.f32.gmra.mrb[0].mxu0 %v2688
        %v2859 = vpop.f32.mrb[0].mxu0
        %v2860 = vadd.f32 0.0, %v2859
        %v2861 = vpop.f32.mrb[0].mxu0
        %2862 = vmatprep.mubr.f32.mxu0 0.0
        %2863 = vmatmul.mubr.f32.gmra.mrb[0].mxu0 %v2689
        %v2864 = vpop.f32.mrb[0].mxu0
        %v2865 = vadd.f32 0.0, %v2864
        %v2866 = vpop.f32.mrb[0].mxu0
        %2867 = vmatprep.mubr.f32.mxu0 0.0
        %2868 = vmatmul.mubr.f32.gmra.mrb[0].mxu0 %v2690
        %v2869 = vpop.f32.mrb[0].mxu0
        %v2870 = vadd.f32 0.0, %v2869
        %v2871 = vpop.f32.mrb[0].mxu0
        %2872 = vmatprep.mubr.f32.mxu0 0.0
        %2873 = vmatmul.mubr.f32.gmra.mrb[0].mxu0 %v2691
        %v2874 = vpop.f32.mrb[0].mxu0
        %v2875 = vadd.f32 0.0, %v2874
        %v2876 = vpop.f32.mrb[0].mxu0
        %2877 = vmatprep.mubr.f32.mxu0 0.0
        %2878 = vmatmul.mubr.f32.gmra.mrb[0].mxu0 %v2692
        %v2879 = vpop.f32.mrb[0].mxu0
        %v2880 = vadd.f32 0.0, %v2879
        %v2881 = vpop.f32.mrb[0].mxu0
        %2882 = vmatprep.mubr.f32.mxu0 0.0
        %2883 = vmatmul.mubr.f32.gmra.mrb[0].mxu0 %v2693
        %v2884 = vpop.f32.mrb[0].mxu0
        %v2885 = vadd.f32 0.0, %v2884
        %v2886 = vpop.f32.mrb[0].mxu0
        %2887 = vmatprep.mubr.f32.mxu0 0.0
        %2888 = vmatmul.mubr.f32.gmra.mrb[0].mxu0 %v2694
        %v2889 = vpop.f32.mrb[0].mxu0
        %v2890 = vadd.f32 0.0, %v2889
        %v2891 = vpop.f32.mrb[0].mxu0
        %2892 = vmatprep.mubr.f32.mxu0 0.0
        %2893 = vmatmul.mubr.f32.gmra.mrb[0].mxu0 %v2695
        %v2894 = vpop.f32.mrb[0].mxu0
        %v2895 = vadd.f32 0.0, %v2894
        %v2896 = vpop.f32.mrb[0].mxu0
        %2897 = vmatprep.mubr.f32.mxu0 0.0
        %2898 = vmatmul.mubr.f32.gmra.mrb[0].mxu0 %v2696
        %v2899 = vpop.f32.mrb[0].mxu0
        %v2900 = vadd.f32 0.0, %v2899
        %v2901 = vpop.f32.mrb[0].mxu0
        %2902 = vmatprep.mubr.f32.mxu0 0.0
        %2903 = vmatmul.mubr.f32.gmra.mrb[0].mxu0 %v2697
        %v2904 = vpop.f32.mrb[0].mxu0
        %v2905 = vadd.f32 0.0, %v2904
        %v2906 = vpop.f32.mrb[0].mxu0
        %2907 = vmatprep.mubr.f32.mxu0 0.0
        %2908 = vmatmul.mubr.f32.gmra.mrb[0].mxu0 %v2698
        %v2909 = vpop.f32.mrb[0].mxu0
        %v2910 = vadd.f32 0.0, %v2909
        %v2911 = vpop.f32.mrb[0].mxu0
        %2912 = vmatprep.mubr.f32.mxu0 0.0
        %2913 = vmatmul.mubr.f32.gmra.mrb[0].mxu0 %v2699
        %v2914 = vpop.f32.mrb[0].mxu0
        %v2915 = vadd.f32 0.0, %v2914
        %v2916 = vpop.f32.mrb[0].mxu0
        %2917 = vmatprep.mubr.f32.mxu0 0.0
        %2918 = vmatmul.mubr.f32.gmra.mrb[0].mxu0 %v2700
        %v2919 = vpop.f32.mrb[0].mxu0
        %v2920 = vadd.f32 0.0, %v2919
        %v2921 = vpop.f32.mrb[0].mxu0
        %2922 = vmatprep.mubr.f32.mxu0 0.0
        %2923 = vmatmul.mubr.f32.gmra.mrb[0].mxu0 %v2701
        %v2924 = vpop.f32.mrb[0].mxu0
        %v2925 = vadd.f32 0.0, %v2924
        %v2926 = vpop.f32.mrb[0].mxu0
        %2927 = vmatprep.mubr.f32.mxu0 0.0
        %2928 = vmatmul.mubr.f32.gmra.mrb[0].mxu0 %v2702
        %v2929 = vpop.f32.mrb[0].mxu0
        %v2930 = vadd.f32 0.0, %v2929
        %v2931 = vpop.f32.mrb[0].mxu0
        %2932 = vmatprep.mubr.f32.mxu0 0.0
        %2933 = vmatmul.mubr.f32.gmra.mrb[0].mxu0 %v2703
        %v2934 = vpop.f32.mrb[0].mxu0
        %v2935 = vadd.f32 0.0, %v2934
        %v2936 = vpop.f32.mrb[0].mxu0
        %2937 = vmatprep.mubr.f32.mxu0 0.0
        %2938 = vmatmul.mubr.f32.gmra.mrb[0].mxu0 %v2704
        %v2939 = vpop.f32.mrb[0].mxu0
        %v2940 = vadd.f32 0.0, %v2939
        %v2941 = vpop.f32.mrb[0].mxu0
        %2942 = vmatprep.mubr.f32.mxu0 0.0
        %2943 = vmatmul.mubr.f32.gmra.mrb[0].mxu0 %v2705
        %v2944 = vpop.f32.mrb[0].mxu0
        %v2945 = vadd.f32 0.0, %v2944
        %v2946 = vpop.f32.mrb[0].mxu0
        %2947 = vmatprep.mubr.f32.mxu0 0.0
        %2948 = vmatmul.mubr.f32.gmra.mrb[0].mxu0 %v2706
        %v2949 = vpop.f32.mrb[0].mxu0
        %v2950 = vadd.f32 0.0, %v2949
        %v2951 = vpop.f32.mrb[0].mxu0
        %2952 = vmatprep.mubr.f32.mxu0 0.0
        %2953 = vmatmul.mubr.f32.gmra.mrb[0].mxu0 %v2707
        %v2954 = vpop.f32.mrb[0].mxu0
        %v2955 = vadd.f32 0.0, %v2954
        %v2956 = vpop.f32.mrb[0].mxu0
        %2957 = vmatprep.mubr.f32.mxu0 0.0
        %2958 = vmatmul.mubr.f32.gmra.mrb[0].mxu0 %v2708
        %v2959 = vpop.f32.mrb[0].mxu0
        %v2960 = vadd.f32 0.0, %v2959
        %v2961 = vpop.f32.mrb[0].mxu0
        %2962 = vmatprep.mubr.f32.mxu0 0.0
        %2963 = vmatmul.mubr.f32.gmra.mrb[0].mxu0 %v2709
        %v2964 = vpop.f32.mrb[0].mxu0
        %v2965 = vadd.f32 0.0, %v2964
        %v2966 = vpop.f32.mrb[0].mxu0
        %2967 = vmatprep.mubr.f32.mxu0 0.0
        %2968 = vmatmul.mubr.f32.gmra.mrb[0].mxu0 %v2710
        %v2969 = vpop.f32.mrb[0].mxu0
        %v2970 = vadd.f32 0.0, %v2969
        %v2971 = vpop.f32.mrb[0].mxu0
        %2972 = vmatprep.mubr.f32.mxu0 0.0
        %2973 = vmatmul.mubr.f32.gmra.mrb[0].mxu0 %v2711
        %v2974 = vpop.f32.mrb[0].mxu0
        %v2975 = vadd.f32 0.0, %v2974
        %v2976 = vpop.f32.mrb[0].mxu0
        %2977 = vmatprep.mubr.f32.mxu0 0.0
        %2978 = vmatmul.mubr.f32.gmra.mrb[0].mxu0 %v2712
        %v2979 = vpop.f32.mrb[0].mxu0
        %v2980 = vadd.f32 0.0, %v2979
        %v2981 = vpop.f32.mrb[0].mxu0
        %2982 = vmatprep.mubr.f32.mxu0 0.0
        %2983 = vmatmul.mubr.f32.gmra.mrb[0].mxu0 %v2713
        %v2984 = vpop.f32.mrb[0].mxu0
        %v2985 = vadd.f32 0.0, %v2984
        %v2986 = vpop.f32.mrb[0].mxu0
        %2987 = vdwg.mxu0
        %v2988 = vadd.f32 %v2714, %v2830
        %v2989 = vadd.f32 %v2715, %v2835
        %v2990 = vadd.f32 %v2716, %v2840
        %v2991 = vadd.f32 %v2717, %v2845
        %v2992 = vadd.f32 %v2718, %v2850
        %v2993 = vadd.f32 %v2719, %v2855
        %v2994 = vadd.f32 %v2720, %v2860
        %v2995 = vadd.f32 %v2721, %v2865
        %v2996 = vadd.f32 %v2722, %v2870
        %v2997 = vadd.f32 %v2723, %v2875
        %v2998 = vadd.f32 %v2724, %v2880
        %v2999 = vadd.f32 %v2725, %v2885
        %v3000 = vadd.f32 %v2726, %v2890
        %v3001 = vadd.f32 %v2727, %v2895
        %v3002 = vadd.f32 %v2728, %v2900
        %v3003 = vadd.f32 %v2729, %v2905
        %v3004 = vadd.f32 %v2730, %v2910
        %v3005 = vadd.f32 %v2731, %v2915
        %v3006 = vadd.f32 %v2732, %v2920
        %v3007 = vadd.f32 %v2733, %v2925
        %v3008 = vadd.f32 %v2734, %v2930
        %v3009 = vadd.f32 %v2735, %v2935
        %v3010 = vadd.f32 %v2736, %v2940
        %v3011 = vadd.f32 %v2737, %v2945
        %v3012 = vadd.f32 %v2738, %v2950
        %v3013 = vadd.f32 %v2739, %v2955
        %v3014 = vadd.f32 %v2740, %v2960
        %v3015 = vadd.f32 %v2741, %v2965
        %v3016 = vadd.f32 %v2742, %v2970
        %v3017 = vadd.f32 %v2743, %v2975
        %v3018 = vadd.f32 %v2744, %v2980
        %v3019 = vadd.f32 %v2745, %v2985
        %3020 = vst [vmem:[#allocation4] sm:$0xff] %v2988
        %3021 = vst [vmem:[#allocation4 + $0x8] sm:$0xff] %v2989
        %3022 = vst [vmem:[#allocation4 + $0x10] sm:$0xff] %v2990
        %3023 = vst [vmem:[#allocation4 + $0x18] sm:$0xff] %v2991
        %3024 = vst [vmem:[#allocation4 + $0x20] sm:$0xff] %v2992
        %3025 = vst [vmem:[#allocation4 + $0x28] sm:$0xff] %v2993
        %3026 = vst [vmem:[#allocation4 + $0x30] sm:$0xff] %v2994
        %3027 = vst [vmem:[#allocation4 + $0x38] sm:$0xff] %v2995
        %3028 = vst [vmem:[#allocation4 + $0x40] sm:$0xff] %v2996
        %3029 = vst [vmem:[#allocation4 + $0x48] sm:$0xff] %v2997
        %3030 = vst [vmem:[#allocation4 + $0x50] sm:$0xff] %v2998
        %3031 = vst [vmem:[#allocation4 + $0x58] sm:$0xff] %v2999
        %3032 = vst [vmem:[#allocation4 + $0x60] sm:$0xff] %v3000
        %3033 = vst [vmem:[#allocation4 + $0x68] sm:$0xff] %v3001
        %3034 = vst [vmem:[#allocation4 + $0x70] sm:$0xff] %v3002
        %3035 = vst [vmem:[#allocation4 + $0x78] sm:$0xff] %v3003
        %3036 = vst [vmem:[#allocation4 + $0x80] sm:$0xff] %v3004
        %3037 = vst [vmem:[#allocation4 + $0x88] sm:$0xff] %v3005
        %3038 = vst [vmem:[#allocation4 + $0x90] sm:$0xff] %v3006
        %3039 = vst [vmem:[#allocation4 + $0x98] sm:$0xff] %v3007
        %3040 = vst [vmem:[#allocation4 + $0xa0] sm:$0xff] %v3008
        %3041 = vst [vmem:[#allocation4 + $0xa8] sm:$0xff] %v3009
        %3042 = vst [vmem:[#allocation4 + $0xb0] sm:$0xff] %v3010
        %3043 = vst [vmem:[#allocation4 + $0xb8] sm:$0xff] %v3011
        %3044 = vst [vmem:[#allocation4 + $0xc0] sm:$0xff] %v3012
        %3045 = vst [vmem:[#allocation4 + $0xc8] sm:$0xff] %v3013
        %3046 = vst [vmem:[#allocation4 + $0xd0] sm:$0xff] %v3014
        %3047 = vst [vmem:[#allocation4 + $0xd8] sm:$0xff] %v3015
        %3048 = vst [vmem:[#allocation4 + $0xe0] sm:$0xff] %v3016
        %3049 = vst [vmem:[#allocation4 + $0xe8] sm:$0xff] %v3017
        %3050 = vst [vmem:[#allocation4 + $0xf0] sm:$0xff] %v3018
        %3051 = vst [vmem:[#allocation4 + $0xf8] sm:$0xff] %v3019
        %v3052 = vld [vmem:[%s2681 + $0x1] sm:$0xff]
        %v3053 = vld [vmem:[%s2681 + $0x9] sm:$0xff]
        %v3054 = vld [vmem:[%s2681 + $0x19] sm:$0xff]
        %v3055 = vld [vmem:[%s2681 + $0x21] sm:$0xff]
        %v3056 = vld [vmem:[%s2681 + $0x31] sm:$0xff]
        %v3057 = vld [vmem:[%s2681 + $0x39] sm:$0xff]
        %v3058 = vld [vmem:[%s2681 + $0x49] sm:$0xff]
        %v3059 = vld [vmem:[%s2681 + $0x51] sm:$0xff]
        %v3060 = vld [vmem:[%s2681 + $0x61] sm:$0xff]
        %v3061 = vld [vmem:[%s2681 + $0x69] sm:$0xff]
        %v3062 = vld [vmem:[%s2681 + $0x79] sm:$0xff]
        %v3063 = vld [vmem:[%s2681 + $0x81] sm:$0xff]
        %v3064 = vld [vmem:[%s2681 + $0x91] sm:$0xff]
        %v3065 = vld [vmem:[%s2681 + $0x99] sm:$0xff]
        %v3066 = vld [vmem:[%s2681 + $0xa9] sm:$0xff]
        %v3067 = vld [vmem:[%s2681 + $0xb1] sm:$0xff]
        %v3068 = vld [vmem:[%s2681 + $0xc1] sm:$0xff]
        %v3069 = vld [vmem:[%s2681 + $0xc9] sm:$0xff]
        %v3070 = vld [vmem:[%s2681 + $0xd9] sm:$0xff]
        %v3071 = vld [vmem:[%s2681 + $0xe1] sm:$0xff]
        %v3072 = vld [vmem:[%s2681 + $0xf1] sm:$0xff]
        %v3073 = vld [vmem:[%s2681 + $0xf9] sm:$0xff]
        %v3074 = vld [vmem:[%s2681 + $0x109] sm:$0xff]
        %v3075 = vld [vmem:[%s2681 + $0x111] sm:$0xff]
        %v3076 = vld [vmem:[%s2681 + $0x121] sm:$0xff]
        %v3077 = vld [vmem:[%s2681 + $0x129] sm:$0xff]
        %v3078 = vld [vmem:[%s2681 + $0x139] sm:$0xff]
        %v3079 = vld [vmem:[%s2681 + $0x141] sm:$0xff]
        %v3080 = vld [vmem:[%s2681 + $0x151] sm:$0xff]
        %v3081 = vld [vmem:[%s2681 + $0x159] sm:$0xff]
        %v3082 = vld [vmem:[%s2681 + $0x169] sm:$0xff]
        %v3083 = vld [vmem:[%s2681 + $0x171] sm:$0xff]
        %v3084 = vld [vmem:[#allocation4] sm:$0xff]
        %v3085 = vld [vmem:[#allocation4 + $0x8] sm:$0xff]
        %v3086 = vld [vmem:[#allocation4 + $0x10] sm:$0xff]
        %v3087 = vld [vmem:[#allocation4 + $0x18] sm:$0xff]
        %v3088 = vld [vmem:[#allocation4 + $0x20] sm:$0xff]
        %v3089 = vld [vmem:[#allocation4 + $0x28] sm:$0xff]
        %v3090 = vld [vmem:[#allocation4 + $0x30] sm:$0xff]
        %v3091 = vld [vmem:[#allocation4 + $0x38] sm:$0xff]
        %v3092 = vld [vmem:[#allocation4 + $0x40] sm:$0xff]
        %v3093 = vld [vmem:[#allocation4 + $0x48] sm:$0xff]
        %v3094 = vld [vmem:[#allocation4 + $0x50] sm:$0xff]
        %v3095 = vld [vmem:[#allocation4 + $0x58] sm:$0xff]
        %v3096 = vld [vmem:[#allocation4 + $0x60] sm:$0xff]
        %v3097 = vld [vmem:[#allocation4 + $0x68] sm:$0xff]
        %v3098 = vld [vmem:[#allocation4 + $0x70] sm:$0xff]
        %v3099 = vld [vmem:[#allocation4 + $0x78] sm:$0xff]
        %v3100 = vld [vmem:[#allocation4 + $0x80] sm:$0xff]
        %v3101 = vld [vmem:[#allocation4 + $0x88] sm:$0xff]
        %v3102 = vld [vmem:[#allocation4 + $0x90] sm:$0xff]
        %v3103 = vld [vmem:[#allocation4 + $0x98] sm:$0xff]
        %v3104 = vld [vmem:[#allocation4 + $0xa0] sm:$0xff]
        %v3105 = vld [vmem:[#allocation4 + $0xa8] sm:$0xff]
        %v3106 = vld [vmem:[#allocation4 + $0xb0] sm:$0xff]
        %v3107 = vld [vmem:[#allocation4 + $0xb8] sm:$0xff]
        %v3108 = vld [vmem:[#allocation4 + $0xc0] sm:$0xff]
        %v3109 = vld [vmem:[#allocation4 + $0xc8] sm:$0xff]
        %v3110 = vld [vmem:[#allocation4 + $0xd0] sm:$0xff]
        %v3111 = vld [vmem:[#allocation4 + $0xd8] sm:$0xff]
        %v3112 = vld [vmem:[#allocation4 + $0xe0] sm:$0xff]
        %v3113 = vld [vmem:[#allocation4 + $0xe8] sm:$0xff]
        %v3114 = vld [vmem:[#allocation4 + $0xf0] sm:$0xff]
        %v3115 = vld [vmem:[#allocation4 + $0xf8] sm:$0xff]
        %s3116 = scalar_lea.vmem [#allocation9], 896
        %v3117 = vld [vmem:[%s3116] sm:$0xff]
        %v3118 = vld [vmem:[%s3116 + $0x8] sm:$0xff]
        %v3119 = vld [vmem:[%s3116 + $0x10] sm:$0xff]
        %v3120 = vld [vmem:[%s3116 + $0x18] sm:$0xff]
        %v3121 = vld [vmem:[%s3116 + $0x20] sm:$0xff]
        %v3122 = vld [vmem:[%s3116 + $0x28] sm:$0xff]
        %v3123 = vld [vmem:[%s3116 + $0x30] sm:$0xff]
        %v3124 = vld [vmem:[%s3116 + $0x38] sm:$0xff]
        %v3125 = vld [vmem:[%s3116 + $0x40] sm:$0xff]
        %v3126 = vld [vmem:[%s3116 + $0x48] sm:$0xff]
        %v3127 = vld [vmem:[%s3116 + $0x50] sm:$0xff]
        %v3128 = vld [vmem:[%s3116 + $0x58] sm:$0xff]
        %v3129 = vld [vmem:[%s3116 + $0x60] sm:$0xff]
        %v3130 = vld [vmem:[%s3116 + $0x68] sm:$0xff]
        %v3131 = vld [vmem:[%s3116 + $0x70] sm:$0xff]
        %v3132 = vld [vmem:[%s3116 + $0x78] sm:$0xff]
        %3133 = vmatprep.subr.mxu0 0.0
        %3134 = vmatpush1.msra.mxu0 %v3117
        %3135 = vmatprep.subr.mxu0 0.0
        %3136 = vmatpush1.msra.mxu0 %v3118
        %3137 = vmatprep.subr.mxu0 0.0
        %3138 = vmatpush1.msra.mxu0 %v3119
        %3139 = vmatprep.subr.mxu0 0.0
        %3140 = vmatpush1.msra.mxu0 %v3120
        %3141 = vmatprep.subr.mxu0 0.0
        %3142 = vmatpush1.msra.mxu0 %v3121
        %3143 = vmatprep.subr.mxu0 0.0
        %3144 = vmatpush1.msra.mxu0 %v3122
        %3145 = vmatprep.subr.mxu0 0.0
        %3146 = vmatpush1.msra.mxu0 %v3123
        %3147 = vmatprep.subr.mxu0 0.0
        %3148 = vmatpush1.msra.mxu0 %v3124
        %3149 = vmatprep.subr.mxu0 0.0
        %3150 = vmatpush1.msra.mxu0 %v3125
        %3151 = vmatprep.subr.mxu0 0.0
        %3152 = vmatpush1.msra.mxu0 %v3126
        %3153 = vmatprep.subr.mxu0 0.0
        %3154 = vmatpush1.msra.mxu0 %v3127
        %3155 = vmatprep.subr.mxu0 0.0
        %3156 = vmatpush1.msra.mxu0 %v3128
        %3157 = vmatprep.subr.mxu0 0.0
        %3158 = vmatpush1.msra.mxu0 %v3129
        %3159 = vmatprep.subr.mxu0 0.0
        %3160 = vmatpush1.msra.mxu0 %v3130
        %3161 = vmatprep.subr.mxu0 0.0
        %3162 = vmatpush1.msra.mxu0 %v3131
        %3163 = vmatprep.subr.mxu0 0.0
        %3164 = vmatpush1.msra.mxu0 %v3132
        %3165 = vmatprep.subr.mxu0 0.0
        %3166 = vmatpush1.msra.mxu0 0.0
        %3167 = vmatprep.subr.mxu0 0.0
        %3168 = vmatpush1.msra.mxu0 0.0
        %3169 = vmatprep.subr.mxu0 0.0
        %3170 = vmatpush1.msra.mxu0 0.0
        %3171 = vmatprep.subr.mxu0 0.0
        %3172 = vmatpush1.msra.mxu0 0.0
        %3173 = vmatprep.subr.mxu0 0.0
        %3174 = vmatpush1.msra.mxu0 0.0
        %3175 = vmatprep.subr.mxu0 0.0
        %3176 = vmatpush1.msra.mxu0 0.0
        %3177 = vmatprep.subr.mxu0 0.0
        %3178 = vmatpush1.msra.mxu0 0.0
        %3179 = vmatprep.subr.mxu0 0.0
        %3180 = vmatpush1.msra.mxu0 0.0
        %3181 = vmatprep.subr.mxu0 0.0
        %3182 = vmatpush1.msra.mxu0 0.0
        %3183 = vmatprep.subr.mxu0 0.0
        %3184 = vmatpush1.msra.mxu0 0.0
        %3185 = vmatprep.subr.mxu0 0.0
        %3186 = vmatpush1.msra.mxu0 0.0
        %3187 = vmatprep.subr.mxu0 0.0
        %3188 = vmatpush1.msra.mxu0 0.0
        %3189 = vmatprep.subr.mxu0 0.0
        %3190 = vmatpush1.msra.mxu0 0.0
        %3191 = vmatprep.subr.mxu0 0.0
        %3192 = vmatpush1.msra.mxu0 0.0
        %3193 = vmatprep.subr.mxu0 0.0
        %3194 = vmatpush1.msra.mxu0 0.0
        %3195 = vmatprep.subr.mxu0 0.0
        %3196 = vmatpush1.msra.mxu0 0.0
        %3197 = vmatprep.mubr.f32.mxu0 0.0
        %3198 = vmatmul.mubr.f32.gmra.mrb[0].mxu0 %v3052
        %v3199 = vpop.f32.mrb[0].mxu0
        %v3200 = vadd.f32 0.0, %v3199
        %v3201 = vpop.f32.mrb[0].mxu0
        %3202 = vmatprep.mubr.f32.mxu0 0.0
        %3203 = vmatmul.mubr.f32.gmra.mrb[0].mxu0 %v3053
        %v3204 = vpop.f32.mrb[0].mxu0
        %v3205 = vadd.f32 0.0, %v3204
        %v3206 = vpop.f32.mrb[0].mxu0
        %3207 = vmatprep.mubr.f32.mxu0 0.0
        %3208 = vmatmul.mubr.f32.gmra.mrb[0].mxu0 %v3054
        %v3209 = vpop.f32.mrb[0].mxu0
        %v3210 = vadd.f32 0.0, %v3209
        %v3211 = vpop.f32.mrb[0].mxu0
        %3212 = vmatprep.mubr.f32.mxu0 0.0
        %3213 = vmatmul.mubr.f32.gmra.mrb[0].mxu0 %v3055
        %v3214 = vpop.f32.mrb[0].mxu0
        %v3215 = vadd.f32 0.0, %v3214
        %v3216 = vpop.f32.mrb[0].mxu0
        %3217 = vmatprep.mubr.f32.mxu0 0.0
        %3218 = vmatmul.mubr.f32.gmra.mrb[0].mxu0 %v3056
        %v3219 = vpop.f32.mrb[0].mxu0
        %v3220 = vadd.f32 0.0, %v3219
        %v3221 = vpop.f32.mrb[0].mxu0
        %3222 = vmatprep.mubr.f32.mxu0 0.0
        %3223 = vmatmul.mubr.f32.gmra.mrb[0].mxu0 %v3057
        %v3224 = vpop.f32.mrb[0].mxu0
        %v3225 = vadd.f32 0.0, %v3224
        %v3226 = vpop.f32.mrb[0].mxu0
        %3227 = vmatprep.mubr.f32.mxu0 0.0
        %3228 = vmatmul.mubr.f32.gmra.mrb[0].mxu0 %v3058
        %v3229 = vpop.f32.mrb[0].mxu0
        %v3230 = vadd.f32 0.0, %v3229
        %v3231 = vpop.f32.mrb[0].mxu0
        %3232 = vmatprep.mubr.f32.mxu0 0.0
        %3233 = vmatmul.mubr.f32.gmra.mrb[0].mxu0 %v3059
        %v3234 = vpop.f32.mrb[0].mxu0
        %v3235 = vadd.f32 0.0, %v3234
        %v3236 = vpop.f32.mrb[0].mxu0
        %3237 = vmatprep.mubr.f32.mxu0 0.0
        %3238 = vmatmul.mubr.f32.gmra.mrb[0].mxu0 %v3060
        %v3239 = vpop.f32.mrb[0].mxu0
        %v3240 = vadd.f32 0.0, %v3239
        %v3241 = vpop.f32.mrb[0].mxu0
        %3242 = vmatprep.mubr.f32.mxu0 0.0
        %3243 = vmatmul.mubr.f32.gmra.mrb[0].mxu0 %v3061
        %v3244 = vpop.f32.mrb[0].mxu0
        %v3245 = vadd.f32 0.0, %v3244
        %v3246 = vpop.f32.mrb[0].mxu0
        %3247 = vmatprep.mubr.f32.mxu0 0.0
        %3248 = vmatmul.mubr.f32.gmra.mrb[0].mxu0 %v3062
        %v3249 = vpop.f32.mrb[0].mxu0
        %v3250 = vadd.f32 0.0, %v3249
        %v3251 = vpop.f32.mrb[0].mxu0
        %3252 = vmatprep.mubr.f32.mxu0 0.0
        %3253 = vmatmul.mubr.f32.gmra.mrb[0].mxu0 %v3063
        %v3254 = vpop.f32.mrb[0].mxu0
        %v3255 = vadd.f32 0.0, %v3254
        %v3256 = vpop.f32.mrb[0].mxu0
        %3257 = vmatprep.mubr.f32.mxu0 0.0
        %3258 = vmatmul.mubr.f32.gmra.mrb[0].mxu0 %v3064
        %v3259 = vpop.f32.mrb[0].mxu0
        %v3260 = vadd.f32 0.0, %v3259
        %v3261 = vpop.f32.mrb[0].mxu0
        %3262 = vmatprep.mubr.f32.mxu0 0.0
        %3263 = vmatmul.mubr.f32.gmra.mrb[0].mxu0 %v3065
        %v3264 = vpop.f32.mrb[0].mxu0
        %v3265 = vadd.f32 0.0, %v3264
        %v3266 = vpop.f32.mrb[0].mxu0
        %3267 = vmatprep.mubr.f32.mxu0 0.0
        %3268 = vmatmul.mubr.f32.gmra.mrb[0].mxu0 %v3066
        %v3269 = vpop.f32.mrb[0].mxu0
        %v3270 = vadd.f32 0.0, %v3269
        %v3271 = vpop.f32.mrb[0].mxu0
        %3272 = vmatprep.mubr.f32.mxu0 0.0
        %3273 = vmatmul.mubr.f32.gmra.mrb[0].mxu0 %v3067
        %v3274 = vpop.f32.mrb[0].mxu0
        %v3275 = vadd.f32 0.0, %v3274
        %v3276 = vpop.f32.mrb[0].mxu0
        %3277 = vmatprep.mubr.f32.mxu0 0.0
        %3278 = vmatmul.mubr.f32.gmra.mrb[0].mxu0 %v3068
        %v3279 = vpop.f32.mrb[0].mxu0
        %v3280 = vadd.f32 0.0, %v3279
        %v3281 = vpop.f32.mrb[0].mxu0
        %3282 = vmatprep.mubr.f32.mxu0 0.0
        %3283 = vmatmul.mubr.f32.gmra.mrb[0].mxu0 %v3069
        %v3284 = vpop.f32.mrb[0].mxu0
        %v3285 = vadd.f32 0.0, %v3284
        %v3286 = vpop.f32.mrb[0].mxu0
        %3287 = vmatprep.mubr.f32.mxu0 0.0
        %3288 = vmatmul.mubr.f32.gmra.mrb[0].mxu0 %v3070
        %v3289 = vpop.f32.mrb[0].mxu0
        %v3290 = vadd.f32 0.0, %v3289
        %v3291 = vpop.f32.mrb[0].mxu0
        %3292 = vmatprep.mubr.f32.mxu0 0.0
        %3293 = vmatmul.mubr.f32.gmra.mrb[0].mxu0 %v3071
        %v3294 = vpop.f32.mrb[0].mxu0
        %v3295 = vadd.f32 0.0, %v3294
        %v3296 = vpop.f32.mrb[0].mxu0
        %3297 = vmatprep.mubr.f32.mxu0 0.0
        %3298 = vmatmul.mubr.f32.gmra.mrb[0].mxu0 %v3072
        %v3299 = vpop.f32.mrb[0].mxu0
        %v3300 = vadd.f32 0.0, %v3299
        %v3301 = vpop.f32.mrb[0].mxu0
        %3302 = vmatprep.mubr.f32.mxu0 0.0
        %3303 = vmatmul.mubr.f32.gmra.mrb[0].mxu0 %v3073
        %v3304 = vpop.f32.mrb[0].mxu0
        %v3305 = vadd.f32 0.0, %v3304
        %v3306 = vpop.f32.mrb[0].mxu0
        %3307 = vmatprep.mubr.f32.mxu0 0.0
        %3308 = vmatmul.mubr.f32.gmra.mrb[0].mxu0 %v3074
        %v3309 = vpop.f32.mrb[0].mxu0
        %v3310 = vadd.f32 0.0, %v3309
        %v3311 = vpop.f32.mrb[0].mxu0
        %3312 = vmatprep.mubr.f32.mxu0 0.0
        %3313 = vmatmul.mubr.f32.gmra.mrb[0].mxu0 %v3075
        %v3314 = vpop.f32.mrb[0].mxu0
        %v3315 = vadd.f32 0.0, %v3314
        %v3316 = vpop.f32.mrb[0].mxu0
        %3317 = vmatprep.mubr.f32.mxu0 0.0
        %3318 = vmatmul.mubr.f32.gmra.mrb[0].mxu0 %v3076
        %v3319 = vpop.f32.mrb[0].mxu0
        %v3320 = vadd.f32 0.0, %v3319
        %v3321 = vpop.f32.mrb[0].mxu0
        %3322 = vmatprep.mubr.f32.mxu0 0.0
        %3323 = vmatmul.mubr.f32.gmra.mrb[0].mxu0 %v3077
        %v3324 = vpop.f32.mrb[0].mxu0
        %v3325 = vadd.f32 0.0, %v3324
        %v3326 = vpop.f32.mrb[0].mxu0
        %3327 = vmatprep.mubr.f32.mxu0 0.0
        %3328 = vmatmul.mubr.f32.gmra.mrb[0].mxu0 %v3078
        %v3329 = vpop.f32.mrb[0].mxu0
        %v3330 = vadd.f32 0.0, %v3329
        %v3331 = vpop.f32.mrb[0].mxu0
        %3332 = vmatprep.mubr.f32.mxu0 0.0
        %3333 = vmatmul.mubr.f32.gmra.mrb[0].mxu0 %v3079
        %v3334 = vpop.f32.mrb[0].mxu0
        %v3335 = vadd.f32 0.0, %v3334
        %v3336 = vpop.f32.mrb[0].mxu0
        %3337 = vmatprep.mubr.f32.mxu0 0.0
        %3338 = vmatmul.mubr.f32.gmra.mrb[0].mxu0 %v3080
        %v3339 = vpop.f32.mrb[0].mxu0
        %v3340 = vadd.f32 0.0, %v3339
        %v3341 = vpop.f32.mrb[0].mxu0
        %3342 = vmatprep.mubr.f32.mxu0 0.0
        %3343 = vmatmul.mubr.f32.gmra.mrb[0].mxu0 %v3081
        %v3344 = vpop.f32.mrb[0].mxu0
        %v3345 = vadd.f32 0.0, %v3344
        %v3346 = vpop.f32.mrb[0].mxu0
        %3347 = vmatprep.mubr.f32.mxu0 0.0
        %3348 = vmatmul.mubr.f32.gmra.mrb[0].mxu0 %v3082
        %v3349 = vpop.f32.mrb[0].mxu0
        %v3350 = vadd.f32 0.0, %v3349
        %v3351 = vpop.f32.mrb[0].mxu0
        %3352 = vmatprep.mubr.f32.mxu0 0.0
        %3353 = vmatmul.mubr.f32.gmra.mrb[0].mxu0 %v3083
        %v3354 = vpop.f32.mrb[0].mxu0
        %v3355 = vadd.f32 0.0, %v3354
        %v3356 = vpop.f32.mrb[0].mxu0
        %3357 = vdwg.mxu0
        %v3358 = vadd.f32 %v3084, %v3200
        %v3359 = vadd.f32 %v3085, %v3205
        %v3360 = vadd.f32 %v3086, %v3210
        %v3361 = vadd.f32 %v3087, %v3215
        %v3362 = vadd.f32 %v3088, %v3220
        %v3363 = vadd.f32 %v3089, %v3225
        %v3364 = vadd.f32 %v3090, %v3230
        %v3365 = vadd.f32 %v3091, %v3235
        %v3366 = vadd.f32 %v3092, %v3240
        %v3367 = vadd.f32 %v3093, %v3245
        %v3368 = vadd.f32 %v3094, %v3250
        %v3369 = vadd.f32 %v3095, %v3255
        %v3370 = vadd.f32 %v3096, %v3260
        %v3371 = vadd.f32 %v3097, %v3265
        %v3372 = vadd.f32 %v3098, %v3270
        %v3373 = vadd.f32 %v3099, %v3275
        %v3374 = vadd.f32 %v3100, %v3280
        %v3375 = vadd.f32 %v3101, %v3285
        %v3376 = vadd.f32 %v3102, %v3290
        %v3377 = vadd.f32 %v3103, %v3295
        %v3378 = vadd.f32 %v3104, %v3300
        %v3379 = vadd.f32 %v3105, %v3305
        %v3380 = vadd.f32 %v3106, %v3310
        %v3381 = vadd.f32 %v3107, %v3315
        %v3382 = vadd.f32 %v3108, %v3320
        %v3383 = vadd.f32 %v3109, %v3325
        %v3384 = vadd.f32 %v3110, %v3330
        %v3385 = vadd.f32 %v3111, %v3335
        %v3386 = vadd.f32 %v3112, %v3340
        %v3387 = vadd.f32 %v3113, %v3345
        %v3388 = vadd.f32 %v3114, %v3350
        %v3389 = vadd.f32 %v3115, %v3355
        %3390 = vst [vmem:[#allocation4] sm:$0xff] %v3358
        %3391 = vst [vmem:[#allocation4 + $0x8] sm:$0xff] %v3359
        %3392 = vst [vmem:[#allocation4 + $0x10] sm:$0xff] %v3360
        %3393 = vst [vmem:[#allocation4 + $0x18] sm:$0xff] %v3361
        %3394 = vst [vmem:[#allocation4 + $0x20] sm:$0xff] %v3362
        %3395 = vst [vmem:[#allocation4 + $0x28] sm:$0xff] %v3363
        %3396 = vst [vmem:[#allocation4 + $0x30] sm:$0xff] %v3364
        %3397 = vst [vmem:[#allocation4 + $0x38] sm:$0xff] %v3365
        %3398 = vst [vmem:[#allocation4 + $0x40] sm:$0xff] %v3366
        %3399 = vst [vmem:[#allocation4 + $0x48] sm:$0xff] %v3367
        %3400 = vst [vmem:[#allocation4 + $0x50] sm:$0xff] %v3368
        %3401 = vst [vmem:[#allocation4 + $0x58] sm:$0xff] %v3369
        %3402 = vst [vmem:[#allocation4 + $0x60] sm:$0xff] %v3370
        %3403 = vst [vmem:[#allocation4 + $0x68] sm:$0xff] %v3371
        %3404 = vst [vmem:[#allocation4 + $0x70] sm:$0xff] %v3372
        %3405 = vst [vmem:[#allocation4 + $0x78] sm:$0xff] %v3373
        %3406 = vst [vmem:[#allocation4 + $0x80] sm:$0xff] %v3374
        %3407 = vst [vmem:[#allocation4 + $0x88] sm:$0xff] %v3375
        %3408 = vst [vmem:[#allocation4 + $0x90] sm:$0xff] %v3376
        %3409 = vst [vmem:[#allocation4 + $0x98] sm:$0xff] %v3377
        %3410 = vst [vmem:[#allocation4 + $0xa0] sm:$0xff] %v3378
        %3411 = vst [vmem:[#allocation4 + $0xa8] sm:$0xff] %v3379
        %3412 = vst [vmem:[#allocation4 + $0xb0] sm:$0xff] %v3380
        %3413 = vst [vmem:[#allocation4 + $0xb8] sm:$0xff] %v3381
        %3414 = vst [vmem:[#allocation4 + $0xc0] sm:$0xff] %v3382
        %3415 = vst [vmem:[#allocation4 + $0xc8] sm:$0xff] %v3383
        %3416 = vst [vmem:[#allocation4 + $0xd0] sm:$0xff] %v3384
        %3417 = vst [vmem:[#allocation4 + $0xd8] sm:$0xff] %v3385
        %3418 = vst [vmem:[#allocation4 + $0xe0] sm:$0xff] %v3386
        %3419 = vst [vmem:[#allocation4 + $0xe8] sm:$0xff] %v3387
        %3420 = vst [vmem:[#allocation4 + $0xf0] sm:$0xff] %v3388
        %3421 = vst [vmem:[#allocation4 + $0xf8] sm:$0xff] %v3389
        %v3422 = vld [vmem:[%s2681 + $0x2] sm:$0xff]
        %v3423 = vld [vmem:[%s2681 + $0xa] sm:$0xff]
        %v3424 = vld [vmem:[%s2681 + $0x1a] sm:$0xff]
        %v3425 = vld [vmem:[%s2681 + $0x22] sm:$0xff]
        %v3426 = vld [vmem:[%s2681 + $0x32] sm:$0xff]
        %v3427 = vld [vmem:[%s2681 + $0x3a] sm:$0xff]
        %v3428 = vld [vmem:[%s2681 + $0x4a] sm:$0xff]
        %v3429 = vld [vmem:[%s2681 + $0x52] sm:$0xff]
        %v3430 = vld [vmem:[%s2681 + $0x62] sm:$0xff]
        %v3431 = vld [vmem:[%s2681 + $0x6a] sm:$0xff]
        %v3432 = vld [vmem:[%s2681 + $0x7a] sm:$0xff]
        %v3433 = vld [vmem:[%s2681 + $0x82] sm:$0xff]
        %v3434 = vld [vmem:[%s2681 + $0x92] sm:$0xff]
        %v3435 = vld [vmem:[%s2681 + $0x9a] sm:$0xff]
        %v3436 = vld [vmem:[%s2681 + $0xaa] sm:$0xff]
        %v3437 = vld [vmem:[%s2681 + $0xb2] sm:$0xff]
        %v3438 = vld [vmem:[%s2681 + $0xc2] sm:$0xff]
        %v3439 = vld [vmem:[%s2681 + $0xca] sm:$0xff]
        %v3440 = vld [vmem:[%s2681 + $0xda] sm:$0xff]
        %v3441 = vld [vmem:[%s2681 + $0xe2] sm:$0xff]
        %v3442 = vld [vmem:[%s2681 + $0xf2] sm:$0xff]
        %v3443 = vld [vmem:[%s2681 + $0xfa] sm:$0xff]
        %v3444 = vld [vmem:[%s2681 + $0x10a] sm:$0xff]
        %v3445 = vld [vmem:[%s2681 + $0x112] sm:$0xff]
        %v3446 = vld [vmem:[%s2681 + $0x122] sm:$0xff]
        %v3447 = vld [vmem:[%s2681 + $0x12a] sm:$0xff]
        %v3448 = vld [vmem:[%s2681 + $0x13a] sm:$0xff]
        %v3449 = vld [vmem:[%s2681 + $0x142] sm:$0xff]
        %v3450 = vld [vmem:[%s2681 + $0x152] sm:$0xff]
        %v3451 = vld [vmem:[%s2681 + $0x15a] sm:$0xff]
        %v3452 = vld [vmem:[%s2681 + $0x16a] sm:$0xff]
        %v3453 = vld [vmem:[%s2681 + $0x172] sm:$0xff]
        %v3454 = vld [vmem:[#allocation4] sm:$0xff]
        %v3455 = vld [vmem:[#allocation4 + $0x8] sm:$0xff]
        %v3456 = vld [vmem:[#allocation4 + $0x10] sm:$0xff]
        %v3457 = vld [vmem:[#allocation4 + $0x18] sm:$0xff]
        %v3458 = vld [vmem:[#allocation4 + $0x20] sm:$0xff]
        %v3459 = vld [vmem:[#allocation4 + $0x28] sm:$0xff]
        %v3460 = vld [vmem:[#allocation4 + $0x30] sm:$0xff]
        %v3461 = vld [vmem:[#allocation4 + $0x38] sm:$0xff]
        %v3462 = vld [vmem:[#allocation4 + $0x40] sm:$0xff]
        %v3463 = vld [vmem:[#allocation4 + $0x48] sm:$0xff]
        %v3464 = vld [vmem:[#allocation4 + $0x50] sm:$0xff]
        %v3465 = vld [vmem:[#allocation4 + $0x58] sm:$0xff]
        %v3466 = vld [vmem:[#allocation4 + $0x60] sm:$0xff]
        %v3467 = vld [vmem:[#allocation4 + $0x68] sm:$0xff]
        %v3468 = vld [vmem:[#allocation4 + $0x70] sm:$0xff]
        %v3469 = vld [vmem:[#allocation4 + $0x78] sm:$0xff]
        %v3470 = vld [vmem:[#allocation4 + $0x80] sm:$0xff]
        %v3471 = vld [vmem:[#allocation4 + $0x88] sm:$0xff]
        %v3472 = vld [vmem:[#allocation4 + $0x90] sm:$0xff]
        %v3473 = vld [vmem:[#allocation4 + $0x98] sm:$0xff]
        %v3474 = vld [vmem:[#allocation4 + $0xa0] sm:$0xff]
        %v3475 = vld [vmem:[#allocation4 + $0xa8] sm:$0xff]
        %v3476 = vld [vmem:[#allocation4 + $0xb0] sm:$0xff]
        %v3477 = vld [vmem:[#allocation4 + $0xb8] sm:$0xff]
        %v3478 = vld [vmem:[#allocation4 + $0xc0] sm:$0xff]
        %v3479 = vld [vmem:[#allocation4 + $0xc8] sm:$0xff]
        %v3480 = vld [vmem:[#allocation4 + $0xd0] sm:$0xff]
        %v3481 = vld [vmem:[#allocation4 + $0xd8] sm:$0xff]
        %v3482 = vld [vmem:[#allocation4 + $0xe0] sm:$0xff]
        %v3483 = vld [vmem:[#allocation4 + $0xe8] sm:$0xff]
        %v3484 = vld [vmem:[#allocation4 + $0xf0] sm:$0xff]
        %v3485 = vld [vmem:[#allocation4 + $0xf8] sm:$0xff]
        %s3486 = scalar_lea.vmem [#allocation9], 1024
        %v3487 = vld [vmem:[%s3486] sm:$0xff]
        %v3488 = vld [vmem:[%s3486 + $0x8] sm:$0xff]
        %v3489 = vld [vmem:[%s3486 + $0x10] sm:$0xff]
        %v3490 = vld [vmem:[%s3486 + $0x18] sm:$0xff]
        %v3491 = vld [vmem:[%s3486 + $0x20] sm:$0xff]
        %v3492 = vld [vmem:[%s3486 + $0x28] sm:$0xff]
        %v3493 = vld [vmem:[%s3486 + $0x30] sm:$0xff]
        %v3494 = vld [vmem:[%s3486 + $0x38] sm:$0xff]
        %v3495 = vld [vmem:[%s3486 + $0x40] sm:$0xff]
        %v3496 = vld [vmem:[%s3486 + $0x48] sm:$0xff]
        %v3497 = vld [vmem:[%s3486 + $0x50] sm:$0xff]
        %v3498 = vld [vmem:[%s3486 + $0x58] sm:$0xff]
        %v3499 = vld [vmem:[%s3486 + $0x60] sm:$0xff]
        %v3500 = vld [vmem:[%s3486 + $0x68] sm:$0xff]
        %v3501 = vld [vmem:[%s3486 + $0x70] sm:$0xff]
        %v3502 = vld [vmem:[%s3486 + $0x78] sm:$0xff]
        %3503 = vmatprep.subr.mxu0 0.0
        %3504 = vmatpush1.msra.mxu0 %v3487
        %3505 = vmatprep.subr.mxu0 0.0
        %3506 = vmatpush1.msra.mxu0 %v3488
        %3507 = vmatprep.subr.mxu0 0.0
        %3508 = vmatpush1.msra.mxu0 %v3489
        %3509 = vmatprep.subr.mxu0 0.0
        %3510 = vmatpush1.msra.mxu0 %v3490
        %3511 = vmatprep.subr.mxu0 0.0
        %3512 = vmatpush1.msra.mxu0 %v3491
        %3513 = vmatprep.subr.mxu0 0.0
        %3514 = vmatpush1.msra.mxu0 %v3492
        %3515 = vmatprep.subr.mxu0 0.0
        %3516 = vmatpush1.msra.mxu0 %v3493
        %3517 = vmatprep.subr.mxu0 0.0
        %3518 = vmatpush1.msra.mxu0 %v3494
        %3519 = vmatprep.subr.mxu0 0.0
        %3520 = vmatpush1.msra.mxu0 %v3495
        %3521 = vmatprep.subr.mxu0 0.0
        %3522 = vmatpush1.msra.mxu0 %v3496
        %3523 = vmatprep.subr.mxu0 0.0
        %3524 = vmatpush1.msra.mxu0 %v3497
        %3525 = vmatprep.subr.mxu0 0.0
        %3526 = vmatpush1.msra.mxu0 %v3498
        %3527 = vmatprep.subr.mxu0 0.0
        %3528 = vmatpush1.msra.mxu0 %v3499
        %3529 = vmatprep.subr.mxu0 0.0
        %3530 = vmatpush1.msra.mxu0 %v3500
        %3531 = vmatprep.subr.mxu0 0.0
        %3532 = vmatpush1.msra.mxu0 %v3501
        %3533 = vmatprep.subr.mxu0 0.0
        %3534 = vmatpush1.msra.mxu0 %v3502
        %3535 = vmatprep.subr.mxu0 0.0
        %3536 = vmatpush1.msra.mxu0 0.0
        %3537 = vmatprep.subr.mxu0 0.0
        %3538 = vmatpush1.msra.mxu0 0.0
        %3539 = vmatprep.subr.mxu0 0.0
        %3540 = vmatpush1.msra.mxu0 0.0
        %3541 = vmatprep.subr.mxu0 0.0
        %3542 = vmatpush1.msra.mxu0 0.0
        %3543 = vmatprep.subr.mxu0 0.0
        %3544 = vmatpush1.msra.mxu0 0.0
        %3545 = vmatprep.subr.mxu0 0.0
        %3546 = vmatpush1.msra.mxu0 0.0
        %3547 = vmatprep.subr.mxu0 0.0
        %3548 = vmatpush1.msra.mxu0 0.0
        %3549 = vmatprep.subr.mxu0 0.0
        %3550 = vmatpush1.msra.mxu0 0.0
        %3551 = vmatprep.subr.mxu0 0.0
        %3552 = vmatpush1.msra.mxu0 0.0
        %3553 = vmatprep.subr.mxu0 0.0
        %3554 = vmatpush1.msra.mxu0 0.0
        %3555 = vmatprep.subr.mxu0 0.0
        %3556 = vmatpush1.msra.mxu0 0.0
        %3557 = vmatprep.subr.mxu0 0.0
        %3558 = vmatpush1.msra.mxu0 0.0
        %3559 = vmatprep.subr.mxu0 0.0
        %3560 = vmatpush1.msra.mxu0 0.0
        %3561 = vmatprep.subr.mxu0 0.0
        %3562 = vmatpush1.msra.mxu0 0.0
        %3563 = vmatprep.subr.mxu0 0.0
        %3564 = vmatpush1.msra.mxu0 0.0
        %3565 = vmatprep.subr.mxu0 0.0
        %3566 = vmatpush1.msra.mxu0 0.0
        %3567 = vmatprep.mubr.f32.mxu0 0.0
        %3568 = vmatmul.mubr.f32.gmra.mrb[0].mxu0 %v3422
        %v3569 = vpop.f32.mrb[0].mxu0
        %v3570 = vadd.f32 0.0, %v3569
        %v3571 = vpop.f32.mrb[0].mxu0
        %3572 = vmatprep.mubr.f32.mxu0 0.0
        %3573 = vmatmul.mubr.f32.gmra.mrb[0].mxu0 %v3423
        %v3574 = vpop.f32.mrb[0].mxu0
        %v3575 = vadd.f32 0.0, %v3574
        %v3576 = vpop.f32.mrb[0].mxu0
        %3577 = vmatprep.mubr.f32.mxu0 0.0
        %3578 = vmatmul.mubr.f32.gmra.mrb[0].mxu0 %v3424
        %v3579 = vpop.f32.mrb[0].mxu0
        %v3580 = vadd.f32 0.0, %v3579
        %v3581 = vpop.f32.mrb[0].mxu0
        %3582 = vmatprep.mubr.f32.mxu0 0.0
        %3583 = vmatmul.mubr.f32.gmra.mrb[0].mxu0 %v3425
        %v3584 = vpop.f32.mrb[0].mxu0
        %v3585 = vadd.f32 0.0, %v3584
        %v3586 = vpop.f32.mrb[0].mxu0
        %3587 = vmatprep.mubr.f32.mxu0 0.0
        %3588 = vmatmul.mubr.f32.gmra.mrb[0].mxu0 %v3426
        %v3589 = vpop.f32.mrb[0].mxu0
        %v3590 = vadd.f32 0.0, %v3589
        %v3591 = vpop.f32.mrb[0].mxu0
        %3592 = vmatprep.mubr.f32.mxu0 0.0
        %3593 = vmatmul.mubr.f32.gmra.mrb[0].mxu0 %v3427
        %v3594 = vpop.f32.mrb[0].mxu0
        %v3595 = vadd.f32 0.0, %v3594
        %v3596 = vpop.f32.mrb[0].mxu0
        %3597 = vmatprep.mubr.f32.mxu0 0.0
        %3598 = vmatmul.mubr.f32.gmra.mrb[0].mxu0 %v3428
        %v3599 = vpop.f32.mrb[0].mxu0
        %v3600 = vadd.f32 0.0, %v3599
        %v3601 = vpop.f32.mrb[0].mxu0
        %3602 = vmatprep.mubr.f32.mxu0 0.0
        %3603 = vmatmul.mubr.f32.gmra.mrb[0].mxu0 %v3429
        %v3604 = vpop.f32.mrb[0].mxu0
        %v3605 = vadd.f32 0.0, %v3604
        %v3606 = vpop.f32.mrb[0].mxu0
        %3607 = vmatprep.mubr.f32.mxu0 0.0
        %3608 = vmatmul.mubr.f32.gmra.mrb[0].mxu0 %v3430
        %v3609 = vpop.f32.mrb[0].mxu0
        %v3610 = vadd.f32 0.0, %v3609
        %v3611 = vpop.f32.mrb[0].mxu0
        %3612 = vmatprep.mubr.f32.mxu0 0.0
        %3613 = vmatmul.mubr.f32.gmra.mrb[0].mxu0 %v3431
        %v3614 = vpop.f32.mrb[0].mxu0
        %v3615 = vadd.f32 0.0, %v3614
        %v3616 = vpop.f32.mrb[0].mxu0
        %3617 = vmatprep.mubr.f32.mxu0 0.0
        %3618 = vmatmul.mubr.f32.gmra.mrb[0].mxu0 %v3432
        %v3619 = vpop.f32.mrb[0].mxu0
        %v3620 = vadd.f32 0.0, %v3619
        %v3621 = vpop.f32.mrb[0].mxu0
        %3622 = vmatprep.mubr.f32.mxu0 0.0
        %3623 = vmatmul.mubr.f32.gmra.mrb[0].mxu0 %v3433
        %v3624 = vpop.f32.mrb[0].mxu0
        %v3625 = vadd.f32 0.0, %v3624
        %v3626 = vpop.f32.mrb[0].mxu0
        %3627 = vmatprep.mubr.f32.mxu0 0.0
        %3628 = vmatmul.mubr.f32.gmra.mrb[0].mxu0 %v3434
        %v3629 = vpop.f32.mrb[0].mxu0
        %v3630 = vadd.f32 0.0, %v3629
        %v3631 = vpop.f32.mrb[0].mxu0
        %3632 = vmatprep.mubr.f32.mxu0 0.0
        %3633 = vmatmul.mubr.f32.gmra.mrb[0].mxu0 %v3435
        %v3634 = vpop.f32.mrb[0].mxu0
        %v3635 = vadd.f32 0.0, %v3634
        %v3636 = vpop.f32.mrb[0].mxu0
        %3637 = vmatprep.mubr.f32.mxu0 0.0
        %3638 = vmatmul.mubr.f32.gmra.mrb[0].mxu0 %v3436
        %v3639 = vpop.f32.mrb[0].mxu0
        %v3640 = vadd.f32 0.0, %v3639
        %v3641 = vpop.f32.mrb[0].mxu0
        %3642 = vmatprep.mubr.f32.mxu0 0.0
        %3643 = vmatmul.mubr.f32.gmra.mrb[0].mxu0 %v3437
        %v3644 = vpop.f32.mrb[0].mxu0
        %v3645 = vadd.f32 0.0, %v3644
        %v3646 = vpop.f32.mrb[0].mxu0
        %3647 = vmatprep.mubr.f32.mxu0 0.0
        %3648 = vmatmul.mubr.f32.gmra.mrb[0].mxu0 %v3438
        %v3649 = vpop.f32.mrb[0].mxu0
        %v3650 = vadd.f32 0.0, %v3649
        %v3651 = vpop.f32.mrb[0].mxu0
        %3652 = vmatprep.mubr.f32.mxu0 0.0
        %3653 = vmatmul.mubr.f32.gmra.mrb[0].mxu0 %v3439
        %v3654 = vpop.f32.mrb[0].mxu0
        %v3655 = vadd.f32 0.0, %v3654
        %v3656 = vpop.f32.mrb[0].mxu0
        %3657 = vmatprep.mubr.f32.mxu0 0.0
        %3658 = vmatmul.mubr.f32.gmra.mrb[0].mxu0 %v3440
        %v3659 = vpop.f32.mrb[0].mxu0
        %v3660 = vadd.f32 0.0, %v3659
        %v3661 = vpop.f32.mrb[0].mxu0
        %3662 = vmatprep.mubr.f32.mxu0 0.0
        %3663 = vmatmul.mubr.f32.gmra.mrb[0].mxu0 %v3441
        %v3664 = vpop.f32.mrb[0].mxu0
        %v3665 = vadd.f32 0.0, %v3664
        %v3666 = vpop.f32.mrb[0].mxu0
        %3667 = vmatprep.mubr.f32.mxu0 0.0
        %3668 = vmatmul.mubr.f32.gmra.mrb[0].mxu0 %v3442
        %v3669 = vpop.f32.mrb[0].mxu0
        %v3670 = vadd.f32 0.0, %v3669
        %v3671 = vpop.f32.mrb[0].mxu0
        %3672 = vmatprep.mubr.f32.mxu0 0.0
        %3673 = vmatmul.mubr.f32.gmra.mrb[0].mxu0 %v3443
        %v3674 = vpop.f32.mrb[0].mxu0
        %v3675 = vadd.f32 0.0, %v3674
        %v3676 = vpop.f32.mrb[0].mxu0
        %3677 = vmatprep.mubr.f32.mxu0 0.0
        %3678 = vmatmul.mubr.f32.gmra.mrb[0].mxu0 %v3444
        %v3679 = vpop.f32.mrb[0].mxu0
        %v3680 = vadd.f32 0.0, %v3679
        %v3681 = vpop.f32.mrb[0].mxu0
        %3682 = vmatprep.mubr.f32.mxu0 0.0
        %3683 = vmatmul.mubr.f32.gmra.mrb[0].mxu0 %v3445
        %v3684 = vpop.f32.mrb[0].mxu0
        %v3685 = vadd.f32 0.0, %v3684
        %v3686 = vpop.f32.mrb[0].mxu0
        %3687 = vmatprep.mubr.f32.mxu0 0.0
        %3688 = vmatmul.mubr.f32.gmra.mrb[0].mxu0 %v3446
        %v3689 = vpop.f32.mrb[0].mxu0
        %v3690 = vadd.f32 0.0, %v3689
        %v3691 = vpop.f32.mrb[0].mxu0
        %3692 = vmatprep.mubr.f32.mxu0 0.0
        %3693 = vmatmul.mubr.f32.gmra.mrb[0].mxu0 %v3447
        %v3694 = vpop.f32.mrb[0].mxu0
        %v3695 = vadd.f32 0.0, %v3694
        %v3696 = vpop.f32.mrb[0].mxu0
        %3697 = vmatprep.mubr.f32.mxu0 0.0
        %3698 = vmatmul.mubr.f32.gmra.mrb[0].mxu0 %v3448
        %v3699 = vpop.f32.mrb[0].mxu0
        %v3700 = vadd.f32 0.0, %v3699
        %v3701 = vpop.f32.mrb[0].mxu0
        %3702 = vmatprep.mubr.f32.mxu0 0.0
        %3703 = vmatmul.mubr.f32.gmra.mrb[0].mxu0 %v3449
        %v3704 = vpop.f32.mrb[0].mxu0
        %v3705 = vadd.f32 0.0, %v3704
        %v3706 = vpop.f32.mrb[0].mxu0
        %3707 = vmatprep.mubr.f32.mxu0 0.0
        %3708 = vmatmul.mubr.f32.gmra.mrb[0].mxu0 %v3450
        %v3709 = vpop.f32.mrb[0].mxu0
        %v3710 = vadd.f32 0.0, %v3709
        %v3711 = vpop.f32.mrb[0].mxu0
        %3712 = vmatprep.mubr.f32.mxu0 0.0
        %3713 = vmatmul.mubr.f32.gmra.mrb[0].mxu0 %v3451
        %v3714 = vpop.f32.mrb[0].mxu0
        %v3715 = vadd.f32 0.0, %v3714
        %v3716 = vpop.f32.mrb[0].mxu0
        %3717 = vmatprep.mubr.f32.mxu0 0.0
        %3718 = vmatmul.mubr.f32.gmra.mrb[0].mxu0 %v3452
        %v3719 = vpop.f32.mrb[0].mxu0
        %v3720 = vadd.f32 0.0, %v3719
        %v3721 = vpop.f32.mrb[0].mxu0
        %3722 = vmatprep.mubr.f32.mxu0 0.0
        %3723 = vmatmul.mubr.f32.gmra.mrb[0].mxu0 %v3453
        %v3724 = vpop.f32.mrb[0].mxu0
        %v3725 = vadd.f32 0.0, %v3724
        %v3726 = vpop.f32.mrb[0].mxu0
        %3727 = vdwg.mxu0
        %v3728 = vadd.f32 %v3454, %v3570
        %v3729 = vadd.f32 %v3455, %v3575
        %v3730 = vadd.f32 %v3456, %v3580
        %v3731 = vadd.f32 %v3457, %v3585
        %v3732 = vadd.f32 %v3458, %v3590
        %v3733 = vadd.f32 %v3459, %v3595
        %v3734 = vadd.f32 %v3460, %v3600
        %v3735 = vadd.f32 %v3461, %v3605
        %v3736 = vadd.f32 %v3462, %v3610
        %v3737 = vadd.f32 %v3463, %v3615
        %v3738 = vadd.f32 %v3464, %v3620
        %v3739 = vadd.f32 %v3465, %v3625
        %v3740 = vadd.f32 %v3466, %v3630
        %v3741 = vadd.f32 %v3467, %v3635
        %v3742 = vadd.f32 %v3468, %v3640
        %v3743 = vadd.f32 %v3469, %v3645
        %v3744 = vadd.f32 %v3470, %v3650
        %v3745 = vadd.f32 %v3471, %v3655
        %v3746 = vadd.f32 %v3472, %v3660
        %v3747 = vadd.f32 %v3473, %v3665
        %v3748 = vadd.f32 %v3474, %v3670
        %v3749 = vadd.f32 %v3475, %v3675
        %v3750 = vadd.f32 %v3476, %v3680
        %v3751 = vadd.f32 %v3477, %v3685
        %v3752 = vadd.f32 %v3478, %v3690
        %v3753 = vadd.f32 %v3479, %v3695
        %v3754 = vadd.f32 %v3480, %v3700
        %v3755 = vadd.f32 %v3481, %v3705
        %v3756 = vadd.f32 %v3482, %v3710
        %v3757 = vadd.f32 %v3483, %v3715
        %v3758 = vadd.f32 %v3484, %v3720
        %v3759 = vadd.f32 %v3485, %v3725
        %3760 = vst [vmem:[#allocation4] sm:$0xff] %v3728
        %3761 = vst [vmem:[#allocation4 + $0x8] sm:$0xff] %v3729
        %3762 = vst [vmem:[#allocation4 + $0x10] sm:$0xff] %v3730
        %3763 = vst [vmem:[#allocation4 + $0x18] sm:$0xff] %v3731
        %3764 = vst [vmem:[#allocation4 + $0x20] sm:$0xff] %v3732
        %3765 = vst [vmem:[#allocation4 + $0x28] sm:$0xff] %v3733
        %3766 = vst [vmem:[#allocation4 + $0x30] sm:$0xff] %v3734
        %3767 = vst [vmem:[#allocation4 + $0x38] sm:$0xff] %v3735
        %3768 = vst [vmem:[#allocation4 + $0x40] sm:$0xff] %v3736
        %3769 = vst [vmem:[#allocation4 + $0x48] sm:$0xff] %v3737
        %3770 = vst [vmem:[#allocation4 + $0x50] sm:$0xff] %v3738
        %3771 = vst [vmem:[#allocation4 + $0x58] sm:$0xff] %v3739
        %3772 = vst [vmem:[#allocation4 + $0x60] sm:$0xff] %v3740
        %3773 = vst [vmem:[#allocation4 + $0x68] sm:$0xff] %v3741
        %3774 = vst [vmem:[#allocation4 + $0x70] sm:$0xff] %v3742
        %3775 = vst [vmem:[#allocation4 + $0x78] sm:$0xff] %v3743
        %3776 = vst [vmem:[#allocation4 + $0x80] sm:$0xff] %v3744
        %3777 = vst [vmem:[#allocation4 + $0x88] sm:$0xff] %v3745
        %3778 = vst [vmem:[#allocation4 + $0x90] sm:$0xff] %v3746
        %3779 = vst [vmem:[#allocation4 + $0x98] sm:$0xff] %v3747
        %3780 = vst [vmem:[#allocation4 + $0xa0] sm:$0xff] %v3748
        %3781 = vst [vmem:[#allocation4 + $0xa8] sm:$0xff] %v3749
        %3782 = vst [vmem:[#allocation4 + $0xb0] sm:$0xff] %v3750
        %3783 = vst [vmem:[#allocation4 + $0xb8] sm:$0xff] %v3751
        %3784 = vst [vmem:[#allocation4 + $0xc0] sm:$0xff] %v3752
        %3785 = vst [vmem:[#allocation4 + $0xc8] sm:$0xff] %v3753
        %3786 = vst [vmem:[#allocation4 + $0xd0] sm:$0xff] %v3754
        %3787 = vst [vmem:[#allocation4 + $0xd8] sm:$0xff] %v3755
        %3788 = vst [vmem:[#allocation4 + $0xe0] sm:$0xff] %v3756
        %3789 = vst [vmem:[#allocation4 + $0xe8] sm:$0xff] %v3757
        %3790 = vst [vmem:[#allocation4 + $0xf0] sm:$0xff] %v3758
        %3791 = vst [vmem:[#allocation4 + $0xf8] sm:$0xff] %v3759
        %v3792 = vld [vmem:[#allocation4] sm:$0xff]
        %v3793 = vld [vmem:[#allocation4 + $0x8] sm:$0xff]
        %v3794 = vld [vmem:[#allocation4 + $0x10] sm:$0xff]
        %v3795 = vld [vmem:[#allocation4 + $0x18] sm:$0xff]
        %v3796 = vld [vmem:[#allocation4 + $0x20] sm:$0xff]
        %v3797 = vld [vmem:[#allocation4 + $0x28] sm:$0xff]
        %v3798 = vld [vmem:[#allocation4 + $0x30] sm:$0xff]
        %v3799 = vld [vmem:[#allocation4 + $0x38] sm:$0xff]
        %v3800 = vld [vmem:[#allocation4 + $0x40] sm:$0xff]
        %v3801 = vld [vmem:[#allocation4 + $0x48] sm:$0xff]
        %v3802 = vld [vmem:[#allocation4 + $0x50] sm:$0xff]
        %v3803 = vld [vmem:[#allocation4 + $0x58] sm:$0xff]
        %v3804 = vld [vmem:[#allocation4 + $0x60] sm:$0xff]
        %v3805 = vld [vmem:[#allocation4 + $0x68] sm:$0xff]
        %v3806 = vld [vmem:[#allocation4 + $0x70] sm:$0xff]
        %v3807 = vld [vmem:[#allocation4 + $0x78] sm:$0xff]
        %v3808 = vld [vmem:[#allocation4 + $0x80] sm:$0xff]
        %v3809 = vld [vmem:[#allocation4 + $0x88] sm:$0xff]
        %v3810 = vld [vmem:[#allocation4 + $0x90] sm:$0xff]
        %v3811 = vld [vmem:[#allocation4 + $0x98] sm:$0xff]
        %v3812 = vld [vmem:[#allocation4 + $0xa0] sm:$0xff]
        %v3813 = vld [vmem:[#allocation4 + $0xa8] sm:$0xff]
        %v3814 = vld [vmem:[#allocation4 + $0xb0] sm:$0xff]
        %v3815 = vld [vmem:[#allocation4 + $0xb8] sm:$0xff]
        %v3816 = vld [vmem:[#allocation4 + $0xc0] sm:$0xff]
        %v3817 = vld [vmem:[#allocation4 + $0xc8] sm:$0xff]
        %v3818 = vld [vmem:[#allocation4 + $0xd0] sm:$0xff]
        %v3819 = vld [vmem:[#allocation4 + $0xd8] sm:$0xff]
        %v3820 = vld [vmem:[#allocation4 + $0xe0] sm:$0xff]
        %v3821 = vld [vmem:[#allocation4 + $0xe8] sm:$0xff]
        %v3822 = vld [vmem:[#allocation4 + $0xf0] sm:$0xff]
        %v3823 = vld [vmem:[#allocation4 + $0xf8] sm:$0xff]
        %v3824 = vmax.f32 %v3792, 0.0
        %v3825 = vmax.f32 %v3793, 0.0
        %v3826 = vmax.f32 %v3794, 0.0
        %v3827 = vmax.f32 %v3795, 0.0
        %v3828 = vmax.f32 %v3796, 0.0
        %v3829 = vmax.f32 %v3797, 0.0
        %v3830 = vmax.f32 %v3798, 0.0
        %v3831 = vmax.f32 %v3799, 0.0
        %v3832 = vmax.f32 %v3800, 0.0
        %v3833 = vmax.f32 %v3801, 0.0
        %v3834 = vmax.f32 %v3802, 0.0
        %v3835 = vmax.f32 %v3803, 0.0
        %v3836 = vmax.f32 %v3804, 0.0
        %v3837 = vmax.f32 %v3805, 0.0
        %v3838 = vmax.f32 %v3806, 0.0
        %v3839 = vmax.f32 %v3807, 0.0
        %v3840 = vmax.f32 %v3808, 0.0
        %v3841 = vmax.f32 %v3809, 0.0
        %v3842 = vmax.f32 %v3810, 0.0
        %v3843 = vmax.f32 %v3811, 0.0
        %v3844 = vmax.f32 %v3812, 0.0
        %v3845 = vmax.f32 %v3813, 0.0
        %v3846 = vmax.f32 %v3814, 0.0
        %v3847 = vmax.f32 %v3815, 0.0
        %v3848 = vmax.f32 %v3816, 0.0
        %v3849 = vmax.f32 %v3817, 0.0
        %v3850 = vmax.f32 %v3818, 0.0
        %v3851 = vmax.f32 %v3819, 0.0
        %v3852 = vmax.f32 %v3820, 0.0
        %v3853 = vmax.f32 %v3821, 0.0
        %v3854 = vmax.f32 %v3822, 0.0
        %v3855 = vmax.f32 %v3823, 0.0
        %s3856 = scalar_lea.vmem [#allocation3], 24
        %3857 = vst [vmem:[%s3856 + $0x1] sm:$0xff] %v3824
        %3858 = vst [vmem:[%s3856 + $0x9] sm:$0xff] %v3825
        %3859 = vst [vmem:[%s3856 + $0x19] sm:$0xff] %v3826
        %3860 = vst [vmem:[%s3856 + $0x21] sm:$0xff] %v3827
        %3861 = vst [vmem:[%s3856 + $0x31] sm:$0xff] %v3828
        %3862 = vst [vmem:[%s3856 + $0x39] sm:$0xff] %v3829
        %3863 = vst [vmem:[%s3856 + $0x49] sm:$0xff] %v3830
        %3864 = vst [vmem:[%s3856 + $0x51] sm:$0xff] %v3831
        %3865 = vst [vmem:[%s3856 + $0x61] sm:$0xff] %v3832
        %3866 = vst [vmem:[%s3856 + $0x69] sm:$0xff] %v3833
        %3867 = vst [vmem:[%s3856 + $0x79] sm:$0xff] %v3834
        %3868 = vst [vmem:[%s3856 + $0x81] sm:$0xff] %v3835
        %3869 = vst [vmem:[%s3856 + $0x91] sm:$0xff] %v3836
        %3870 = vst [vmem:[%s3856 + $0x99] sm:$0xff] %v3837
        %3871 = vst [vmem:[%s3856 + $0xa9] sm:$0xff] %v3838
        %3872 = vst [vmem:[%s3856 + $0xb1] sm:$0xff] %v3839
        %3873 = vst [vmem:[%s3856 + $0xc1] sm:$0xff] %v3840
        %3874 = vst [vmem:[%s3856 + $0xc9] sm:$0xff] %v3841
        %3875 = vst [vmem:[%s3856 + $0xd9] sm:$0xff] %v3842
        %3876 = vst [vmem:[%s3856 + $0xe1] sm:$0xff] %v3843
        %3877 = vst [vmem:[%s3856 + $0xf1] sm:$0xff] %v3844
        %3878 = vst [vmem:[%s3856 + $0xf9] sm:$0xff] %v3845
        %3879 = vst [vmem:[%s3856 + $0x109] sm:$0xff] %v3846
        %3880 = vst [vmem:[%s3856 + $0x111] sm:$0xff] %v3847
        %3881 = vst [vmem:[%s3856 + $0x121] sm:$0xff] %v3848
        %3882 = vst [vmem:[%s3856 + $0x129] sm:$0xff] %v3849
        %3883 = vst [vmem:[%s3856 + $0x139] sm:$0xff] %v3850
        %3884 = vst [vmem:[%s3856 + $0x141] sm:$0xff] %v3851
        %3885 = vst [vmem:[%s3856 + $0x151] sm:$0xff] %v3852
        %3886 = vst [vmem:[%s3856 + $0x159] sm:$0xff] %v3853
        %3887 = vst [vmem:[%s3856 + $0x169] sm:$0xff] %v3854
        %3888 = vst [vmem:[%s3856 + $0x171] sm:$0xff] %v3855
        %v3889 = vld [vmem:[%s4] sm:$0x1]
        %v3891 = vlaneseq
        %v3892 = vshrl.u32 %v3891, 7
        %v3893 = vsub.s32 0, %v3892
        %v3894 = vrot.slane %v3889, %v3893
        %3896 = vst [vmem:[#allocation5] sm:$0xff] %v3894
        %3897 = vst [vmem:[#allocation5 + $0x8] sm:$0xff] %v3894
        %3898 = vst [vmem:[#allocation5 + $0x10] sm:$0xff] %v3894
        %3899 = vst [vmem:[#allocation5 + $0x18] sm:$0xff] %v3894
        %3900 = vst [vmem:[#allocation5 + $0x20] sm:$0xff] %v3894
        %3901 = vst [vmem:[#allocation5 + $0x28] sm:$0xff] %v3894
        %3902 = vst [vmem:[#allocation5 + $0x30] sm:$0xff] %v3894
        %3903 = vst [vmem:[#allocation5 + $0x38] sm:$0xff] %v3894
        %3904 = vst [vmem:[#allocation5 + $0x40] sm:$0xff] %v3894
        %3905 = vst [vmem:[#allocation5 + $0x48] sm:$0xff] %v3894
        %3906 = vst [vmem:[#allocation5 + $0x50] sm:$0xff] %v3894
        %3907 = vst [vmem:[#allocation5 + $0x58] sm:$0xff] %v3894
        %3908 = vst [vmem:[#allocation5 + $0x60] sm:$0xff] %v3894
        %3909 = vst [vmem:[#allocation5 + $0x68] sm:$0xff] %v3894
        %3910 = vst [vmem:[#allocation5 + $0x70] sm:$0xff] %v3894
        %3911 = vst [vmem:[#allocation5 + $0x78] sm:$0xff] %v3894
        %3912 = vst [vmem:[#allocation5 + $0x80] sm:$0xff] %v3894
        %3913 = vst [vmem:[#allocation5 + $0x88] sm:$0xff] %v3894
        %3914 = vst [vmem:[#allocation5 + $0x90] sm:$0xff] %v3894
        %3915 = vst [vmem:[#allocation5 + $0x98] sm:$0xff] %v3894
        %3916 = vst [vmem:[#allocation5 + $0xa0] sm:$0xff] %v3894
        %3917 = vst [vmem:[#allocation5 + $0xa8] sm:$0xff] %v3894
        %3918 = vst [vmem:[#allocation5 + $0xb0] sm:$0xff] %v3894
        %3919 = vst [vmem:[#allocation5 + $0xb8] sm:$0xff] %v3894
        %3920 = vst [vmem:[#allocation5 + $0xc0] sm:$0xff] %v3894
        %3921 = vst [vmem:[#allocation5 + $0xc8] sm:$0xff] %v3894
        %3922 = vst [vmem:[#allocation5 + $0xd0] sm:$0xff] %v3894
        %3923 = vst [vmem:[#allocation5 + $0xd8] sm:$0xff] %v3894
        %3924 = vst [vmem:[#allocation5 + $0xe0] sm:$0xff] %v3894
        %3925 = vst [vmem:[#allocation5 + $0xe8] sm:$0xff] %v3894
        %3926 = vst [vmem:[#allocation5 + $0xf0] sm:$0xff] %v3894
        %3927 = vst [vmem:[#allocation5 + $0xf8] sm:$0xff] %v3894
        %v3928 = vld [vmem:[#allocation3] sm:$0xff]
        %v3929 = vld [vmem:[#allocation3 + $0x8] sm:$0xff]
        %v3930 = vld [vmem:[#allocation3 + $0x18] sm:$0xff]
        %v3931 = vld [vmem:[#allocation3 + $0x20] sm:$0xff]
        %v3932 = vld [vmem:[#allocation3 + $0x30] sm:$0xff]
        %v3933 = vld [vmem:[#allocation3 + $0x38] sm:$0xff]
        %v3934 = vld [vmem:[#allocation3 + $0x48] sm:$0xff]
        %v3935 = vld [vmem:[#allocation3 + $0x50] sm:$0xff]
        %v3936 = vld [vmem:[#allocation3 + $0x60] sm:$0xff]
        %v3937 = vld [vmem:[#allocation3 + $0x68] sm:$0xff]
        %v3938 = vld [vmem:[#allocation3 + $0x78] sm:$0xff]
        %v3939 = vld [vmem:[#allocation3 + $0x80] sm:$0xff]
        %v3940 = vld [vmem:[#allocation3 + $0x90] sm:$0xff]
        %v3941 = vld [vmem:[#allocation3 + $0x98] sm:$0xff]
        %v3942 = vld [vmem:[#allocation3 + $0xa8] sm:$0xff]
        %v3943 = vld [vmem:[#allocation3 + $0xb0] sm:$0xff]
        %v3944 = vld [vmem:[#allocation3 + $0xc0] sm:$0xff]
        %v3945 = vld [vmem:[#allocation3 + $0xc8] sm:$0xff]
        %v3946 = vld [vmem:[#allocation3 + $0xd8] sm:$0xff]
        %v3947 = vld [vmem:[#allocation3 + $0xe0] sm:$0xff]
        %v3948 = vld [vmem:[#allocation3 + $0xf0] sm:$0xff]
        %v3949 = vld [vmem:[#allocation3 + $0xf8] sm:$0xff]
        %v3950 = vld [vmem:[#allocation3 + $0x108] sm:$0xff]
        %v3951 = vld [vmem:[#allocation3 + $0x110] sm:$0xff]
        %v3952 = vld [vmem:[#allocation3 + $0x120] sm:$0xff]
        %v3953 = vld [vmem:[#allocation3 + $0x128] sm:$0xff]
        %v3954 = vld [vmem:[#allocation3 + $0x138] sm:$0xff]
        %v3955 = vld [vmem:[#allocation3 + $0x140] sm:$0xff]
        %v3956 = vld [vmem:[#allocation3 + $0x150] sm:$0xff]
        %v3957 = vld [vmem:[#allocation3 + $0x158] sm:$0xff]
        %v3958 = vld [vmem:[#allocation3 + $0x168] sm:$0xff]
        %v3959 = vld [vmem:[#allocation3 + $0x170] sm:$0xff]
        %v3960 = vld [vmem:[#allocation5] sm:$0xff]
        %v3961 = vld [vmem:[#allocation5 + $0x8] sm:$0xff]
        %v3962 = vld [vmem:[#allocation5 + $0x10] sm:$0xff]
        %v3963 = vld [vmem:[#allocation5 + $0x18] sm:$0xff]
        %v3964 = vld [vmem:[#allocation5 + $0x20] sm:$0xff]
        %v3965 = vld [vmem:[#allocation5 + $0x28] sm:$0xff]
        %v3966 = vld [vmem:[#allocation5 + $0x30] sm:$0xff]
        %v3967 = vld [vmem:[#allocation5 + $0x38] sm:$0xff]
        %v3968 = vld [vmem:[#allocation5 + $0x40] sm:$0xff]
        %v3969 = vld [vmem:[#allocation5 + $0x48] sm:$0xff]
        %v3970 = vld [vmem:[#allocation5 + $0x50] sm:$0xff]
        %v3971 = vld [vmem:[#allocation5 + $0x58] sm:$0xff]
        %v3972 = vld [vmem:[#allocation5 + $0x60] sm:$0xff]
        %v3973 = vld [vmem:[#allocation5 + $0x68] sm:$0xff]
        %v3974 = vld [vmem:[#allocation5 + $0x70] sm:$0xff]
        %v3975 = vld [vmem:[#allocation5 + $0x78] sm:$0xff]
        %v3976 = vld [vmem:[#allocation5 + $0x80] sm:$0xff]
        %v3977 = vld [vmem:[#allocation5 + $0x88] sm:$0xff]
        %v3978 = vld [vmem:[#allocation5 + $0x90] sm:$0xff]
        %v3979 = vld [vmem:[#allocation5 + $0x98] sm:$0xff]
        %v3980 = vld [vmem:[#allocation5 + $0xa0] sm:$0xff]
        %v3981 = vld [vmem:[#allocation5 + $0xa8] sm:$0xff]
        %v3982 = vld [vmem:[#allocation5 + $0xb0] sm:$0xff]
        %v3983 = vld [vmem:[#allocation5 + $0xb8] sm:$0xff]
        %v3984 = vld [vmem:[#allocation5 + $0xc0] sm:$0xff]
        %v3985 = vld [vmem:[#allocation5 + $0xc8] sm:$0xff]
        %v3986 = vld [vmem:[#allocation5 + $0xd0] sm:$0xff]
        %v3987 = vld [vmem:[#allocation5 + $0xd8] sm:$0xff]
        %v3988 = vld [vmem:[#allocation5 + $0xe0] sm:$0xff]
        %v3989 = vld [vmem:[#allocation5 + $0xe8] sm:$0xff]
        %v3990 = vld [vmem:[#allocation5 + $0xf0] sm:$0xff]
        %v3991 = vld [vmem:[#allocation5 + $0xf8] sm:$0xff]
        %v3992 = vld [vmem:[#allocation11] sm:$0xff]
        %v3993 = vld [vmem:[#allocation11 + $0x8] sm:$0xff]
        %v3994 = vld [vmem:[#allocation11 + $0x10] sm:$0xff]
        %v3995 = vld [vmem:[#allocation11 + $0x18] sm:$0xff]
        %v3996 = vld [vmem:[#allocation11 + $0x20] sm:$0xff]
        %v3997 = vld [vmem:[#allocation11 + $0x28] sm:$0xff]
        %v3998 = vld [vmem:[#allocation11 + $0x30] sm:$0xff]
        %v3999 = vld [vmem:[#allocation11 + $0x38] sm:$0xff]
        %v4000 = vld [vmem:[#allocation11 + $0x40] sm:$0xff]
        %v4001 = vld [vmem:[#allocation11 + $0x48] sm:$0xff]
        %v4002 = vld [vmem:[#allocation11 + $0x50] sm:$0xff]
        %v4003 = vld [vmem:[#allocation11 + $0x58] sm:$0xff]
        %v4004 = vld [vmem:[#allocation11 + $0x60] sm:$0xff]
        %v4005 = vld [vmem:[#allocation11 + $0x68] sm:$0xff]
        %v4006 = vld [vmem:[#allocation11 + $0x70] sm:$0xff]
        %v4007 = vld [vmem:[#allocation11 + $0x78] sm:$0xff]
        %4008 = vmatprep.subr.mxu0 0.0
        %4009 = vmatpush1.msra.mxu0 %v3992
        %4010 = vmatprep.subr.mxu0 0.0
        %4011 = vmatpush1.msra.mxu0 %v3993
        %4012 = vmatprep.subr.mxu0 0.0
        %4013 = vmatpush1.msra.mxu0 %v3994
        %4014 = vmatprep.subr.mxu0 0.0
        %4015 = vmatpush1.msra.mxu0 %v3995
        %4016 = vmatprep.subr.mxu0 0.0
        %4017 = vmatpush1.msra.mxu0 %v3996
        %4018 = vmatprep.subr.mxu0 0.0
        %4019 = vmatpush1.msra.mxu0 %v3997
        %4020 = vmatprep.subr.mxu0 0.0
        %4021 = vmatpush1.msra.mxu0 %v3998
        %4022 = vmatprep.subr.mxu0 0.0
        %4023 = vmatpush1.msra.mxu0 %v3999
        %4024 = vmatprep.subr.mxu0 0.0
        %4025 = vmatpush1.msra.mxu0 %v4000
        %4026 = vmatprep.subr.mxu0 0.0
        %4027 = vmatpush1.msra.mxu0 %v4001
        %4028 = vmatprep.subr.mxu0 0.0
        %4029 = vmatpush1.msra.mxu0 %v4002
        %4030 = vmatprep.subr.mxu0 0.0
        %4031 = vmatpush1.msra.mxu0 %v4003
        %4032 = vmatprep.subr.mxu0 0.0
        %4033 = vmatpush1.msra.mxu0 %v4004
        %4034 = vmatprep.subr.mxu0 0.0
        %4035 = vmatpush1.msra.mxu0 %v4005
        %4036 = vmatprep.subr.mxu0 0.0
        %4037 = vmatpush1.msra.mxu0 %v4006
        %4038 = vmatprep.subr.mxu0 0.0
        %4039 = vmatpush1.msra.mxu0 %v4007
        %4040 = vmatprep.subr.mxu0 0.0
        %4041 = vmatpush1.msra.mxu0 0.0
        %4042 = vmatprep.subr.mxu0 0.0
        %4043 = vmatpush1.msra.mxu0 0.0
        %4044 = vmatprep.subr.mxu0 0.0
        %4045 = vmatpush1.msra.mxu0 0.0
        %4046 = vmatprep.subr.mxu0 0.0
        %4047 = vmatpush1.msra.mxu0 0.0
        %4048 = vmatprep.subr.mxu0 0.0
        %4049 = vmatpush1.msra.mxu0 0.0
        %4050 = vmatprep.subr.mxu0 0.0
        %4051 = vmatpush1.msra.mxu0 0.0
        %4052 = vmatprep.subr.mxu0 0.0
        %4053 = vmatpush1.msra.mxu0 0.0
        %4054 = vmatprep.subr.mxu0 0.0
        %4055 = vmatpush1.msra.mxu0 0.0
        %4056 = vmatprep.subr.mxu0 0.0
        %4057 = vmatpush1.msra.mxu0 0.0
        %4058 = vmatprep.subr.mxu0 0.0
        %4059 = vmatpush1.msra.mxu0 0.0
        %4060 = vmatprep.subr.mxu0 0.0
        %4061 = vmatpush1.msra.mxu0 0.0
        %4062 = vmatprep.subr.mxu0 0.0
        %4063 = vmatpush1.msra.mxu0 0.0
        %4064 = vmatprep.subr.mxu0 0.0
        %4065 = vmatpush1.msra.mxu0 0.0
        %4066 = vmatprep.subr.mxu0 0.0
        %4067 = vmatpush1.msra.mxu0 0.0
        %4068 = vmatprep.subr.mxu0 0.0
        %4069 = vmatpush1.msra.mxu0 0.0
        %4070 = vmatprep.subr.mxu0 0.0
        %4071 = vmatpush1.msra.mxu0 0.0
        %4072 = vmatprep.mubr.f32.mxu0 0.0
        %4073 = vmatmul.mubr.f32.gmra.mrb[0].mxu0 %v3928
        %v4074 = vpop.f32.mrb[0].mxu0
        %v4075 = vadd.f32 0.0, %v4074
        %v4076 = vpop.f32.mrb[0].mxu0
        %4077 = vmatprep.mubr.f32.mxu0 0.0
        %4078 = vmatmul.mubr.f32.gmra.mrb[0].mxu0 %v3929
        %v4079 = vpop.f32.mrb[0].mxu0
        %v4080 = vadd.f32 0.0, %v4079
        %v4081 = vpop.f32.mrb[0].mxu0
        %4082 = vmatprep.mubr.f32.mxu0 0.0
        %4083 = vmatmul.mubr.f32.gmra.mrb[0].mxu0 %v3930
        %v4084 = vpop.f32.mrb[0].mxu0
        %v4085 = vadd.f32 0.0, %v4084
        %v4086 = vpop.f32.mrb[0].mxu0
        %4087 = vmatprep.mubr.f32.mxu0 0.0
        %4088 = vmatmul.mubr.f32.gmra.mrb[0].mxu0 %v3931
        %v4089 = vpop.f32.mrb[0].mxu0
        %v4090 = vadd.f32 0.0, %v4089
        %v4091 = vpop.f32.mrb[0].mxu0
        %4092 = vmatprep.mubr.f32.mxu0 0.0
        %4093 = vmatmul.mubr.f32.gmra.mrb[0].mxu0 %v3932
        %v4094 = vpop.f32.mrb[0].mxu0
        %v4095 = vadd.f32 0.0, %v4094
        %v4096 = vpop.f32.mrb[0].mxu0
        %4097 = vmatprep.mubr.f32.mxu0 0.0
        %4098 = vmatmul.mubr.f32.gmra.mrb[0].mxu0 %v3933
        %v4099 = vpop.f32.mrb[0].mxu0
        %v4100 = vadd.f32 0.0, %v4099
        %v4101 = vpop.f32.mrb[0].mxu0
        %4102 = vmatprep.mubr.f32.mxu0 0.0
        %4103 = vmatmul.mubr.f32.gmra.mrb[0].mxu0 %v3934
        %v4104 = vpop.f32.mrb[0].mxu0
        %v4105 = vadd.f32 0.0, %v4104
        %v4106 = vpop.f32.mrb[0].mxu0
        %4107 = vmatprep.mubr.f32.mxu0 0.0
        %4108 = vmatmul.mubr.f32.gmra.mrb[0].mxu0 %v3935
        %v4109 = vpop.f32.mrb[0].mxu0
        %v4110 = vadd.f32 0.0, %v4109
        %v4111 = vpop.f32.mrb[0].mxu0
        %4112 = vmatprep.mubr.f32.mxu0 0.0
        %4113 = vmatmul.mubr.f32.gmra.mrb[0].mxu0 %v3936
        %v4114 = vpop.f32.mrb[0].mxu0
        %v4115 = vadd.f32 0.0, %v4114
        %v4116 = vpop.f32.mrb[0].mxu0
        %4117 = vmatprep.mubr.f32.mxu0 0.0
        %4118 = vmatmul.mubr.f32.gmra.mrb[0].mxu0 %v3937
        %v4119 = vpop.f32.mrb[0].mxu0
        %v4120 = vadd.f32 0.0, %v4119
        %v4121 = vpop.f32.mrb[0].mxu0
        %4122 = vmatprep.mubr.f32.mxu0 0.0
        %4123 = vmatmul.mubr.f32.gmra.mrb[0].mxu0 %v3938
        %v4124 = vpop.f32.mrb[0].mxu0
        %v4125 = vadd.f32 0.0, %v4124
        %v4126 = vpop.f32.mrb[0].mxu0
        %4127 = vmatprep.mubr.f32.mxu0 0.0
        %4128 = vmatmul.mubr.f32.gmra.mrb[0].mxu0 %v3939
        %v4129 = vpop.f32.mrb[0].mxu0
        %v4130 = vadd.f32 0.0, %v4129
        %v4131 = vpop.f32.mrb[0].mxu0
        %4132 = vmatprep.mubr.f32.mxu0 0.0
        %4133 = vmatmul.mubr.f32.gmra.mrb[0].mxu0 %v3940
        %v4134 = vpop.f32.mrb[0].mxu0
        %v4135 = vadd.f32 0.0, %v4134
        %v4136 = vpop.f32.mrb[0].mxu0
        %4137 = vmatprep.mubr.f32.mxu0 0.0
        %4138 = vmatmul.mubr.f32.gmra.mrb[0].mxu0 %v3941
        %v4139 = vpop.f32.mrb[0].mxu0
        %v4140 = vadd.f32 0.0, %v4139
        %v4141 = vpop.f32.mrb[0].mxu0
        %4142 = vmatprep.mubr.f32.mxu0 0.0
        %4143 = vmatmul.mubr.f32.gmra.mrb[0].mxu0 %v3942
        %v4144 = vpop.f32.mrb[0].mxu0
        %v4145 = vadd.f32 0.0, %v4144
        %v4146 = vpop.f32.mrb[0].mxu0
        %4147 = vmatprep.mubr.f32.mxu0 0.0
        %4148 = vmatmul.mubr.f32.gmra.mrb[0].mxu0 %v3943
        %v4149 = vpop.f32.mrb[0].mxu0
        %v4150 = vadd.f32 0.0, %v4149
        %v4151 = vpop.f32.mrb[0].mxu0
        %4152 = vmatprep.mubr.f32.mxu0 0.0
        %4153 = vmatmul.mubr.f32.gmra.mrb[0].mxu0 %v3944
        %v4154 = vpop.f32.mrb[0].mxu0
        %v4155 = vadd.f32 0.0, %v4154
        %v4156 = vpop.f32.mrb[0].mxu0
        %4157 = vmatprep.mubr.f32.mxu0 0.0
        %4158 = vmatmul.mubr.f32.gmra.mrb[0].mxu0 %v3945
        %v4159 = vpop.f32.mrb[0].mxu0
        %v4160 = vadd.f32 0.0, %v4159
        %v4161 = vpop.f32.mrb[0].mxu0
        %4162 = vmatprep.mubr.f32.mxu0 0.0
        %4163 = vmatmul.mubr.f32.gmra.mrb[0].mxu0 %v3946
        %v4164 = vpop.f32.mrb[0].mxu0
        %v4165 = vadd.f32 0.0, %v4164
        %v4166 = vpop.f32.mrb[0].mxu0
        %4167 = vmatprep.mubr.f32.mxu0 0.0
        %4168 = vmatmul.mubr.f32.gmra.mrb[0].mxu0 %v3947
        %v4169 = vpop.f32.mrb[0].mxu0
        %v4170 = vadd.f32 0.0, %v4169
        %v4171 = vpop.f32.mrb[0].mxu0
        %4172 = vmatprep.mubr.f32.mxu0 0.0
        %4173 = vmatmul.mubr.f32.gmra.mrb[0].mxu0 %v3948
        %v4174 = vpop.f32.mrb[0].mxu0
        %v4175 = vadd.f32 0.0, %v4174
        %v4176 = vpop.f32.mrb[0].mxu0
        %4177 = vmatprep.mubr.f32.mxu0 0.0
        %4178 = vmatmul.mubr.f32.gmra.mrb[0].mxu0 %v3949
        %v4179 = vpop.f32.mrb[0].mxu0
        %v4180 = vadd.f32 0.0, %v4179
        %v4181 = vpop.f32.mrb[0].mxu0
        %4182 = vmatprep.mubr.f32.mxu0 0.0
        %4183 = vmatmul.mubr.f32.gmra.mrb[0].mxu0 %v3950
        %v4184 = vpop.f32.mrb[0].mxu0
        %v4185 = vadd.f32 0.0, %v4184
        %v4186 = vpop.f32.mrb[0].mxu0
        %4187 = vmatprep.mubr.f32.mxu0 0.0
        %4188 = vmatmul.mubr.f32.gmra.mrb[0].mxu0 %v3951
        %v4189 = vpop.f32.mrb[0].mxu0
        %v4190 = vadd.f32 0.0, %v4189
        %v4191 = vpop.f32.mrb[0].mxu0
        %4192 = vmatprep.mubr.f32.mxu0 0.0
        %4193 = vmatmul.mubr.f32.gmra.mrb[0].mxu0 %v3952
        %v4194 = vpop.f32.mrb[0].mxu0
        %v4195 = vadd.f32 0.0, %v4194
        %v4196 = vpop.f32.mrb[0].mxu0
        %4197 = vmatprep.mubr.f32.mxu0 0.0
        %4198 = vmatmul.mubr.f32.gmra.mrb[0].mxu0 %v3953
        %v4199 = vpop.f32.mrb[0].mxu0
        %v4200 = vadd.f32 0.0, %v4199
        %v4201 = vpop.f32.mrb[0].mxu0
        %4202 = vmatprep.mubr.f32.mxu0 0.0
        %4203 = vmatmul.mubr.f32.gmra.mrb[0].mxu0 %v3954
        %v4204 = vpop.f32.mrb[0].mxu0
        %v4205 = vadd.f32 0.0, %v4204
        %v4206 = vpop.f32.mrb[0].mxu0
        %4207 = vmatprep.mubr.f32.mxu0 0.0
        %4208 = vmatmul.mubr.f32.gmra.mrb[0].mxu0 %v3955
        %v4209 = vpop.f32.mrb[0].mxu0
        %v4210 = vadd.f32 0.0, %v4209
        %v4211 = vpop.f32.mrb[0].mxu0
        %4212 = vmatprep.mubr.f32.mxu0 0.0
        %4213 = vmatmul.mubr.f32.gmra.mrb[0].mxu0 %v3956
        %v4214 = vpop.f32.mrb[0].mxu0
        %v4215 = vadd.f32 0.0, %v4214
        %v4216 = vpop.f32.mrb[0].mxu0
        %4217 = vmatprep.mubr.f32.mxu0 0.0
        %4218 = vmatmul.mubr.f32.gmra.mrb[0].mxu0 %v3957
        %v4219 = vpop.f32.mrb[0].mxu0
        %v4220 = vadd.f32 0.0, %v4219
        %v4221 = vpop.f32.mrb[0].mxu0
        %4222 = vmatprep.mubr.f32.mxu0 0.0
        %4223 = vmatmul.mubr.f32.gmra.mrb[0].mxu0 %v3958
        %v4224 = vpop.f32.mrb[0].mxu0
        %v4225 = vadd.f32 0.0, %v4224
        %v4226 = vpop.f32.mrb[0].mxu0
        %4227 = vmatprep.mubr.f32.mxu0 0.0
        %4228 = vmatmul.mubr.f32.gmra.mrb[0].mxu0 %v3959
        %v4229 = vpop.f32.mrb[0].mxu0
        %v4230 = vadd.f32 0.0, %v4229
        %v4231 = vpop.f32.mrb[0].mxu0
        %4232 = vdwg.mxu0
        %v4233 = vadd.f32 %v3960, %v4075
        %v4234 = vadd.f32 %v3961, %v4080
        %v4235 = vadd.f32 %v3962, %v4085
        %v4236 = vadd.f32 %v3963, %v4090
        %v4237 = vadd.f32 %v3964, %v4095
        %v4238 = vadd.f32 %v3965, %v4100
        %v4239 = vadd.f32 %v3966, %v4105
        %v4240 = vadd.f32 %v3967, %v4110
        %v4241 = vadd.f32 %v3968, %v4115
        %v4242 = vadd.f32 %v3969, %v4120
        %v4243 = vadd.f32 %v3970, %v4125
        %v4244 = vadd.f32 %v3971, %v4130
        %v4245 = vadd.f32 %v3972, %v4135
        %v4246 = vadd.f32 %v3973, %v4140
        %v4247 = vadd.f32 %v3974, %v4145
        %v4248 = vadd.f32 %v3975, %v4150
        %v4249 = vadd.f32 %v3976, %v4155
        %v4250 = vadd.f32 %v3977, %v4160
        %v4251 = vadd.f32 %v3978, %v4165
        %v4252 = vadd.f32 %v3979, %v4170
        %v4253 = vadd.f32 %v3980, %v4175
        %v4254 = vadd.f32 %v3981, %v4180
        %v4255 = vadd.f32 %v3982, %v4185
        %v4256 = vadd.f32 %v3983, %v4190
        %v4257 = vadd.f32 %v3984, %v4195
        %v4258 = vadd.f32 %v3985, %v4200
        %v4259 = vadd.f32 %v3986, %v4205
        %v4260 = vadd.f32 %v3987, %v4210
        %v4261 = vadd.f32 %v3988, %v4215
        %v4262 = vadd.f32 %v3989, %v4220
        %v4263 = vadd.f32 %v3990, %v4225
        %v4264 = vadd.f32 %v3991, %v4230
        %4265 = vst [vmem:[#allocation5] sm:$0xff] %v4233
        %4266 = vst [vmem:[#allocation5 + $0x8] sm:$0xff] %v4234
        %4267 = vst [vmem:[#allocation5 + $0x10] sm:$0xff] %v4235
        %4268 = vst [vmem:[#allocation5 + $0x18] sm:$0xff] %v4236
        %4269 = vst [vmem:[#allocation5 + $0x20] sm:$0xff] %v4237
        %4270 = vst [vmem:[#allocation5 + $0x28] sm:$0xff] %v4238
        %4271 = vst [vmem:[#allocation5 + $0x30] sm:$0xff] %v4239
        %4272 = vst [vmem:[#allocation5 + $0x38] sm:$0xff] %v4240
        %4273 = vst [vmem:[#allocation5 + $0x40] sm:$0xff] %v4241
        %4274 = vst [vmem:[#allocation5 + $0x48] sm:$0xff] %v4242
        %4275 = vst [vmem:[#allocation5 + $0x50] sm:$0xff] %v4243
        %4276 = vst [vmem:[#allocation5 + $0x58] sm:$0xff] %v4244
        %4277 = vst [vmem:[#allocation5 + $0x60] sm:$0xff] %v4245
        %4278 = vst [vmem:[#allocation5 + $0x68] sm:$0xff] %v4246
        %4279 = vst [vmem:[#allocation5 + $0x70] sm:$0xff] %v4247
        %4280 = vst [vmem:[#allocation5 + $0x78] sm:$0xff] %v4248
        %4281 = vst [vmem:[#allocation5 + $0x80] sm:$0xff] %v4249
        %4282 = vst [vmem:[#allocation5 + $0x88] sm:$0xff] %v4250
        %4283 = vst [vmem:[#allocation5 + $0x90] sm:$0xff] %v4251
        %4284 = vst [vmem:[#allocation5 + $0x98] sm:$0xff] %v4252
        %4285 = vst [vmem:[#allocation5 + $0xa0] sm:$0xff] %v4253
        %4286 = vst [vmem:[#allocation5 + $0xa8] sm:$0xff] %v4254
        %4287 = vst [vmem:[#allocation5 + $0xb0] sm:$0xff] %v4255
        %4288 = vst [vmem:[#allocation5 + $0xb8] sm:$0xff] %v4256
        %4289 = vst [vmem:[#allocation5 + $0xc0] sm:$0xff] %v4257
        %4290 = vst [vmem:[#allocation5 + $0xc8] sm:$0xff] %v4258
        %4291 = vst [vmem:[#allocation5 + $0xd0] sm:$0xff] %v4259
        %4292 = vst [vmem:[#allocation5 + $0xd8] sm:$0xff] %v4260
        %4293 = vst [vmem:[#allocation5 + $0xe0] sm:$0xff] %v4261
        %4294 = vst [vmem:[#allocation5 + $0xe8] sm:$0xff] %v4262
        %4295 = vst [vmem:[#allocation5 + $0xf0] sm:$0xff] %v4263
        %4296 = vst [vmem:[#allocation5 + $0xf8] sm:$0xff] %v4264
        %v4297 = vld [vmem:[#allocation3 + $0x1] sm:$0xff]
        %v4298 = vld [vmem:[#allocation3 + $0x9] sm:$0xff]
        %v4299 = vld [vmem:[#allocation3 + $0x19] sm:$0xff]
        %v4300 = vld [vmem:[#allocation3 + $0x21] sm:$0xff]
        %v4301 = vld [vmem:[#allocation3 + $0x31] sm:$0xff]
        %v4302 = vld [vmem:[#allocation3 + $0x39] sm:$0xff]
        %v4303 = vld [vmem:[#allocation3 + $0x49] sm:$0xff]
        %v4304 = vld [vmem:[#allocation3 + $0x51] sm:$0xff]
        %v4305 = vld [vmem:[#allocation3 + $0x61] sm:$0xff]
        %v4306 = vld [vmem:[#allocation3 + $0x69] sm:$0xff]
        %v4307 = vld [vmem:[#allocation3 + $0x79] sm:$0xff]
        %v4308 = vld [vmem:[#allocation3 + $0x81] sm:$0xff]
        %v4309 = vld [vmem:[#allocation3 + $0x91] sm:$0xff]
        %v4310 = vld [vmem:[#allocation3 + $0x99] sm:$0xff]
        %v4311 = vld [vmem:[#allocation3 + $0xa9] sm:$0xff]
        %v4312 = vld [vmem:[#allocation3 + $0xb1] sm:$0xff]
        %v4313 = vld [vmem:[#allocation3 + $0xc1] sm:$0xff]
        %v4314 = vld [vmem:[#allocation3 + $0xc9] sm:$0xff]
        %v4315 = vld [vmem:[#allocation3 + $0xd9] sm:$0xff]
        %v4316 = vld [vmem:[#allocation3 + $0xe1] sm:$0xff]
        %v4317 = vld [vmem:[#allocation3 + $0xf1] sm:$0xff]
        %v4318 = vld [vmem:[#allocation3 + $0xf9] sm:$0xff]
        %v4319 = vld [vmem:[#allocation3 + $0x109] sm:$0xff]
        %v4320 = vld [vmem:[#allocation3 + $0x111] sm:$0xff]
        %v4321 = vld [vmem:[#allocation3 + $0x121] sm:$0xff]
        %v4322 = vld [vmem:[#allocation3 + $0x129] sm:$0xff]
        %v4323 = vld [vmem:[#allocation3 + $0x139] sm:$0xff]
        %v4324 = vld [vmem:[#allocation3 + $0x141] sm:$0xff]
        %v4325 = vld [vmem:[#allocation3 + $0x151] sm:$0xff]
        %v4326 = vld [vmem:[#allocation3 + $0x159] sm:$0xff]
        %v4327 = vld [vmem:[#allocation3 + $0x169] sm:$0xff]
        %v4328 = vld [vmem:[#allocation3 + $0x171] sm:$0xff]
        %v4329 = vld [vmem:[#allocation5] sm:$0xff]
        %v4330 = vld [vmem:[#allocation5 + $0x8] sm:$0xff]
        %v4331 = vld [vmem:[#allocation5 + $0x10] sm:$0xff]
        %v4332 = vld [vmem:[#allocation5 + $0x18] sm:$0xff]
        %v4333 = vld [vmem:[#allocation5 + $0x20] sm:$0xff]
        %v4334 = vld [vmem:[#allocation5 + $0x28] sm:$0xff]
        %v4335 = vld [vmem:[#allocation5 + $0x30] sm:$0xff]
        %v4336 = vld [vmem:[#allocation5 + $0x38] sm:$0xff]
        %v4337 = vld [vmem:[#allocation5 + $0x40] sm:$0xff]
        %v4338 = vld [vmem:[#allocation5 + $0x48] sm:$0xff]
        %v4339 = vld [vmem:[#allocation5 + $0x50] sm:$0xff]
        %v4340 = vld [vmem:[#allocation5 + $0x58] sm:$0xff]
        %v4341 = vld [vmem:[#allocation5 + $0x60] sm:$0xff]
        %v4342 = vld [vmem:[#allocation5 + $0x68] sm:$0xff]
        %v4343 = vld [vmem:[#allocation5 + $0x70] sm:$0xff]
        %v4344 = vld [vmem:[#allocation5 + $0x78] sm:$0xff]
        %v4345 = vld [vmem:[#allocation5 + $0x80] sm:$0xff]
        %v4346 = vld [vmem:[#allocation5 + $0x88] sm:$0xff]
        %v4347 = vld [vmem:[#allocation5 + $0x90] sm:$0xff]
        %v4348 = vld [vmem:[#allocation5 + $0x98] sm:$0xff]
        %v4349 = vld [vmem:[#allocation5 + $0xa0] sm:$0xff]
        %v4350 = vld [vmem:[#allocation5 + $0xa8] sm:$0xff]
        %v4351 = vld [vmem:[#allocation5 + $0xb0] sm:$0xff]
        %v4352 = vld [vmem:[#allocation5 + $0xb8] sm:$0xff]
        %v4353 = vld [vmem:[#allocation5 + $0xc0] sm:$0xff]
        %v4354 = vld [vmem:[#allocation5 + $0xc8] sm:$0xff]
        %v4355 = vld [vmem:[#allocation5 + $0xd0] sm:$0xff]
        %v4356 = vld [vmem:[#allocation5 + $0xd8] sm:$0xff]
        %v4357 = vld [vmem:[#allocation5 + $0xe0] sm:$0xff]
        %v4358 = vld [vmem:[#allocation5 + $0xe8] sm:$0xff]
        %v4359 = vld [vmem:[#allocation5 + $0xf0] sm:$0xff]
        %v4360 = vld [vmem:[#allocation5 + $0xf8] sm:$0xff]
        %s4361 = scalar_lea.vmem [#allocation11], 128
        %v4362 = vld [vmem:[%s4361] sm:$0xff]
        %v4363 = vld [vmem:[%s4361 + $0x8] sm:$0xff]
        %v4364 = vld [vmem:[%s4361 + $0x10] sm:$0xff]
        %v4365 = vld [vmem:[%s4361 + $0x18] sm:$0xff]
        %v4366 = vld [vmem:[%s4361 + $0x20] sm:$0xff]
        %v4367 = vld [vmem:[%s4361 + $0x28] sm:$0xff]
        %v4368 = vld [vmem:[%s4361 + $0x30] sm:$0xff]
        %v4369 = vld [vmem:[%s4361 + $0x38] sm:$0xff]
        %v4370 = vld [vmem:[%s4361 + $0x40] sm:$0xff]
        %v4371 = vld [vmem:[%s4361 + $0x48] sm:$0xff]
        %v4372 = vld [vmem:[%s4361 + $0x50] sm:$0xff]
        %v4373 = vld [vmem:[%s4361 + $0x58] sm:$0xff]
        %v4374 = vld [vmem:[%s4361 + $0x60] sm:$0xff]
        %v4375 = vld [vmem:[%s4361 + $0x68] sm:$0xff]
        %v4376 = vld [vmem:[%s4361 + $0x70] sm:$0xff]
        %v4377 = vld [vmem:[%s4361 + $0x78] sm:$0xff]
        %4378 = vmatprep.subr.mxu0 0.0
        %4379 = vmatpush1.msra.mxu0 %v4362
        %4380 = vmatprep.subr.mxu0 0.0
        %4381 = vmatpush1.msra.mxu0 %v4363
        %4382 = vmatprep.subr.mxu0 0.0
        %4383 = vmatpush1.msra.mxu0 %v4364
        %4384 = vmatprep.subr.mxu0 0.0
        %4385 = vmatpush1.msra.mxu0 %v4365
        %4386 = vmatprep.subr.mxu0 0.0
        %4387 = vmatpush1.msra.mxu0 %v4366
        %4388 = vmatprep.subr.mxu0 0.0
        %4389 = vmatpush1.msra.mxu0 %v4367
        %4390 = vmatprep.subr.mxu0 0.0
        %4391 = vmatpush1.msra.mxu0 %v4368
        %4392 = vmatprep.subr.mxu0 0.0
        %4393 = vmatpush1.msra.mxu0 %v4369
        %4394 = vmatprep.subr.mxu0 0.0
        %4395 = vmatpush1.msra.mxu0 %v4370
        %4396 = vmatprep.subr.mxu0 0.0
        %4397 = vmatpush1.msra.mxu0 %v4371
        %4398 = vmatprep.subr.mxu0 0.0
        %4399 = vmatpush1.msra.mxu0 %v4372
        %4400 = vmatprep.subr.mxu0 0.0
        %4401 = vmatpush1.msra.mxu0 %v4373
        %4402 = vmatprep.subr.mxu0 0.0
        %4403 = vmatpush1.msra.mxu0 %v4374
        %4404 = vmatprep.subr.mxu0 0.0
        %4405 = vmatpush1.msra.mxu0 %v4375
        %4406 = vmatprep.subr.mxu0 0.0
        %4407 = vmatpush1.msra.mxu0 %v4376
        %4408 = vmatprep.subr.mxu0 0.0
        %4409 = vmatpush1.msra.mxu0 %v4377
        %4410 = vmatprep.subr.mxu0 0.0
        %4411 = vmatpush1.msra.mxu0 0.0
        %4412 = vmatprep.subr.mxu0 0.0
        %4413 = vmatpush1.msra.mxu0 0.0
        %4414 = vmatprep.subr.mxu0 0.0
        %4415 = vmatpush1.msra.mxu0 0.0
        %4416 = vmatprep.subr.mxu0 0.0
        %4417 = vmatpush1.msra.mxu0 0.0
        %4418 = vmatprep.subr.mxu0 0.0
        %4419 = vmatpush1.msra.mxu0 0.0
        %4420 = vmatprep.subr.mxu0 0.0
        %4421 = vmatpush1.msra.mxu0 0.0
        %4422 = vmatprep.subr.mxu0 0.0
        %4423 = vmatpush1.msra.mxu0 0.0
        %4424 = vmatprep.subr.mxu0 0.0
        %4425 = vmatpush1.msra.mxu0 0.0
        %4426 = vmatprep.subr.mxu0 0.0
        %4427 = vmatpush1.msra.mxu0 0.0
        %4428 = vmatprep.subr.mxu0 0.0
        %4429 = vmatpush1.msra.mxu0 0.0
        %4430 = vmatprep.subr.mxu0 0.0
        %4431 = vmatpush1.msra.mxu0 0.0
        %4432 = vmatprep.subr.mxu0 0.0
        %4433 = vmatpush1.msra.mxu0 0.0
        %4434 = vmatprep.subr.mxu0 0.0
        %4435 = vmatpush1.msra.mxu0 0.0
        %4436 = vmatprep.subr.mxu0 0.0
        %4437 = vmatpush1.msra.mxu0 0.0
        %4438 = vmatprep.subr.mxu0 0.0
        %4439 = vmatpush1.msra.mxu0 0.0
        %4440 = vmatprep.subr.mxu0 0.0
        %4441 = vmatpush1.msra.mxu0 0.0
        %4442 = vmatprep.mubr.f32.mxu0 0.0
        %4443 = vmatmul.mubr.f32.gmra.mrb[0].mxu0 %v4297
        %v4444 = vpop.f32.mrb[0].mxu0
        %v4445 = vadd.f32 0.0, %v4444
        %v4446 = vpop.f32.mrb[0].mxu0
        %4447 = vmatprep.mubr.f32.mxu0 0.0
        %4448 = vmatmul.mubr.f32.gmra.mrb[0].mxu0 %v4298
        %v4449 = vpop.f32.mrb[0].mxu0
        %v4450 = vadd.f32 0.0, %v4449
        %v4451 = vpop.f32.mrb[0].mxu0
        %4452 = vmatprep.mubr.f32.mxu0 0.0
        %4453 = vmatmul.mubr.f32.gmra.mrb[0].mxu0 %v4299
        %v4454 = vpop.f32.mrb[0].mxu0
        %v4455 = vadd.f32 0.0, %v4454
        %v4456 = vpop.f32.mrb[0].mxu0
        %4457 = vmatprep.mubr.f32.mxu0 0.0
        %4458 = vmatmul.mubr.f32.gmra.mrb[0].mxu0 %v4300
        %v4459 = vpop.f32.mrb[0].mxu0
        %v4460 = vadd.f32 0.0, %v4459
        %v4461 = vpop.f32.mrb[0].mxu0
        %4462 = vmatprep.mubr.f32.mxu0 0.0
        %4463 = vmatmul.mubr.f32.gmra.mrb[0].mxu0 %v4301
        %v4464 = vpop.f32.mrb[0].mxu0
        %v4465 = vadd.f32 0.0, %v4464
        %v4466 = vpop.f32.mrb[0].mxu0
        %4467 = vmatprep.mubr.f32.mxu0 0.0
        %4468 = vmatmul.mubr.f32.gmra.mrb[0].mxu0 %v4302
        %v4469 = vpop.f32.mrb[0].mxu0
        %v4470 = vadd.f32 0.0, %v4469
        %v4471 = vpop.f32.mrb[0].mxu0
        %4472 = vmatprep.mubr.f32.mxu0 0.0
        %4473 = vmatmul.mubr.f32.gmra.mrb[0].mxu0 %v4303
        %v4474 = vpop.f32.mrb[0].mxu0
        %v4475 = vadd.f32 0.0, %v4474
        %v4476 = vpop.f32.mrb[0].mxu0
        %4477 = vmatprep.mubr.f32.mxu0 0.0
        %4478 = vmatmul.mubr.f32.gmra.mrb[0].mxu0 %v4304
        %v4479 = vpop.f32.mrb[0].mxu0
        %v4480 = vadd.f32 0.0, %v4479
        %v4481 = vpop.f32.mrb[0].mxu0
        %4482 = vmatprep.mubr.f32.mxu0 0.0
        %4483 = vmatmul.mubr.f32.gmra.mrb[0].mxu0 %v4305
        %v4484 = vpop.f32.mrb[0].mxu0
        %v4485 = vadd.f32 0.0, %v4484
        %v4486 = vpop.f32.mrb[0].mxu0
        %4487 = vmatprep.mubr.f32.mxu0 0.0
        %4488 = vmatmul.mubr.f32.gmra.mrb[0].mxu0 %v4306
        %v4489 = vpop.f32.mrb[0].mxu0
        %v4490 = vadd.f32 0.0, %v4489
        %v4491 = vpop.f32.mrb[0].mxu0
        %4492 = vmatprep.mubr.f32.mxu0 0.0
        %4493 = vmatmul.mubr.f32.gmra.mrb[0].mxu0 %v4307
        %v4494 = vpop.f32.mrb[0].mxu0
        %v4495 = vadd.f32 0.0, %v4494
        %v4496 = vpop.f32.mrb[0].mxu0
        %4497 = vmatprep.mubr.f32.mxu0 0.0
        %4498 = vmatmul.mubr.f32.gmra.mrb[0].mxu0 %v4308
        %v4499 = vpop.f32.mrb[0].mxu0
        %v4500 = vadd.f32 0.0, %v4499
        %v4501 = vpop.f32.mrb[0].mxu0
        %4502 = vmatprep.mubr.f32.mxu0 0.0
        %4503 = vmatmul.mubr.f32.gmra.mrb[0].mxu0 %v4309
        %v4504 = vpop.f32.mrb[0].mxu0
        %v4505 = vadd.f32 0.0, %v4504
        %v4506 = vpop.f32.mrb[0].mxu0
        %4507 = vmatprep.mubr.f32.mxu0 0.0
        %4508 = vmatmul.mubr.f32.gmra.mrb[0].mxu0 %v4310
        %v4509 = vpop.f32.mrb[0].mxu0
        %v4510 = vadd.f32 0.0, %v4509
        %v4511 = vpop.f32.mrb[0].mxu0
        %4512 = vmatprep.mubr.f32.mxu0 0.0
        %4513 = vmatmul.mubr.f32.gmra.mrb[0].mxu0 %v4311
        %v4514 = vpop.f32.mrb[0].mxu0
        %v4515 = vadd.f32 0.0, %v4514
        %v4516 = vpop.f32.mrb[0].mxu0
        %4517 = vmatprep.mubr.f32.mxu0 0.0
        %4518 = vmatmul.mubr.f32.gmra.mrb[0].mxu0 %v4312
        %v4519 = vpop.f32.mrb[0].mxu0
        %v4520 = vadd.f32 0.0, %v4519
        %v4521 = vpop.f32.mrb[0].mxu0
        %4522 = vmatprep.mubr.f32.mxu0 0.0
        %4523 = vmatmul.mubr.f32.gmra.mrb[0].mxu0 %v4313
        %v4524 = vpop.f32.mrb[0].mxu0
        %v4525 = vadd.f32 0.0, %v4524
        %v4526 = vpop.f32.mrb[0].mxu0
        %4527 = vmatprep.mubr.f32.mxu0 0.0
        %4528 = vmatmul.mubr.f32.gmra.mrb[0].mxu0 %v4314
        %v4529 = vpop.f32.mrb[0].mxu0
        %v4530 = vadd.f32 0.0, %v4529
        %v4531 = vpop.f32.mrb[0].mxu0
        %4532 = vmatprep.mubr.f32.mxu0 0.0
        %4533 = vmatmul.mubr.f32.gmra.mrb[0].mxu0 %v4315
        %v4534 = vpop.f32.mrb[0].mxu0
        %v4535 = vadd.f32 0.0, %v4534
        %v4536 = vpop.f32.mrb[0].mxu0
        %4537 = vmatprep.mubr.f32.mxu0 0.0
        %4538 = vmatmul.mubr.f32.gmra.mrb[0].mxu0 %v4316
        %v4539 = vpop.f32.mrb[0].mxu0
        %v4540 = vadd.f32 0.0, %v4539
        %v4541 = vpop.f32.mrb[0].mxu0
        %4542 = vmatprep.mubr.f32.mxu0 0.0
        %4543 = vmatmul.mubr.f32.gmra.mrb[0].mxu0 %v4317
        %v4544 = vpop.f32.mrb[0].mxu0
        %v4545 = vadd.f32 0.0, %v4544
        %v4546 = vpop.f32.mrb[0].mxu0
        %4547 = vmatprep.mubr.f32.mxu0 0.0
        %4548 = vmatmul.mubr.f32.gmra.mrb[0].mxu0 %v4318
        %v4549 = vpop.f32.mrb[0].mxu0
        %v4550 = vadd.f32 0.0, %v4549
        %v4551 = vpop.f32.mrb[0].mxu0
        %4552 = vmatprep.mubr.f32.mxu0 0.0
        %4553 = vmatmul.mubr.f32.gmra.mrb[0].mxu0 %v4319
        %v4554 = vpop.f32.mrb[0].mxu0
        %v4555 = vadd.f32 0.0, %v4554
        %v4556 = vpop.f32.mrb[0].mxu0
        %4557 = vmatprep.mubr.f32.mxu0 0.0
        %4558 = vmatmul.mubr.f32.gmra.mrb[0].mxu0 %v4320
        %v4559 = vpop.f32.mrb[0].mxu0
        %v4560 = vadd.f32 0.0, %v4559
        %v4561 = vpop.f32.mrb[0].mxu0
        %4562 = vmatprep.mubr.f32.mxu0 0.0
        %4563 = vmatmul.mubr.f32.gmra.mrb[0].mxu0 %v4321
        %v4564 = vpop.f32.mrb[0].mxu0
        %v4565 = vadd.f32 0.0, %v4564
        %v4566 = vpop.f32.mrb[0].mxu0
        %4567 = vmatprep.mubr.f32.mxu0 0.0
        %4568 = vmatmul.mubr.f32.gmra.mrb[0].mxu0 %v4322
        %v4569 = vpop.f32.mrb[0].mxu0
        %v4570 = vadd.f32 0.0, %v4569
        %v4571 = vpop.f32.mrb[0].mxu0
        %4572 = vmatprep.mubr.f32.mxu0 0.0
        %4573 = vmatmul.mubr.f32.gmra.mrb[0].mxu0 %v4323
        %v4574 = vpop.f32.mrb[0].mxu0
        %v4575 = vadd.f32 0.0, %v4574
        %v4576 = vpop.f32.mrb[0].mxu0
        %4577 = vmatprep.mubr.f32.mxu0 0.0
        %4578 = vmatmul.mubr.f32.gmra.mrb[0].mxu0 %v4324
        %v4579 = vpop.f32.mrb[0].mxu0
        %v4580 = vadd.f32 0.0, %v4579
        %v4581 = vpop.f32.mrb[0].mxu0
        %4582 = vmatprep.mubr.f32.mxu0 0.0
        %4583 = vmatmul.mubr.f32.gmra.mrb[0].mxu0 %v4325
        %v4584 = vpop.f32.mrb[0].mxu0
        %v4585 = vadd.f32 0.0, %v4584
        %v4586 = vpop.f32.mrb[0].mxu0
        %4587 = vmatprep.mubr.f32.mxu0 0.0
        %4588 = vmatmul.mubr.f32.gmra.mrb[0].mxu0 %v4326
        %v4589 = vpop.f32.mrb[0].mxu0
        %v4590 = vadd.f32 0.0, %v4589
        %v4591 = vpop.f32.mrb[0].mxu0
        %4592 = vmatprep.mubr.f32.mxu0 0.0
        %4593 = vmatmul.mubr.f32.gmra.mrb[0].mxu0 %v4327
        %v4594 = vpop.f32.mrb[0].mxu0
        %v4595 = vadd.f32 0.0, %v4594
        %v4596 = vpop.f32.mrb[0].mxu0
        %4597 = vmatprep.mubr.f32.mxu0 0.0
        %4598 = vmatmul.mubr.f32.gmra.mrb[0].mxu0 %v4328
        %v4599 = vpop.f32.mrb[0].mxu0
        %v4600 = vadd.f32 0.0, %v4599
        %v4601 = vpop.f32.mrb[0].mxu0
        %4602 = vdwg.mxu0
        %v4603 = vadd.f32 %v4329, %v4445
        %v4604 = vadd.f32 %v4330, %v4450
        %v4605 = vadd.f32 %v4331, %v4455
        %v4606 = vadd.f32 %v4332, %v4460
        %v4607 = vadd.f32 %v4333, %v4465
        %v4608 = vadd.f32 %v4334, %v4470
        %v4609 = vadd.f32 %v4335, %v4475
        %v4610 = vadd.f32 %v4336, %v4480
        %v4611 = vadd.f32 %v4337, %v4485
        %v4612 = vadd.f32 %v4338, %v4490
        %v4613 = vadd.f32 %v4339, %v4495
        %v4614 = vadd.f32 %v4340, %v4500
        %v4615 = vadd.f32 %v4341, %v4505
        %v4616 = vadd.f32 %v4342, %v4510
        %v4617 = vadd.f32 %v4343, %v4515
        %v4618 = vadd.f32 %v4344, %v4520
        %v4619 = vadd.f32 %v4345, %v4525
        %v4620 = vadd.f32 %v4346, %v4530
        %v4621 = vadd.f32 %v4347, %v4535
        %v4622 = vadd.f32 %v4348, %v4540
        %v4623 = vadd.f32 %v4349, %v4545
        %v4624 = vadd.f32 %v4350, %v4550
        %v4625 = vadd.f32 %v4351, %v4555
        %v4626 = vadd.f32 %v4352, %v4560
        %v4627 = vadd.f32 %v4353, %v4565
        %v4628 = vadd.f32 %v4354, %v4570
        %v4629 = vadd.f32 %v4355, %v4575
        %v4630 = vadd.f32 %v4356, %v4580
        %v4631 = vadd.f32 %v4357, %v4585
        %v4632 = vadd.f32 %v4358, %v4590
        %v4633 = vadd.f32 %v4359, %v4595
        %v4634 = vadd.f32 %v4360, %v4600
        %4635 = vst [vmem:[#allocation5] sm:$0xff] %v4603
        %4636 = vst [vmem:[#allocation5 + $0x8] sm:$0xff] %v4604
        %4637 = vst [vmem:[#allocation5 + $0x10] sm:$0xff] %v4605
        %4638 = vst [vmem:[#allocation5 + $0x18] sm:$0xff] %v4606
        %4639 = vst [vmem:[#allocation5 + $0x20] sm:$0xff] %v4607
        %4640 = vst [vmem:[#allocation5 + $0x28] sm:$0xff] %v4608
        %4641 = vst [vmem:[#allocation5 + $0x30] sm:$0xff] %v4609
        %4642 = vst [vmem:[#allocation5 + $0x38] sm:$0xff] %v4610
        %4643 = vst [vmem:[#allocation5 + $0x40] sm:$0xff] %v4611
        %4644 = vst [vmem:[#allocation5 + $0x48] sm:$0xff] %v4612
        %4645 = vst [vmem:[#allocation5 + $0x50] sm:$0xff] %v4613
        %4646 = vst [vmem:[#allocation5 + $0x58] sm:$0xff] %v4614
        %4647 = vst [vmem:[#allocation5 + $0x60] sm:$0xff] %v4615
        %4648 = vst [vmem:[#allocation5 + $0x68] sm:$0xff] %v4616
        %4649 = vst [vmem:[#allocation5 + $0x70] sm:$0xff] %v4617
        %4650 = vst [vmem:[#allocation5 + $0x78] sm:$0xff] %v4618
        %4651 = vst [vmem:[#allocation5 + $0x80] sm:$0xff] %v4619
        %4652 = vst [vmem:[#allocation5 + $0x88] sm:$0xff] %v4620
        %4653 = vst [vmem:[#allocation5 + $0x90] sm:$0xff] %v4621
        %4654 = vst [vmem:[#allocation5 + $0x98] sm:$0xff] %v4622
        %4655 = vst [vmem:[#allocation5 + $0xa0] sm:$0xff] %v4623
        %4656 = vst [vmem:[#allocation5 + $0xa8] sm:$0xff] %v4624
        %4657 = vst [vmem:[#allocation5 + $0xb0] sm:$0xff] %v4625
        %4658 = vst [vmem:[#allocation5 + $0xb8] sm:$0xff] %v4626
        %4659 = vst [vmem:[#allocation5 + $0xc0] sm:$0xff] %v4627
        %4660 = vst [vmem:[#allocation5 + $0xc8] sm:$0xff] %v4628
        %4661 = vst [vmem:[#allocation5 + $0xd0] sm:$0xff] %v4629
        %4662 = vst [vmem:[#allocation5 + $0xd8] sm:$0xff] %v4630
        %4663 = vst [vmem:[#allocation5 + $0xe0] sm:$0xff] %v4631
        %4664 = vst [vmem:[#allocation5 + $0xe8] sm:$0xff] %v4632
        %4665 = vst [vmem:[#allocation5 + $0xf0] sm:$0xff] %v4633
        %4666 = vst [vmem:[#allocation5 + $0xf8] sm:$0xff] %v4634
        %v4667 = vld [vmem:[#allocation3 + $0x2] sm:$0xff]
        %v4668 = vld [vmem:[#allocation3 + $0xa] sm:$0xff]
        %v4669 = vld [vmem:[#allocation3 + $0x1a] sm:$0xff]
        %v4670 = vld [vmem:[#allocation3 + $0x22] sm:$0xff]
        %v4671 = vld [vmem:[#allocation3 + $0x32] sm:$0xff]
        %v4672 = vld [vmem:[#allocation3 + $0x3a] sm:$0xff]
        %v4673 = vld [vmem:[#allocation3 + $0x4a] sm:$0xff]
        %v4674 = vld [vmem:[#allocation3 + $0x52] sm:$0xff]
        %v4675 = vld [vmem:[#allocation3 + $0x62] sm:$0xff]
        %v4676 = vld [vmem:[#allocation3 + $0x6a] sm:$0xff]
        %v4677 = vld [vmem:[#allocation3 + $0x7a] sm:$0xff]
        %v4678 = vld [vmem:[#allocation3 + $0x82] sm:$0xff]
        %v4679 = vld [vmem:[#allocation3 + $0x92] sm:$0xff]
        %v4680 = vld [vmem:[#allocation3 + $0x9a] sm:$0xff]
        %v4681 = vld [vmem:[#allocation3 + $0xaa] sm:$0xff]
        %v4682 = vld [vmem:[#allocation3 + $0xb2] sm:$0xff]
        %v4683 = vld [vmem:[#allocation3 + $0xc2] sm:$0xff]
        %v4684 = vld [vmem:[#allocation3 + $0xca] sm:$0xff]
        %v4685 = vld [vmem:[#allocation3 + $0xda] sm:$0xff]
        %v4686 = vld [vmem:[#allocation3 + $0xe2] sm:$0xff]
        %v4687 = vld [vmem:[#allocation3 + $0xf2] sm:$0xff]
        %v4688 = vld [vmem:[#allocation3 + $0xfa] sm:$0xff]
        %v4689 = vld [vmem:[#allocation3 + $0x10a] sm:$0xff]
        %v4690 = vld [vmem:[#allocation3 + $0x112] sm:$0xff]
        %v4691 = vld [vmem:[#allocation3 + $0x122] sm:$0xff]
        %v4692 = vld [vmem:[#allocation3 + $0x12a] sm:$0xff]
        %v4693 = vld [vmem:[#allocation3 + $0x13a] sm:$0xff]
        %v4694 = vld [vmem:[#allocation3 + $0x142] sm:$0xff]
        %v4695 = vld [vmem:[#allocation3 + $0x152] sm:$0xff]
        %v4696 = vld [vmem:[#allocation3 + $0x15a] sm:$0xff]
        %v4697 = vld [vmem:[#allocation3 + $0x16a] sm:$0xff]
        %v4698 = vld [vmem:[#allocation3 + $0x172] sm:$0xff]
        %v4699 = vld [vmem:[#allocation5] sm:$0xff]
        %v4700 = vld [vmem:[#allocation5 + $0x8] sm:$0xff]
        %v4701 = vld [vmem:[#allocation5 + $0x10] sm:$0xff]
        %v4702 = vld [vmem:[#allocation5 + $0x18] sm:$0xff]
        %v4703 = vld [vmem:[#allocation5 + $0x20] sm:$0xff]
        %v4704 = vld [vmem:[#allocation5 + $0x28] sm:$0xff]
        %v4705 = vld [vmem:[#allocation5 + $0x30] sm:$0xff]
        %v4706 = vld [vmem:[#allocation5 + $0x38] sm:$0xff]
        %v4707 = vld [vmem:[#allocation5 + $0x40] sm:$0xff]
        %v4708 = vld [vmem:[#allocation5 + $0x48] sm:$0xff]
        %v4709 = vld [vmem:[#allocation5 + $0x50] sm:$0xff]
        %v4710 = vld [vmem:[#allocation5 + $0x58] sm:$0xff]
        %v4711 = vld [vmem:[#allocation5 + $0x60] sm:$0xff]
        %v4712 = vld [vmem:[#allocation5 + $0x68] sm:$0xff]
        %v4713 = vld [vmem:[#allocation5 + $0x70] sm:$0xff]
        %v4714 = vld [vmem:[#allocation5 + $0x78] sm:$0xff]
        %v4715 = vld [vmem:[#allocation5 + $0x80] sm:$0xff]
        %v4716 = vld [vmem:[#allocation5 + $0x88] sm:$0xff]
        %v4717 = vld [vmem:[#allocation5 + $0x90] sm:$0xff]
        %v4718 = vld [vmem:[#allocation5 + $0x98] sm:$0xff]
        %v4719 = vld [vmem:[#allocation5 + $0xa0] sm:$0xff]
        %v4720 = vld [vmem:[#allocation5 + $0xa8] sm:$0xff]
        %v4721 = vld [vmem:[#allocation5 + $0xb0] sm:$0xff]
        %v4722 = vld [vmem:[#allocation5 + $0xb8] sm:$0xff]
        %v4723 = vld [vmem:[#allocation5 + $0xc0] sm:$0xff]
        %v4724 = vld [vmem:[#allocation5 + $0xc8] sm:$0xff]
        %v4725 = vld [vmem:[#allocation5 + $0xd0] sm:$0xff]
        %v4726 = vld [vmem:[#allocation5 + $0xd8] sm:$0xff]
        %v4727 = vld [vmem:[#allocation5 + $0xe0] sm:$0xff]
        %v4728 = vld [vmem:[#allocation5 + $0xe8] sm:$0xff]
        %v4729 = vld [vmem:[#allocation5 + $0xf0] sm:$0xff]
        %v4730 = vld [vmem:[#allocation5 + $0xf8] sm:$0xff]
        %s4731 = scalar_lea.vmem [#allocation11], 256
        %v4732 = vld [vmem:[%s4731] sm:$0xff]
        %v4733 = vld [vmem:[%s4731 + $0x8] sm:$0xff]
        %v4734 = vld [vmem:[%s4731 + $0x10] sm:$0xff]
        %v4735 = vld [vmem:[%s4731 + $0x18] sm:$0xff]
        %v4736 = vld [vmem:[%s4731 + $0x20] sm:$0xff]
        %v4737 = vld [vmem:[%s4731 + $0x28] sm:$0xff]
        %v4738 = vld [vmem:[%s4731 + $0x30] sm:$0xff]
        %v4739 = vld [vmem:[%s4731 + $0x38] sm:$0xff]
        %v4740 = vld [vmem:[%s4731 + $0x40] sm:$0xff]
        %v4741 = vld [vmem:[%s4731 + $0x48] sm:$0xff]
        %v4742 = vld [vmem:[%s4731 + $0x50] sm:$0xff]
        %v4743 = vld [vmem:[%s4731 + $0x58] sm:$0xff]
        %v4744 = vld [vmem:[%s4731 + $0x60] sm:$0xff]
        %v4745 = vld [vmem:[%s4731 + $0x68] sm:$0xff]
        %v4746 = vld [vmem:[%s4731 + $0x70] sm:$0xff]
        %v4747 = vld [vmem:[%s4731 + $0x78] sm:$0xff]
        %4748 = vmatprep.subr.mxu0 0.0
        %4749 = vmatpush1.msra.mxu0 %v4732
        %4750 = vmatprep.subr.mxu0 0.0
        %4751 = vmatpush1.msra.mxu0 %v4733
        %4752 = vmatprep.subr.mxu0 0.0
        %4753 = vmatpush1.msra.mxu0 %v4734
        %4754 = vmatprep.subr.mxu0 0.0
        %4755 = vmatpush1.msra.mxu0 %v4735
        %4756 = vmatprep.subr.mxu0 0.0
        %4757 = vmatpush1.msra.mxu0 %v4736
        %4758 = vmatprep.subr.mxu0 0.0
        %4759 = vmatpush1.msra.mxu0 %v4737
        %4760 = vmatprep.subr.mxu0 0.0
        %4761 = vmatpush1.msra.mxu0 %v4738
        %4762 = vmatprep.subr.mxu0 0.0
        %4763 = vmatpush1.msra.mxu0 %v4739
        %4764 = vmatprep.subr.mxu0 0.0
        %4765 = vmatpush1.msra.mxu0 %v4740
        %4766 = vmatprep.subr.mxu0 0.0
        %4767 = vmatpush1.msra.mxu0 %v4741
        %4768 = vmatprep.subr.mxu0 0.0
        %4769 = vmatpush1.msra.mxu0 %v4742
        %4770 = vmatprep.subr.mxu0 0.0
        %4771 = vmatpush1.msra.mxu0 %v4743
        %4772 = vmatprep.subr.mxu0 0.0
        %4773 = vmatpush1.msra.mxu0 %v4744
        %4774 = vmatprep.subr.mxu0 0.0
        %4775 = vmatpush1.msra.mxu0 %v4745
        %4776 = vmatprep.subr.mxu0 0.0
        %4777 = vmatpush1.msra.mxu0 %v4746
        %4778 = vmatprep.subr.mxu0 0.0
        %4779 = vmatpush1.msra.mxu0 %v4747
        %4780 = vmatprep.subr.mxu0 0.0
        %4781 = vmatpush1.msra.mxu0 0.0
        %4782 = vmatprep.subr.mxu0 0.0
        %4783 = vmatpush1.msra.mxu0 0.0
        %4784 = vmatprep.subr.mxu0 0.0
        %4785 = vmatpush1.msra.mxu0 0.0
        %4786 = vmatprep.subr.mxu0 0.0
        %4787 = vmatpush1.msra.mxu0 0.0
        %4788 = vmatprep.subr.mxu0 0.0
        %4789 = vmatpush1.msra.mxu0 0.0
        %4790 = vmatprep.subr.mxu0 0.0
        %4791 = vmatpush1.msra.mxu0 0.0
        %4792 = vmatprep.subr.mxu0 0.0
        %4793 = vmatpush1.msra.mxu0 0.0
        %4794 = vmatprep.subr.mxu0 0.0
        %4795 = vmatpush1.msra.mxu0 0.0
        %4796 = vmatprep.subr.mxu0 0.0
        %4797 = vmatpush1.msra.mxu0 0.0
        %4798 = vmatprep.subr.mxu0 0.0
        %4799 = vmatpush1.msra.mxu0 0.0
        %4800 = vmatprep.subr.mxu0 0.0
        %4801 = vmatpush1.msra.mxu0 0.0
        %4802 = vmatprep.subr.mxu0 0.0
        %4803 = vmatpush1.msra.mxu0 0.0
        %4804 = vmatprep.subr.mxu0 0.0
        %4805 = vmatpush1.msra.mxu0 0.0
        %4806 = vmatprep.subr.mxu0 0.0
        %4807 = vmatpush1.msra.mxu0 0.0
        %4808 = vmatprep.subr.mxu0 0.0
        %4809 = vmatpush1.msra.mxu0 0.0
        %4810 = vmatprep.subr.mxu0 0.0
        %4811 = vmatpush1.msra.mxu0 0.0
        %4812 = vmatprep.mubr.f32.mxu0 0.0
        %4813 = vmatmul.mubr.f32.gmra.mrb[0].mxu0 %v4667
        %v4814 = vpop.f32.mrb[0].mxu0
        %v4815 = vadd.f32 0.0, %v4814
        %v4816 = vpop.f32.mrb[0].mxu0
        %4817 = vmatprep.mubr.f32.mxu0 0.0
        %4818 = vmatmul.mubr.f32.gmra.mrb[0].mxu0 %v4668
        %v4819 = vpop.f32.mrb[0].mxu0
        %v4820 = vadd.f32 0.0, %v4819
        %v4821 = vpop.f32.mrb[0].mxu0
        %4822 = vmatprep.mubr.f32.mxu0 0.0
        %4823 = vmatmul.mubr.f32.gmra.mrb[0].mxu0 %v4669
        %v4824 = vpop.f32.mrb[0].mxu0
        %v4825 = vadd.f32 0.0, %v4824
        %v4826 = vpop.f32.mrb[0].mxu0
        %4827 = vmatprep.mubr.f32.mxu0 0.0
        %4828 = vmatmul.mubr.f32.gmra.mrb[0].mxu0 %v4670
        %v4829 = vpop.f32.mrb[0].mxu0
        %v4830 = vadd.f32 0.0, %v4829
        %v4831 = vpop.f32.mrb[0].mxu0
        %4832 = vmatprep.mubr.f32.mxu0 0.0
        %4833 = vmatmul.mubr.f32.gmra.mrb[0].mxu0 %v4671
        %v4834 = vpop.f32.mrb[0].mxu0
        %v4835 = vadd.f32 0.0, %v4834
        %v4836 = vpop.f32.mrb[0].mxu0
        %4837 = vmatprep.mubr.f32.mxu0 0.0
        %4838 = vmatmul.mubr.f32.gmra.mrb[0].mxu0 %v4672
        %v4839 = vpop.f32.mrb[0].mxu0
        %v4840 = vadd.f32 0.0, %v4839
        %v4841 = vpop.f32.mrb[0].mxu0
        %4842 = vmatprep.mubr.f32.mxu0 0.0
        %4843 = vmatmul.mubr.f32.gmra.mrb[0].mxu0 %v4673
        %v4844 = vpop.f32.mrb[0].mxu0
        %v4845 = vadd.f32 0.0, %v4844
        %v4846 = vpop.f32.mrb[0].mxu0
        %4847 = vmatprep.mubr.f32.mxu0 0.0
        %4848 = vmatmul.mubr.f32.gmra.mrb[0].mxu0 %v4674
        %v4849 = vpop.f32.mrb[0].mxu0
        %v4850 = vadd.f32 0.0, %v4849
        %v4851 = vpop.f32.mrb[0].mxu0
        %4852 = vmatprep.mubr.f32.mxu0 0.0
        %4853 = vmatmul.mubr.f32.gmra.mrb[0].mxu0 %v4675
        %v4854 = vpop.f32.mrb[0].mxu0
        %v4855 = vadd.f32 0.0, %v4854
        %v4856 = vpop.f32.mrb[0].mxu0
        %4857 = vmatprep.mubr.f32.mxu0 0.0
        %4858 = vmatmul.mubr.f32.gmra.mrb[0].mxu0 %v4676
        %v4859 = vpop.f32.mrb[0].mxu0
        %v4860 = vadd.f32 0.0, %v4859
        %v4861 = vpop.f32.mrb[0].mxu0
        %4862 = vmatprep.mubr.f32.mxu0 0.0
        %4863 = vmatmul.mubr.f32.gmra.mrb[0].mxu0 %v4677
        %v4864 = vpop.f32.mrb[0].mxu0
        %v4865 = vadd.f32 0.0, %v4864
        %v4866 = vpop.f32.mrb[0].mxu0
        %4867 = vmatprep.mubr.f32.mxu0 0.0
        %4868 = vmatmul.mubr.f32.gmra.mrb[0].mxu0 %v4678
        %v4869 = vpop.f32.mrb[0].mxu0
        %v4870 = vadd.f32 0.0, %v4869
        %v4871 = vpop.f32.mrb[0].mxu0
        %4872 = vmatprep.mubr.f32.mxu0 0.0
        %4873 = vmatmul.mubr.f32.gmra.mrb[0].mxu0 %v4679
        %v4874 = vpop.f32.mrb[0].mxu0
        %v4875 = vadd.f32 0.0, %v4874
        %v4876 = vpop.f32.mrb[0].mxu0
        %4877 = vmatprep.mubr.f32.mxu0 0.0
        %4878 = vmatmul.mubr.f32.gmra.mrb[0].mxu0 %v4680
        %v4879 = vpop.f32.mrb[0].mxu0
        %v4880 = vadd.f32 0.0, %v4879
        %v4881 = vpop.f32.mrb[0].mxu0
        %4882 = vmatprep.mubr.f32.mxu0 0.0
        %4883 = vmatmul.mubr.f32.gmra.mrb[0].mxu0 %v4681
        %v4884 = vpop.f32.mrb[0].mxu0
        %v4885 = vadd.f32 0.0, %v4884
        %v4886 = vpop.f32.mrb[0].mxu0
        %4887 = vmatprep.mubr.f32.mxu0 0.0
        %4888 = vmatmul.mubr.f32.gmra.mrb[0].mxu0 %v4682
        %v4889 = vpop.f32.mrb[0].mxu0
        %v4890 = vadd.f32 0.0, %v4889
        %v4891 = vpop.f32.mrb[0].mxu0
        %4892 = vmatprep.mubr.f32.mxu0 0.0
        %4893 = vmatmul.mubr.f32.gmra.mrb[0].mxu0 %v4683
        %v4894 = vpop.f32.mrb[0].mxu0
        %v4895 = vadd.f32 0.0, %v4894
        %v4896 = vpop.f32.mrb[0].mxu0
        %4897 = vmatprep.mubr.f32.mxu0 0.0
        %4898 = vmatmul.mubr.f32.gmra.mrb[0].mxu0 %v4684
        %v4899 = vpop.f32.mrb[0].mxu0
        %v4900 = vadd.f32 0.0, %v4899
        %v4901 = vpop.f32.mrb[0].mxu0
        %4902 = vmatprep.mubr.f32.mxu0 0.0
        %4903 = vmatmul.mubr.f32.gmra.mrb[0].mxu0 %v4685
        %v4904 = vpop.f32.mrb[0].mxu0
        %v4905 = vadd.f32 0.0, %v4904
        %v4906 = vpop.f32.mrb[0].mxu0
        %4907 = vmatprep.mubr.f32.mxu0 0.0
        %4908 = vmatmul.mubr.f32.gmra.mrb[0].mxu0 %v4686
        %v4909 = vpop.f32.mrb[0].mxu0
        %v4910 = vadd.f32 0.0, %v4909
        %v4911 = vpop.f32.mrb[0].mxu0
        %4912 = vmatprep.mubr.f32.mxu0 0.0
        %4913 = vmatmul.mubr.f32.gmra.mrb[0].mxu0 %v4687
        %v4914 = vpop.f32.mrb[0].mxu0
        %v4915 = vadd.f32 0.0, %v4914
        %v4916 = vpop.f32.mrb[0].mxu0
        %4917 = vmatprep.mubr.f32.mxu0 0.0
        %4918 = vmatmul.mubr.f32.gmra.mrb[0].mxu0 %v4688
        %v4919 = vpop.f32.mrb[0].mxu0
        %v4920 = vadd.f32 0.0, %v4919
        %v4921 = vpop.f32.mrb[0].mxu0
        %4922 = vmatprep.mubr.f32.mxu0 0.0
        %4923 = vmatmul.mubr.f32.gmra.mrb[0].mxu0 %v4689
        %v4924 = vpop.f32.mrb[0].mxu0
        %v4925 = vadd.f32 0.0, %v4924
        %v4926 = vpop.f32.mrb[0].mxu0
        %4927 = vmatprep.mubr.f32.mxu0 0.0
        %4928 = vmatmul.mubr.f32.gmra.mrb[0].mxu0 %v4690
        %v4929 = vpop.f32.mrb[0].mxu0
        %v4930 = vadd.f32 0.0, %v4929
        %v4931 = vpop.f32.mrb[0].mxu0
        %4932 = vmatprep.mubr.f32.mxu0 0.0
        %4933 = vmatmul.mubr.f32.gmra.mrb[0].mxu0 %v4691
        %v4934 = vpop.f32.mrb[0].mxu0
        %v4935 = vadd.f32 0.0, %v4934
        %v4936 = vpop.f32.mrb[0].mxu0
        %4937 = vmatprep.mubr.f32.mxu0 0.0
        %4938 = vmatmul.mubr.f32.gmra.mrb[0].mxu0 %v4692
        %v4939 = vpop.f32.mrb[0].mxu0
        %v4940 = vadd.f32 0.0, %v4939
        %v4941 = vpop.f32.mrb[0].mxu0
        %4942 = vmatprep.mubr.f32.mxu0 0.0
        %4943 = vmatmul.mubr.f32.gmra.mrb[0].mxu0 %v4693
        %v4944 = vpop.f32.mrb[0].mxu0
        %v4945 = vadd.f32 0.0, %v4944
        %v4946 = vpop.f32.mrb[0].mxu0
        %4947 = vmatprep.mubr.f32.mxu0 0.0
        %4948 = vmatmul.mubr.f32.gmra.mrb[0].mxu0 %v4694
        %v4949 = vpop.f32.mrb[0].mxu0
        %v4950 = vadd.f32 0.0, %v4949
        %v4951 = vpop.f32.mrb[0].mxu0
        %4952 = vmatprep.mubr.f32.mxu0 0.0
        %4953 = vmatmul.mubr.f32.gmra.mrb[0].mxu0 %v4695
        %v4954 = vpop.f32.mrb[0].mxu0
        %v4955 = vadd.f32 0.0, %v4954
        %v4956 = vpop.f32.mrb[0].mxu0
        %4957 = vmatprep.mubr.f32.mxu0 0.0
        %4958 = vmatmul.mubr.f32.gmra.mrb[0].mxu0 %v4696
        %v4959 = vpop.f32.mrb[0].mxu0
        %v4960 = vadd.f32 0.0, %v4959
        %v4961 = vpop.f32.mrb[0].mxu0
        %4962 = vmatprep.mubr.f32.mxu0 0.0
        %4963 = vmatmul.mubr.f32.gmra.mrb[0].mxu0 %v4697
        %v4964 = vpop.f32.mrb[0].mxu0
        %v4965 = vadd.f32 0.0, %v4964
        %v4966 = vpop.f32.mrb[0].mxu0
        %4967 = vmatprep.mubr.f32.mxu0 0.0
        %4968 = vmatmul.mubr.f32.gmra.mrb[0].mxu0 %v4698
        %v4969 = vpop.f32.mrb[0].mxu0
        %v4970 = vadd.f32 0.0, %v4969
        %v4971 = vpop.f32.mrb[0].mxu0
        %4972 = vdwg.mxu0
        %v4973 = vadd.f32 %v4699, %v4815
        %v4974 = vadd.f32 %v4700, %v4820
        %v4975 = vadd.f32 %v4701, %v4825
        %v4976 = vadd.f32 %v4702, %v4830
        %v4977 = vadd.f32 %v4703, %v4835
        %v4978 = vadd.f32 %v4704, %v4840
        %v4979 = vadd.f32 %v4705, %v4845
        %v4980 = vadd.f32 %v4706, %v4850
        %v4981 = vadd.f32 %v4707, %v4855
        %v4982 = vadd.f32 %v4708, %v4860
        %v4983 = vadd.f32 %v4709, %v4865
        %v4984 = vadd.f32 %v4710, %v4870
        %v4985 = vadd.f32 %v4711, %v4875
        %v4986 = vadd.f32 %v4712, %v4880
        %v4987 = vadd.f32 %v4713, %v4885
        %v4988 = vadd.f32 %v4714, %v4890
        %v4989 = vadd.f32 %v4715, %v4895
        %v4990 = vadd.f32 %v4716, %v4900
        %v4991 = vadd.f32 %v4717, %v4905
        %v4992 = vadd.f32 %v4718, %v4910
        %v4993 = vadd.f32 %v4719, %v4915
        %v4994 = vadd.f32 %v4720, %v4920
        %v4995 = vadd.f32 %v4721, %v4925
        %v4996 = vadd.f32 %v4722, %v4930
        %v4997 = vadd.f32 %v4723, %v4935
        %v4998 = vadd.f32 %v4724, %v4940
        %v4999 = vadd.f32 %v4725, %v4945
        %v5000 = vadd.f32 %v4726, %v4950
        %v5001 = vadd.f32 %v4727, %v4955
        %v5002 = vadd.f32 %v4728, %v4960
        %v5003 = vadd.f32 %v4729, %v4965
        %v5004 = vadd.f32 %v4730, %v4970
        %5005 = vst [vmem:[#allocation5] sm:$0xff] %v4973
        %5006 = vst [vmem:[#allocation5 + $0x8] sm:$0xff] %v4974
        %5007 = vst [vmem:[#allocation5 + $0x10] sm:$0xff] %v4975
        %5008 = vst [vmem:[#allocation5 + $0x18] sm:$0xff] %v4976
        %5009 = vst [vmem:[#allocation5 + $0x20] sm:$0xff] %v4977
        %5010 = vst [vmem:[#allocation5 + $0x28] sm:$0xff] %v4978
        %5011 = vst [vmem:[#allocation5 + $0x30] sm:$0xff] %v4979
        %5012 = vst [vmem:[#allocation5 + $0x38] sm:$0xff] %v4980
        %5013 = vst [vmem:[#allocation5 + $0x40] sm:$0xff] %v4981
        %5014 = vst [vmem:[#allocation5 + $0x48] sm:$0xff] %v4982
        %5015 = vst [vmem:[#allocation5 + $0x50] sm:$0xff] %v4983
        %5016 = vst [vmem:[#allocation5 + $0x58] sm:$0xff] %v4984
        %5017 = vst [vmem:[#allocation5 + $0x60] sm:$0xff] %v4985
        %5018 = vst [vmem:[#allocation5 + $0x68] sm:$0xff] %v4986
        %5019 = vst [vmem:[#allocation5 + $0x70] sm:$0xff] %v4987
        %5020 = vst [vmem:[#allocation5 + $0x78] sm:$0xff] %v4988
        %5021 = vst [vmem:[#allocation5 + $0x80] sm:$0xff] %v4989
        %5022 = vst [vmem:[#allocation5 + $0x88] sm:$0xff] %v4990
        %5023 = vst [vmem:[#allocation5 + $0x90] sm:$0xff] %v4991
        %5024 = vst [vmem:[#allocation5 + $0x98] sm:$0xff] %v4992
        %5025 = vst [vmem:[#allocation5 + $0xa0] sm:$0xff] %v4993
        %5026 = vst [vmem:[#allocation5 + $0xa8] sm:$0xff] %v4994
        %5027 = vst [vmem:[#allocation5 + $0xb0] sm:$0xff] %v4995
        %5028 = vst [vmem:[#allocation5 + $0xb8] sm:$0xff] %v4996
        %5029 = vst [vmem:[#allocation5 + $0xc0] sm:$0xff] %v4997
        %5030 = vst [vmem:[#allocation5 + $0xc8] sm:$0xff] %v4998
        %5031 = vst [vmem:[#allocation5 + $0xd0] sm:$0xff] %v4999
        %5032 = vst [vmem:[#allocation5 + $0xd8] sm:$0xff] %v5000
        %5033 = vst [vmem:[#allocation5 + $0xe0] sm:$0xff] %v5001
        %5034 = vst [vmem:[#allocation5 + $0xe8] sm:$0xff] %v5002
        %5035 = vst [vmem:[#allocation5 + $0xf0] sm:$0xff] %v5003
        %5036 = vst [vmem:[#allocation5 + $0xf8] sm:$0xff] %v5004
        %v5037 = vld [vmem:[%s3856] sm:$0xff]
        %v5038 = vld [vmem:[%s3856 + $0x8] sm:$0xff]
        %v5039 = vld [vmem:[%s3856 + $0x18] sm:$0xff]
        %v5040 = vld [vmem:[%s3856 + $0x20] sm:$0xff]
        %v5041 = vld [vmem:[%s3856 + $0x30] sm:$0xff]
        %v5042 = vld [vmem:[%s3856 + $0x38] sm:$0xff]
        %v5043 = vld [vmem:[%s3856 + $0x48] sm:$0xff]
        %v5044 = vld [vmem:[%s3856 + $0x50] sm:$0xff]
        %v5045 = vld [vmem:[%s3856 + $0x60] sm:$0xff]
        %v5046 = vld [vmem:[%s3856 + $0x68] sm:$0xff]
        %v5047 = vld [vmem:[%s3856 + $0x78] sm:$0xff]
        %v5048 = vld [vmem:[%s3856 + $0x80] sm:$0xff]
        %v5049 = vld [vmem:[%s3856 + $0x90] sm:$0xff]
        %v5050 = vld [vmem:[%s3856 + $0x98] sm:$0xff]
        %v5051 = vld [vmem:[%s3856 + $0xa8] sm:$0xff]
        %v5052 = vld [vmem:[%s3856 + $0xb0] sm:$0xff]
        %v5053 = vld [vmem:[%s3856 + $0xc0] sm:$0xff]
        %v5054 = vld [vmem:[%s3856 + $0xc8] sm:$0xff]
        %v5055 = vld [vmem:[%s3856 + $0xd8] sm:$0xff]
        %v5056 = vld [vmem:[%s3856 + $0xe0] sm:$0xff]
        %v5057 = vld [vmem:[%s3856 + $0xf0] sm:$0xff]
        %v5058 = vld [vmem:[%s3856 + $0xf8] sm:$0xff]
        %v5059 = vld [vmem:[%s3856 + $0x108] sm:$0xff]
        %v5060 = vld [vmem:[%s3856 + $0x110] sm:$0xff]
        %v5061 = vld [vmem:[%s3856 + $0x120] sm:$0xff]
        %v5062 = vld [vmem:[%s3856 + $0x128] sm:$0xff]
        %v5063 = vld [vmem:[%s3856 + $0x138] sm:$0xff]
        %v5064 = vld [vmem:[%s3856 + $0x140] sm:$0xff]
        %v5065 = vld [vmem:[%s3856 + $0x150] sm:$0xff]
        %v5066 = vld [vmem:[%s3856 + $0x158] sm:$0xff]
        %v5067 = vld [vmem:[%s3856 + $0x168] sm:$0xff]
        %v5068 = vld [vmem:[%s3856 + $0x170] sm:$0xff]
        %v5069 = vld [vmem:[#allocation5] sm:$0xff]
        %v5070 = vld [vmem:[#allocation5 + $0x8] sm:$0xff]
        %v5071 = vld [vmem:[#allocation5 + $0x10] sm:$0xff]
        %v5072 = vld [vmem:[#allocation5 + $0x18] sm:$0xff]
        %v5073 = vld [vmem:[#allocation5 + $0x20] sm:$0xff]
        %v5074 = vld [vmem:[#allocation5 + $0x28] sm:$0xff]
        %v5075 = vld [vmem:[#allocation5 + $0x30] sm:$0xff]
        %v5076 = vld [vmem:[#allocation5 + $0x38] sm:$0xff]
        %v5077 = vld [vmem:[#allocation5 + $0x40] sm:$0xff]
        %v5078 = vld [vmem:[#allocation5 + $0x48] sm:$0xff]
        %v5079 = vld [vmem:[#allocation5 + $0x50] sm:$0xff]
        %v5080 = vld [vmem:[#allocation5 + $0x58] sm:$0xff]
        %v5081 = vld [vmem:[#allocation5 + $0x60] sm:$0xff]
        %v5082 = vld [vmem:[#allocation5 + $0x68] sm:$0xff]
        %v5083 = vld [vmem:[#allocation5 + $0x70] sm:$0xff]
        %v5084 = vld [vmem:[#allocation5 + $0x78] sm:$0xff]
        %v5085 = vld [vmem:[#allocation5 + $0x80] sm:$0xff]
        %v5086 = vld [vmem:[#allocation5 + $0x88] sm:$0xff]
        %v5087 = vld [vmem:[#allocation5 + $0x90] sm:$0xff]
        %v5088 = vld [vmem:[#allocation5 + $0x98] sm:$0xff]
        %v5089 = vld [vmem:[#allocation5 + $0xa0] sm:$0xff]
        %v5090 = vld [vmem:[#allocation5 + $0xa8] sm:$0xff]
        %v5091 = vld [vmem:[#allocation5 + $0xb0] sm:$0xff]
        %v5092 = vld [vmem:[#allocation5 + $0xb8] sm:$0xff]
        %v5093 = vld [vmem:[#allocation5 + $0xc0] sm:$0xff]
        %v5094 = vld [vmem:[#allocation5 + $0xc8] sm:$0xff]
        %v5095 = vld [vmem:[#allocation5 + $0xd0] sm:$0xff]
        %v5096 = vld [vmem:[#allocation5 + $0xd8] sm:$0xff]
        %v5097 = vld [vmem:[#allocation5 + $0xe0] sm:$0xff]
        %v5098 = vld [vmem:[#allocation5 + $0xe8] sm:$0xff]
        %v5099 = vld [vmem:[#allocation5 + $0xf0] sm:$0xff]
        %v5100 = vld [vmem:[#allocation5 + $0xf8] sm:$0xff]
        %s5101 = scalar_lea.vmem [#allocation11], 384
        %v5102 = vld [vmem:[%s5101] sm:$0xff]
        %v5103 = vld [vmem:[%s5101 + $0x8] sm:$0xff]
        %v5104 = vld [vmem:[%s5101 + $0x10] sm:$0xff]
        %v5105 = vld [vmem:[%s5101 + $0x18] sm:$0xff]
        %v5106 = vld [vmem:[%s5101 + $0x20] sm:$0xff]
        %v5107 = vld [vmem:[%s5101 + $0x28] sm:$0xff]
        %v5108 = vld [vmem:[%s5101 + $0x30] sm:$0xff]
        %v5109 = vld [vmem:[%s5101 + $0x38] sm:$0xff]
        %v5110 = vld [vmem:[%s5101 + $0x40] sm:$0xff]
        %v5111 = vld [vmem:[%s5101 + $0x48] sm:$0xff]
        %v5112 = vld [vmem:[%s5101 + $0x50] sm:$0xff]
        %v5113 = vld [vmem:[%s5101 + $0x58] sm:$0xff]
        %v5114 = vld [vmem:[%s5101 + $0x60] sm:$0xff]
        %v5115 = vld [vmem:[%s5101 + $0x68] sm:$0xff]
        %v5116 = vld [vmem:[%s5101 + $0x70] sm:$0xff]
        %v5117 = vld [vmem:[%s5101 + $0x78] sm:$0xff]
        %5118 = vmatprep.subr.mxu0 0.0
        %5119 = vmatpush1.msra.mxu0 %v5102
        %5120 = vmatprep.subr.mxu0 0.0
        %5121 = vmatpush1.msra.mxu0 %v5103
        %5122 = vmatprep.subr.mxu0 0.0
        %5123 = vmatpush1.msra.mxu0 %v5104
        %5124 = vmatprep.subr.mxu0 0.0
        %5125 = vmatpush1.msra.mxu0 %v5105
        %5126 = vmatprep.subr.mxu0 0.0
        %5127 = vmatpush1.msra.mxu0 %v5106
        %5128 = vmatprep.subr.mxu0 0.0
        %5129 = vmatpush1.msra.mxu0 %v5107
        %5130 = vmatprep.subr.mxu0 0.0
        %5131 = vmatpush1.msra.mxu0 %v5108
        %5132 = vmatprep.subr.mxu0 0.0
        %5133 = vmatpush1.msra.mxu0 %v5109
        %5134 = vmatprep.subr.mxu0 0.0
        %5135 = vmatpush1.msra.mxu0 %v5110
        %5136 = vmatprep.subr.mxu0 0.0
        %5137 = vmatpush1.msra.mxu0 %v5111
        %5138 = vmatprep.subr.mxu0 0.0
        %5139 = vmatpush1.msra.mxu0 %v5112
        %5140 = vmatprep.subr.mxu0 0.0
        %5141 = vmatpush1.msra.mxu0 %v5113
        %5142 = vmatprep.subr.mxu0 0.0
        %5143 = vmatpush1.msra.mxu0 %v5114
        %5144 = vmatprep.subr.mxu0 0.0
        %5145 = vmatpush1.msra.mxu0 %v5115
        %5146 = vmatprep.subr.mxu0 0.0
        %5147 = vmatpush1.msra.mxu0 %v5116
        %5148 = vmatprep.subr.mxu0 0.0
        %5149 = vmatpush1.msra.mxu0 %v5117
        %5150 = vmatprep.subr.mxu0 0.0
        %5151 = vmatpush1.msra.mxu0 0.0
        %5152 = vmatprep.subr.mxu0 0.0
        %5153 = vmatpush1.msra.mxu0 0.0
        %5154 = vmatprep.subr.mxu0 0.0
        %5155 = vmatpush1.msra.mxu0 0.0
        %5156 = vmatprep.subr.mxu0 0.0
        %5157 = vmatpush1.msra.mxu0 0.0
        %5158 = vmatprep.subr.mxu0 0.0
        %5159 = vmatpush1.msra.mxu0 0.0
        %5160 = vmatprep.subr.mxu0 0.0
        %5161 = vmatpush1.msra.mxu0 0.0
        %5162 = vmatprep.subr.mxu0 0.0
        %5163 = vmatpush1.msra.mxu0 0.0
        %5164 = vmatprep.subr.mxu0 0.0
        %5165 = vmatpush1.msra.mxu0 0.0
        %5166 = vmatprep.subr.mxu0 0.0
        %5167 = vmatpush1.msra.mxu0 0.0
        %5168 = vmatprep.subr.mxu0 0.0
        %5169 = vmatpush1.msra.mxu0 0.0
        %5170 = vmatprep.subr.mxu0 0.0
        %5171 = vmatpush1.msra.mxu0 0.0
        %5172 = vmatprep.subr.mxu0 0.0
        %5173 = vmatpush1.msra.mxu0 0.0
        %5174 = vmatprep.subr.mxu0 0.0
        %5175 = vmatpush1.msra.mxu0 0.0
        %5176 = vmatprep.subr.mxu0 0.0
        %5177 = vmatpush1.msra.mxu0 0.0
        %5178 = vmatprep.subr.mxu0 0.0
        %5179 = vmatpush1.msra.mxu0 0.0
        %5180 = vmatprep.subr.mxu0 0.0
        %5181 = vmatpush1.msra.mxu0 0.0
        %5182 = vmatprep.mubr.f32.mxu0 0.0
        %5183 = vmatmul.mubr.f32.gmra.mrb[0].mxu0 %v5037
        %v5184 = vpop.f32.mrb[0].mxu0
        %v5185 = vadd.f32 0.0, %v5184
        %v5186 = vpop.f32.mrb[0].mxu0
        %5187 = vmatprep.mubr.f32.mxu0 0.0
        %5188 = vmatmul.mubr.f32.gmra.mrb[0].mxu0 %v5038
        %v5189 = vpop.f32.mrb[0].mxu0
        %v5190 = vadd.f32 0.0, %v5189
        %v5191 = vpop.f32.mrb[0].mxu0
        %5192 = vmatprep.mubr.f32.mxu0 0.0
        %5193 = vmatmul.mubr.f32.gmra.mrb[0].mxu0 %v5039
        %v5194 = vpop.f32.mrb[0].mxu0
        %v5195 = vadd.f32 0.0, %v5194
        %v5196 = vpop.f32.mrb[0].mxu0
        %5197 = vmatprep.mubr.f32.mxu0 0.0
        %5198 = vmatmul.mubr.f32.gmra.mrb[0].mxu0 %v5040
        %v5199 = vpop.f32.mrb[0].mxu0
        %v5200 = vadd.f32 0.0, %v5199
        %v5201 = vpop.f32.mrb[0].mxu0
        %5202 = vmatprep.mubr.f32.mxu0 0.0
        %5203 = vmatmul.mubr.f32.gmra.mrb[0].mxu0 %v5041
        %v5204 = vpop.f32.mrb[0].mxu0
        %v5205 = vadd.f32 0.0, %v5204
        %v5206 = vpop.f32.mrb[0].mxu0
        %5207 = vmatprep.mubr.f32.mxu0 0.0
        %5208 = vmatmul.mubr.f32.gmra.mrb[0].mxu0 %v5042
        %v5209 = vpop.f32.mrb[0].mxu0
        %v5210 = vadd.f32 0.0, %v5209
        %v5211 = vpop.f32.mrb[0].mxu0
        %5212 = vmatprep.mubr.f32.mxu0 0.0
        %5213 = vmatmul.mubr.f32.gmra.mrb[0].mxu0 %v5043
        %v5214 = vpop.f32.mrb[0].mxu0
        %v5215 = vadd.f32 0.0, %v5214
        %v5216 = vpop.f32.mrb[0].mxu0
        %5217 = vmatprep.mubr.f32.mxu0 0.0
        %5218 = vmatmul.mubr.f32.gmra.mrb[0].mxu0 %v5044
        %v5219 = vpop.f32.mrb[0].mxu0
        %v5220 = vadd.f32 0.0, %v5219
        %v5221 = vpop.f32.mrb[0].mxu0
        %5222 = vmatprep.mubr.f32.mxu0 0.0
        %5223 = vmatmul.mubr.f32.gmra.mrb[0].mxu0 %v5045
        %v5224 = vpop.f32.mrb[0].mxu0
        %v5225 = vadd.f32 0.0, %v5224
        %v5226 = vpop.f32.mrb[0].mxu0
        %5227 = vmatprep.mubr.f32.mxu0 0.0
        %5228 = vmatmul.mubr.f32.gmra.mrb[0].mxu0 %v5046
        %v5229 = vpop.f32.mrb[0].mxu0
        %v5230 = vadd.f32 0.0, %v5229
        %v5231 = vpop.f32.mrb[0].mxu0
        %5232 = vmatprep.mubr.f32.mxu0 0.0
        %5233 = vmatmul.mubr.f32.gmra.mrb[0].mxu0 %v5047
        %v5234 = vpop.f32.mrb[0].mxu0
        %v5235 = vadd.f32 0.0, %v5234
        %v5236 = vpop.f32.mrb[0].mxu0
        %5237 = vmatprep.mubr.f32.mxu0 0.0
        %5238 = vmatmul.mubr.f32.gmra.mrb[0].mxu0 %v5048
        %v5239 = vpop.f32.mrb[0].mxu0
        %v5240 = vadd.f32 0.0, %v5239
        %v5241 = vpop.f32.mrb[0].mxu0
        %5242 = vmatprep.mubr.f32.mxu0 0.0
        %5243 = vmatmul.mubr.f32.gmra.mrb[0].mxu0 %v5049
        %v5244 = vpop.f32.mrb[0].mxu0
        %v5245 = vadd.f32 0.0, %v5244
        %v5246 = vpop.f32.mrb[0].mxu0
        %5247 = vmatprep.mubr.f32.mxu0 0.0
        %5248 = vmatmul.mubr.f32.gmra.mrb[0].mxu0 %v5050
        %v5249 = vpop.f32.mrb[0].mxu0
        %v5250 = vadd.f32 0.0, %v5249
        %v5251 = vpop.f32.mrb[0].mxu0
        %5252 = vmatprep.mubr.f32.mxu0 0.0
        %5253 = vmatmul.mubr.f32.gmra.mrb[0].mxu0 %v5051
        %v5254 = vpop.f32.mrb[0].mxu0
        %v5255 = vadd.f32 0.0, %v5254
        %v5256 = vpop.f32.mrb[0].mxu0
        %5257 = vmatprep.mubr.f32.mxu0 0.0
        %5258 = vmatmul.mubr.f32.gmra.mrb[0].mxu0 %v5052
        %v5259 = vpop.f32.mrb[0].mxu0
        %v5260 = vadd.f32 0.0, %v5259
        %v5261 = vpop.f32.mrb[0].mxu0
        %5262 = vmatprep.mubr.f32.mxu0 0.0
        %5263 = vmatmul.mubr.f32.gmra.mrb[0].mxu0 %v5053
        %v5264 = vpop.f32.mrb[0].mxu0
        %v5265 = vadd.f32 0.0, %v5264
        %v5266 = vpop.f32.mrb[0].mxu0
        %5267 = vmatprep.mubr.f32.mxu0 0.0
        %5268 = vmatmul.mubr.f32.gmra.mrb[0].mxu0 %v5054
        %v5269 = vpop.f32.mrb[0].mxu0
        %v5270 = vadd.f32 0.0, %v5269
        %v5271 = vpop.f32.mrb[0].mxu0
        %5272 = vmatprep.mubr.f32.mxu0 0.0
        %5273 = vmatmul.mubr.f32.gmra.mrb[0].mxu0 %v5055
        %v5274 = vpop.f32.mrb[0].mxu0
        %v5275 = vadd.f32 0.0, %v5274
        %v5276 = vpop.f32.mrb[0].mxu0
        %5277 = vmatprep.mubr.f32.mxu0 0.0
        %5278 = vmatmul.mubr.f32.gmra.mrb[0].mxu0 %v5056
        %v5279 = vpop.f32.mrb[0].mxu0
        %v5280 = vadd.f32 0.0, %v5279
        %v5281 = vpop.f32.mrb[0].mxu0
        %5282 = vmatprep.mubr.f32.mxu0 0.0
        %5283 = vmatmul.mubr.f32.gmra.mrb[0].mxu0 %v5057
        %v5284 = vpop.f32.mrb[0].mxu0
        %v5285 = vadd.f32 0.0, %v5284
        %v5286 = vpop.f32.mrb[0].mxu0
        %5287 = vmatprep.mubr.f32.mxu0 0.0
        %5288 = vmatmul.mubr.f32.gmra.mrb[0].mxu0 %v5058
        %v5289 = vpop.f32.mrb[0].mxu0
        %v5290 = vadd.f32 0.0, %v5289
        %v5291 = vpop.f32.mrb[0].mxu0
        %5292 = vmatprep.mubr.f32.mxu0 0.0
        %5293 = vmatmul.mubr.f32.gmra.mrb[0].mxu0 %v5059
        %v5294 = vpop.f32.mrb[0].mxu0
        %v5295 = vadd.f32 0.0, %v5294
        %v5296 = vpop.f32.mrb[0].mxu0
        %5297 = vmatprep.mubr.f32.mxu0 0.0
        %5298 = vmatmul.mubr.f32.gmra.mrb[0].mxu0 %v5060
        %v5299 = vpop.f32.mrb[0].mxu0
        %v5300 = vadd.f32 0.0, %v5299
        %v5301 = vpop.f32.mrb[0].mxu0
        %5302 = vmatprep.mubr.f32.mxu0 0.0
        %5303 = vmatmul.mubr.f32.gmra.mrb[0].mxu0 %v5061
        %v5304 = vpop.f32.mrb[0].mxu0
        %v5305 = vadd.f32 0.0, %v5304
        %v5306 = vpop.f32.mrb[0].mxu0
        %5307 = vmatprep.mubr.f32.mxu0 0.0
        %5308 = vmatmul.mubr.f32.gmra.mrb[0].mxu0 %v5062
        %v5309 = vpop.f32.mrb[0].mxu0
        %v5310 = vadd.f32 0.0, %v5309
        %v5311 = vpop.f32.mrb[0].mxu0
        %5312 = vmatprep.mubr.f32.mxu0 0.0
        %5313 = vmatmul.mubr.f32.gmra.mrb[0].mxu0 %v5063
        %v5314 = vpop.f32.mrb[0].mxu0
        %v5315 = vadd.f32 0.0, %v5314
        %v5316 = vpop.f32.mrb[0].mxu0
        %5317 = vmatprep.mubr.f32.mxu0 0.0
        %5318 = vmatmul.mubr.f32.gmra.mrb[0].mxu0 %v5064
        %v5319 = vpop.f32.mrb[0].mxu0
        %v5320 = vadd.f32 0.0, %v5319
        %v5321 = vpop.f32.mrb[0].mxu0
        %5322 = vmatprep.mubr.f32.mxu0 0.0
        %5323 = vmatmul.mubr.f32.gmra.mrb[0].mxu0 %v5065
        %v5324 = vpop.f32.mrb[0].mxu0
        %v5325 = vadd.f32 0.0, %v5324
        %v5326 = vpop.f32.mrb[0].mxu0
        %5327 = vmatprep.mubr.f32.mxu0 0.0
        %5328 = vmatmul.mubr.f32.gmra.mrb[0].mxu0 %v5066
        %v5329 = vpop.f32.mrb[0].mxu0
        %v5330 = vadd.f32 0.0, %v5329
        %v5331 = vpop.f32.mrb[0].mxu0
        %5332 = vmatprep.mubr.f32.mxu0 0.0
        %5333 = vmatmul.mubr.f32.gmra.mrb[0].mxu0 %v5067
        %v5334 = vpop.f32.mrb[0].mxu0
        %v5335 = vadd.f32 0.0, %v5334
        %v5336 = vpop.f32.mrb[0].mxu0
        %5337 = vmatprep.mubr.f32.mxu0 0.0
        %5338 = vmatmul.mubr.f32.gmra.mrb[0].mxu0 %v5068
        %v5339 = vpop.f32.mrb[0].mxu0
        %v5340 = vadd.f32 0.0, %v5339
        %v5341 = vpop.f32.mrb[0].mxu0
        %5342 = vdwg.mxu0
        %v5343 = vadd.f32 %v5069, %v5185
        %v5344 = vadd.f32 %v5070, %v5190
        %v5345 = vadd.f32 %v5071, %v5195
        %v5346 = vadd.f32 %v5072, %v5200
        %v5347 = vadd.f32 %v5073, %v5205
        %v5348 = vadd.f32 %v5074, %v5210
        %v5349 = vadd.f32 %v5075, %v5215
        %v5350 = vadd.f32 %v5076, %v5220
        %v5351 = vadd.f32 %v5077, %v5225
        %v5352 = vadd.f32 %v5078, %v5230
        %v5353 = vadd.f32 %v5079, %v5235
        %v5354 = vadd.f32 %v5080, %v5240
        %v5355 = vadd.f32 %v5081, %v5245
        %v5356 = vadd.f32 %v5082, %v5250
        %v5357 = vadd.f32 %v5083, %v5255
        %v5358 = vadd.f32 %v5084, %v5260
        %v5359 = vadd.f32 %v5085, %v5265
        %v5360 = vadd.f32 %v5086, %v5270
        %v5361 = vadd.f32 %v5087, %v5275
        %v5362 = vadd.f32 %v5088, %v5280
        %v5363 = vadd.f32 %v5089, %v5285
        %v5364 = vadd.f32 %v5090, %v5290
        %v5365 = vadd.f32 %v5091, %v5295
        %v5366 = vadd.f32 %v5092, %v5300
        %v5367 = vadd.f32 %v5093, %v5305
        %v5368 = vadd.f32 %v5094, %v5310
        %v5369 = vadd.f32 %v5095, %v5315
        %v5370 = vadd.f32 %v5096, %v5320
        %v5371 = vadd.f32 %v5097, %v5325
        %v5372 = vadd.f32 %v5098, %v5330
        %v5373 = vadd.f32 %v5099, %v5335
        %v5374 = vadd.f32 %v5100, %v5340
        %5375 = vst [vmem:[#allocation5] sm:$0xff] %v5343
        %5376 = vst [vmem:[#allocation5 + $0x8] sm:$0xff] %v5344
        %5377 = vst [vmem:[#allocation5 + $0x10] sm:$0xff] %v5345
        %5378 = vst [vmem:[#allocation5 + $0x18] sm:$0xff] %v5346
        %5379 = vst [vmem:[#allocation5 + $0x20] sm:$0xff] %v5347
        %5380 = vst [vmem:[#allocation5 + $0x28] sm:$0xff] %v5348
        %5381 = vst [vmem:[#allocation5 + $0x30] sm:$0xff] %v5349
        %5382 = vst [vmem:[#allocation5 + $0x38] sm:$0xff] %v5350
        %5383 = vst [vmem:[#allocation5 + $0x40] sm:$0xff] %v5351
        %5384 = vst [vmem:[#allocation5 + $0x48] sm:$0xff] %v5352
        %5385 = vst [vmem:[#allocation5 + $0x50] sm:$0xff] %v5353
        %5386 = vst [vmem:[#allocation5 + $0x58] sm:$0xff] %v5354
        %5387 = vst [vmem:[#allocation5 + $0x60] sm:$0xff] %v5355
        %5388 = vst [vmem:[#allocation5 + $0x68] sm:$0xff] %v5356
        %5389 = vst [vmem:[#allocation5 + $0x70] sm:$0xff] %v5357
        %5390 = vst [vmem:[#allocation5 + $0x78] sm:$0xff] %v5358
        %5391 = vst [vmem:[#allocation5 + $0x80] sm:$0xff] %v5359
        %5392 = vst [vmem:[#allocation5 + $0x88] sm:$0xff] %v5360
        %5393 = vst [vmem:[#allocation5 + $0x90] sm:$0xff] %v5361
        %5394 = vst [vmem:[#allocation5 + $0x98] sm:$0xff] %v5362
        %5395 = vst [vmem:[#allocation5 + $0xa0] sm:$0xff] %v5363
        %5396 = vst [vmem:[#allocation5 + $0xa8] sm:$0xff] %v5364
        %5397 = vst [vmem:[#allocation5 + $0xb0] sm:$0xff] %v5365
        %5398 = vst [vmem:[#allocation5 + $0xb8] sm:$0xff] %v5366
        %5399 = vst [vmem:[#allocation5 + $0xc0] sm:$0xff] %v5367
        %5400 = vst [vmem:[#allocation5 + $0xc8] sm:$0xff] %v5368
        %5401 = vst [vmem:[#allocation5 + $0xd0] sm:$0xff] %v5369
        %5402 = vst [vmem:[#allocation5 + $0xd8] sm:$0xff] %v5370
        %5403 = vst [vmem:[#allocation5 + $0xe0] sm:$0xff] %v5371
        %5404 = vst [vmem:[#allocation5 + $0xe8] sm:$0xff] %v5372
        %5405 = vst [vmem:[#allocation5 + $0xf0] sm:$0xff] %v5373
        %5406 = vst [vmem:[#allocation5 + $0xf8] sm:$0xff] %v5374
        %v5407 = vld [vmem:[%s3856 + $0x1] sm:$0xff]
        %v5408 = vld [vmem:[%s3856 + $0x9] sm:$0xff]
        %v5409 = vld [vmem:[%s3856 + $0x19] sm:$0xff]
        %v5410 = vld [vmem:[%s3856 + $0x21] sm:$0xff]
        %v5411 = vld [vmem:[%s3856 + $0x31] sm:$0xff]
        %v5412 = vld [vmem:[%s3856 + $0x39] sm:$0xff]
        %v5413 = vld [vmem:[%s3856 + $0x49] sm:$0xff]
        %v5414 = vld [vmem:[%s3856 + $0x51] sm:$0xff]
        %v5415 = vld [vmem:[%s3856 + $0x61] sm:$0xff]
        %v5416 = vld [vmem:[%s3856 + $0x69] sm:$0xff]
        %v5417 = vld [vmem:[%s3856 + $0x79] sm:$0xff]
        %v5418 = vld [vmem:[%s3856 + $0x81] sm:$0xff]
        %v5419 = vld [vmem:[%s3856 + $0x91] sm:$0xff]
        %v5420 = vld [vmem:[%s3856 + $0x99] sm:$0xff]
        %v5421 = vld [vmem:[%s3856 + $0xa9] sm:$0xff]
        %v5422 = vld [vmem:[%s3856 + $0xb1] sm:$0xff]
        %v5423 = vld [vmem:[%s3856 + $0xc1] sm:$0xff]
        %v5424 = vld [vmem:[%s3856 + $0xc9] sm:$0xff]
        %v5425 = vld [vmem:[%s3856 + $0xd9] sm:$0xff]
        %v5426 = vld [vmem:[%s3856 + $0xe1] sm:$0xff]
        %v5427 = vld [vmem:[%s3856 + $0xf1] sm:$0xff]
        %v5428 = vld [vmem:[%s3856 + $0xf9] sm:$0xff]
        %v5429 = vld [vmem:[%s3856 + $0x109] sm:$0xff]
        %v5430 = vld [vmem:[%s3856 + $0x111] sm:$0xff]
        %v5431 = vld [vmem:[%s3856 + $0x121] sm:$0xff]
        %v5432 = vld [vmem:[%s3856 + $0x129] sm:$0xff]
        %v5433 = vld [vmem:[%s3856 + $0x139] sm:$0xff]
        %v5434 = vld [vmem:[%s3856 + $0x141] sm:$0xff]
        %v5435 = vld [vmem:[%s3856 + $0x151] sm:$0xff]
        %v5436 = vld [vmem:[%s3856 + $0x159] sm:$0xff]
        %v5437 = vld [vmem:[%s3856 + $0x169] sm:$0xff]
        %v5438 = vld [vmem:[%s3856 + $0x171] sm:$0xff]
        %v5439 = vld [vmem:[#allocation5] sm:$0xff]
        %v5440 = vld [vmem:[#allocation5 + $0x8] sm:$0xff]
        %v5441 = vld [vmem:[#allocation5 + $0x10] sm:$0xff]
        %v5442 = vld [vmem:[#allocation5 + $0x18] sm:$0xff]
        %v5443 = vld [vmem:[#allocation5 + $0x20] sm:$0xff]
        %v5444 = vld [vmem:[#allocation5 + $0x28] sm:$0xff]
        %v5445 = vld [vmem:[#allocation5 + $0x30] sm:$0xff]
        %v5446 = vld [vmem:[#allocation5 + $0x38] sm:$0xff]
        %v5447 = vld [vmem:[#allocation5 + $0x40] sm:$0xff]
        %v5448 = vld [vmem:[#allocation5 + $0x48] sm:$0xff]
        %v5449 = vld [vmem:[#allocation5 + $0x50] sm:$0xff]
        %v5450 = vld [vmem:[#allocation5 + $0x58] sm:$0xff]
        %v5451 = vld [vmem:[#allocation5 + $0x60] sm:$0xff]
        %v5452 = vld [vmem:[#allocation5 + $0x68] sm:$0xff]
        %v5453 = vld [vmem:[#allocation5 + $0x70] sm:$0xff]
        %v5454 = vld [vmem:[#allocation5 + $0x78] sm:$0xff]
        %v5455 = vld [vmem:[#allocation5 + $0x80] sm:$0xff]
        %v5456 = vld [vmem:[#allocation5 + $0x88] sm:$0xff]
        %v5457 = vld [vmem:[#allocation5 + $0x90] sm:$0xff]
        %v5458 = vld [vmem:[#allocation5 + $0x98] sm:$0xff]
        %v5459 = vld [vmem:[#allocation5 + $0xa0] sm:$0xff]
        %v5460 = vld [vmem:[#allocation5 + $0xa8] sm:$0xff]
        %v5461 = vld [vmem:[#allocation5 + $0xb0] sm:$0xff]
        %v5462 = vld [vmem:[#allocation5 + $0xb8] sm:$0xff]
        %v5463 = vld [vmem:[#allocation5 + $0xc0] sm:$0xff]
        %v5464 = vld [vmem:[#allocation5 + $0xc8] sm:$0xff]
        %v5465 = vld [vmem:[#allocation5 + $0xd0] sm:$0xff]
        %v5466 = vld [vmem:[#allocation5 + $0xd8] sm:$0xff]
        %v5467 = vld [vmem:[#allocation5 + $0xe0] sm:$0xff]
        %v5468 = vld [vmem:[#allocation5 + $0xe8] sm:$0xff]
        %v5469 = vld [vmem:[#allocation5 + $0xf0] sm:$0xff]
        %v5470 = vld [vmem:[#allocation5 + $0xf8] sm:$0xff]
        %s5471 = scalar_lea.vmem [#allocation11], 512
        %v5472 = vld [vmem:[%s5471] sm:$0xff]
        %v5473 = vld [vmem:[%s5471 + $0x8] sm:$0xff]
        %v5474 = vld [vmem:[%s5471 + $0x10] sm:$0xff]
        %v5475 = vld [vmem:[%s5471 + $0x18] sm:$0xff]
        %v5476 = vld [vmem:[%s5471 + $0x20] sm:$0xff]
        %v5477 = vld [vmem:[%s5471 + $0x28] sm:$0xff]
        %v5478 = vld [vmem:[%s5471 + $0x30] sm:$0xff]
        %v5479 = vld [vmem:[%s5471 + $0x38] sm:$0xff]
        %v5480 = vld [vmem:[%s5471 + $0x40] sm:$0xff]
        %v5481 = vld [vmem:[%s5471 + $0x48] sm:$0xff]
        %v5482 = vld [vmem:[%s5471 + $0x50] sm:$0xff]
        %v5483 = vld [vmem:[%s5471 + $0x58] sm:$0xff]
        %v5484 = vld [vmem:[%s5471 + $0x60] sm:$0xff]
        %v5485 = vld [vmem:[%s5471 + $0x68] sm:$0xff]
        %v5486 = vld [vmem:[%s5471 + $0x70] sm:$0xff]
        %v5487 = vld [vmem:[%s5471 + $0x78] sm:$0xff]
        %5488 = vmatprep.subr.mxu0 0.0
        %5489 = vmatpush1.msra.mxu0 %v5472
        %5490 = vmatprep.subr.mxu0 0.0
        %5491 = vmatpush1.msra.mxu0 %v5473
        %5492 = vmatprep.subr.mxu0 0.0
        %5493 = vmatpush1.msra.mxu0 %v5474
        %5494 = vmatprep.subr.mxu0 0.0
        %5495 = vmatpush1.msra.mxu0 %v5475
        %5496 = vmatprep.subr.mxu0 0.0
        %5497 = vmatpush1.msra.mxu0 %v5476
        %5498 = vmatprep.subr.mxu0 0.0
        %5499 = vmatpush1.msra.mxu0 %v5477
        %5500 = vmatprep.subr.mxu0 0.0
        %5501 = vmatpush1.msra.mxu0 %v5478
        %5502 = vmatprep.subr.mxu0 0.0
        %5503 = vmatpush1.msra.mxu0 %v5479
        %5504 = vmatprep.subr.mxu0 0.0
        %5505 = vmatpush1.msra.mxu0 %v5480
        %5506 = vmatprep.subr.mxu0 0.0
        %5507 = vmatpush1.msra.mxu0 %v5481
        %5508 = vmatprep.subr.mxu0 0.0
        %5509 = vmatpush1.msra.mxu0 %v5482
        %5510 = vmatprep.subr.mxu0 0.0
        %5511 = vmatpush1.msra.mxu0 %v5483
        %5512 = vmatprep.subr.mxu0 0.0
        %5513 = vmatpush1.msra.mxu0 %v5484
        %5514 = vmatprep.subr.mxu0 0.0
        %5515 = vmatpush1.msra.mxu0 %v5485
        %5516 = vmatprep.subr.mxu0 0.0
        %5517 = vmatpush1.msra.mxu0 %v5486
        %5518 = vmatprep.subr.mxu0 0.0
        %5519 = vmatpush1.msra.mxu0 %v5487
        %5520 = vmatprep.subr.mxu0 0.0
        %5521 = vmatpush1.msra.mxu0 0.0
        %5522 = vmatprep.subr.mxu0 0.0
        %5523 = vmatpush1.msra.mxu0 0.0
        %5524 = vmatprep.subr.mxu0 0.0
        %5525 = vmatpush1.msra.mxu0 0.0
        %5526 = vmatprep.subr.mxu0 0.0
        %5527 = vmatpush1.msra.mxu0 0.0
        %5528 = vmatprep.subr.mxu0 0.0
        %5529 = vmatpush1.msra.mxu0 0.0
        %5530 = vmatprep.subr.mxu0 0.0
        %5531 = vmatpush1.msra.mxu0 0.0
        %5532 = vmatprep.subr.mxu0 0.0
        %5533 = vmatpush1.msra.mxu0 0.0
        %5534 = vmatprep.subr.mxu0 0.0
        %5535 = vmatpush1.msra.mxu0 0.0
        %5536 = vmatprep.subr.mxu0 0.0
        %5537 = vmatpush1.msra.mxu0 0.0
        %5538 = vmatprep.subr.mxu0 0.0
        %5539 = vmatpush1.msra.mxu0 0.0
        %5540 = vmatprep.subr.mxu0 0.0
        %5541 = vmatpush1.msra.mxu0 0.0
        %5542 = vmatprep.subr.mxu0 0.0
        %5543 = vmatpush1.msra.mxu0 0.0
        %5544 = vmatprep.subr.mxu0 0.0
        %5545 = vmatpush1.msra.mxu0 0.0
        %5546 = vmatprep.subr.mxu0 0.0
        %5547 = vmatpush1.msra.mxu0 0.0
        %5548 = vmatprep.subr.mxu0 0.0
        %5549 = vmatpush1.msra.mxu0 0.0
        %5550 = vmatprep.subr.mxu0 0.0
        %5551 = vmatpush1.msra.mxu0 0.0
        %5552 = vmatprep.mubr.f32.mxu0 0.0
        %5553 = vmatmul.mubr.f32.gmra.mrb[0].mxu0 %v5407
        %v5554 = vpop.f32.mrb[0].mxu0
        %v5555 = vadd.f32 0.0, %v5554
        %v5556 = vpop.f32.mrb[0].mxu0
        %5557 = vmatprep.mubr.f32.mxu0 0.0
        %5558 = vmatmul.mubr.f32.gmra.mrb[0].mxu0 %v5408
        %v5559 = vpop.f32.mrb[0].mxu0
        %v5560 = vadd.f32 0.0, %v5559
        %v5561 = vpop.f32.mrb[0].mxu0
        %5562 = vmatprep.mubr.f32.mxu0 0.0
        %5563 = vmatmul.mubr.f32.gmra.mrb[0].mxu0 %v5409
        %v5564 = vpop.f32.mrb[0].mxu0
        %v5565 = vadd.f32 0.0, %v5564
        %v5566 = vpop.f32.mrb[0].mxu0
        %5567 = vmatprep.mubr.f32.mxu0 0.0
        %5568 = vmatmul.mubr.f32.gmra.mrb[0].mxu0 %v5410
        %v5569 = vpop.f32.mrb[0].mxu0
        %v5570 = vadd.f32 0.0, %v5569
        %v5571 = vpop.f32.mrb[0].mxu0
        %5572 = vmatprep.mubr.f32.mxu0 0.0
        %5573 = vmatmul.mubr.f32.gmra.mrb[0].mxu0 %v5411
        %v5574 = vpop.f32.mrb[0].mxu0
        %v5575 = vadd.f32 0.0, %v5574
        %v5576 = vpop.f32.mrb[0].mxu0
        %5577 = vmatprep.mubr.f32.mxu0 0.0
        %5578 = vmatmul.mubr.f32.gmra.mrb[0].mxu0 %v5412
        %v5579 = vpop.f32.mrb[0].mxu0
        %v5580 = vadd.f32 0.0, %v5579
        %v5581 = vpop.f32.mrb[0].mxu0
        %5582 = vmatprep.mubr.f32.mxu0 0.0
        %5583 = vmatmul.mubr.f32.gmra.mrb[0].mxu0 %v5413
        %v5584 = vpop.f32.mrb[0].mxu0
        %v5585 = vadd.f32 0.0, %v5584
        %v5586 = vpop.f32.mrb[0].mxu0
        %5587 = vmatprep.mubr.f32.mxu0 0.0
        %5588 = vmatmul.mubr.f32.gmra.mrb[0].mxu0 %v5414
        %v5589 = vpop.f32.mrb[0].mxu0
        %v5590 = vadd.f32 0.0, %v5589
        %v5591 = vpop.f32.mrb[0].mxu0
        %5592 = vmatprep.mubr.f32.mxu0 0.0
        %5593 = vmatmul.mubr.f32.gmra.mrb[0].mxu0 %v5415
        %v5594 = vpop.f32.mrb[0].mxu0
        %v5595 = vadd.f32 0.0, %v5594
        %v5596 = vpop.f32.mrb[0].mxu0
        %5597 = vmatprep.mubr.f32.mxu0 0.0
        %5598 = vmatmul.mubr.f32.gmra.mrb[0].mxu0 %v5416
        %v5599 = vpop.f32.mrb[0].mxu0
        %v5600 = vadd.f32 0.0, %v5599
        %v5601 = vpop.f32.mrb[0].mxu0
        %5602 = vmatprep.mubr.f32.mxu0 0.0
        %5603 = vmatmul.mubr.f32.gmra.mrb[0].mxu0 %v5417
        %v5604 = vpop.f32.mrb[0].mxu0
        %v5605 = vadd.f32 0.0, %v5604
        %v5606 = vpop.f32.mrb[0].mxu0
        %5607 = vmatprep.mubr.f32.mxu0 0.0
        %5608 = vmatmul.mubr.f32.gmra.mrb[0].mxu0 %v5418
        %v5609 = vpop.f32.mrb[0].mxu0
        %v5610 = vadd.f32 0.0, %v5609
        %v5611 = vpop.f32.mrb[0].mxu0
        %5612 = vmatprep.mubr.f32.mxu0 0.0
        %5613 = vmatmul.mubr.f32.gmra.mrb[0].mxu0 %v5419
        %v5614 = vpop.f32.mrb[0].mxu0
        %v5615 = vadd.f32 0.0, %v5614
        %v5616 = vpop.f32.mrb[0].mxu0
        %5617 = vmatprep.mubr.f32.mxu0 0.0
        %5618 = vmatmul.mubr.f32.gmra.mrb[0].mxu0 %v5420
        %v5619 = vpop.f32.mrb[0].mxu0
        %v5620 = vadd.f32 0.0, %v5619
        %v5621 = vpop.f32.mrb[0].mxu0
        %5622 = vmatprep.mubr.f32.mxu0 0.0
        %5623 = vmatmul.mubr.f32.gmra.mrb[0].mxu0 %v5421
        %v5624 = vpop.f32.mrb[0].mxu0
        %v5625 = vadd.f32 0.0, %v5624
        %v5626 = vpop.f32.mrb[0].mxu0
        %5627 = vmatprep.mubr.f32.mxu0 0.0
        %5628 = vmatmul.mubr.f32.gmra.mrb[0].mxu0 %v5422
        %v5629 = vpop.f32.mrb[0].mxu0
        %v5630 = vadd.f32 0.0, %v5629
        %v5631 = vpop.f32.mrb[0].mxu0
        %5632 = vmatprep.mubr.f32.mxu0 0.0
        %5633 = vmatmul.mubr.f32.gmra.mrb[0].mxu0 %v5423
        %v5634 = vpop.f32.mrb[0].mxu0
        %v5635 = vadd.f32 0.0, %v5634
        %v5636 = vpop.f32.mrb[0].mxu0
        %5637 = vmatprep.mubr.f32.mxu0 0.0
        %5638 = vmatmul.mubr.f32.gmra.mrb[0].mxu0 %v5424
        %v5639 = vpop.f32.mrb[0].mxu0
        %v5640 = vadd.f32 0.0, %v5639
        %v5641 = vpop.f32.mrb[0].mxu0
        %5642 = vmatprep.mubr.f32.mxu0 0.0
        %5643 = vmatmul.mubr.f32.gmra.mrb[0].mxu0 %v5425
        %v5644 = vpop.f32.mrb[0].mxu0
        %v5645 = vadd.f32 0.0, %v5644
        %v5646 = vpop.f32.mrb[0].mxu0
        %5647 = vmatprep.mubr.f32.mxu0 0.0
        %5648 = vmatmul.mubr.f32.gmra.mrb[0].mxu0 %v5426
        %v5649 = vpop.f32.mrb[0].mxu0
        %v5650 = vadd.f32 0.0, %v5649
        %v5651 = vpop.f32.mrb[0].mxu0
        %5652 = vmatprep.mubr.f32.mxu0 0.0
        %5653 = vmatmul.mubr.f32.gmra.mrb[0].mxu0 %v5427
        %v5654 = vpop.f32.mrb[0].mxu0
        %v5655 = vadd.f32 0.0, %v5654
        %v5656 = vpop.f32.mrb[0].mxu0
        %5657 = vmatprep.mubr.f32.mxu0 0.0
        %5658 = vmatmul.mubr.f32.gmra.mrb[0].mxu0 %v5428
        %v5659 = vpop.f32.mrb[0].mxu0
        %v5660 = vadd.f32 0.0, %v5659
        %v5661 = vpop.f32.mrb[0].mxu0
        %5662 = vmatprep.mubr.f32.mxu0 0.0
        %5663 = vmatmul.mubr.f32.gmra.mrb[0].mxu0 %v5429
        %v5664 = vpop.f32.mrb[0].mxu0
        %v5665 = vadd.f32 0.0, %v5664
        %v5666 = vpop.f32.mrb[0].mxu0
        %5667 = vmatprep.mubr.f32.mxu0 0.0
        %5668 = vmatmul.mubr.f32.gmra.mrb[0].mxu0 %v5430
        %v5669 = vpop.f32.mrb[0].mxu0
        %v5670 = vadd.f32 0.0, %v5669
        %v5671 = vpop.f32.mrb[0].mxu0
        %5672 = vmatprep.mubr.f32.mxu0 0.0
        %5673 = vmatmul.mubr.f32.gmra.mrb[0].mxu0 %v5431
        %v5674 = vpop.f32.mrb[0].mxu0
        %v5675 = vadd.f32 0.0, %v5674
        %v5676 = vpop.f32.mrb[0].mxu0
        %5677 = vmatprep.mubr.f32.mxu0 0.0
        %5678 = vmatmul.mubr.f32.gmra.mrb[0].mxu0 %v5432
        %v5679 = vpop.f32.mrb[0].mxu0
        %v5680 = vadd.f32 0.0, %v5679
        %v5681 = vpop.f32.mrb[0].mxu0
        %5682 = vmatprep.mubr.f32.mxu0 0.0
        %5683 = vmatmul.mubr.f32.gmra.mrb[0].mxu0 %v5433
        %v5684 = vpop.f32.mrb[0].mxu0
        %v5685 = vadd.f32 0.0, %v5684
        %v5686 = vpop.f32.mrb[0].mxu0
        %5687 = vmatprep.mubr.f32.mxu0 0.0
        %5688 = vmatmul.mubr.f32.gmra.mrb[0].mxu0 %v5434
        %v5689 = vpop.f32.mrb[0].mxu0
        %v5690 = vadd.f32 0.0, %v5689
        %v5691 = vpop.f32.mrb[0].mxu0
        %5692 = vmatprep.mubr.f32.mxu0 0.0
        %5693 = vmatmul.mubr.f32.gmra.mrb[0].mxu0 %v5435
        %v5694 = vpop.f32.mrb[0].mxu0
        %v5695 = vadd.f32 0.0, %v5694
        %v5696 = vpop.f32.mrb[0].mxu0
        %5697 = vmatprep.mubr.f32.mxu0 0.0
        %5698 = vmatmul.mubr.f32.gmra.mrb[0].mxu0 %v5436
        %v5699 = vpop.f32.mrb[0].mxu0
        %v5700 = vadd.f32 0.0, %v5699
        %v5701 = vpop.f32.mrb[0].mxu0
        %5702 = vmatprep.mubr.f32.mxu0 0.0
        %5703 = vmatmul.mubr.f32.gmra.mrb[0].mxu0 %v5437
        %v5704 = vpop.f32.mrb[0].mxu0
        %v5705 = vadd.f32 0.0, %v5704
        %v5706 = vpop.f32.mrb[0].mxu0
        %5707 = vmatprep.mubr.f32.mxu0 0.0
        %5708 = vmatmul.mubr.f32.gmra.mrb[0].mxu0 %v5438
        %v5709 = vpop.f32.mrb[0].mxu0
        %v5710 = vadd.f32 0.0, %v5709
        %v5711 = vpop.f32.mrb[0].mxu0
        %5712 = vdwg.mxu0
        %v5713 = vadd.f32 %v5439, %v5555
        %v5714 = vadd.f32 %v5440, %v5560
        %v5715 = vadd.f32 %v5441, %v5565
        %v5716 = vadd.f32 %v5442, %v5570
        %v5717 = vadd.f32 %v5443, %v5575
        %v5718 = vadd.f32 %v5444, %v5580
        %v5719 = vadd.f32 %v5445, %v5585
        %v5720 = vadd.f32 %v5446, %v5590
        %v5721 = vadd.f32 %v5447, %v5595
        %v5722 = vadd.f32 %v5448, %v5600
        %v5723 = vadd.f32 %v5449, %v5605
        %v5724 = vadd.f32 %v5450, %v5610
        %v5725 = vadd.f32 %v5451, %v5615
        %v5726 = vadd.f32 %v5452, %v5620
        %v5727 = vadd.f32 %v5453, %v5625
        %v5728 = vadd.f32 %v5454, %v5630
        %v5729 = vadd.f32 %v5455, %v5635
        %v5730 = vadd.f32 %v5456, %v5640
        %v5731 = vadd.f32 %v5457, %v5645
        %v5732 = vadd.f32 %v5458, %v5650
        %v5733 = vadd.f32 %v5459, %v5655
        %v5734 = vadd.f32 %v5460, %v5660
        %v5735 = vadd.f32 %v5461, %v5665
        %v5736 = vadd.f32 %v5462, %v5670
        %v5737 = vadd.f32 %v5463, %v5675
        %v5738 = vadd.f32 %v5464, %v5680
        %v5739 = vadd.f32 %v5465, %v5685
        %v5740 = vadd.f32 %v5466, %v5690
        %v5741 = vadd.f32 %v5467, %v5695
        %v5742 = vadd.f32 %v5468, %v5700
        %v5743 = vadd.f32 %v5469, %v5705
        %v5744 = vadd.f32 %v5470, %v5710
        %5745 = vst [vmem:[#allocation5] sm:$0xff] %v5713
        %5746 = vst [vmem:[#allocation5 + $0x8] sm:$0xff] %v5714
        %5747 = vst [vmem:[#allocation5 + $0x10] sm:$0xff] %v5715
        %5748 = vst [vmem:[#allocation5 + $0x18] sm:$0xff] %v5716
        %5749 = vst [vmem:[#allocation5 + $0x20] sm:$0xff] %v5717
        %5750 = vst [vmem:[#allocation5 + $0x28] sm:$0xff] %v5718
        %5751 = vst [vmem:[#allocation5 + $0x30] sm:$0xff] %v5719
        %5752 = vst [vmem:[#allocation5 + $0x38] sm:$0xff] %v5720
        %5753 = vst [vmem:[#allocation5 + $0x40] sm:$0xff] %v5721
        %5754 = vst [vmem:[#allocation5 + $0x48] sm:$0xff] %v5722
        %5755 = vst [vmem:[#allocation5 + $0x50] sm:$0xff] %v5723
        %5756 = vst [vmem:[#allocation5 + $0x58] sm:$0xff] %v5724
        %5757 = vst [vmem:[#allocation5 + $0x60] sm:$0xff] %v5725
        %5758 = vst [vmem:[#allocation5 + $0x68] sm:$0xff] %v5726
        %5759 = vst [vmem:[#allocation5 + $0x70] sm:$0xff] %v5727
        %5760 = vst [vmem:[#allocation5 + $0x78] sm:$0xff] %v5728
        %5761 = vst [vmem:[#allocation5 + $0x80] sm:$0xff] %v5729
        %5762 = vst [vmem:[#allocation5 + $0x88] sm:$0xff] %v5730
        %5763 = vst [vmem:[#allocation5 + $0x90] sm:$0xff] %v5731
        %5764 = vst [vmem:[#allocation5 + $0x98] sm:$0xff] %v5732
        %5765 = vst [vmem:[#allocation5 + $0xa0] sm:$0xff] %v5733
        %5766 = vst [vmem:[#allocation5 + $0xa8] sm:$0xff] %v5734
        %5767 = vst [vmem:[#allocation5 + $0xb0] sm:$0xff] %v5735
        %5768 = vst [vmem:[#allocation5 + $0xb8] sm:$0xff] %v5736
        %5769 = vst [vmem:[#allocation5 + $0xc0] sm:$0xff] %v5737
        %5770 = vst [vmem:[#allocation5 + $0xc8] sm:$0xff] %v5738
        %5771 = vst [vmem:[#allocation5 + $0xd0] sm:$0xff] %v5739
        %5772 = vst [vmem:[#allocation5 + $0xd8] sm:$0xff] %v5740
        %5773 = vst [vmem:[#allocation5 + $0xe0] sm:$0xff] %v5741
        %5774 = vst [vmem:[#allocation5 + $0xe8] sm:$0xff] %v5742
        %5775 = vst [vmem:[#allocation5 + $0xf0] sm:$0xff] %v5743
        %5776 = vst [vmem:[#allocation5 + $0xf8] sm:$0xff] %v5744
        %v5777 = vld [vmem:[%s3856 + $0x2] sm:$0xff]
        %v5778 = vld [vmem:[%s3856 + $0xa] sm:$0xff]
        %v5779 = vld [vmem:[%s3856 + $0x1a] sm:$0xff]
        %v5780 = vld [vmem:[%s3856 + $0x22] sm:$0xff]
        %v5781 = vld [vmem:[%s3856 + $0x32] sm:$0xff]
        %v5782 = vld [vmem:[%s3856 + $0x3a] sm:$0xff]
        %v5783 = vld [vmem:[%s3856 + $0x4a] sm:$0xff]
        %v5784 = vld [vmem:[%s3856 + $0x52] sm:$0xff]
        %v5785 = vld [vmem:[%s3856 + $0x62] sm:$0xff]
        %v5786 = vld [vmem:[%s3856 + $0x6a] sm:$0xff]
        %v5787 = vld [vmem:[%s3856 + $0x7a] sm:$0xff]
        %v5788 = vld [vmem:[%s3856 + $0x82] sm:$0xff]
        %v5789 = vld [vmem:[%s3856 + $0x92] sm:$0xff]
        %v5790 = vld [vmem:[%s3856 + $0x9a] sm:$0xff]
        %v5791 = vld [vmem:[%s3856 + $0xaa] sm:$0xff]
        %v5792 = vld [vmem:[%s3856 + $0xb2] sm:$0xff]
        %v5793 = vld [vmem:[%s3856 + $0xc2] sm:$0xff]
        %v5794 = vld [vmem:[%s3856 + $0xca] sm:$0xff]
        %v5795 = vld [vmem:[%s3856 + $0xda] sm:$0xff]
        %v5796 = vld [vmem:[%s3856 + $0xe2] sm:$0xff]
        %v5797 = vld [vmem:[%s3856 + $0xf2] sm:$0xff]
        %v5798 = vld [vmem:[%s3856 + $0xfa] sm:$0xff]
        %v5799 = vld [vmem:[%s3856 + $0x10a] sm:$0xff]
        %v5800 = vld [vmem:[%s3856 + $0x112] sm:$0xff]
        %v5801 = vld [vmem:[%s3856 + $0x122] sm:$0xff]
        %v5802 = vld [vmem:[%s3856 + $0x12a] sm:$0xff]
        %v5803 = vld [vmem:[%s3856 + $0x13a] sm:$0xff]
        %v5804 = vld [vmem:[%s3856 + $0x142] sm:$0xff]
        %v5805 = vld [vmem:[%s3856 + $0x152] sm:$0xff]
        %v5806 = vld [vmem:[%s3856 + $0x15a] sm:$0xff]
        %v5807 = vld [vmem:[%s3856 + $0x16a] sm:$0xff]
        %v5808 = vld [vmem:[%s3856 + $0x172] sm:$0xff]
        %v5809 = vld [vmem:[#allocation5] sm:$0xff]
        %v5810 = vld [vmem:[#allocation5 + $0x8] sm:$0xff]
        %v5811 = vld [vmem:[#allocation5 + $0x10] sm:$0xff]
        %v5812 = vld [vmem:[#allocation5 + $0x18] sm:$0xff]
        %v5813 = vld [vmem:[#allocation5 + $0x20] sm:$0xff]
        %v5814 = vld [vmem:[#allocation5 + $0x28] sm:$0xff]
        %v5815 = vld [vmem:[#allocation5 + $0x30] sm:$0xff]
        %v5816 = vld [vmem:[#allocation5 + $0x38] sm:$0xff]
        %v5817 = vld [vmem:[#allocation5 + $0x40] sm:$0xff]
        %v5818 = vld [vmem:[#allocation5 + $0x48] sm:$0xff]
        %v5819 = vld [vmem:[#allocation5 + $0x50] sm:$0xff]
        %v5820 = vld [vmem:[#allocation5 + $0x58] sm:$0xff]
        %v5821 = vld [vmem:[#allocation5 + $0x60] sm:$0xff]
        %v5822 = vld [vmem:[#allocation5 + $0x68] sm:$0xff]
        %v5823 = vld [vmem:[#allocation5 + $0x70] sm:$0xff]
        %v5824 = vld [vmem:[#allocation5 + $0x78] sm:$0xff]
        %v5825 = vld [vmem:[#allocation5 + $0x80] sm:$0xff]
        %v5826 = vld [vmem:[#allocation5 + $0x88] sm:$0xff]
        %v5827 = vld [vmem:[#allocation5 + $0x90] sm:$0xff]
        %v5828 = vld [vmem:[#allocation5 + $0x98] sm:$0xff]
        %v5829 = vld [vmem:[#allocation5 + $0xa0] sm:$0xff]
        %v5830 = vld [vmem:[#allocation5 + $0xa8] sm:$0xff]
        %v5831 = vld [vmem:[#allocation5 + $0xb0] sm:$0xff]
        %v5832 = vld [vmem:[#allocation5 + $0xb8] sm:$0xff]
        %v5833 = vld [vmem:[#allocation5 + $0xc0] sm:$0xff]
        %v5834 = vld [vmem:[#allocation5 + $0xc8] sm:$0xff]
        %v5835 = vld [vmem:[#allocation5 + $0xd0] sm:$0xff]
        %v5836 = vld [vmem:[#allocation5 + $0xd8] sm:$0xff]
        %v5837 = vld [vmem:[#allocation5 + $0xe0] sm:$0xff]
        %v5838 = vld [vmem:[#allocation5 + $0xe8] sm:$0xff]
        %v5839 = vld [vmem:[#allocation5 + $0xf0] sm:$0xff]
        %v5840 = vld [vmem:[#allocation5 + $0xf8] sm:$0xff]
        %s5841 = scalar_lea.vmem [#allocation11], 640
        %v5842 = vld [vmem:[%s5841] sm:$0xff]
        %v5843 = vld [vmem:[%s5841 + $0x8] sm:$0xff]
        %v5844 = vld [vmem:[%s5841 + $0x10] sm:$0xff]
        %v5845 = vld [vmem:[%s5841 + $0x18] sm:$0xff]
        %v5846 = vld [vmem:[%s5841 + $0x20] sm:$0xff]
        %v5847 = vld [vmem:[%s5841 + $0x28] sm:$0xff]
        %v5848 = vld [vmem:[%s5841 + $0x30] sm:$0xff]
        %v5849 = vld [vmem:[%s5841 + $0x38] sm:$0xff]
        %v5850 = vld [vmem:[%s5841 + $0x40] sm:$0xff]
        %v5851 = vld [vmem:[%s5841 + $0x48] sm:$0xff]
        %v5852 = vld [vmem:[%s5841 + $0x50] sm:$0xff]
        %v5853 = vld [vmem:[%s5841 + $0x58] sm:$0xff]
        %v5854 = vld [vmem:[%s5841 + $0x60] sm:$0xff]
        %v5855 = vld [vmem:[%s5841 + $0x68] sm:$0xff]
        %v5856 = vld [vmem:[%s5841 + $0x70] sm:$0xff]
        %v5857 = vld [vmem:[%s5841 + $0x78] sm:$0xff]
        %5858 = vmatprep.subr.mxu0 0.0
        %5859 = vmatpush1.msra.mxu0 %v5842
        %5860 = vmatprep.subr.mxu0 0.0
        %5861 = vmatpush1.msra.mxu0 %v5843
        %5862 = vmatprep.subr.mxu0 0.0
        %5863 = vmatpush1.msra.mxu0 %v5844
        %5864 = vmatprep.subr.mxu0 0.0
        %5865 = vmatpush1.msra.mxu0 %v5845
        %5866 = vmatprep.subr.mxu0 0.0
        %5867 = vmatpush1.msra.mxu0 %v5846
        %5868 = vmatprep.subr.mxu0 0.0
        %5869 = vmatpush1.msra.mxu0 %v5847
        %5870 = vmatprep.subr.mxu0 0.0
        %5871 = vmatpush1.msra.mxu0 %v5848
        %5872 = vmatprep.subr.mxu0 0.0
        %5873 = vmatpush1.msra.mxu0 %v5849
        %5874 = vmatprep.subr.mxu0 0.0
        %5875 = vmatpush1.msra.mxu0 %v5850
        %5876 = vmatprep.subr.mxu0 0.0
        %5877 = vmatpush1.msra.mxu0 %v5851
        %5878 = vmatprep.subr.mxu0 0.0
        %5879 = vmatpush1.msra.mxu0 %v5852
        %5880 = vmatprep.subr.mxu0 0.0
        %5881 = vmatpush1.msra.mxu0 %v5853
        %5882 = vmatprep.subr.mxu0 0.0
        %5883 = vmatpush1.msra.mxu0 %v5854
        %5884 = vmatprep.subr.mxu0 0.0
        %5885 = vmatpush1.msra.mxu0 %v5855
        %5886 = vmatprep.subr.mxu0 0.0
        %5887 = vmatpush1.msra.mxu0 %v5856
        %5888 = vmatprep.subr.mxu0 0.0
        %5889 = vmatpush1.msra.mxu0 %v5857
        %5890 = vmatprep.subr.mxu0 0.0
        %5891 = vmatpush1.msra.mxu0 0.0
        %5892 = vmatprep.subr.mxu0 0.0
        %5893 = vmatpush1.msra.mxu0 0.0
        %5894 = vmatprep.subr.mxu0 0.0
        %5895 = vmatpush1.msra.mxu0 0.0
        %5896 = vmatprep.subr.mxu0 0.0
        %5897 = vmatpush1.msra.mxu0 0.0
        %5898 = vmatprep.subr.mxu0 0.0
        %5899 = vmatpush1.msra.mxu0 0.0
        %5900 = vmatprep.subr.mxu0 0.0
        %5901 = vmatpush1.msra.mxu0 0.0
        %5902 = vmatprep.subr.mxu0 0.0
        %5903 = vmatpush1.msra.mxu0 0.0
        %5904 = vmatprep.subr.mxu0 0.0
        %5905 = vmatpush1.msra.mxu0 0.0
        %5906 = vmatprep.subr.mxu0 0.0
        %5907 = vmatpush1.msra.mxu0 0.0
        %5908 = vmatprep.subr.mxu0 0.0
        %5909 = vmatpush1.msra.mxu0 0.0
        %5910 = vmatprep.subr.mxu0 0.0
        %5911 = vmatpush1.msra.mxu0 0.0
        %5912 = vmatprep.subr.mxu0 0.0
        %5913 = vmatpush1.msra.mxu0 0.0
        %5914 = vmatprep.subr.mxu0 0.0
        %5915 = vmatpush1.msra.mxu0 0.0
        %5916 = vmatprep.subr.mxu0 0.0
        %5917 = vmatpush1.msra.mxu0 0.0
        %5918 = vmatprep.subr.mxu0 0.0
        %5919 = vmatpush1.msra.mxu0 0.0
        %5920 = vmatprep.subr.mxu0 0.0
        %5921 = vmatpush1.msra.mxu0 0.0
        %5922 = vmatprep.mubr.f32.mxu0 0.0
        %5923 = vmatmul.mubr.f32.gmra.mrb[0].mxu0 %v5777
        %v5924 = vpop.f32.mrb[0].mxu0
        %v5925 = vadd.f32 0.0, %v5924
        %v5926 = vpop.f32.mrb[0].mxu0
        %5927 = vmatprep.mubr.f32.mxu0 0.0
        %5928 = vmatmul.mubr.f32.gmra.mrb[0].mxu0 %v5778
        %v5929 = vpop.f32.mrb[0].mxu0
        %v5930 = vadd.f32 0.0, %v5929
        %v5931 = vpop.f32.mrb[0].mxu0
        %5932 = vmatprep.mubr.f32.mxu0 0.0
        %5933 = vmatmul.mubr.f32.gmra.mrb[0].mxu0 %v5779
        %v5934 = vpop.f32.mrb[0].mxu0
        %v5935 = vadd.f32 0.0, %v5934
        %v5936 = vpop.f32.mrb[0].mxu0
        %5937 = vmatprep.mubr.f32.mxu0 0.0
        %5938 = vmatmul.mubr.f32.gmra.mrb[0].mxu0 %v5780
        %v5939 = vpop.f32.mrb[0].mxu0
        %v5940 = vadd.f32 0.0, %v5939
        %v5941 = vpop.f32.mrb[0].mxu0
        %5942 = vmatprep.mubr.f32.mxu0 0.0
        %5943 = vmatmul.mubr.f32.gmra.mrb[0].mxu0 %v5781
        %v5944 = vpop.f32.mrb[0].mxu0
        %v5945 = vadd.f32 0.0, %v5944
        %v5946 = vpop.f32.mrb[0].mxu0
        %5947 = vmatprep.mubr.f32.mxu0 0.0
        %5948 = vmatmul.mubr.f32.gmra.mrb[0].mxu0 %v5782
        %v5949 = vpop.f32.mrb[0].mxu0
        %v5950 = vadd.f32 0.0, %v5949
        %v5951 = vpop.f32.mrb[0].mxu0
        %5952 = vmatprep.mubr.f32.mxu0 0.0
        %5953 = vmatmul.mubr.f32.gmra.mrb[0].mxu0 %v5783
        %v5954 = vpop.f32.mrb[0].mxu0
        %v5955 = vadd.f32 0.0, %v5954
        %v5956 = vpop.f32.mrb[0].mxu0
        %5957 = vmatprep.mubr.f32.mxu0 0.0
        %5958 = vmatmul.mubr.f32.gmra.mrb[0].mxu0 %v5784
        %v5959 = vpop.f32.mrb[0].mxu0
        %v5960 = vadd.f32 0.0, %v5959
        %v5961 = vpop.f32.mrb[0].mxu0
        %5962 = vmatprep.mubr.f32.mxu0 0.0
        %5963 = vmatmul.mubr.f32.gmra.mrb[0].mxu0 %v5785
        %v5964 = vpop.f32.mrb[0].mxu0
        %v5965 = vadd.f32 0.0, %v5964
        %v5966 = vpop.f32.mrb[0].mxu0
        %5967 = vmatprep.mubr.f32.mxu0 0.0
        %5968 = vmatmul.mubr.f32.gmra.mrb[0].mxu0 %v5786
        %v5969 = vpop.f32.mrb[0].mxu0
        %v5970 = vadd.f32 0.0, %v5969
        %v5971 = vpop.f32.mrb[0].mxu0
        %5972 = vmatprep.mubr.f32.mxu0 0.0
        %5973 = vmatmul.mubr.f32.gmra.mrb[0].mxu0 %v5787
        %v5974 = vpop.f32.mrb[0].mxu0
        %v5975 = vadd.f32 0.0, %v5974
        %v5976 = vpop.f32.mrb[0].mxu0
        %5977 = vmatprep.mubr.f32.mxu0 0.0
        %5978 = vmatmul.mubr.f32.gmra.mrb[0].mxu0 %v5788
        %v5979 = vpop.f32.mrb[0].mxu0
        %v5980 = vadd.f32 0.0, %v5979
        %v5981 = vpop.f32.mrb[0].mxu0
        %5982 = vmatprep.mubr.f32.mxu0 0.0
        %5983 = vmatmul.mubr.f32.gmra.mrb[0].mxu0 %v5789
        %v5984 = vpop.f32.mrb[0].mxu0
        %v5985 = vadd.f32 0.0, %v5984
        %v5986 = vpop.f32.mrb[0].mxu0
        %5987 = vmatprep.mubr.f32.mxu0 0.0
        %5988 = vmatmul.mubr.f32.gmra.mrb[0].mxu0 %v5790
        %v5989 = vpop.f32.mrb[0].mxu0
        %v5990 = vadd.f32 0.0, %v5989
        %v5991 = vpop.f32.mrb[0].mxu0
        %5992 = vmatprep.mubr.f32.mxu0 0.0
        %5993 = vmatmul.mubr.f32.gmra.mrb[0].mxu0 %v5791
        %v5994 = vpop.f32.mrb[0].mxu0
        %v5995 = vadd.f32 0.0, %v5994
        %v5996 = vpop.f32.mrb[0].mxu0
        %5997 = vmatprep.mubr.f32.mxu0 0.0
        %5998 = vmatmul.mubr.f32.gmra.mrb[0].mxu0 %v5792
        %v5999 = vpop.f32.mrb[0].mxu0
        %v6000 = vadd.f32 0.0, %v5999
        %v6001 = vpop.f32.mrb[0].mxu0
        %6002 = vmatprep.mubr.f32.mxu0 0.0
        %6003 = vmatmul.mubr.f32.gmra.mrb[0].mxu0 %v5793
        %v6004 = vpop.f32.mrb[0].mxu0
        %v6005 = vadd.f32 0.0, %v6004
        %v6006 = vpop.f32.mrb[0].mxu0
        %6007 = vmatprep.mubr.f32.mxu0 0.0
        %6008 = vmatmul.mubr.f32.gmra.mrb[0].mxu0 %v5794
        %v6009 = vpop.f32.mrb[0].mxu0
        %v6010 = vadd.f32 0.0, %v6009
        %v6011 = vpop.f32.mrb[0].mxu0
        %6012 = vmatprep.mubr.f32.mxu0 0.0
        %6013 = vmatmul.mubr.f32.gmra.mrb[0].mxu0 %v5795
        %v6014 = vpop.f32.mrb[0].mxu0
        %v6015 = vadd.f32 0.0, %v6014
        %v6016 = vpop.f32.mrb[0].mxu0
        %6017 = vmatprep.mubr.f32.mxu0 0.0
        %6018 = vmatmul.mubr.f32.gmra.mrb[0].mxu0 %v5796
        %v6019 = vpop.f32.mrb[0].mxu0
        %v6020 = vadd.f32 0.0, %v6019
        %v6021 = vpop.f32.mrb[0].mxu0
        %6022 = vmatprep.mubr.f32.mxu0 0.0
        %6023 = vmatmul.mubr.f32.gmra.mrb[0].mxu0 %v5797
        %v6024 = vpop.f32.mrb[0].mxu0
        %v6025 = vadd.f32 0.0, %v6024
        %v6026 = vpop.f32.mrb[0].mxu0
        %6027 = vmatprep.mubr.f32.mxu0 0.0
        %6028 = vmatmul.mubr.f32.gmra.mrb[0].mxu0 %v5798
        %v6029 = vpop.f32.mrb[0].mxu0
        %v6030 = vadd.f32 0.0, %v6029
        %v6031 = vpop.f32.mrb[0].mxu0
        %6032 = vmatprep.mubr.f32.mxu0 0.0
        %6033 = vmatmul.mubr.f32.gmra.mrb[0].mxu0 %v5799
        %v6034 = vpop.f32.mrb[0].mxu0
        %v6035 = vadd.f32 0.0, %v6034
        %v6036 = vpop.f32.mrb[0].mxu0
        %6037 = vmatprep.mubr.f32.mxu0 0.0
        %6038 = vmatmul.mubr.f32.gmra.mrb[0].mxu0 %v5800
        %v6039 = vpop.f32.mrb[0].mxu0
        %v6040 = vadd.f32 0.0, %v6039
        %v6041 = vpop.f32.mrb[0].mxu0
        %6042 = vmatprep.mubr.f32.mxu0 0.0
        %6043 = vmatmul.mubr.f32.gmra.mrb[0].mxu0 %v5801
        %v6044 = vpop.f32.mrb[0].mxu0
        %v6045 = vadd.f32 0.0, %v6044
        %v6046 = vpop.f32.mrb[0].mxu0
        %6047 = vmatprep.mubr.f32.mxu0 0.0
        %6048 = vmatmul.mubr.f32.gmra.mrb[0].mxu0 %v5802
        %v6049 = vpop.f32.mrb[0].mxu0
        %v6050 = vadd.f32 0.0, %v6049
        %v6051 = vpop.f32.mrb[0].mxu0
        %6052 = vmatprep.mubr.f32.mxu0 0.0
        %6053 = vmatmul.mubr.f32.gmra.mrb[0].mxu0 %v5803
        %v6054 = vpop.f32.mrb[0].mxu0
        %v6055 = vadd.f32 0.0, %v6054
        %v6056 = vpop.f32.mrb[0].mxu0
        %6057 = vmatprep.mubr.f32.mxu0 0.0
        %6058 = vmatmul.mubr.f32.gmra.mrb[0].mxu0 %v5804
        %v6059 = vpop.f32.mrb[0].mxu0
        %v6060 = vadd.f32 0.0, %v6059
        %v6061 = vpop.f32.mrb[0].mxu0
        %6062 = vmatprep.mubr.f32.mxu0 0.0
        %6063 = vmatmul.mubr.f32.gmra.mrb[0].mxu0 %v5805
        %v6064 = vpop.f32.mrb[0].mxu0
        %v6065 = vadd.f32 0.0, %v6064
        %v6066 = vpop.f32.mrb[0].mxu0
        %6067 = vmatprep.mubr.f32.mxu0 0.0
        %6068 = vmatmul.mubr.f32.gmra.mrb[0].mxu0 %v5806
        %v6069 = vpop.f32.mrb[0].mxu0
        %v6070 = vadd.f32 0.0, %v6069
        %v6071 = vpop.f32.mrb[0].mxu0
        %6072 = vmatprep.mubr.f32.mxu0 0.0
        %6073 = vmatmul.mubr.f32.gmra.mrb[0].mxu0 %v5807
        %v6074 = vpop.f32.mrb[0].mxu0
        %v6075 = vadd.f32 0.0, %v6074
        %v6076 = vpop.f32.mrb[0].mxu0
        %6077 = vmatprep.mubr.f32.mxu0 0.0
        %6078 = vmatmul.mubr.f32.gmra.mrb[0].mxu0 %v5808
        %v6079 = vpop.f32.mrb[0].mxu0
        %v6080 = vadd.f32 0.0, %v6079
        %v6081 = vpop.f32.mrb[0].mxu0
        %6082 = vdwg.mxu0
        %v6083 = vadd.f32 %v5809, %v5925
        %v6084 = vadd.f32 %v5810, %v5930
        %v6085 = vadd.f32 %v5811, %v5935
        %v6086 = vadd.f32 %v5812, %v5940
        %v6087 = vadd.f32 %v5813, %v5945
        %v6088 = vadd.f32 %v5814, %v5950
        %v6089 = vadd.f32 %v5815, %v5955
        %v6090 = vadd.f32 %v5816, %v5960
        %v6091 = vadd.f32 %v5817, %v5965
        %v6092 = vadd.f32 %v5818, %v5970
        %v6093 = vadd.f32 %v5819, %v5975
        %v6094 = vadd.f32 %v5820, %v5980
        %v6095 = vadd.f32 %v5821, %v5985
        %v6096 = vadd.f32 %v5822, %v5990
        %v6097 = vadd.f32 %v5823, %v5995
        %v6098 = vadd.f32 %v5824, %v6000
        %v6099 = vadd.f32 %v5825, %v6005
        %v6100 = vadd.f32 %v5826, %v6010
        %v6101 = vadd.f32 %v5827, %v6015
        %v6102 = vadd.f32 %v5828, %v6020
        %v6103 = vadd.f32 %v5829, %v6025
        %v6104 = vadd.f32 %v5830, %v6030
        %v6105 = vadd.f32 %v5831, %v6035
        %v6106 = vadd.f32 %v5832, %v6040
        %v6107 = vadd.f32 %v5833, %v6045
        %v6108 = vadd.f32 %v5834, %v6050
        %v6109 = vadd.f32 %v5835, %v6055
        %v6110 = vadd.f32 %v5836, %v6060
        %v6111 = vadd.f32 %v5837, %v6065
        %v6112 = vadd.f32 %v5838, %v6070
        %v6113 = vadd.f32 %v5839, %v6075
        %v6114 = vadd.f32 %v5840, %v6080
        %6115 = vst [vmem:[#allocation5] sm:$0xff] %v6083
        %6116 = vst [vmem:[#allocation5 + $0x8] sm:$0xff] %v6084
        %6117 = vst [vmem:[#allocation5 + $0x10] sm:$0xff] %v6085
        %6118 = vst [vmem:[#allocation5 + $0x18] sm:$0xff] %v6086
        %6119 = vst [vmem:[#allocation5 + $0x20] sm:$0xff] %v6087
        %6120 = vst [vmem:[#allocation5 + $0x28] sm:$0xff] %v6088
        %6121 = vst [vmem:[#allocation5 + $0x30] sm:$0xff] %v6089
        %6122 = vst [vmem:[#allocation5 + $0x38] sm:$0xff] %v6090
        %6123 = vst [vmem:[#allocation5 + $0x40] sm:$0xff] %v6091
        %6124 = vst [vmem:[#allocation5 + $0x48] sm:$0xff] %v6092
        %6125 = vst [vmem:[#allocation5 + $0x50] sm:$0xff] %v6093
        %6126 = vst [vmem:[#allocation5 + $0x58] sm:$0xff] %v6094
        %6127 = vst [vmem:[#allocation5 + $0x60] sm:$0xff] %v6095
        %6128 = vst [vmem:[#allocation5 + $0x68] sm:$0xff] %v6096
        %6129 = vst [vmem:[#allocation5 + $0x70] sm:$0xff] %v6097
        %6130 = vst [vmem:[#allocation5 + $0x78] sm:$0xff] %v6098
        %6131 = vst [vmem:[#allocation5 + $0x80] sm:$0xff] %v6099
        %6132 = vst [vmem:[#allocation5 + $0x88] sm:$0xff] %v6100
        %6133 = vst [vmem:[#allocation5 + $0x90] sm:$0xff] %v6101
        %6134 = vst [vmem:[#allocation5 + $0x98] sm:$0xff] %v6102
        %6135 = vst [vmem:[#allocation5 + $0xa0] sm:$0xff] %v6103
        %6136 = vst [vmem:[#allocation5 + $0xa8] sm:$0xff] %v6104
        %6137 = vst [vmem:[#allocation5 + $0xb0] sm:$0xff] %v6105
        %6138 = vst [vmem:[#allocation5 + $0xb8] sm:$0xff] %v6106
        %6139 = vst [vmem:[#allocation5 + $0xc0] sm:$0xff] %v6107
        %6140 = vst [vmem:[#allocation5 + $0xc8] sm:$0xff] %v6108
        %6141 = vst [vmem:[#allocation5 + $0xd0] sm:$0xff] %v6109
        %6142 = vst [vmem:[#allocation5 + $0xd8] sm:$0xff] %v6110
        %6143 = vst [vmem:[#allocation5 + $0xe0] sm:$0xff] %v6111
        %6144 = vst [vmem:[#allocation5 + $0xe8] sm:$0xff] %v6112
        %6145 = vst [vmem:[#allocation5 + $0xf0] sm:$0xff] %v6113
        %6146 = vst [vmem:[#allocation5 + $0xf8] sm:$0xff] %v6114
        %s6147 = scalar_lea.vmem [#allocation3], 48
        %v6148 = vld [vmem:[%s6147] sm:$0xff]
        %v6149 = vld [vmem:[%s6147 + $0x8] sm:$0xff]
        %v6150 = vld [vmem:[%s6147 + $0x18] sm:$0xff]
        %v6151 = vld [vmem:[%s6147 + $0x20] sm:$0xff]
        %v6152 = vld [vmem:[%s6147 + $0x30] sm:$0xff]
        %v6153 = vld [vmem:[%s6147 + $0x38] sm:$0xff]
        %v6154 = vld [vmem:[%s6147 + $0x48] sm:$0xff]
        %v6155 = vld [vmem:[%s6147 + $0x50] sm:$0xff]
        %v6156 = vld [vmem:[%s6147 + $0x60] sm:$0xff]
        %v6157 = vld [vmem:[%s6147 + $0x68] sm:$0xff]
        %v6158 = vld [vmem:[%s6147 + $0x78] sm:$0xff]
        %v6159 = vld [vmem:[%s6147 + $0x80] sm:$0xff]
        %v6160 = vld [vmem:[%s6147 + $0x90] sm:$0xff]
        %v6161 = vld [vmem:[%s6147 + $0x98] sm:$0xff]
        %v6162 = vld [vmem:[%s6147 + $0xa8] sm:$0xff]
        %v6163 = vld [vmem:[%s6147 + $0xb0] sm:$0xff]
        %v6164 = vld [vmem:[%s6147 + $0xc0] sm:$0xff]
        %v6165 = vld [vmem:[%s6147 + $0xc8] sm:$0xff]
        %v6166 = vld [vmem:[%s6147 + $0xd8] sm:$0xff]
        %v6167 = vld [vmem:[%s6147 + $0xe0] sm:$0xff]
        %v6168 = vld [vmem:[%s6147 + $0xf0] sm:$0xff]
        %v6169 = vld [vmem:[%s6147 + $0xf8] sm:$0xff]
        %v6170 = vld [vmem:[%s6147 + $0x108] sm:$0xff]
        %v6171 = vld [vmem:[%s6147 + $0x110] sm:$0xff]
        %v6172 = vld [vmem:[%s6147 + $0x120] sm:$0xff]
        %v6173 = vld [vmem:[%s6147 + $0x128] sm:$0xff]
        %v6174 = vld [vmem:[%s6147 + $0x138] sm:$0xff]
        %v6175 = vld [vmem:[%s6147 + $0x140] sm:$0xff]
        %v6176 = vld [vmem:[%s6147 + $0x150] sm:$0xff]
        %v6177 = vld [vmem:[%s6147 + $0x158] sm:$0xff]
        %v6178 = vld [vmem:[%s6147 + $0x168] sm:$0xff]
        %v6179 = vld [vmem:[%s6147 + $0x170] sm:$0xff]
        %v6180 = vld [vmem:[#allocation5] sm:$0xff]
        %v6181 = vld [vmem:[#allocation5 + $0x8] sm:$0xff]
        %v6182 = vld [vmem:[#allocation5 + $0x10] sm:$0xff]
        %v6183 = vld [vmem:[#allocation5 + $0x18] sm:$0xff]
        %v6184 = vld [vmem:[#allocation5 + $0x20] sm:$0xff]
        %v6185 = vld [vmem:[#allocation5 + $0x28] sm:$0xff]
        %v6186 = vld [vmem:[#allocation5 + $0x30] sm:$0xff]
        %v6187 = vld [vmem:[#allocation5 + $0x38] sm:$0xff]
        %v6188 = vld [vmem:[#allocation5 + $0x40] sm:$0xff]
        %v6189 = vld [vmem:[#allocation5 + $0x48] sm:$0xff]
        %v6190 = vld [vmem:[#allocation5 + $0x50] sm:$0xff]
        %v6191 = vld [vmem:[#allocation5 + $0x58] sm:$0xff]
        %v6192 = vld [vmem:[#allocation5 + $0x60] sm:$0xff]
        %v6193 = vld [vmem:[#allocation5 + $0x68] sm:$0xff]
        %v6194 = vld [vmem:[#allocation5 + $0x70] sm:$0xff]
        %v6195 = vld [vmem:[#allocation5 + $0x78] sm:$0xff]
        %v6196 = vld [vmem:[#allocation5 + $0x80] sm:$0xff]
        %v6197 = vld [vmem:[#allocation5 + $0x88] sm:$0xff]
        %v6198 = vld [vmem:[#allocation5 + $0x90] sm:$0xff]
        %v6199 = vld [vmem:[#allocation5 + $0x98] sm:$0xff]
        %v6200 = vld [vmem:[#allocation5 + $0xa0] sm:$0xff]
        %v6201 = vld [vmem:[#allocation5 + $0xa8] sm:$0xff]
        %v6202 = vld [vmem:[#allocation5 + $0xb0] sm:$0xff]
        %v6203 = vld [vmem:[#allocation5 + $0xb8] sm:$0xff]
        %v6204 = vld [vmem:[#allocation5 + $0xc0] sm:$0xff]
        %v6205 = vld [vmem:[#allocation5 + $0xc8] sm:$0xff]
        %v6206 = vld [vmem:[#allocation5 + $0xd0] sm:$0xff]
        %v6207 = vld [vmem:[#allocation5 + $0xd8] sm:$0xff]
        %v6208 = vld [vmem:[#allocation5 + $0xe0] sm:$0xff]
        %v6209 = vld [vmem:[#allocation5 + $0xe8] sm:$0xff]
        %v6210 = vld [vmem:[#allocation5 + $0xf0] sm:$0xff]
        %v6211 = vld [vmem:[#allocation5 + $0xf8] sm:$0xff]
        %s6212 = scalar_lea.vmem [#allocation11], 768
        %v6213 = vld [vmem:[%s6212] sm:$0xff]
        %v6214 = vld [vmem:[%s6212 + $0x8] sm:$0xff]
        %v6215 = vld [vmem:[%s6212 + $0x10] sm:$0xff]
        %v6216 = vld [vmem:[%s6212 + $0x18] sm:$0xff]
        %v6217 = vld [vmem:[%s6212 + $0x20] sm:$0xff]
        %v6218 = vld [vmem:[%s6212 + $0x28] sm:$0xff]
        %v6219 = vld [vmem:[%s6212 + $0x30] sm:$0xff]
        %v6220 = vld [vmem:[%s6212 + $0x38] sm:$0xff]
        %v6221 = vld [vmem:[%s6212 + $0x40] sm:$0xff]
        %v6222 = vld [vmem:[%s6212 + $0x48] sm:$0xff]
        %v6223 = vld [vmem:[%s6212 + $0x50] sm:$0xff]
        %v6224 = vld [vmem:[%s6212 + $0x58] sm:$0xff]
        %v6225 = vld [vmem:[%s6212 + $0x60] sm:$0xff]
        %v6226 = vld [vmem:[%s6212 + $0x68] sm:$0xff]
        %v6227 = vld [vmem:[%s6212 + $0x70] sm:$0xff]
        %v6228 = vld [vmem:[%s6212 + $0x78] sm:$0xff]
        %6229 = vmatprep.subr.mxu0 0.0
        %6230 = vmatpush1.msra.mxu0 %v6213
        %6231 = vmatprep.subr.mxu0 0.0
        %6232 = vmatpush1.msra.mxu0 %v6214
        %6233 = vmatprep.subr.mxu0 0.0
        %6234 = vmatpush1.msra.mxu0 %v6215
        %6235 = vmatprep.subr.mxu0 0.0
        %6236 = vmatpush1.msra.mxu0 %v6216
        %6237 = vmatprep.subr.mxu0 0.0
        %6238 = vmatpush1.msra.mxu0 %v6217
        %6239 = vmatprep.subr.mxu0 0.0
        %6240 = vmatpush1.msra.mxu0 %v6218
        %6241 = vmatprep.subr.mxu0 0.0
        %6242 = vmatpush1.msra.mxu0 %v6219
        %6243 = vmatprep.subr.mxu0 0.0
        %6244 = vmatpush1.msra.mxu0 %v6220
        %6245 = vmatprep.subr.mxu0 0.0
        %6246 = vmatpush1.msra.mxu0 %v6221
        %6247 = vmatprep.subr.mxu0 0.0
        %6248 = vmatpush1.msra.mxu0 %v6222
        %6249 = vmatprep.subr.mxu0 0.0
        %6250 = vmatpush1.msra.mxu0 %v6223
        %6251 = vmatprep.subr.mxu0 0.0
        %6252 = vmatpush1.msra.mxu0 %v6224
        %6253 = vmatprep.subr.mxu0 0.0
        %6254 = vmatpush1.msra.mxu0 %v6225
        %6255 = vmatprep.subr.mxu0 0.0
        %6256 = vmatpush1.msra.mxu0 %v6226
        %6257 = vmatprep.subr.mxu0 0.0
        %6258 = vmatpush1.msra.mxu0 %v6227
        %6259 = vmatprep.subr.mxu0 0.0
        %6260 = vmatpush1.msra.mxu0 %v6228
        %6261 = vmatprep.subr.mxu0 0.0
        %6262 = vmatpush1.msra.mxu0 0.0
        %6263 = vmatprep.subr.mxu0 0.0
        %6264 = vmatpush1.msra.mxu0 0.0
        %6265 = vmatprep.subr.mxu0 0.0
        %6266 = vmatpush1.msra.mxu0 0.0
        %6267 = vmatprep.subr.mxu0 0.0
        %6268 = vmatpush1.msra.mxu0 0.0
        %6269 = vmatprep.subr.mxu0 0.0
        %6270 = vmatpush1.msra.mxu0 0.0
        %6271 = vmatprep.subr.mxu0 0.0
        %6272 = vmatpush1.msra.mxu0 0.0
        %6273 = vmatprep.subr.mxu0 0.0
        %6274 = vmatpush1.msra.mxu0 0.0
        %6275 = vmatprep.subr.mxu0 0.0
        %6276 = vmatpush1.msra.mxu0 0.0
        %6277 = vmatprep.subr.mxu0 0.0
        %6278 = vmatpush1.msra.mxu0 0.0
        %6279 = vmatprep.subr.mxu0 0.0
        %6280 = vmatpush1.msra.mxu0 0.0
        %6281 = vmatprep.subr.mxu0 0.0
        %6282 = vmatpush1.msra.mxu0 0.0
        %6283 = vmatprep.subr.mxu0 0.0
        %6284 = vmatpush1.msra.mxu0 0.0
        %6285 = vmatprep.subr.mxu0 0.0
        %6286 = vmatpush1.msra.mxu0 0.0
        %6287 = vmatprep.subr.mxu0 0.0
        %6288 = vmatpush1.msra.mxu0 0.0
        %6289 = vmatprep.subr.mxu0 0.0
        %6290 = vmatpush1.msra.mxu0 0.0
        %6291 = vmatprep.subr.mxu0 0.0
        %6292 = vmatpush1.msra.mxu0 0.0
        %6293 = vmatprep.mubr.f32.mxu0 0.0
        %6294 = vmatmul.mubr.f32.gmra.mrb[0].mxu0 %v6148
        %v6295 = vpop.f32.mrb[0].mxu0
        %v6296 = vadd.f32 0.0, %v6295
        %v6297 = vpop.f32.mrb[0].mxu0
        %6298 = vmatprep.mubr.f32.mxu0 0.0
        %6299 = vmatmul.mubr.f32.gmra.mrb[0].mxu0 %v6149
        %v6300 = vpop.f32.mrb[0].mxu0
        %v6301 = vadd.f32 0.0, %v6300
        %v6302 = vpop.f32.mrb[0].mxu0
        %6303 = vmatprep.mubr.f32.mxu0 0.0
        %6304 = vmatmul.mubr.f32.gmra.mrb[0].mxu0 %v6150
        %v6305 = vpop.f32.mrb[0].mxu0
        %v6306 = vadd.f32 0.0, %v6305
        %v6307 = vpop.f32.mrb[0].mxu0
        %6308 = vmatprep.mubr.f32.mxu0 0.0
        %6309 = vmatmul.mubr.f32.gmra.mrb[0].mxu0 %v6151
        %v6310 = vpop.f32.mrb[0].mxu0
        %v6311 = vadd.f32 0.0, %v6310
        %v6312 = vpop.f32.mrb[0].mxu0
        %6313 = vmatprep.mubr.f32.mxu0 0.0
        %6314 = vmatmul.mubr.f32.gmra.mrb[0].mxu0 %v6152
        %v6315 = vpop.f32.mrb[0].mxu0
        %v6316 = vadd.f32 0.0, %v6315
        %v6317 = vpop.f32.mrb[0].mxu0
        %6318 = vmatprep.mubr.f32.mxu0 0.0
        %6319 = vmatmul.mubr.f32.gmra.mrb[0].mxu0 %v6153
        %v6320 = vpop.f32.mrb[0].mxu0
        %v6321 = vadd.f32 0.0, %v6320
        %v6322 = vpop.f32.mrb[0].mxu0
        %6323 = vmatprep.mubr.f32.mxu0 0.0
        %6324 = vmatmul.mubr.f32.gmra.mrb[0].mxu0 %v6154
        %v6325 = vpop.f32.mrb[0].mxu0
        %v6326 = vadd.f32 0.0, %v6325
        %v6327 = vpop.f32.mrb[0].mxu0
        %6328 = vmatprep.mubr.f32.mxu0 0.0
        %6329 = vmatmul.mubr.f32.gmra.mrb[0].mxu0 %v6155
        %v6330 = vpop.f32.mrb[0].mxu0
        %v6331 = vadd.f32 0.0, %v6330
        %v6332 = vpop.f32.mrb[0].mxu0
        %6333 = vmatprep.mubr.f32.mxu0 0.0
        %6334 = vmatmul.mubr.f32.gmra.mrb[0].mxu0 %v6156
        %v6335 = vpop.f32.mrb[0].mxu0
        %v6336 = vadd.f32 0.0, %v6335
        %v6337 = vpop.f32.mrb[0].mxu0
        %6338 = vmatprep.mubr.f32.mxu0 0.0
        %6339 = vmatmul.mubr.f32.gmra.mrb[0].mxu0 %v6157
        %v6340 = vpop.f32.mrb[0].mxu0
        %v6341 = vadd.f32 0.0, %v6340
        %v6342 = vpop.f32.mrb[0].mxu0
        %6343 = vmatprep.mubr.f32.mxu0 0.0
        %6344 = vmatmul.mubr.f32.gmra.mrb[0].mxu0 %v6158
        %v6345 = vpop.f32.mrb[0].mxu0
        %v6346 = vadd.f32 0.0, %v6345
        %v6347 = vpop.f32.mrb[0].mxu0
        %6348 = vmatprep.mubr.f32.mxu0 0.0
        %6349 = vmatmul.mubr.f32.gmra.mrb[0].mxu0 %v6159
        %v6350 = vpop.f32.mrb[0].mxu0
        %v6351 = vadd.f32 0.0, %v6350
        %v6352 = vpop.f32.mrb[0].mxu0
        %6353 = vmatprep.mubr.f32.mxu0 0.0
        %6354 = vmatmul.mubr.f32.gmra.mrb[0].mxu0 %v6160
        %v6355 = vpop.f32.mrb[0].mxu0
        %v6356 = vadd.f32 0.0, %v6355
        %v6357 = vpop.f32.mrb[0].mxu0
        %6358 = vmatprep.mubr.f32.mxu0 0.0
        %6359 = vmatmul.mubr.f32.gmra.mrb[0].mxu0 %v6161
        %v6360 = vpop.f32.mrb[0].mxu0
        %v6361 = vadd.f32 0.0, %v6360
        %v6362 = vpop.f32.mrb[0].mxu0
        %6363 = vmatprep.mubr.f32.mxu0 0.0
        %6364 = vmatmul.mubr.f32.gmra.mrb[0].mxu0 %v6162
        %v6365 = vpop.f32.mrb[0].mxu0
        %v6366 = vadd.f32 0.0, %v6365
        %v6367 = vpop.f32.mrb[0].mxu0
        %6368 = vmatprep.mubr.f32.mxu0 0.0
        %6369 = vmatmul.mubr.f32.gmra.mrb[0].mxu0 %v6163
        %v6370 = vpop.f32.mrb[0].mxu0
        %v6371 = vadd.f32 0.0, %v6370
        %v6372 = vpop.f32.mrb[0].mxu0
        %6373 = vmatprep.mubr.f32.mxu0 0.0
        %6374 = vmatmul.mubr.f32.gmra.mrb[0].mxu0 %v6164
        %v6375 = vpop.f32.mrb[0].mxu0
        %v6376 = vadd.f32 0.0, %v6375
        %v6377 = vpop.f32.mrb[0].mxu0
        %6378 = vmatprep.mubr.f32.mxu0 0.0
        %6379 = vmatmul.mubr.f32.gmra.mrb[0].mxu0 %v6165
        %v6380 = vpop.f32.mrb[0].mxu0
        %v6381 = vadd.f32 0.0, %v6380
        %v6382 = vpop.f32.mrb[0].mxu0
        %6383 = vmatprep.mubr.f32.mxu0 0.0
        %6384 = vmatmul.mubr.f32.gmra.mrb[0].mxu0 %v6166
        %v6385 = vpop.f32.mrb[0].mxu0
        %v6386 = vadd.f32 0.0, %v6385
        %v6387 = vpop.f32.mrb[0].mxu0
        %6388 = vmatprep.mubr.f32.mxu0 0.0
        %6389 = vmatmul.mubr.f32.gmra.mrb[0].mxu0 %v6167
        %v6390 = vpop.f32.mrb[0].mxu0
        %v6391 = vadd.f32 0.0, %v6390
        %v6392 = vpop.f32.mrb[0].mxu0
        %6393 = vmatprep.mubr.f32.mxu0 0.0
        %6394 = vmatmul.mubr.f32.gmra.mrb[0].mxu0 %v6168
        %v6395 = vpop.f32.mrb[0].mxu0
        %v6396 = vadd.f32 0.0, %v6395
        %v6397 = vpop.f32.mrb[0].mxu0
        %6398 = vmatprep.mubr.f32.mxu0 0.0
        %6399 = vmatmul.mubr.f32.gmra.mrb[0].mxu0 %v6169
        %v6400 = vpop.f32.mrb[0].mxu0
        %v6401 = vadd.f32 0.0, %v6400
        %v6402 = vpop.f32.mrb[0].mxu0
        %6403 = vmatprep.mubr.f32.mxu0 0.0
        %6404 = vmatmul.mubr.f32.gmra.mrb[0].mxu0 %v6170
        %v6405 = vpop.f32.mrb[0].mxu0
        %v6406 = vadd.f32 0.0, %v6405
        %v6407 = vpop.f32.mrb[0].mxu0
        %6408 = vmatprep.mubr.f32.mxu0 0.0
        %6409 = vmatmul.mubr.f32.gmra.mrb[0].mxu0 %v6171
        %v6410 = vpop.f32.mrb[0].mxu0
        %v6411 = vadd.f32 0.0, %v6410
        %v6412 = vpop.f32.mrb[0].mxu0
        %6413 = vmatprep.mubr.f32.mxu0 0.0
        %6414 = vmatmul.mubr.f32.gmra.mrb[0].mxu0 %v6172
        %v6415 = vpop.f32.mrb[0].mxu0
        %v6416 = vadd.f32 0.0, %v6415
        %v6417 = vpop.f32.mrb[0].mxu0
        %6418 = vmatprep.mubr.f32.mxu0 0.0
        %6419 = vmatmul.mubr.f32.gmra.mrb[0].mxu0 %v6173
        %v6420 = vpop.f32.mrb[0].mxu0
        %v6421 = vadd.f32 0.0, %v6420
        %v6422 = vpop.f32.mrb[0].mxu0
        %6423 = vmatprep.mubr.f32.mxu0 0.0
        %6424 = vmatmul.mubr.f32.gmra.mrb[0].mxu0 %v6174
        %v6425 = vpop.f32.mrb[0].mxu0
        %v6426 = vadd.f32 0.0, %v6425
        %v6427 = vpop.f32.mrb[0].mxu0
        %6428 = vmatprep.mubr.f32.mxu0 0.0
        %6429 = vmatmul.mubr.f32.gmra.mrb[0].mxu0 %v6175
        %v6430 = vpop.f32.mrb[0].mxu0
        %v6431 = vadd.f32 0.0, %v6430
        %v6432 = vpop.f32.mrb[0].mxu0
        %6433 = vmatprep.mubr.f32.mxu0 0.0
        %6434 = vmatmul.mubr.f32.gmra.mrb[0].mxu0 %v6176
        %v6435 = vpop.f32.mrb[0].mxu0
        %v6436 = vadd.f32 0.0, %v6435
        %v6437 = vpop.f32.mrb[0].mxu0
        %6438 = vmatprep.mubr.f32.mxu0 0.0
        %6439 = vmatmul.mubr.f32.gmra.mrb[0].mxu0 %v6177
        %v6440 = vpop.f32.mrb[0].mxu0
        %v6441 = vadd.f32 0.0, %v6440
        %v6442 = vpop.f32.mrb[0].mxu0
        %6443 = vmatprep.mubr.f32.mxu0 0.0
        %6444 = vmatmul.mubr.f32.gmra.mrb[0].mxu0 %v6178
        %v6445 = vpop.f32.mrb[0].mxu0
        %v6446 = vadd.f32 0.0, %v6445
        %v6447 = vpop.f32.mrb[0].mxu0
        %6448 = vmatprep.mubr.f32.mxu0 0.0
        %6449 = vmatmul.mubr.f32.gmra.mrb[0].mxu0 %v6179
        %v6450 = vpop.f32.mrb[0].mxu0
        %v6451 = vadd.f32 0.0, %v6450
        %v6452 = vpop.f32.mrb[0].mxu0
        %6453 = vdwg.mxu0
        %v6454 = vadd.f32 %v6180, %v6296
        %v6455 = vadd.f32 %v6181, %v6301
        %v6456 = vadd.f32 %v6182, %v6306
        %v6457 = vadd.f32 %v6183, %v6311
        %v6458 = vadd.f32 %v6184, %v6316
        %v6459 = vadd.f32 %v6185, %v6321
        %v6460 = vadd.f32 %v6186, %v6326
        %v6461 = vadd.f32 %v6187, %v6331
        %v6462 = vadd.f32 %v6188, %v6336
        %v6463 = vadd.f32 %v6189, %v6341
        %v6464 = vadd.f32 %v6190, %v6346
        %v6465 = vadd.f32 %v6191, %v6351
        %v6466 = vadd.f32 %v6192, %v6356
        %v6467 = vadd.f32 %v6193, %v6361
        %v6468 = vadd.f32 %v6194, %v6366
        %v6469 = vadd.f32 %v6195, %v6371
        %v6470 = vadd.f32 %v6196, %v6376
        %v6471 = vadd.f32 %v6197, %v6381
        %v6472 = vadd.f32 %v6198, %v6386
        %v6473 = vadd.f32 %v6199, %v6391
        %v6474 = vadd.f32 %v6200, %v6396
        %v6475 = vadd.f32 %v6201, %v6401
        %v6476 = vadd.f32 %v6202, %v6406
        %v6477 = vadd.f32 %v6203, %v6411
        %v6478 = vadd.f32 %v6204, %v6416
        %v6479 = vadd.f32 %v6205, %v6421
        %v6480 = vadd.f32 %v6206, %v6426
        %v6481 = vadd.f32 %v6207, %v6431
        %v6482 = vadd.f32 %v6208, %v6436
        %v6483 = vadd.f32 %v6209, %v6441
        %v6484 = vadd.f32 %v6210, %v6446
        %v6485 = vadd.f32 %v6211, %v6451
        %6486 = vst [vmem:[#allocation5] sm:$0xff] %v6454
        %6487 = vst [vmem:[#allocation5 + $0x8] sm:$0xff] %v6455
        %6488 = vst [vmem:[#allocation5 + $0x10] sm:$0xff] %v6456
        %6489 = vst [vmem:[#allocation5 + $0x18] sm:$0xff] %v6457
        %6490 = vst [vmem:[#allocation5 + $0x20] sm:$0xff] %v6458
        %6491 = vst [vmem:[#allocation5 + $0x28] sm:$0xff] %v6459
        %6492 = vst [vmem:[#allocation5 + $0x30] sm:$0xff] %v6460
        %6493 = vst [vmem:[#allocation5 + $0x38] sm:$0xff] %v6461
        %6494 = vst [vmem:[#allocation5 + $0x40] sm:$0xff] %v6462
        %6495 = vst [vmem:[#allocation5 + $0x48] sm:$0xff] %v6463
        %6496 = vst [vmem:[#allocation5 + $0x50] sm:$0xff] %v6464
        %6497 = vst [vmem:[#allocation5 + $0x58] sm:$0xff] %v6465
        %6498 = vst [vmem:[#allocation5 + $0x60] sm:$0xff] %v6466
        %6499 = vst [vmem:[#allocation5 + $0x68] sm:$0xff] %v6467
        %6500 = vst [vmem:[#allocation5 + $0x70] sm:$0xff] %v6468
        %6501 = vst [vmem:[#allocation5 + $0x78] sm:$0xff] %v6469
        %6502 = vst [vmem:[#allocation5 + $0x80] sm:$0xff] %v6470
        %6503 = vst [vmem:[#allocation5 + $0x88] sm:$0xff] %v6471
        %6504 = vst [vmem:[#allocation5 + $0x90] sm:$0xff] %v6472
        %6505 = vst [vmem:[#allocation5 + $0x98] sm:$0xff] %v6473
        %6506 = vst [vmem:[#allocation5 + $0xa0] sm:$0xff] %v6474
        %6507 = vst [vmem:[#allocation5 + $0xa8] sm:$0xff] %v6475
        %6508 = vst [vmem:[#allocation5 + $0xb0] sm:$0xff] %v6476
        %6509 = vst [vmem:[#allocation5 + $0xb8] sm:$0xff] %v6477
        %6510 = vst [vmem:[#allocation5 + $0xc0] sm:$0xff] %v6478
        %6511 = vst [vmem:[#allocation5 + $0xc8] sm:$0xff] %v6479
        %6512 = vst [vmem:[#allocation5 + $0xd0] sm:$0xff] %v6480
        %6513 = vst [vmem:[#allocation5 + $0xd8] sm:$0xff] %v6481
        %6514 = vst [vmem:[#allocation5 + $0xe0] sm:$0xff] %v6482
        %6515 = vst [vmem:[#allocation5 + $0xe8] sm:$0xff] %v6483
        %6516 = vst [vmem:[#allocation5 + $0xf0] sm:$0xff] %v6484
        %6517 = vst [vmem:[#allocation5 + $0xf8] sm:$0xff] %v6485
        %v6518 = vld [vmem:[%s6147 + $0x1] sm:$0xff]
        %v6519 = vld [vmem:[%s6147 + $0x9] sm:$0xff]
        %v6520 = vld [vmem:[%s6147 + $0x19] sm:$0xff]
        %v6521 = vld [vmem:[%s6147 + $0x21] sm:$0xff]
        %v6522 = vld [vmem:[%s6147 + $0x31] sm:$0xff]
        %v6523 = vld [vmem:[%s6147 + $0x39] sm:$0xff]
        %v6524 = vld [vmem:[%s6147 + $0x49] sm:$0xff]
        %v6525 = vld [vmem:[%s6147 + $0x51] sm:$0xff]
        %v6526 = vld [vmem:[%s6147 + $0x61] sm:$0xff]
        %v6527 = vld [vmem:[%s6147 + $0x69] sm:$0xff]
        %v6528 = vld [vmem:[%s6147 + $0x79] sm:$0xff]
        %v6529 = vld [vmem:[%s6147 + $0x81] sm:$0xff]
        %v6530 = vld [vmem:[%s6147 + $0x91] sm:$0xff]
        %v6531 = vld [vmem:[%s6147 + $0x99] sm:$0xff]
        %v6532 = vld [vmem:[%s6147 + $0xa9] sm:$0xff]
        %v6533 = vld [vmem:[%s6147 + $0xb1] sm:$0xff]
        %v6534 = vld [vmem:[%s6147 + $0xc1] sm:$0xff]
        %v6535 = vld [vmem:[%s6147 + $0xc9] sm:$0xff]
        %v6536 = vld [vmem:[%s6147 + $0xd9] sm:$0xff]
        %v6537 = vld [vmem:[%s6147 + $0xe1] sm:$0xff]
        %v6538 = vld [vmem:[%s6147 + $0xf1] sm:$0xff]
        %v6539 = vld [vmem:[%s6147 + $0xf9] sm:$0xff]
        %v6540 = vld [vmem:[%s6147 + $0x109] sm:$0xff]
        %v6541 = vld [vmem:[%s6147 + $0x111] sm:$0xff]
        %v6542 = vld [vmem:[%s6147 + $0x121] sm:$0xff]
        %v6543 = vld [vmem:[%s6147 + $0x129] sm:$0xff]
        %v6544 = vld [vmem:[%s6147 + $0x139] sm:$0xff]
        %v6545 = vld [vmem:[%s6147 + $0x141] sm:$0xff]
        %v6546 = vld [vmem:[%s6147 + $0x151] sm:$0xff]
        %v6547 = vld [vmem:[%s6147 + $0x159] sm:$0xff]
        %v6548 = vld [vmem:[%s6147 + $0x169] sm:$0xff]
        %v6549 = vld [vmem:[%s6147 + $0x171] sm:$0xff]
        %v6550 = vld [vmem:[#allocation5] sm:$0xff]
        %v6551 = vld [vmem:[#allocation5 + $0x8] sm:$0xff]
        %v6552 = vld [vmem:[#allocation5 + $0x10] sm:$0xff]
        %v6553 = vld [vmem:[#allocation5 + $0x18] sm:$0xff]
        %v6554 = vld [vmem:[#allocation5 + $0x20] sm:$0xff]
        %v6555 = vld [vmem:[#allocation5 + $0x28] sm:$0xff]
        %v6556 = vld [vmem:[#allocation5 + $0x30] sm:$0xff]
        %v6557 = vld [vmem:[#allocation5 + $0x38] sm:$0xff]
        %v6558 = vld [vmem:[#allocation5 + $0x40] sm:$0xff]
        %v6559 = vld [vmem:[#allocation5 + $0x48] sm:$0xff]
        %v6560 = vld [vmem:[#allocation5 + $0x50] sm:$0xff]
        %v6561 = vld [vmem:[#allocation5 + $0x58] sm:$0xff]
        %v6562 = vld [vmem:[#allocation5 + $0x60] sm:$0xff]
        %v6563 = vld [vmem:[#allocation5 + $0x68] sm:$0xff]
        %v6564 = vld [vmem:[#allocation5 + $0x70] sm:$0xff]
        %v6565 = vld [vmem:[#allocation5 + $0x78] sm:$0xff]
        %v6566 = vld [vmem:[#allocation5 + $0x80] sm:$0xff]
        %v6567 = vld [vmem:[#allocation5 + $0x88] sm:$0xff]
        %v6568 = vld [vmem:[#allocation5 + $0x90] sm:$0xff]
        %v6569 = vld [vmem:[#allocation5 + $0x98] sm:$0xff]
        %v6570 = vld [vmem:[#allocation5 + $0xa0] sm:$0xff]
        %v6571 = vld [vmem:[#allocation5 + $0xa8] sm:$0xff]
        %v6572 = vld [vmem:[#allocation5 + $0xb0] sm:$0xff]
        %v6573 = vld [vmem:[#allocation5 + $0xb8] sm:$0xff]
        %v6574 = vld [vmem:[#allocation5 + $0xc0] sm:$0xff]
        %v6575 = vld [vmem:[#allocation5 + $0xc8] sm:$0xff]
        %v6576 = vld [vmem:[#allocation5 + $0xd0] sm:$0xff]
        %v6577 = vld [vmem:[#allocation5 + $0xd8] sm:$0xff]
        %v6578 = vld [vmem:[#allocation5 + $0xe0] sm:$0xff]
        %v6579 = vld [vmem:[#allocation5 + $0xe8] sm:$0xff]
        %v6580 = vld [vmem:[#allocation5 + $0xf0] sm:$0xff]
        %v6581 = vld [vmem:[#allocation5 + $0xf8] sm:$0xff]
        %s6582 = scalar_lea.vmem [#allocation11], 896
        %v6583 = vld [vmem:[%s6582] sm:$0xff]
        %v6584 = vld [vmem:[%s6582 + $0x8] sm:$0xff]
        %v6585 = vld [vmem:[%s6582 + $0x10] sm:$0xff]
        %v6586 = vld [vmem:[%s6582 + $0x18] sm:$0xff]
        %v6587 = vld [vmem:[%s6582 + $0x20] sm:$0xff]
        %v6588 = vld [vmem:[%s6582 + $0x28] sm:$0xff]
        %v6589 = vld [vmem:[%s6582 + $0x30] sm:$0xff]
        %v6590 = vld [vmem:[%s6582 + $0x38] sm:$0xff]
        %v6591 = vld [vmem:[%s6582 + $0x40] sm:$0xff]
        %v6592 = vld [vmem:[%s6582 + $0x48] sm:$0xff]
        %v6593 = vld [vmem:[%s6582 + $0x50] sm:$0xff]
        %v6594 = vld [vmem:[%s6582 + $0x58] sm:$0xff]
        %v6595 = vld [vmem:[%s6582 + $0x60] sm:$0xff]
        %v6596 = vld [vmem:[%s6582 + $0x68] sm:$0xff]
        %v6597 = vld [vmem:[%s6582 + $0x70] sm:$0xff]
        %v6598 = vld [vmem:[%s6582 + $0x78] sm:$0xff]
        %6599 = vmatprep.subr.mxu0 0.0
        %6600 = vmatpush1.msra.mxu0 %v6583
        %6601 = vmatprep.subr.mxu0 0.0
        %6602 = vmatpush1.msra.mxu0 %v6584
        %6603 = vmatprep.subr.mxu0 0.0
        %6604 = vmatpush1.msra.mxu0 %v6585
        %6605 = vmatprep.subr.mxu0 0.0
        %6606 = vmatpush1.msra.mxu0 %v6586
        %6607 = vmatprep.subr.mxu0 0.0
        %6608 = vmatpush1.msra.mxu0 %v6587
        %6609 = vmatprep.subr.mxu0 0.0
        %6610 = vmatpush1.msra.mxu0 %v6588
        %6611 = vmatprep.subr.mxu0 0.0
        %6612 = vmatpush1.msra.mxu0 %v6589
        %6613 = vmatprep.subr.mxu0 0.0
        %6614 = vmatpush1.msra.mxu0 %v6590
        %6615 = vmatprep.subr.mxu0 0.0
        %6616 = vmatpush1.msra.mxu0 %v6591
        %6617 = vmatprep.subr.mxu0 0.0
        %6618 = vmatpush1.msra.mxu0 %v6592
        %6619 = vmatprep.subr.mxu0 0.0
        %6620 = vmatpush1.msra.mxu0 %v6593
        %6621 = vmatprep.subr.mxu0 0.0
        %6622 = vmatpush1.msra.mxu0 %v6594
        %6623 = vmatprep.subr.mxu0 0.0
        %6624 = vmatpush1.msra.mxu0 %v6595
        %6625 = vmatprep.subr.mxu0 0.0
        %6626 = vmatpush1.msra.mxu0 %v6596
        %6627 = vmatprep.subr.mxu0 0.0
        %6628 = vmatpush1.msra.mxu0 %v6597
        %6629 = vmatprep.subr.mxu0 0.0
        %6630 = vmatpush1.msra.mxu0 %v6598
        %6631 = vmatprep.subr.mxu0 0.0
        %6632 = vmatpush1.msra.mxu0 0.0
        %6633 = vmatprep.subr.mxu0 0.0
        %6634 = vmatpush1.msra.mxu0 0.0
        %6635 = vmatprep.subr.mxu0 0.0
        %6636 = vmatpush1.msra.mxu0 0.0
        %6637 = vmatprep.subr.mxu0 0.0
        %6638 = vmatpush1.msra.mxu0 0.0
        %6639 = vmatprep.subr.mxu0 0.0
        %6640 = vmatpush1.msra.mxu0 0.0
        %6641 = vmatprep.subr.mxu0 0.0
        %6642 = vmatpush1.msra.mxu0 0.0
        %6643 = vmatprep.subr.mxu0 0.0
        %6644 = vmatpush1.msra.mxu0 0.0
        %6645 = vmatprep.subr.mxu0 0.0
        %6646 = vmatpush1.msra.mxu0 0.0
        %6647 = vmatprep.subr.mxu0 0.0
        %6648 = vmatpush1.msra.mxu0 0.0
        %6649 = vmatprep.subr.mxu0 0.0
        %6650 = vmatpush1.msra.mxu0 0.0
        %6651 = vmatprep.subr.mxu0 0.0
        %6652 = vmatpush1.msra.mxu0 0.0
        %6653 = vmatprep.subr.mxu0 0.0
        %6654 = vmatpush1.msra.mxu0 0.0
        %6655 = vmatprep.subr.mxu0 0.0
        %6656 = vmatpush1.msra.mxu0 0.0
        %6657 = vmatprep.subr.mxu0 0.0
        %6658 = vmatpush1.msra.mxu0 0.0
        %6659 = vmatprep.subr.mxu0 0.0
        %6660 = vmatpush1.msra.mxu0 0.0
        %6661 = vmatprep.subr.mxu0 0.0
        %6662 = vmatpush1.msra.mxu0 0.0
        %6663 = vmatprep.mubr.f32.mxu0 0.0
        %6664 = vmatmul.mubr.f32.gmra.mrb[0].mxu0 %v6518
        %v6665 = vpop.f32.mrb[0].mxu0
        %v6666 = vadd.f32 0.0, %v6665
        %v6667 = vpop.f32.mrb[0].mxu0
        %6668 = vmatprep.mubr.f32.mxu0 0.0
        %6669 = vmatmul.mubr.f32.gmra.mrb[0].mxu0 %v6519
        %v6670 = vpop.f32.mrb[0].mxu0
        %v6671 = vadd.f32 0.0, %v6670
        %v6672 = vpop.f32.mrb[0].mxu0
        %6673 = vmatprep.mubr.f32.mxu0 0.0
        %6674 = vmatmul.mubr.f32.gmra.mrb[0].mxu0 %v6520
        %v6675 = vpop.f32.mrb[0].mxu0
        %v6676 = vadd.f32 0.0, %v6675
        %v6677 = vpop.f32.mrb[0].mxu0
        %6678 = vmatprep.mubr.f32.mxu0 0.0
        %6679 = vmatmul.mubr.f32.gmra.mrb[0].mxu0 %v6521
        %v6680 = vpop.f32.mrb[0].mxu0
        %v6681 = vadd.f32 0.0, %v6680
        %v6682 = vpop.f32.mrb[0].mxu0
        %6683 = vmatprep.mubr.f32.mxu0 0.0
        %6684 = vmatmul.mubr.f32.gmra.mrb[0].mxu0 %v6522
        %v6685 = vpop.f32.mrb[0].mxu0
        %v6686 = vadd.f32 0.0, %v6685
        %v6687 = vpop.f32.mrb[0].mxu0
        %6688 = vmatprep.mubr.f32.mxu0 0.0
        %6689 = vmatmul.mubr.f32.gmra.mrb[0].mxu0 %v6523
        %v6690 = vpop.f32.mrb[0].mxu0
        %v6691 = vadd.f32 0.0, %v6690
        %v6692 = vpop.f32.mrb[0].mxu0
        %6693 = vmatprep.mubr.f32.mxu0 0.0
        %6694 = vmatmul.mubr.f32.gmra.mrb[0].mxu0 %v6524
        %v6695 = vpop.f32.mrb[0].mxu0
        %v6696 = vadd.f32 0.0, %v6695
        %v6697 = vpop.f32.mrb[0].mxu0
        %6698 = vmatprep.mubr.f32.mxu0 0.0
        %6699 = vmatmul.mubr.f32.gmra.mrb[0].mxu0 %v6525
        %v6700 = vpop.f32.mrb[0].mxu0
        %v6701 = vadd.f32 0.0, %v6700
        %v6702 = vpop.f32.mrb[0].mxu0
        %6703 = vmatprep.mubr.f32.mxu0 0.0
        %6704 = vmatmul.mubr.f32.gmra.mrb[0].mxu0 %v6526
        %v6705 = vpop.f32.mrb[0].mxu0
        %v6706 = vadd.f32 0.0, %v6705
        %v6707 = vpop.f32.mrb[0].mxu0
        %6708 = vmatprep.mubr.f32.mxu0 0.0
        %6709 = vmatmul.mubr.f32.gmra.mrb[0].mxu0 %v6527
        %v6710 = vpop.f32.mrb[0].mxu0
        %v6711 = vadd.f32 0.0, %v6710
        %v6712 = vpop.f32.mrb[0].mxu0
        %6713 = vmatprep.mubr.f32.mxu0 0.0
        %6714 = vmatmul.mubr.f32.gmra.mrb[0].mxu0 %v6528
        %v6715 = vpop.f32.mrb[0].mxu0
        %v6716 = vadd.f32 0.0, %v6715
        %v6717 = vpop.f32.mrb[0].mxu0
        %6718 = vmatprep.mubr.f32.mxu0 0.0
        %6719 = vmatmul.mubr.f32.gmra.mrb[0].mxu0 %v6529
        %v6720 = vpop.f32.mrb[0].mxu0
        %v6721 = vadd.f32 0.0, %v6720
        %v6722 = vpop.f32.mrb[0].mxu0
        %6723 = vmatprep.mubr.f32.mxu0 0.0
        %6724 = vmatmul.mubr.f32.gmra.mrb[0].mxu0 %v6530
        %v6725 = vpop.f32.mrb[0].mxu0
        %v6726 = vadd.f32 0.0, %v6725
        %v6727 = vpop.f32.mrb[0].mxu0
        %6728 = vmatprep.mubr.f32.mxu0 0.0
        %6729 = vmatmul.mubr.f32.gmra.mrb[0].mxu0 %v6531
        %v6730 = vpop.f32.mrb[0].mxu0
        %v6731 = vadd.f32 0.0, %v6730
        %v6732 = vpop.f32.mrb[0].mxu0
        %6733 = vmatprep.mubr.f32.mxu0 0.0
        %6734 = vmatmul.mubr.f32.gmra.mrb[0].mxu0 %v6532
        %v6735 = vpop.f32.mrb[0].mxu0
        %v6736 = vadd.f32 0.0, %v6735
        %v6737 = vpop.f32.mrb[0].mxu0
        %6738 = vmatprep.mubr.f32.mxu0 0.0
        %6739 = vmatmul.mubr.f32.gmra.mrb[0].mxu0 %v6533
        %v6740 = vpop.f32.mrb[0].mxu0
        %v6741 = vadd.f32 0.0, %v6740
        %v6742 = vpop.f32.mrb[0].mxu0
        %6743 = vmatprep.mubr.f32.mxu0 0.0
        %6744 = vmatmul.mubr.f32.gmra.mrb[0].mxu0 %v6534
        %v6745 = vpop.f32.mrb[0].mxu0
        %v6746 = vadd.f32 0.0, %v6745
        %v6747 = vpop.f32.mrb[0].mxu0
        %6748 = vmatprep.mubr.f32.mxu0 0.0
        %6749 = vmatmul.mubr.f32.gmra.mrb[0].mxu0 %v6535
        %v6750 = vpop.f32.mrb[0].mxu0
        %v6751 = vadd.f32 0.0, %v6750
        %v6752 = vpop.f32.mrb[0].mxu0
        %6753 = vmatprep.mubr.f32.mxu0 0.0
        %6754 = vmatmul.mubr.f32.gmra.mrb[0].mxu0 %v6536
        %v6755 = vpop.f32.mrb[0].mxu0
        %v6756 = vadd.f32 0.0, %v6755
        %v6757 = vpop.f32.mrb[0].mxu0
        %6758 = vmatprep.mubr.f32.mxu0 0.0
        %6759 = vmatmul.mubr.f32.gmra.mrb[0].mxu0 %v6537
        %v6760 = vpop.f32.mrb[0].mxu0
        %v6761 = vadd.f32 0.0, %v6760
        %v6762 = vpop.f32.mrb[0].mxu0
        %6763 = vmatprep.mubr.f32.mxu0 0.0
        %6764 = vmatmul.mubr.f32.gmra.mrb[0].mxu0 %v6538
        %v6765 = vpop.f32.mrb[0].mxu0
        %v6766 = vadd.f32 0.0, %v6765
        %v6767 = vpop.f32.mrb[0].mxu0
        %6768 = vmatprep.mubr.f32.mxu0 0.0
        %6769 = vmatmul.mubr.f32.gmra.mrb[0].mxu0 %v6539
        %v6770 = vpop.f32.mrb[0].mxu0
        %v6771 = vadd.f32 0.0, %v6770
        %v6772 = vpop.f32.mrb[0].mxu0
        %6773 = vmatprep.mubr.f32.mxu0 0.0
        %6774 = vmatmul.mubr.f32.gmra.mrb[0].mxu0 %v6540
        %v6775 = vpop.f32.mrb[0].mxu0
        %v6776 = vadd.f32 0.0, %v6775
        %v6777 = vpop.f32.mrb[0].mxu0
        %6778 = vmatprep.mubr.f32.mxu0 0.0
        %6779 = vmatmul.mubr.f32.gmra.mrb[0].mxu0 %v6541
        %v6780 = vpop.f32.mrb[0].mxu0
        %v6781 = vadd.f32 0.0, %v6780
        %v6782 = vpop.f32.mrb[0].mxu0
        %6783 = vmatprep.mubr.f32.mxu0 0.0
        %6784 = vmatmul.mubr.f32.gmra.mrb[0].mxu0 %v6542
        %v6785 = vpop.f32.mrb[0].mxu0
        %v6786 = vadd.f32 0.0, %v6785
        %v6787 = vpop.f32.mrb[0].mxu0
        %6788 = vmatprep.mubr.f32.mxu0 0.0
        %6789 = vmatmul.mubr.f32.gmra.mrb[0].mxu0 %v6543
        %v6790 = vpop.f32.mrb[0].mxu0
        %v6791 = vadd.f32 0.0, %v6790
        %v6792 = vpop.f32.mrb[0].mxu0
        %6793 = vmatprep.mubr.f32.mxu0 0.0
        %6794 = vmatmul.mubr.f32.gmra.mrb[0].mxu0 %v6544
        %v6795 = vpop.f32.mrb[0].mxu0
        %v6796 = vadd.f32 0.0, %v6795
        %v6797 = vpop.f32.mrb[0].mxu0
        %6798 = vmatprep.mubr.f32.mxu0 0.0
        %6799 = vmatmul.mubr.f32.gmra.mrb[0].mxu0 %v6545
        %v6800 = vpop.f32.mrb[0].mxu0
        %v6801 = vadd.f32 0.0, %v6800
        %v6802 = vpop.f32.mrb[0].mxu0
        %6803 = vmatprep.mubr.f32.mxu0 0.0
        %6804 = vmatmul.mubr.f32.gmra.mrb[0].mxu0 %v6546
        %v6805 = vpop.f32.mrb[0].mxu0
        %v6806 = vadd.f32 0.0, %v6805
        %v6807 = vpop.f32.mrb[0].mxu0
        %6808 = vmatprep.mubr.f32.mxu0 0.0
        %6809 = vmatmul.mubr.f32.gmra.mrb[0].mxu0 %v6547
        %v6810 = vpop.f32.mrb[0].mxu0
        %v6811 = vadd.f32 0.0, %v6810
        %v6812 = vpop.f32.mrb[0].mxu0
        %6813 = vmatprep.mubr.f32.mxu0 0.0
        %6814 = vmatmul.mubr.f32.gmra.mrb[0].mxu0 %v6548
        %v6815 = vpop.f32.mrb[0].mxu0
        %v6816 = vadd.f32 0.0, %v6815
        %v6817 = vpop.f32.mrb[0].mxu0
        %6818 = vmatprep.mubr.f32.mxu0 0.0
        %6819 = vmatmul.mubr.f32.gmra.mrb[0].mxu0 %v6549
        %v6820 = vpop.f32.mrb[0].mxu0
        %v6821 = vadd.f32 0.0, %v6820
        %v6822 = vpop.f32.mrb[0].mxu0
        %6823 = vdwg.mxu0
        %v6824 = vadd.f32 %v6550, %v6666
        %v6825 = vadd.f32 %v6551, %v6671
        %v6826 = vadd.f32 %v6552, %v6676
        %v6827 = vadd.f32 %v6553, %v6681
        %v6828 = vadd.f32 %v6554, %v6686
        %v6829 = vadd.f32 %v6555, %v6691
        %v6830 = vadd.f32 %v6556, %v6696
        %v6831 = vadd.f32 %v6557, %v6701
        %v6832 = vadd.f32 %v6558, %v6706
        %v6833 = vadd.f32 %v6559, %v6711
        %v6834 = vadd.f32 %v6560, %v6716
        %v6835 = vadd.f32 %v6561, %v6721
        %v6836 = vadd.f32 %v6562, %v6726
        %v6837 = vadd.f32 %v6563, %v6731
        %v6838 = vadd.f32 %v6564, %v6736
        %v6839 = vadd.f32 %v6565, %v6741
        %v6840 = vadd.f32 %v6566, %v6746
        %v6841 = vadd.f32 %v6567, %v6751
        %v6842 = vadd.f32 %v6568, %v6756
        %v6843 = vadd.f32 %v6569, %v6761
        %v6844 = vadd.f32 %v6570, %v6766
        %v6845 = vadd.f32 %v6571, %v6771
        %v6846 = vadd.f32 %v6572, %v6776
        %v6847 = vadd.f32 %v6573, %v6781
        %v6848 = vadd.f32 %v6574, %v6786
        %v6849 = vadd.f32 %v6575, %v6791
        %v6850 = vadd.f32 %v6576, %v6796
        %v6851 = vadd.f32 %v6577, %v6801
        %v6852 = vadd.f32 %v6578, %v6806
        %v6853 = vadd.f32 %v6579, %v6811
        %v6854 = vadd.f32 %v6580, %v6816
        %v6855 = vadd.f32 %v6581, %v6821
        %6856 = vst [vmem:[#allocation5] sm:$0xff] %v6824
        %6857 = vst [vmem:[#allocation5 + $0x8] sm:$0xff] %v6825
        %6858 = vst [vmem:[#allocation5 + $0x10] sm:$0xff] %v6826
        %6859 = vst [vmem:[#allocation5 + $0x18] sm:$0xff] %v6827
        %6860 = vst [vmem:[#allocation5 + $0x20] sm:$0xff] %v6828
        %6861 = vst [vmem:[#allocation5 + $0x28] sm:$0xff] %v6829
        %6862 = vst [vmem:[#allocation5 + $0x30] sm:$0xff] %v6830
        %6863 = vst [vmem:[#allocation5 + $0x38] sm:$0xff] %v6831
        %6864 = vst [vmem:[#allocation5 + $0x40] sm:$0xff] %v6832
        %6865 = vst [vmem:[#allocation5 + $0x48] sm:$0xff] %v6833
        %6866 = vst [vmem:[#allocation5 + $0x50] sm:$0xff] %v6834
        %6867 = vst [vmem:[#allocation5 + $0x58] sm:$0xff] %v6835
        %6868 = vst [vmem:[#allocation5 + $0x60] sm:$0xff] %v6836
        %6869 = vst [vmem:[#allocation5 + $0x68] sm:$0xff] %v6837
        %6870 = vst [vmem:[#allocation5 + $0x70] sm:$0xff] %v6838
        %6871 = vst [vmem:[#allocation5 + $0x78] sm:$0xff] %v6839
        %6872 = vst [vmem:[#allocation5 + $0x80] sm:$0xff] %v6840
        %6873 = vst [vmem:[#allocation5 + $0x88] sm:$0xff] %v6841
        %6874 = vst [vmem:[#allocation5 + $0x90] sm:$0xff] %v6842
        %6875 = vst [vmem:[#allocation5 + $0x98] sm:$0xff] %v6843
        %6876 = vst [vmem:[#allocation5 + $0xa0] sm:$0xff] %v6844
        %6877 = vst [vmem:[#allocation5 + $0xa8] sm:$0xff] %v6845
        %6878 = vst [vmem:[#allocation5 + $0xb0] sm:$0xff] %v6846
        %6879 = vst [vmem:[#allocation5 + $0xb8] sm:$0xff] %v6847
        %6880 = vst [vmem:[#allocation5 + $0xc0] sm:$0xff] %v6848
        %6881 = vst [vmem:[#allocation5 + $0xc8] sm:$0xff] %v6849
        %6882 = vst [vmem:[#allocation5 + $0xd0] sm:$0xff] %v6850
        %6883 = vst [vmem:[#allocation5 + $0xd8] sm:$0xff] %v6851
        %6884 = vst [vmem:[#allocation5 + $0xe0] sm:$0xff] %v6852
        %6885 = vst [vmem:[#allocation5 + $0xe8] sm:$0xff] %v6853
        %6886 = vst [vmem:[#allocation5 + $0xf0] sm:$0xff] %v6854
        %6887 = vst [vmem:[#allocation5 + $0xf8] sm:$0xff] %v6855
        %v6888 = vld [vmem:[%s6147 + $0x2] sm:$0xff]
        %v6889 = vld [vmem:[%s6147 + $0xa] sm:$0xff]
        %v6890 = vld [vmem:[%s6147 + $0x1a] sm:$0xff]
        %v6891 = vld [vmem:[%s6147 + $0x22] sm:$0xff]
        %v6892 = vld [vmem:[%s6147 + $0x32] sm:$0xff]
        %v6893 = vld [vmem:[%s6147 + $0x3a] sm:$0xff]
        %v6894 = vld [vmem:[%s6147 + $0x4a] sm:$0xff]
        %v6895 = vld [vmem:[%s6147 + $0x52] sm:$0xff]
        %v6896 = vld [vmem:[%s6147 + $0x62] sm:$0xff]
        %v6897 = vld [vmem:[%s6147 + $0x6a] sm:$0xff]
        %v6898 = vld [vmem:[%s6147 + $0x7a] sm:$0xff]
        %v6899 = vld [vmem:[%s6147 + $0x82] sm:$0xff]
        %v6900 = vld [vmem:[%s6147 + $0x92] sm:$0xff]
        %v6901 = vld [vmem:[%s6147 + $0x9a] sm:$0xff]
        %v6902 = vld [vmem:[%s6147 + $0xaa] sm:$0xff]
        %v6903 = vld [vmem:[%s6147 + $0xb2] sm:$0xff]
        %v6904 = vld [vmem:[%s6147 + $0xc2] sm:$0xff]
        %v6905 = vld [vmem:[%s6147 + $0xca] sm:$0xff]
        %v6906 = vld [vmem:[%s6147 + $0xda] sm:$0xff]
        %v6907 = vld [vmem:[%s6147 + $0xe2] sm:$0xff]
        %v6908 = vld [vmem:[%s6147 + $0xf2] sm:$0xff]
        %v6909 = vld [vmem:[%s6147 + $0xfa] sm:$0xff]
        %v6910 = vld [vmem:[%s6147 + $0x10a] sm:$0xff]
        %v6911 = vld [vmem:[%s6147 + $0x112] sm:$0xff]
        %v6912 = vld [vmem:[%s6147 + $0x122] sm:$0xff]
        %v6913 = vld [vmem:[%s6147 + $0x12a] sm:$0xff]
        %v6914 = vld [vmem:[%s6147 + $0x13a] sm:$0xff]
        %v6915 = vld [vmem:[%s6147 + $0x142] sm:$0xff]
        %v6916 = vld [vmem:[%s6147 + $0x152] sm:$0xff]
        %v6917 = vld [vmem:[%s6147 + $0x15a] sm:$0xff]
        %v6918 = vld [vmem:[%s6147 + $0x16a] sm:$0xff]
        %v6919 = vld [vmem:[%s6147 + $0x172] sm:$0xff]
        %v6920 = vld [vmem:[#allocation5] sm:$0xff]
        %v6921 = vld [vmem:[#allocation5 + $0x8] sm:$0xff]
        %v6922 = vld [vmem:[#allocation5 + $0x10] sm:$0xff]
        %v6923 = vld [vmem:[#allocation5 + $0x18] sm:$0xff]
        %v6924 = vld [vmem:[#allocation5 + $0x20] sm:$0xff]
        %v6925 = vld [vmem:[#allocation5 + $0x28] sm:$0xff]
        %v6926 = vld [vmem:[#allocation5 + $0x30] sm:$0xff]
        %v6927 = vld [vmem:[#allocation5 + $0x38] sm:$0xff]
        %v6928 = vld [vmem:[#allocation5 + $0x40] sm:$0xff]
        %v6929 = vld [vmem:[#allocation5 + $0x48] sm:$0xff]
        %v6930 = vld [vmem:[#allocation5 + $0x50] sm:$0xff]
        %v6931 = vld [vmem:[#allocation5 + $0x58] sm:$0xff]
        %v6932 = vld [vmem:[#allocation5 + $0x60] sm:$0xff]
        %v6933 = vld [vmem:[#allocation5 + $0x68] sm:$0xff]
        %v6934 = vld [vmem:[#allocation5 + $0x70] sm:$0xff]
        %v6935 = vld [vmem:[#allocation5 + $0x78] sm:$0xff]
        %v6936 = vld [vmem:[#allocation5 + $0x80] sm:$0xff]
        %v6937 = vld [vmem:[#allocation5 + $0x88] sm:$0xff]
        %v6938 = vld [vmem:[#allocation5 + $0x90] sm:$0xff]
        %v6939 = vld [vmem:[#allocation5 + $0x98] sm:$0xff]
        %v6940 = vld [vmem:[#allocation5 + $0xa0] sm:$0xff]
        %v6941 = vld [vmem:[#allocation5 + $0xa8] sm:$0xff]
        %v6942 = vld [vmem:[#allocation5 + $0xb0] sm:$0xff]
        %v6943 = vld [vmem:[#allocation5 + $0xb8] sm:$0xff]
        %v6944 = vld [vmem:[#allocation5 + $0xc0] sm:$0xff]
        %v6945 = vld [vmem:[#allocation5 + $0xc8] sm:$0xff]
        %v6946 = vld [vmem:[#allocation5 + $0xd0] sm:$0xff]
        %v6947 = vld [vmem:[#allocation5 + $0xd8] sm:$0xff]
        %v6948 = vld [vmem:[#allocation5 + $0xe0] sm:$0xff]
        %v6949 = vld [vmem:[#allocation5 + $0xe8] sm:$0xff]
        %v6950 = vld [vmem:[#allocation5 + $0xf0] sm:$0xff]
        %v6951 = vld [vmem:[#allocation5 + $0xf8] sm:$0xff]
        %s6952 = scalar_lea.vmem [#allocation11], 1024
        %v6953 = vld [vmem:[%s6952] sm:$0xff]
        %v6954 = vld [vmem:[%s6952 + $0x8] sm:$0xff]
        %v6955 = vld [vmem:[%s6952 + $0x10] sm:$0xff]
        %v6956 = vld [vmem:[%s6952 + $0x18] sm:$0xff]
        %v6957 = vld [vmem:[%s6952 + $0x20] sm:$0xff]
        %v6958 = vld [vmem:[%s6952 + $0x28] sm:$0xff]
        %v6959 = vld [vmem:[%s6952 + $0x30] sm:$0xff]
        %v6960 = vld [vmem:[%s6952 + $0x38] sm:$0xff]
        %v6961 = vld [vmem:[%s6952 + $0x40] sm:$0xff]
        %v6962 = vld [vmem:[%s6952 + $0x48] sm:$0xff]
        %v6963 = vld [vmem:[%s6952 + $0x50] sm:$0xff]
        %v6964 = vld [vmem:[%s6952 + $0x58] sm:$0xff]
        %v6965 = vld [vmem:[%s6952 + $0x60] sm:$0xff]
        %v6966 = vld [vmem:[%s6952 + $0x68] sm:$0xff]
        %v6967 = vld [vmem:[%s6952 + $0x70] sm:$0xff]
        %v6968 = vld [vmem:[%s6952 + $0x78] sm:$0xff]
        %6969 = vmatprep.subr.mxu0 0.0
        %6970 = vmatpush1.msra.mxu0 %v6953
        %6971 = vmatprep.subr.mxu0 0.0
        %6972 = vmatpush1.msra.mxu0 %v6954
        %6973 = vmatprep.subr.mxu0 0.0
        %6974 = vmatpush1.msra.mxu0 %v6955
        %6975 = vmatprep.subr.mxu0 0.0
        %6976 = vmatpush1.msra.mxu0 %v6956
        %6977 = vmatprep.subr.mxu0 0.0
        %6978 = vmatpush1.msra.mxu0 %v6957
        %6979 = vmatprep.subr.mxu0 0.0
        %6980 = vmatpush1.msra.mxu0 %v6958
        %6981 = vmatprep.subr.mxu0 0.0
        %6982 = vmatpush1.msra.mxu0 %v6959
        %6983 = vmatprep.subr.mxu0 0.0
        %6984 = vmatpush1.msra.mxu0 %v6960
        %6985 = vmatprep.subr.mxu0 0.0
        %6986 = vmatpush1.msra.mxu0 %v6961
        %6987 = vmatprep.subr.mxu0 0.0
        %6988 = vmatpush1.msra.mxu0 %v6962
        %6989 = vmatprep.subr.mxu0 0.0
        %6990 = vmatpush1.msra.mxu0 %v6963
        %6991 = vmatprep.subr.mxu0 0.0
        %6992 = vmatpush1.msra.mxu0 %v6964
        %6993 = vmatprep.subr.mxu0 0.0
        %6994 = vmatpush1.msra.mxu0 %v6965
        %6995 = vmatprep.subr.mxu0 0.0
        %6996 = vmatpush1.msra.mxu0 %v6966
        %6997 = vmatprep.subr.mxu0 0.0
        %6998 = vmatpush1.msra.mxu0 %v6967
        %6999 = vmatprep.subr.mxu0 0.0
        %7000 = vmatpush1.msra.mxu0 %v6968
        %7001 = vmatprep.subr.mxu0 0.0
        %7002 = vmatpush1.msra.mxu0 0.0
        %7003 = vmatprep.subr.mxu0 0.0
        %7004 = vmatpush1.msra.mxu0 0.0
        %7005 = vmatprep.subr.mxu0 0.0
        %7006 = vmatpush1.msra.mxu0 0.0
        %7007 = vmatprep.subr.mxu0 0.0
        %7008 = vmatpush1.msra.mxu0 0.0
        %7009 = vmatprep.subr.mxu0 0.0
        %7010 = vmatpush1.msra.mxu0 0.0
        %7011 = vmatprep.subr.mxu0 0.0
        %7012 = vmatpush1.msra.mxu0 0.0
        %7013 = vmatprep.subr.mxu0 0.0
        %7014 = vmatpush1.msra.mxu0 0.0
        %7015 = vmatprep.subr.mxu0 0.0
        %7016 = vmatpush1.msra.mxu0 0.0
        %7017 = vmatprep.subr.mxu0 0.0
        %7018 = vmatpush1.msra.mxu0 0.0
        %7019 = vmatprep.subr.mxu0 0.0
        %7020 = vmatpush1.msra.mxu0 0.0
        %7021 = vmatprep.subr.mxu0 0.0
        %7022 = vmatpush1.msra.mxu0 0.0
        %7023 = vmatprep.subr.mxu0 0.0
        %7024 = vmatpush1.msra.mxu0 0.0
        %7025 = vmatprep.subr.mxu0 0.0
        %7026 = vmatpush1.msra.mxu0 0.0
        %7027 = vmatprep.subr.mxu0 0.0
        %7028 = vmatpush1.msra.mxu0 0.0
        %7029 = vmatprep.subr.mxu0 0.0
        %7030 = vmatpush1.msra.mxu0 0.0
        %7031 = vmatprep.subr.mxu0 0.0
        %7032 = vmatpush1.msra.mxu0 0.0
        %7033 = vmatprep.mubr.f32.mxu0 0.0
        %7034 = vmatmul.mubr.f32.gmra.mrb[0].mxu0 %v6888
        %v7035 = vpop.f32.mrb[0].mxu0
        %v7036 = vadd.f32 0.0, %v7035
        %v7037 = vpop.f32.mrb[0].mxu0
        %7038 = vmatprep.mubr.f32.mxu0 0.0
        %7039 = vmatmul.mubr.f32.gmra.mrb[0].mxu0 %v6889
        %v7040 = vpop.f32.mrb[0].mxu0
        %v7041 = vadd.f32 0.0, %v7040
        %v7042 = vpop.f32.mrb[0].mxu0
        %7043 = vmatprep.mubr.f32.mxu0 0.0
        %7044 = vmatmul.mubr.f32.gmra.mrb[0].mxu0 %v6890
        %v7045 = vpop.f32.mrb[0].mxu0
        %v7046 = vadd.f32 0.0, %v7045
        %v7047 = vpop.f32.mrb[0].mxu0
        %7048 = vmatprep.mubr.f32.mxu0 0.0
        %7049 = vmatmul.mubr.f32.gmra.mrb[0].mxu0 %v6891
        %v7050 = vpop.f32.mrb[0].mxu0
        %v7051 = vadd.f32 0.0, %v7050
        %v7052 = vpop.f32.mrb[0].mxu0
        %7053 = vmatprep.mubr.f32.mxu0 0.0
        %7054 = vmatmul.mubr.f32.gmra.mrb[0].mxu0 %v6892
        %v7055 = vpop.f32.mrb[0].mxu0
        %v7056 = vadd.f32 0.0, %v7055
        %v7057 = vpop.f32.mrb[0].mxu0
        %7058 = vmatprep.mubr.f32.mxu0 0.0
        %7059 = vmatmul.mubr.f32.gmra.mrb[0].mxu0 %v6893
        %v7060 = vpop.f32.mrb[0].mxu0
        %v7061 = vadd.f32 0.0, %v7060
        %v7062 = vpop.f32.mrb[0].mxu0
        %7063 = vmatprep.mubr.f32.mxu0 0.0
        %7064 = vmatmul.mubr.f32.gmra.mrb[0].mxu0 %v6894
        %v7065 = vpop.f32.mrb[0].mxu0
        %v7066 = vadd.f32 0.0, %v7065
        %v7067 = vpop.f32.mrb[0].mxu0
        %7068 = vmatprep.mubr.f32.mxu0 0.0
        %7069 = vmatmul.mubr.f32.gmra.mrb[0].mxu0 %v6895
        %v7070 = vpop.f32.mrb[0].mxu0
        %v7071 = vadd.f32 0.0, %v7070
        %v7072 = vpop.f32.mrb[0].mxu0
        %7073 = vmatprep.mubr.f32.mxu0 0.0
        %7074 = vmatmul.mubr.f32.gmra.mrb[0].mxu0 %v6896
        %v7075 = vpop.f32.mrb[0].mxu0
        %v7076 = vadd.f32 0.0, %v7075
        %v7077 = vpop.f32.mrb[0].mxu0
        %7078 = vmatprep.mubr.f32.mxu0 0.0
        %7079 = vmatmul.mubr.f32.gmra.mrb[0].mxu0 %v6897
        %v7080 = vpop.f32.mrb[0].mxu0
        %v7081 = vadd.f32 0.0, %v7080
        %v7082 = vpop.f32.mrb[0].mxu0
        %7083 = vmatprep.mubr.f32.mxu0 0.0
        %7084 = vmatmul.mubr.f32.gmra.mrb[0].mxu0 %v6898
        %v7085 = vpop.f32.mrb[0].mxu0
        %v7086 = vadd.f32 0.0, %v7085
        %v7087 = vpop.f32.mrb[0].mxu0
        %7088 = vmatprep.mubr.f32.mxu0 0.0
        %7089 = vmatmul.mubr.f32.gmra.mrb[0].mxu0 %v6899
        %v7090 = vpop.f32.mrb[0].mxu0
        %v7091 = vadd.f32 0.0, %v7090
        %v7092 = vpop.f32.mrb[0].mxu0
        %7093 = vmatprep.mubr.f32.mxu0 0.0
        %7094 = vmatmul.mubr.f32.gmra.mrb[0].mxu0 %v6900
        %v7095 = vpop.f32.mrb[0].mxu0
        %v7096 = vadd.f32 0.0, %v7095
        %v7097 = vpop.f32.mrb[0].mxu0
        %7098 = vmatprep.mubr.f32.mxu0 0.0
        %7099 = vmatmul.mubr.f32.gmra.mrb[0].mxu0 %v6901
        %v7100 = vpop.f32.mrb[0].mxu0
        %v7101 = vadd.f32 0.0, %v7100
        %v7102 = vpop.f32.mrb[0].mxu0
        %7103 = vmatprep.mubr.f32.mxu0 0.0
        %7104 = vmatmul.mubr.f32.gmra.mrb[0].mxu0 %v6902
        %v7105 = vpop.f32.mrb[0].mxu0
        %v7106 = vadd.f32 0.0, %v7105
        %v7107 = vpop.f32.mrb[0].mxu0
        %7108 = vmatprep.mubr.f32.mxu0 0.0
        %7109 = vmatmul.mubr.f32.gmra.mrb[0].mxu0 %v6903
        %v7110 = vpop.f32.mrb[0].mxu0
        %v7111 = vadd.f32 0.0, %v7110
        %v7112 = vpop.f32.mrb[0].mxu0
        %7113 = vmatprep.mubr.f32.mxu0 0.0
        %7114 = vmatmul.mubr.f32.gmra.mrb[0].mxu0 %v6904
        %v7115 = vpop.f32.mrb[0].mxu0
        %v7116 = vadd.f32 0.0, %v7115
        %v7117 = vpop.f32.mrb[0].mxu0
        %7118 = vmatprep.mubr.f32.mxu0 0.0
        %7119 = vmatmul.mubr.f32.gmra.mrb[0].mxu0 %v6905
        %v7120 = vpop.f32.mrb[0].mxu0
        %v7121 = vadd.f32 0.0, %v7120
        %v7122 = vpop.f32.mrb[0].mxu0
        %7123 = vmatprep.mubr.f32.mxu0 0.0
        %7124 = vmatmul.mubr.f32.gmra.mrb[0].mxu0 %v6906
        %v7125 = vpop.f32.mrb[0].mxu0
        %v7126 = vadd.f32 0.0, %v7125
        %v7127 = vpop.f32.mrb[0].mxu0
        %7128 = vmatprep.mubr.f32.mxu0 0.0
        %7129 = vmatmul.mubr.f32.gmra.mrb[0].mxu0 %v6907
        %v7130 = vpop.f32.mrb[0].mxu0
        %v7131 = vadd.f32 0.0, %v7130
        %v7132 = vpop.f32.mrb[0].mxu0
        %7133 = vmatprep.mubr.f32.mxu0 0.0
        %7134 = vmatmul.mubr.f32.gmra.mrb[0].mxu0 %v6908
        %v7135 = vpop.f32.mrb[0].mxu0
        %v7136 = vadd.f32 0.0, %v7135
        %v7137 = vpop.f32.mrb[0].mxu0
        %7138 = vmatprep.mubr.f32.mxu0 0.0
        %7139 = vmatmul.mubr.f32.gmra.mrb[0].mxu0 %v6909
        %v7140 = vpop.f32.mrb[0].mxu0
        %v7141 = vadd.f32 0.0, %v7140
        %v7142 = vpop.f32.mrb[0].mxu0
        %7143 = vmatprep.mubr.f32.mxu0 0.0
        %7144 = vmatmul.mubr.f32.gmra.mrb[0].mxu0 %v6910
        %v7145 = vpop.f32.mrb[0].mxu0
        %v7146 = vadd.f32 0.0, %v7145
        %v7147 = vpop.f32.mrb[0].mxu0
        %7148 = vmatprep.mubr.f32.mxu0 0.0
        %7149 = vmatmul.mubr.f32.gmra.mrb[0].mxu0 %v6911
        %v7150 = vpop.f32.mrb[0].mxu0
        %v7151 = vadd.f32 0.0, %v7150
        %v7152 = vpop.f32.mrb[0].mxu0
        %7153 = vmatprep.mubr.f32.mxu0 0.0
        %7154 = vmatmul.mubr.f32.gmra.mrb[0].mxu0 %v6912
        %v7155 = vpop.f32.mrb[0].mxu0
        %v7156 = vadd.f32 0.0, %v7155
        %v7157 = vpop.f32.mrb[0].mxu0
        %7158 = vmatprep.mubr.f32.mxu0 0.0
        %7159 = vmatmul.mubr.f32.gmra.mrb[0].mxu0 %v6913
        %v7160 = vpop.f32.mrb[0].mxu0
        %v7161 = vadd.f32 0.0, %v7160
        %v7162 = vpop.f32.mrb[0].mxu0
        %7163 = vmatprep.mubr.f32.mxu0 0.0
        %7164 = vmatmul.mubr.f32.gmra.mrb[0].mxu0 %v6914
        %v7165 = vpop.f32.mrb[0].mxu0
        %v7166 = vadd.f32 0.0, %v7165
        %v7167 = vpop.f32.mrb[0].mxu0
        %7168 = vmatprep.mubr.f32.mxu0 0.0
        %7169 = vmatmul.mubr.f32.gmra.mrb[0].mxu0 %v6915
        %v7170 = vpop.f32.mrb[0].mxu0
        %v7171 = vadd.f32 0.0, %v7170
        %v7172 = vpop.f32.mrb[0].mxu0
        %7173 = vmatprep.mubr.f32.mxu0 0.0
        %7174 = vmatmul.mubr.f32.gmra.mrb[0].mxu0 %v6916
        %v7175 = vpop.f32.mrb[0].mxu0
        %v7176 = vadd.f32 0.0, %v7175
        %v7177 = vpop.f32.mrb[0].mxu0
        %7178 = vmatprep.mubr.f32.mxu0 0.0
        %7179 = vmatmul.mubr.f32.gmra.mrb[0].mxu0 %v6917
        %v7180 = vpop.f32.mrb[0].mxu0
        %v7181 = vadd.f32 0.0, %v7180
        %v7182 = vpop.f32.mrb[0].mxu0
        %7183 = vmatprep.mubr.f32.mxu0 0.0
        %7184 = vmatmul.mubr.f32.gmra.mrb[0].mxu0 %v6918
        %v7185 = vpop.f32.mrb[0].mxu0
        %v7186 = vadd.f32 0.0, %v7185
        %v7187 = vpop.f32.mrb[0].mxu0
        %7188 = vmatprep.mubr.f32.mxu0 0.0
        %7189 = vmatmul.mubr.f32.gmra.mrb[0].mxu0 %v6919
        %v7190 = vpop.f32.mrb[0].mxu0
        %v7191 = vadd.f32 0.0, %v7190
        %v7192 = vpop.f32.mrb[0].mxu0
        %7193 = vdwg.mxu0
        %v7194 = vadd.f32 %v6920, %v7036
        %v7195 = vadd.f32 %v6921, %v7041
        %v7196 = vadd.f32 %v6922, %v7046
        %v7197 = vadd.f32 %v6923, %v7051
        %v7198 = vadd.f32 %v6924, %v7056
        %v7199 = vadd.f32 %v6925, %v7061
        %v7200 = vadd.f32 %v6926, %v7066
        %v7201 = vadd.f32 %v6927, %v7071
        %v7202 = vadd.f32 %v6928, %v7076
        %v7203 = vadd.f32 %v6929, %v7081
        %v7204 = vadd.f32 %v6930, %v7086
        %v7205 = vadd.f32 %v6931, %v7091
        %v7206 = vadd.f32 %v6932, %v7096
        %v7207 = vadd.f32 %v6933, %v7101
        %v7208 = vadd.f32 %v6934, %v7106
        %v7209 = vadd.f32 %v6935, %v7111
        %v7210 = vadd.f32 %v6936, %v7116
        %v7211 = vadd.f32 %v6937, %v7121
        %v7212 = vadd.f32 %v6938, %v7126
        %v7213 = vadd.f32 %v6939, %v7131
        %v7214 = vadd.f32 %v6940, %v7136
        %v7215 = vadd.f32 %v6941, %v7141
        %v7216 = vadd.f32 %v6942, %v7146
        %v7217 = vadd.f32 %v6943, %v7151
        %v7218 = vadd.f32 %v6944, %v7156
        %v7219 = vadd.f32 %v6945, %v7161
        %v7220 = vadd.f32 %v6946, %v7166
        %v7221 = vadd.f32 %v6947, %v7171
        %v7222 = vadd.f32 %v6948, %v7176
        %v7223 = vadd.f32 %v6949, %v7181
        %v7224 = vadd.f32 %v6950, %v7186
        %v7225 = vadd.f32 %v6951, %v7191
        %7226 = vst [vmem:[#allocation5] sm:$0xff] %v7194
        %7227 = vst [vmem:[#allocation5 + $0x8] sm:$0xff] %v7195
        %7228 = vst [vmem:[#allocation5 + $0x10] sm:$0xff] %v7196
        %7229 = vst [vmem:[#allocation5 + $0x18] sm:$0xff] %v7197
        %7230 = vst [vmem:[#allocation5 + $0x20] sm:$0xff] %v7198
        %7231 = vst [vmem:[#allocation5 + $0x28] sm:$0xff] %v7199
        %7232 = vst [vmem:[#allocation5 + $0x30] sm:$0xff] %v7200
        %7233 = vst [vmem:[#allocation5 + $0x38] sm:$0xff] %v7201
        %7234 = vst [vmem:[#allocation5 + $0x40] sm:$0xff] %v7202
        %7235 = vst [vmem:[#allocation5 + $0x48] sm:$0xff] %v7203
        %7236 = vst [vmem:[#allocation5 + $0x50] sm:$0xff] %v7204
        %7237 = vst [vmem:[#allocation5 + $0x58] sm:$0xff] %v7205
        %7238 = vst [vmem:[#allocation5 + $0x60] sm:$0xff] %v7206
        %7239 = vst [vmem:[#allocation5 + $0x68] sm:$0xff] %v7207
        %7240 = vst [vmem:[#allocation5 + $0x70] sm:$0xff] %v7208
        %7241 = vst [vmem:[#allocation5 + $0x78] sm:$0xff] %v7209
        %7242 = vst [vmem:[#allocation5 + $0x80] sm:$0xff] %v7210
        %7243 = vst [vmem:[#allocation5 + $0x88] sm:$0xff] %v7211
        %7244 = vst [vmem:[#allocation5 + $0x90] sm:$0xff] %v7212
        %7245 = vst [vmem:[#allocation5 + $0x98] sm:$0xff] %v7213
        %7246 = vst [vmem:[#allocation5 + $0xa0] sm:$0xff] %v7214
        %7247 = vst [vmem:[#allocation5 + $0xa8] sm:$0xff] %v7215
        %7248 = vst [vmem:[#allocation5 + $0xb0] sm:$0xff] %v7216
        %7249 = vst [vmem:[#allocation5 + $0xb8] sm:$0xff] %v7217
        %7250 = vst [vmem:[#allocation5 + $0xc0] sm:$0xff] %v7218
        %7251 = vst [vmem:[#allocation5 + $0xc8] sm:$0xff] %v7219
        %7252 = vst [vmem:[#allocation5 + $0xd0] sm:$0xff] %v7220
        %7253 = vst [vmem:[#allocation5 + $0xd8] sm:$0xff] %v7221
        %7254 = vst [vmem:[#allocation5 + $0xe0] sm:$0xff] %v7222
        %7255 = vst [vmem:[#allocation5 + $0xe8] sm:$0xff] %v7223
        %7256 = vst [vmem:[#allocation5 + $0xf0] sm:$0xff] %v7224
        %7257 = vst [vmem:[#allocation5 + $0xf8] sm:$0xff] %v7225
        %v7258 = vld [vmem:[#allocation5] sm:$0xff]
        %v7259 = vld [vmem:[#allocation5 + $0x8] sm:$0xff]
        %v7260 = vld [vmem:[#allocation5 + $0x10] sm:$0xff]
        %v7261 = vld [vmem:[#allocation5 + $0x18] sm:$0xff]
        %v7262 = vld [vmem:[#allocation5 + $0x20] sm:$0xff]
        %v7263 = vld [vmem:[#allocation5 + $0x28] sm:$0xff]
        %v7264 = vld [vmem:[#allocation5 + $0x30] sm:$0xff]
        %v7265 = vld [vmem:[#allocation5 + $0x38] sm:$0xff]
        %v7266 = vld [vmem:[#allocation5 + $0x40] sm:$0xff]
        %v7267 = vld [vmem:[#allocation5 + $0x48] sm:$0xff]
        %v7268 = vld [vmem:[#allocation5 + $0x50] sm:$0xff]
        %v7269 = vld [vmem:[#allocation5 + $0x58] sm:$0xff]
        %v7270 = vld [vmem:[#allocation5 + $0x60] sm:$0xff]
        %v7271 = vld [vmem:[#allocation5 + $0x68] sm:$0xff]
        %v7272 = vld [vmem:[#allocation5 + $0x70] sm:$0xff]
        %v7273 = vld [vmem:[#allocation5 + $0x78] sm:$0xff]
        %v7274 = vld [vmem:[#allocation5 + $0x80] sm:$0xff]
        %v7275 = vld [vmem:[#allocation5 + $0x88] sm:$0xff]
        %v7276 = vld [vmem:[#allocation5 + $0x90] sm:$0xff]
        %v7277 = vld [vmem:[#allocation5 + $0x98] sm:$0xff]
        %v7278 = vld [vmem:[#allocation5 + $0xa0] sm:$0xff]
        %v7279 = vld [vmem:[#allocation5 + $0xa8] sm:$0xff]
        %v7280 = vld [vmem:[#allocation5 + $0xb0] sm:$0xff]
        %v7281 = vld [vmem:[#allocation5 + $0xb8] sm:$0xff]
        %v7282 = vld [vmem:[#allocation5 + $0xc0] sm:$0xff]
        %v7283 = vld [vmem:[#allocation5 + $0xc8] sm:$0xff]
        %v7284 = vld [vmem:[#allocation5 + $0xd0] sm:$0xff]
        %v7285 = vld [vmem:[#allocation5 + $0xd8] sm:$0xff]
        %v7286 = vld [vmem:[#allocation5 + $0xe0] sm:$0xff]
        %v7287 = vld [vmem:[#allocation5 + $0xe8] sm:$0xff]
        %v7288 = vld [vmem:[#allocation5 + $0xf0] sm:$0xff]
        %v7289 = vld [vmem:[#allocation5 + $0xf8] sm:$0xff]
        %v7290 = vmax.f32 %v7258, 0.0
        %v7291 = vmax.f32 %v7259, 0.0
        %v7292 = vmax.f32 %v7260, 0.0
        %v7293 = vmax.f32 %v7261, 0.0
        %v7294 = vmax.f32 %v7262, 0.0
        %v7295 = vmax.f32 %v7263, 0.0
        %v7296 = vmax.f32 %v7264, 0.0
        %v7297 = vmax.f32 %v7265, 0.0
        %v7298 = vmax.f32 %v7266, 0.0
        %v7299 = vmax.f32 %v7267, 0.0
        %v7300 = vmax.f32 %v7268, 0.0
        %v7301 = vmax.f32 %v7269, 0.0
        %v7302 = vmax.f32 %v7270, 0.0
        %v7303 = vmax.f32 %v7271, 0.0
        %v7304 = vmax.f32 %v7272, 0.0
        %v7305 = vmax.f32 %v7273, 0.0
        %v7306 = vmax.f32 %v7274, 0.0
        %v7307 = vmax.f32 %v7275, 0.0
        %v7308 = vmax.f32 %v7276, 0.0
        %v7309 = vmax.f32 %v7277, 0.0
        %v7310 = vmax.f32 %v7278, 0.0
        %v7311 = vmax.f32 %v7279, 0.0
        %v7312 = vmax.f32 %v7280, 0.0
        %v7313 = vmax.f32 %v7281, 0.0
        %v7314 = vmax.f32 %v7282, 0.0
        %v7315 = vmax.f32 %v7283, 0.0
        %v7316 = vmax.f32 %v7284, 0.0
        %v7317 = vmax.f32 %v7285, 0.0
        %v7318 = vmax.f32 %v7286, 0.0
        %v7319 = vmax.f32 %v7287, 0.0
        %v7320 = vmax.f32 %v7288, 0.0
        %v7321 = vmax.f32 %v7289, 0.0
        %7322 = vst [vmem:[%s271] sm:$0xff] %v7290
        %7323 = vst [vmem:[%s271 + $0x8] sm:$0xff] %v7291
        %7324 = vst [vmem:[%s271 + $0x10] sm:$0xff] %v7292
        %7325 = vst [vmem:[%s271 + $0x18] sm:$0xff] %v7293
        %7326 = vst [vmem:[%s271 + $0x20] sm:$0xff] %v7294
        %7327 = vst [vmem:[%s271 + $0x28] sm:$0xff] %v7295
        %7328 = vst [vmem:[%s271 + $0x30] sm:$0xff] %v7296
        %7329 = vst [vmem:[%s271 + $0x38] sm:$0xff] %v7297
        %7330 = vst [vmem:[%s271 + $0x40] sm:$0xff] %v7298
        %7331 = vst [vmem:[%s271 + $0x48] sm:$0xff] %v7299
        %7332 = vst [vmem:[%s271 + $0x50] sm:$0xff] %v7300
        %7333 = vst [vmem:[%s271 + $0x58] sm:$0xff] %v7301
        %7334 = vst [vmem:[%s271 + $0x60] sm:$0xff] %v7302
        %7335 = vst [vmem:[%s271 + $0x68] sm:$0xff] %v7303
        %7336 = vst [vmem:[%s271 + $0x70] sm:$0xff] %v7304
        %7337 = vst [vmem:[%s271 + $0x78] sm:$0xff] %v7305
        %7338 = vst [vmem:[%s271 + $0x80] sm:$0xff] %v7306
        %7339 = vst [vmem:[%s271 + $0x88] sm:$0xff] %v7307
        %7340 = vst [vmem:[%s271 + $0x90] sm:$0xff] %v7308
        %7341 = vst [vmem:[%s271 + $0x98] sm:$0xff] %v7309
        %7342 = vst [vmem:[%s271 + $0xa0] sm:$0xff] %v7310
        %7343 = vst [vmem:[%s271 + $0xa8] sm:$0xff] %v7311
        %7344 = vst [vmem:[%s271 + $0xb0] sm:$0xff] %v7312
        %7345 = vst [vmem:[%s271 + $0xb8] sm:$0xff] %v7313
        %7346 = vst [vmem:[%s271 + $0xc0] sm:$0xff] %v7314
        %7347 = vst [vmem:[%s271 + $0xc8] sm:$0xff] %v7315
        %7348 = vst [vmem:[%s271 + $0xd0] sm:$0xff] %v7316
        %7349 = vst [vmem:[%s271 + $0xd8] sm:$0xff] %v7317
        %7350 = vst [vmem:[%s271 + $0xe0] sm:$0xff] %v7318
        %7351 = vst [vmem:[%s271 + $0xe8] sm:$0xff] %v7319
        %7352 = vst [vmem:[%s271 + $0xf0] sm:$0xff] %v7320
        %7353 = vst [vmem:[%s271 + $0xf8] sm:$0xff] %v7321
        %s7354 = sand.u32 %s141, 1
        %s7355 = scalar_lea.sflag [#allocation8], %s7354
        %s7356 = sand.u32 %s141, 1
        %s7357 = smul.addr %s7356, 256
        %s7358 = scalar_lea.vmem [#allocation12], %s7357
        // Predicated region
        $region53: #{tpu_custom_call.1} parent=39 // pred_check
          %p7359 = pneg %p151
        $region54: #{tpu_custom_call.1} parent=39 // pred_check_branch
          %7361 = sbr.rel (%p7359) target = $region56
        $region55: #{tpu_custom_call.1} parent=39 // pred_region
          %s7363 = ssub.s32 4096, 4096
          %7364 = vsyncadd %s7355, %s7363
          %s7365 = smul.addr %s23, 32
          %s7366 = smul.addr %s7365, 128
          %s7367 = scalar_lea.hbm %s5, %s7366
          %s7368 = sshll.u32 %s7358, 4
          %s7369 = int_to_ptr.vmem [resolvable:$true] %s7368
          %7374 = dma.vmem_to_hbm [thread:$0]  %s7369, 4096, %s7367, %s7355, 128, 128, 8
        $region56: #{tpu_custom_call.1} parent=39 // pred_fallthru
          _
      $region40: #{tpu_custom_call.1} parent=5 // pred_fallthru
        _
      %p7375 = scmp.le.s32.totalorder 2, %s18
      // Predicated region
      $region57: #{tpu_custom_call.1} parent=5 // pred_check
        %p7376 = pneg %p7375
      $region58: #{tpu_custom_call.1} parent=5 // pred_check_branch
        %7378 = sbr.rel (%p7376) target = $region60
      $region59: #{tpu_custom_call.1} parent=5 // pred_region
        %s7379 = ssub.s32 %s18, 2
        // Predicated region
        $region61: #{tpu_custom_call.1} parent=59 // pred_check
          %p7380 = pneg %p157
        $region62: #{tpu_custom_call.1} parent=59 // pred_check_branch
          %7382 = sbr.rel (%p7380) target = $region64
        $region63: #{tpu_custom_call.1} parent=59 // pred_region
          %s7383 = sand.u32 %s142, 1
          %s7384 = scalar_lea.sflag [#allocation8], %s7383
          %s7385 = sand.u32 %s142, 1
          %s7386 = smul.addr %s7385, 256
          %s7387 = scalar_lea.vmem [#allocation12], %s7386
          %7388 = dma.done %s7384, 4096
        $region64: #{tpu_custom_call.1} parent=59 // pred_fallthru
          _
      $region60: #{tpu_custom_call.1} parent=5 // pred_fallthru
        _
    $region6: #{tpu_custom_call.1} parent=1 // loop_footer
      %s22 = sadd.s32 1, %s18
    $region7: #{tpu_custom_call.1} parent=1 // loop_footer_branch
      %17 = sbr.rel target = $region3
    $region8: #{tpu_custom_call.1} parent=1 // loop_exit
      _
    %7389 = vsyncpa [#allocation7], 1
    %s7390 = scalar_lea.sflag [#allocation7], 1
    %7391 = vsyncpa %s7390, 1
    %7392 = vsyncpa [#allocation10], 1
    %7393 = vsyncpa [#allocation8], 1
    %s7394 = scalar_lea.sflag [#allocation8], 1
    %7395 = vsyncpa %s7394, 1

</llo_original>
